<compile_context>
chip_gen: v7x
topology: tpu7x:2x2x1
jax: 0.10.0
libtpu: 0.0.40
codegen_flags: <defaults>
</compile_context>

<pallas_src>
import functools

import jax
import jax.numpy as jnp
from jax import lax
from jax.experimental import pallas as pl
from jax.experimental.pallas import tpu as pltpu

BN_EPS = 1e-5


# --------------------------------------------------------------------------------------
# Pallas kernels
# --------------------------------------------------------------------------------------

def _dense_bn_relu_kernel(x_ref, w_ref, scale_ref, shift_ref, o_ref):
    # x: (N, Cin) bf16, w: (Cin, F) bf16, scale/shift: (1, F) f32, o: (N, F) f32
    y = jnp.dot(x_ref[...], w_ref[...], preferred_element_type=jnp.float32)
    y = y * scale_ref[...] + shift_ref[...]
    o_ref[...] = jnp.maximum(y, 0.0).astype(o_ref.dtype)


def dense_bn_relu(x, w, scale, shift):
    """Fused (N,Cin)@(Cin,F) bf16 matmul + per-column affine + ReLU (f32 accumulate)."""
    N, Cin = x.shape
    F = w.shape[1]
    cost = pl.CostEstimate(flops=2 * N * Cin * F, transcendentals=0,
                           bytes_accessed=N * Cin * 2 + Cin * F * 2 + 2 * F * 4 + N * F * 4)
    return pl.pallas_call(
        _dense_bn_relu_kernel,
        out_shape=jax.ShapeDtypeStruct((N, F), jnp.float32),
        grid=(1,),
        in_specs=[
            pl.BlockSpec((N, Cin), lambda i: (0, 0)),
            pl.BlockSpec((Cin, F), lambda i: (0, 0)),
            pl.BlockSpec((1, F), lambda i: (0, 0)),
            pl.BlockSpec((1, F), lambda i: (0, 0)),
        ],
        out_specs=pl.BlockSpec((N, F), lambda i: (0, 0)),
        cost_estimate=cost,
    )(x.astype(jnp.bfloat16), w.astype(jnp.bfloat16),
      scale.reshape(1, F).astype(jnp.float32), shift.reshape(1, F).astype(jnp.float32))


def _deconv_phase_kernel(x_ref, w_ref, scale_ref, shift_ref, o_ref, *, Wp, act):
    # x_ref:     (1, Lp, Cin)      f32  halo-padded, row-flattened input (one batch element)
    # w_ref:     (4, 4, Cin, Cout) bf16 sub-pixel weights [phase = ry*2+rx, tap = dy*2+dx]
    # scale_ref: (1, Cout)         f32  folded BN scale
    # shift_ref: (1, Cout)         f32  folded BN shift (includes conv bias)
    # o_ref:     (1, 4, Lo, Cout)  f32  per-phase flattened output, Lo = H*Wp
    #                                   (columns qx >= W of each row are garbage, dropped in glue)
    Lo = o_ref.shape[2]
    for ry in range(2):
        for rx in range(2):
            acc = jnp.zeros((Lo, o_ref.shape[3]), jnp.float32)
            for dy in range(2):
                for dx in range(2):
                    start = (ry + dy) * Wp + (rx + dx)            # static offset
                    lhs = x_ref[0, start:start + Lo, :].astype(jnp.bfloat16)
                    acc = acc + jnp.dot(lhs, w_ref[ry * 2 + rx, dy * 2 + dx],
                                        preferred_element_type=jnp.float32)
            y = acc * scale_ref[...] + shift_ref[...]
            y = jnp.maximum(y, 0.0) if act == "relu" else jnp.tanh(y)
            o_ref[0, ry * 2 + rx] = y.astype(o_ref.dtype)


def conv_transpose_s2p1_act(x, w_t, scale, shift, act):
    """ConvTranspose2d(kernel=4, stride=2, padding=1) + per-channel affine + activation.

    x: (N, H, W, Cin) NHWC f32.  w_t: (Cin, Cout, 4, 4) (PyTorch ConvTranspose2d layout).
    Returns (N, 2H, 2W, Cout) f32.
    """
    N, H, W, Cin = x.shape
    Cout = w_t.shape[1]
    Hp, Wp = H + 2, W + 2
    Lo = H * Wp
    # glue: 1-pixel halo pad + row-flatten; small tail pad keeps every tap slice in bounds.
    xp = jnp.pad(x, ((0, 0), (1, 1), (1, 1), (0, 0)))
    xf = jnp.pad(xp.reshape(N, Hp * Wp, Cin), ((0, 0), (0, 8), (0, 0)))
    Lp = Hp * Wp + 8
    # sub-pixel weights: phase (ry, rx), tap (dy, dx) uses kernel element ((3-ry)-2dy, (3-rx)-2dx).
    taps = []
    for ry in range(2):
        for rx in range(2):
            for dy in range(2):
                for dx in range(2):
                    taps.append(w_t[:, :, (3 - ry) - 2 * dy, (3 - rx) - 2 * dx])
    wp = jnp.stack(taps, 0).reshape(4, 4, Cin, Cout).astype(jnp.bfloat16)

    kern = functools.partial(_deconv_phase_kernel, Wp=Wp, act=act)
    cost = pl.CostEstimate(
        flops=2 * N * 16 * Lo * Cin * Cout,
        transcendentals=(4 * N * Lo * Cout) if act == "tanh" else 0,
        bytes_accessed=N * Lp * Cin * 4 + 16 * Cin * Cout * 2 + 4 * N * Lo * Cout * 4)
    out_flat = pl.pallas_call(
        kern,
        out_shape=jax.ShapeDtypeStruct((N, 4, Lo, Cout), jnp.float32),
        grid=(N,),
        in_specs=[
            pl.BlockSpec((1, Lp, Cin), lambda n: (n, 0, 0)),
            pl.BlockSpec((4, 4, Cin, Cout), lambda n: (0, 0, 0, 0)),   # grid-invariant weight
            pl.BlockSpec((1, Cout), lambda n: (0, 0)),
            pl.BlockSpec((1, Cout), lambda n: (0, 0)),
        ],
        out_specs=pl.BlockSpec((1, 4, Lo, Cout), lambda n: (n, 0, 0, 0)),
        compiler_params=pltpu.CompilerParams(dimension_semantics=("parallel",)),
        cost_estimate=cost,
    )(xf, wp, scale.reshape(1, Cout).astype(jnp.float32),
      shift.reshape(1, Cout).astype(jnp.float32))
    # reassemble the 4 output phases and drop the 2 garbage columns per row.
    out = out_flat.reshape(N, 2, 2, H, Wp, Cout)[:, :, :, :, :W, :]
    return jnp.transpose(out, (0, 3, 1, 4, 2, 5)).reshape(N, 2 * H, 2 * W, Cout)


# --------------------------------------------------------------------------------------
# Generator forward (Pallas)
# --------------------------------------------------------------------------------------

def _fold_bn(gamma, beta, mean, var, conv_bias):
    s = gamma / jnp.sqrt(var + BN_EPS)
    return s, beta - mean * s + conv_bias * s


def generator_forward(params, z, label, d, C):
    """z: (N,100,1,1), label: (N,10,1,1) NCHW (like PyTorch). Returns (N,C,32,32) NCHW."""
    N = z.shape[0]
    K = 4

    # --- layer 1: two ConvTranspose2d(k=4,s=1,p=0) on 1x1 inputs are dense matmuls; fuse both
    #     branches and the channel concat into ONE matmul with a block-structured weight.
    w1a, w1b = params["w1_1"], params["w1_2"]                  # (100,2d,4,4), (10,2d,4,4)
    Co = w1a.shape[1]
    w1at = jnp.transpose(w1a, (0, 2, 3, 1))                    # (100,4,4,2d) cols = (ky,kx,co)
    w1bt = jnp.transpose(w1b, (0, 2, 3, 1))                    # (10,4,4,2d)
    top = jnp.concatenate([w1at, jnp.zeros_like(w1at)], axis=-1)
    bot = jnp.concatenate([jnp.zeros_like(w1bt), w1bt], axis=-1)
    w_fused = jnp.concatenate([top, bot], axis=0).reshape(110, K * K * 2 * Co)

    s1a, sh1a = _fold_bn(params["g1_1"], params["be1_1"], params["m1_1"], params["v1_1"], params["b1_1"])
    s1b, sh1b = _fold_bn(params["g1_2"], params["be1_2"], params["m1_2"], params["v1_2"], params["b1_2"])
    s1 = jnp.tile(jnp.concatenate([s1a, s1b]), K * K)
    sh1 = jnp.tile(jnp.concatenate([sh1a, sh1b]), K * K)

    zin = jnp.concatenate([z.reshape(N, 100), label.reshape(N, 10)], axis=1)
    h = dense_bn_relu(zin, w_fused, s1, sh1).reshape(N, 4, 4, 2 * Co)   # (N,4,4,4d)

    s2, sh2 = _fold_bn(params["g2"], params["be2"], params["m2"], params["v2"], params["b2"])
    h = conv_transpose_s2p1_act(h, params["w2"], s2, sh2, act="relu")   # (N,8,8,2d)

    s3, sh3 = _fold_bn(params["g3"], params["be3"], params["m3"], params["v3"], params["b3"])
    h = conv_transpose_s2p1_act(h, params["w3"], s3, sh3, act="relu")   # (N,16,16,d)

    # layer 4: zero-pad Cout (3) up to 128 so the kernel's output stores are lane-dense.
    CPAD = 128
    w4 = jnp.pad(params["w4"], ((0, 0), (0, CPAD - C), (0, 0), (0, 0)))
    b4 = jnp.pad(params["b4"], (0, CPAD - C))
    h = conv_transpose_s2p1_act(h, w4, jnp.ones((CPAD,), jnp.float32), b4, act="tanh")
    h = h[:, :, :, :C]                                                  # (N,32,32,C)
    return jnp.transpose(h, (0, 3, 1, 2))                               # NCHW


# --------------------------------------------------------------------------------------
# Pure-JAX reference (XLA conv, f32) for validation
# --------------------------------------------------------------------------------------

def reference_forward(params, z, label):
    def deconv(x, w, b, stride, pad):
        Cin, Cout, K, _ = w.shape
        rhs = jnp.transpose(w[:, :, ::-1, ::-1], (1, 0, 2, 3))   # OIHW, flipped
        pp = K - 1 - pad
        y = lax.conv_general_dilated(x, rhs, (1, 1), ((pp, pp), (pp, pp)),
                                     lhs_dilation=(stride, stride),
                                     dimension_numbers=("NCHW", "OIHW", "NCHW"))
        return y + b.reshape(1, -1, 1, 1)

    def bn(x, g, be, m, v):
        r = lambda a: a.reshape(1, -1, 1, 1)
        return (x - r(m)) / jnp.sqrt(r(v) + BN_EPS) * r(g) + r(be)

    x = jax.nn.relu(bn(deconv(z, params["w1_1"], params["b1_1"], 1, 0),
                       params["g1_1"], params["be1_1"], params["m1_1"], params["v1_1"]))
    y = jax.nn.relu(bn(deconv(label, params["w1_2"], params["b1_2"], 1, 0),
                       params["g1_2"], params["be1_2"], params["m1_2"], params["v1_2"]))
    h = jnp.concatenate([x, y], axis=1)
    h = jax.nn.relu(bn(deconv(h, params["w2"], params["b2"], 2, 1),
                       params["g2"], params["be2"], params["m2"], params["v2"]))
    h = jax.nn.relu(bn(deconv(h, params["w3"], params["b3"], 2, 1),
                       params["g3"], params["be3"], params["m3"], params["v3"]))
    return jnp.tanh(deconv(h, params["w4"], params["b4"], 2, 1))


# --------------------------------------------------------------------------------------
# Deterministic parameter init (shapes from Generator.__init__; small d for the demo)
# --------------------------------------------------------------------------------------

def init_params(key, d, C):
    ks = iter(jax.random.split(key, 30))
    nrm = lambda shape, std=0.02: std * jax.random.normal(next(ks), shape, dtype=jnp.float32)
    p = {}
    # ConvTranspose2d weight layout: (in_channels, out_channels, kH, kW)
    p["w1_1"], p["b1_1"] = nrm((100, 2 * d, 4, 4)), nrm((2 * d,))
    p["w1_2"], p["b1_2"] = nrm((10, 2 * d, 4, 4)), nrm((2 * d,))
    p["w2"], p["b2"] = nrm((4 * d, 2 * d, 4, 4)), nrm((2 * d,))
    p["w3"], p["b3"] = nrm((2 * d, d, 4, 4)), nrm((d,))
    p["w4"], p["b4"] = nrm((d, C, 4, 4)), nrm((C,))
    for name, c in (("1_1", 2 * d), ("1_2", 2 * d), ("2", 2 * d), ("3", d)):
        p["g" + name] = 1.0 + nrm((c,))
        p["be" + name] = nrm((c,))
        p["m" + name] = nrm((c,), std=0.1)
        p["v" + name] = 0.5 + jax.random.uniform(next(ks), (c,), dtype=jnp.float32)
    return p


if __name__ == "__main__":
    d, C, N = 16, 3, 2          # d scaled down from 128 for the demo; C (global in the repo) = 3
    key = jax.random.PRNGKey(0)
    kp, kz, kl = jax.random.split(key, 3)
    params = init_params(kp, d, C)

    z = jax.random.normal(kz, (N, 100, 1, 1), dtype=jnp.float32)
    label_idx = jax.random.randint(kl, (N,), 0, 10)
    label = jax.nn.one_hot(label_idx, 10, dtype=jnp.float32).reshape(N, 10, 1, 1)

    fwd = jax.jit(functools.partial(generator_forward, d=d, C=C))
    out = jax.block_until_ready(fwd(params, z, label))
    assert out.shape == (N, C, 32, 32), out.shape

    ref = jax.block_until_ready(reference_forward(params, z, label))
    max_err = float(jnp.max(jnp.abs(out - ref)))
    # bf16 MXU operands (f32 accumulation) -> tolerance loosened vs the pure-f32 version.
    assert jnp.allclose(out, ref, atol=1e-2), f"max_err={max_err}"

    print("KERNEL_OK")
</pallas_src>

<mosaic_0001>
module attributes {stable_mosaic.version = 11 : i64} {
  func.func @_dense_bn_relu_kernel(%arg0: i32, %arg1: memref<2x110xbf16, #tpu.memory_space<vmem>>, %arg2: memref<110x1024xbf16, #tpu.memory_space<vmem>>, %arg3: memref<1x1024xf32, #tpu.memory_space<vmem>>, %arg4: memref<1x1024xf32, #tpu.memory_space<vmem>>, %arg5: memref<2x1024xf32, #tpu.memory_space<vmem>>) attributes {dimension_semantics = [#tpu.dimension_semantics<arbitrary>], iteration_bounds = array<i64: 1>, scalar_prefetch = 0 : i64, scratch_operands = 0 : i64, tpu.core_type = #tpu.core_type<tc>, window_params = [{pipeline_mode = #tpu.pipeline_mode<synchronous>, transform_indices = @transform_0, window_bounds = array<i64: 2, 110>}, {pipeline_mode = #tpu.pipeline_mode<synchronous>, transform_indices = @transform_1, window_bounds = array<i64: 110, 1024>}, {pipeline_mode = #tpu.pipeline_mode<synchronous>, transform_indices = @transform_2, window_bounds = array<i64: 1, 1024>}, {pipeline_mode = #tpu.pipeline_mode<synchronous>, transform_indices = @transform_3, window_bounds = array<i64: 1, 1024>}, {pipeline_mode = #tpu.pipeline_mode<synchronous>, transform_indices = @transform_4, window_bounds = array<i64: 2, 1024>}]} {
    %c0 = arith.constant 0 : index
    %c0_0 = arith.constant 0 : index
    %0 = vector.load %arg1[%c0, %c0_0] : memref<2x110xbf16, #tpu.memory_space<vmem>>, vector<2x110xbf16>
    %c0_1 = arith.constant 0 : index
    %c0_2 = arith.constant 0 : index
    %1 = vector.load %arg2[%c0_1, %c0_2] : memref<110x1024xbf16, #tpu.memory_space<vmem>>, vector<110x1024xbf16>
    %cst = arith.constant dense<0.000000e+00> : vector<2x1024xf32>
    %2 = tpu.matmul %0, %1, %cst {dimension_numbers = #tpu.dot_dimension_numbers<[1], [0], [0], [1], [0, 0, 1, 1], [], []>} : vector<2x110xbf16>, vector<110x1024xbf16>, vector<2x1024xf32> -> vector<2x1024xf32>
    %c0_3 = arith.constant 0 : index
    %c0_4 = arith.constant 0 : index
    %3 = vector.load %arg3[%c0_3, %c0_4] : memref<1x1024xf32, #tpu.memory_space<vmem>>, vector<1x1024xf32>
    %4 = vector.broadcast %3 : vector<1x1024xf32> to vector<2x1024xf32>
    %5 = arith.mulf %2, %4 : vector<2x1024xf32>
    %c0_5 = arith.constant 0 : index
    %c0_6 = arith.constant 0 : index
    %6 = vector.load %arg4[%c0_5, %c0_6] : memref<1x1024xf32, #tpu.memory_space<vmem>>, vector<1x1024xf32>
    %7 = vector.broadcast %6 : vector<1x1024xf32> to vector<2x1024xf32>
    %8 = arith.addf %5, %7 : vector<2x1024xf32>
    %cst_7 = arith.constant 0.000000e+00 : f32
    %9 = vector.broadcast %cst_7 : f32 to vector<2x1024xf32>
    %10 = arith.maximumf %8, %9 : vector<2x1024xf32>
    %c0_8 = arith.constant 0 : index
    %c0_9 = arith.constant 0 : index
    %11 = vector.load %arg5[%c0_8, %c0_9] : memref<2x1024xf32, #tpu.memory_space<vmem>>, vector<2x1024xf32>
    tpu.vector_store %arg5[%c0_8, %c0_9], %10 {strides = array<i32>} : memref<2x1024xf32, #tpu.memory_space<vmem>>, vector<2x1024xf32>,
    return
  }
  func.func @transform_0(%arg0: i32) -> (i32, i32) {
    %c0_i32 = arith.constant 0 : i32
    %c0_i32_0 = arith.constant 0 : i32
    %c0_i32_1 = arith.constant 0 : i32
    return %c0_i32, %c0_i32_0 : i32, i32
  }
  func.func @transform_1(%arg0: i32) -> (i32, i32) {
    %c0_i32 = arith.constant 0 : i32
    %c0_i32_0 = arith.constant 0 : i32
    %c0_i32_1 = arith.constant 0 : i32
    return %c0_i32, %c0_i32_0 : i32, i32
  }
  func.func @transform_2(%arg0: i32) -> (i32, i32) {
    %c0_i32 = arith.constant 0 : i32
    %c0_i32_0 = arith.constant 0 : i32
    %c0_i32_1 = arith.constant 0 : i32
    return %c0_i32, %c0_i32_0 : i32, i32
  }
  func.func @transform_3(%arg0: i32) -> (i32, i32) {
    %c0_i32 = arith.constant 0 : i32
    %c0_i32_0 = arith.constant 0 : i32
    %c0_i32_1 = arith.constant 0 : i32
    return %c0_i32, %c0_i32_0 : i32, i32
  }
  func.func @transform_4(%arg0: i32) -> (i32, i32) {
    %c0_i32 = arith.constant 0 : i32
    %c0_i32_0 = arith.constant 0 : i32
    %c0_i32_1 = arith.constant 0 : i32
    return %c0_i32, %c0_i32_0 : i32, i32
  }
}

module attributes {stable_mosaic.version = 11 : i64} {
  func.func @_deconv_phase_kernel(%arg0: i32, %arg1: memref<1x44x64xf32, #tpu.memory_space<vmem>>, %arg2: memref<4x4x64x32xbf16, #tpu.memory_space<vmem>>, %arg3: memref<1x32xf32, #tpu.memory_space<vmem>>, %arg4: memref<1x32xf32, #tpu.memory_space<vmem>>, %arg5: memref<1x4x24x32xf32, #tpu.memory_space<vmem>>) attributes {dimension_semantics = [#tpu.dimension_semantics<parallel>], iteration_bounds = array<i64: 2>, scalar_prefetch = 0 : i64, scratch_operands = 0 : i64, tpu.core_type = #tpu.core_type<tc>, window_params = [{transform_indices = @transform_0, window_bounds = array<i64: 1, 44, 64>}, {pipeline_mode = #tpu.pipeline_mode<synchronous>, transform_indices = @transform_1, window_bounds = array<i64: 4, 4, 64, 32>}, {pipeline_mode = #tpu.pipeline_mode<synchronous>, transform_indices = @transform_2, window_bounds = array<i64: 1, 32>}, {pipeline_mode = #tpu.pipeline_mode<synchronous>, transform_indices = @transform_3, window_bounds = array<i64: 1, 32>}, {transform_indices = @transform_4, window_bounds = array<i64: 1, 4, 24, 32>}]} {
    %cst = arith.constant 0.000000e+00 : f32
    %0 = vector.broadcast %cst : f32 to vector<24x32xf32>
    %c0 = arith.constant 0 : index
    %c0_0 = arith.constant 0 : index
    %c0_1 = arith.constant 0 : index
    %1 = vector.load %arg1[%c0, %c0_0, %c0_1] : memref<1x44x64xf32, #tpu.memory_space<vmem>>, vector<1x24x64xf32>
    %2 = vector.shape_cast %1 : vector<1x24x64xf32> to vector<24x64xf32>
    %3 = arith.truncf %2 : vector<24x64xf32> to vector<24x64xbf16>
    %c0_2 = arith.constant 0 : index
    %c0_3 = arith.constant 0 : index
    %c0_4 = arith.constant 0 : index
    %c0_5 = arith.constant 0 : index
    %4 = vector.load %arg2[%c0_2, %c0_3, %c0_4, %c0_5] : memref<4x4x64x32xbf16, #tpu.memory_space<vmem>>, vector<1x1x64x32xbf16>
    %5 = vector.shape_cast %4 : vector<1x1x64x32xbf16> to vector<64x32xbf16>
    %cst_6 = arith.constant dense<0.000000e+00> : vector<24x32xf32>
    %6 = tpu.matmul %3, %5, %cst_6 {dimension_numbers = #tpu.dot_dimension_numbers<[1], [0], [0], [1], [0, 0, 1, 1], [], []>} : vector<24x64xbf16>, vector<64x32xbf16>, vector<24x32xf32> -> vector<24x32xf32>
    %7 = arith.addf %0, %6 : vector<24x32xf32>
    %c0_7 = arith.constant 0 : index
    %c1 = arith.constant 1 : index
    %c0_8 = arith.constant 0 : index
    %8 = vector.load %arg1[%c0_7, %c1, %c0_8] : memref<1x44x64xf32, #tpu.memory_space<vmem>>, vector<1x24x64xf32>
    %9 = vector.shape_cast %8 : vector<1x24x64xf32> to vector<24x64xf32>
    %10 = arith.truncf %9 : vector<24x64xf32> to vector<24x64xbf16>
    %c0_9 = arith.constant 0 : index
    %c1_10 = arith.constant 1 : index
    %c0_11 = arith.constant 0 : index
    %c0_12 = arith.constant 0 : index
    %11 = vector.load %arg2[%c0_9, %c1_10, %c0_11, %c0_12] : memref<4x4x64x32xbf16, #tpu.memory_space<vmem>>, vector<1x1x64x32xbf16>
    %12 = vector.shape_cast %11 : vector<1x1x64x32xbf16> to vector<64x32xbf16>
    %cst_13 = arith.constant dense<0.000000e+00> : vector<24x32xf32>
    %13 = tpu.matmul %10, %12, %cst_13 {dimension_numbers = #tpu.dot_dimension_numbers<[1], [0], [0], [1], [0, 0, 1, 1], [], []>} : vector<24x64xbf16>, vector<64x32xbf16>, vector<24x32xf32> -> vector<24x32xf32>
    %14 = arith.addf %7, %13 : vector<24x32xf32>
    %c0_14 = arith.constant 0 : index
    %c6 = arith.constant 6 : index
    %c0_15 = arith.constant 0 : index
    %15 = vector.load %arg1[%c0_14, %c6, %c0_15] : memref<1x44x64xf32, #tpu.memory_space<vmem>>, vector<1x24x64xf32>
    %16 = vector.shape_cast %15 : vector<1x24x64xf32> to vector<24x64xf32>
    %17 = arith.truncf %16 : vector<24x64xf32> to vector<24x64xbf16>
    %c0_16 = arith.constant 0 : index
    %c2 = arith.constant 2 : index
    %c0_17 = arith.constant 0 : index
    %c0_18 = arith.constant 0 : index
    %18 = vector.load %arg2[%c0_16, %c2, %c0_17, %c0_18] : memref<4x4x64x32xbf16, #tpu.memory_space<vmem>>, vector<1x1x64x32xbf16>
    %19 = vector.shape_cast %18 : vector<1x1x64x32xbf16> to vector<64x32xbf16>
    %cst_19 = arith.constant dense<0.000000e+00> : vector<24x32xf32>
    %20 = tpu.matmul %17, %19, %cst_19 {dimension_numbers = #tpu.dot_dimension_numbers<[1], [0], [0], [1], [0, 0, 1, 1], [], []>} : vector<24x64xbf16>, vector<64x32xbf16>, vector<24x32xf32> -> vector<24x32xf32>
    %21 = arith.addf %14, %20 : vector<24x32xf32>
    %c0_20 = arith.constant 0 : index
    %c7 = arith.constant 7 : index
    %c0_21 = arith.constant 0 : index
    %22 = vector.load %arg1[%c0_20, %c7, %c0_21] : memref<1x44x64xf32, #tpu.memory_space<vmem>>, vector<1x24x64xf32>
    %23 = vector.shape_cast %22 : vector<1x24x64xf32> to vector<24x64xf32>
    %24 = arith.truncf %23 : vector<24x64xf32> to vector<24x64xbf16>
    %c0_22 = arith.constant 0 : index
    %c3 = arith.constant 3 : index
    %c0_23 = arith.constant 0 : index
    %c0_24 = arith.constant 0 : index
    %25 = vector.load %arg2[%c0_22, %c3, %c0_23, %c0_24] : memref<4x4x64x32xbf16, #tpu.memory_space<vmem>>, vector<1x1x64x32xbf16>
    %26 = vector.shape_cast %25 : vector<1x1x64x32xbf16> to vector<64x32xbf16>
    %cst_25 = arith.constant dense<0.000000e+00> : vector<24x32xf32>
    %27 = tpu.matmul %24, %26, %cst_25 {dimension_numbers = #tpu.dot_dimension_numbers<[1], [0], [0], [1], [0, 0, 1, 1], [], []>} : vector<24x64xbf16>, vector<64x32xbf16>, vector<24x32xf32> -> vector<24x32xf32>
    %28 = arith.addf %21, %27 : vector<24x32xf32>
    %c0_26 = arith.constant 0 : index
    %c0_27 = arith.constant 0 : index
    %29 = vector.load %arg3[%c0_26, %c0_27] : memref<1x32xf32, #tpu.memory_space<vmem>>, vector<1x32xf32>
    %30 = vector.broadcast %29 : vector<1x32xf32> to vector<24x32xf32>
    %31 = arith.mulf %28, %30 : vector<24x32xf32>
    %c0_28 = arith.constant 0 : index
    %c0_29 = arith.constant 0 : index
    %32 = vector.load %arg4[%c0_28, %c0_29] : memref<1x32xf32, #tpu.memory_space<vmem>>, vector<1x32xf32>
    %33 = vector.broadcast %32 : vector<1x32xf32> to vector<24x32xf32>
    %34 = arith.addf %31, %33 : vector<24x32xf32>
    %cst_30 = arith.constant 0.000000e+00 : f32
    %35 = vector.broadcast %cst_30 : f32 to vector<24x32xf32>
    %36 = arith.maximumf %34, %35 : vector<24x32xf32>
    %c0_31 = arith.constant 0 : index
    %c0_32 = arith.constant 0 : index
    %c0_33 = arith.constant 0 : index
    %c0_34 = arith.constant 0 : index
    %37 = vector.load %arg5[%c0_31, %c0_32, %c0_33, %c0_34] : memref<1x4x24x32xf32, #tpu.memory_space<vmem>>, vector<1x1x24x32xf32>
    %38 = vector.shape_cast %37 : vector<1x1x24x32xf32> to vector<24x32xf32>
    %39 = vector.shape_cast %36 : vector<24x32xf32> to vector<1x1x24x32xf32>
    tpu.vector_store %arg5[%c0_31, %c0_32, %c0_33, %c0_34], %39 {strides = array<i32>} : memref<1x4x24x32xf32, #tpu.memory_space<vmem>>, vector<1x1x24x32xf32>,
    %cst_35 = arith.constant 0.000000e+00 : f32
    %40 = vector.broadcast %cst_35 : f32 to vector<24x32xf32>
    %c0_36 = arith.constant 0 : index
    %c1_37 = arith.constant 1 : index
    %c0_38 = arith.constant 0 : index
    %41 = vector.load %arg1[%c0_36, %c1_37, %c0_38] : memref<1x44x64xf32, #tpu.memory_space<vmem>>, vector<1x24x64xf32>
    %42 = vector.shape_cast %41 : vector<1x24x64xf32> to vector<24x64xf32>
    %43 = arith.truncf %42 : vector<24x64xf32> to vector<24x64xbf16>
    %c1_39 = arith.constant 1 : index
    %c0_40 = arith.constant 0 : index
    %c0_41 = arith.constant 0 : index
    %c0_42 = arith.constant 0 : index
    %44 = vector.load %arg2[%c1_39, %c0_40, %c0_41, %c0_42] : memref<4x4x64x32xbf16, #tpu.memory_space<vmem>>, vector<1x1x64x32xbf16>
    %45 = vector.shape_cast %44 : vector<1x1x64x32xbf16> to vector<64x32xbf16>
    %cst_43 = arith.constant dense<0.000000e+00> : vector<24x32xf32>
    %46 = tpu.matmul %43, %45, %cst_43 {dimension_numbers = #tpu.dot_dimension_numbers<[1], [0], [0], [1], [0, 0, 1, 1], [], []>} : vector<24x64xbf16>, vector<64x32xbf16>, vector<24x32xf32> -> vector<24x32xf32>
    %47 = arith.addf %40, %46 : vector<24x32xf32>
    %c0_44 = arith.constant 0 : index
    %c2_45 = arith.constant 2 : index
    %c0_46 = arith.constant 0 : index
    %48 = vector.load %arg1[%c0_44, %c2_45, %c0_46] : memref<1x44x64xf32, #tpu.memory_space<vmem>>, vector<1x24x64xf32>
    %49 = vector.shape_cast %48 : vector<1x24x64xf32> to vector<24x64xf32>
    %50 = arith.truncf %49 : vector<24x64xf32> to vector<24x64xbf16>
    %c1_47 = arith.constant 1 : index
    %c1_48 = arith.constant 1 : index
    %c0_49 = arith.constant 0 : index
    %c0_50 = arith.constant 0 : index
    %51 = vector.load %arg2[%c1_47, %c1_48, %c0_49, %c0_50] : memref<4x4x64x32xbf16, #tpu.memory_space<vmem>>, vector<1x1x64x32xbf16>
    %52 = vector.shape_cast %51 : vector<1x1x64x32xbf16> to vector<64x32xbf16>
    %cst_51 = arith.constant dense<0.000000e+00> : vector<24x32xf32>
    %53 = tpu.matmul %50, %52, %cst_51 {dimension_numbers = #tpu.dot_dimension_numbers<[1], [0], [0], [1], [0, 0, 1, 1], [], []>} : vector<24x64xbf16>, vector<64x32xbf16>, vector<24x32xf32> -> vector<24x32xf32>
    %54 = arith.addf %47, %53 : vector<24x32xf32>
    %c0_52 = arith.constant 0 : index
    %c7_53 = arith.constant 7 : index
    %c0_54 = arith.constant 0 : index
    %55 = vector.load %arg1[%c0_52, %c7_53, %c0_54] : memref<1x44x64xf32, #tpu.memory_space<vmem>>, vector<1x24x64xf32>
    %56 = vector.shape_cast %55 : vector<1x24x64xf32> to vector<24x64xf32>
    %57 = arith.truncf %56 : vector<24x64xf32> to vector<24x64xbf16>
    %c1_55 = arith.constant 1 : index
    %c2_56 = arith.constant 2 : index
    %c0_57 = arith.constant 0 : index
    %c0_58 = arith.constant 0 : index
    %58 = vector.load %arg2[%c1_55, %c2_56, %c0_57, %c0_58] : memref<4x4x64x32xbf16, #tpu.memory_space<vmem>>, vector<1x1x64x32xbf16>
    %59 = vector.shape_cast %58 : vector<1x1x64x32xbf16> to vector<64x32xbf16>
    %cst_59 = arith.constant dense<0.000000e+00> : vector<24x32xf32>
    %60 = tpu.matmul %57, %59, %cst_59 {dimension_numbers = #tpu.dot_dimension_numbers<[1], [0], [0], [1], [0, 0, 1, 1], [], []>} : vector<24x64xbf16>, vector<64x32xbf16>, vector<24x32xf32> -> vector<24x32xf32>
    %61 = arith.addf %54, %60 : vector<24x32xf32>
    %c0_60 = arith.constant 0 : index
    %c8 = arith.constant 8 : index
    %c0_61 = arith.constant 0 : index
    %62 = vector.load %arg1[%c0_60, %c8, %c0_61] : memref<1x44x64xf32, #tpu.memory_space<vmem>>, vector<1x24x64xf32>
    %63 = vector.shape_cast %62 : vector<1x24x64xf32> to vector<24x64xf32>
    %64 = arith.truncf %63 : vector<24x64xf32> to vector<24x64xbf16>
    %c1_62 = arith.constant 1 : index
    %c3_63 = arith.constant 3 : index
    %c0_64 = arith.constant 0 : index
    %c0_65 = arith.constant 0 : index
    %65 = vector.load %arg2[%c1_62, %c3_63, %c0_64, %c0_65] : memref<4x4x64x32xbf16, #tpu.memory_space<vmem>>, vector<1x1x64x32xbf16>
    %66 = vector.shape_cast %65 : vector<1x1x64x32xbf16> to vector<64x32xbf16>
    %cst_66 = arith.constant dense<0.000000e+00> : vector<24x32xf32>
    %67 = tpu.matmul %64, %66, %cst_66 {dimension_numbers = #tpu.dot_dimension_numbers<[1], [0], [0], [1], [0, 0, 1, 1], [], []>} : vector<24x64xbf16>, vector<64x32xbf16>, vector<24x32xf32> -> vector<24x32xf32>
    %68 = arith.addf %61, %67 : vector<24x32xf32>
    %c0_67 = arith.constant 0 : index
    %c0_68 = arith.constant 0 : index
    %69 = vector.load %arg3[%c0_67, %c0_68] : memref<1x32xf32, #tpu.memory_space<vmem>>, vector<1x32xf32>
    %70 = vector.broadcast %69 : vector<1x32xf32> to vector<24x32xf32>
    %71 = arith.mulf %68, %70 : vector<24x32xf32>
    %c0_69 = arith.constant 0 : index
    %c0_70 = arith.constant 0 : index
    %72 = vector.load %arg4[%c0_69, %c0_70] : memref<1x32xf32, #tpu.memory_space<vmem>>, vector<1x32xf32>
    %73 = vector.broadcast %72 : vector<1x32xf32> to vector<24x32xf32>
    %74 = arith.addf %71, %73 : vector<24x32xf32>
    %cst_71 = arith.constant 0.000000e+00 : f32
    %75 = vector.broadcast %cst_71 : f32 to vector<24x32xf32>
    %76 = arith.maximumf %74, %75 : vector<24x32xf32>
    %c0_72 = arith.constant 0 : index
    %c1_73 = arith.constant 1 : index
    %c0_74 = arith.constant 0 : index
    %c0_75 = arith.constant 0 : index
    %77 = vector.load %arg5[%c0_72, %c1_73, %c0_74, %c0_75] : memref<1x4x24x32xf32, #tpu.memory_space<vmem>>, vector<1x1x24x32xf32>
    %78 = vector.shape_cast %77 : vector<1x1x24x32xf32> to vector<24x32xf32>
    %79 = vector.shape_cast %76 : vector<24x32xf32> to vector<1x1x24x32xf32>
    tpu.vector_store %arg5[%c0_72, %c1_73, %c0_74, %c0_75], %79 {strides = array<i32>} : memref<1x4x24x32xf32, #tpu.memory_space<vmem>>, vector<1x1x24x32xf32>,
    %cst_76 = arith.constant 0.000000e+00 : f32
    %80 = vector.broadcast %cst_76 : f32 to vector<24x32xf32>
    %c0_77 = arith.constant 0 : index
    %c6_78 = arith.constant 6 : index
    %c0_79 = arith.constant 0 : index
    %81 = vector.load %arg1[%c0_77, %c6_78, %c0_79] : memref<1x44x64xf32, #tpu.memory_space<vmem>>, vector<1x24x64xf32>
    %82 = vector.shape_cast %81 : vector<1x24x64xf32> to vector<24x64xf32>
    %83 = arith.truncf %82 : vector<24x64xf32> to vector<24x64xbf16>
    %c2_80 = arith.constant 2 : index
    %c0_81 = arith.constant 0 : index
    %c0_82 = arith.constant 0 : index
    %c0_83 = arith.constant 0 : index
    %84 = vector.load %arg2[%c2_80, %c0_81, %c0_82, %c0_83] : memref<4x4x64x32xbf16, #tpu.memory_space<vmem>>, vector<1x1x64x32xbf16>
    %85 = vector.shape_cast %84 : vector<1x1x64x32xbf16> to vector<64x32xbf16>
    %cst_84 = arith.constant dense<0.000000e+00> : vector<24x32xf32>
    %86 = tpu.matmul %83, %85, %cst_84 {dimension_numbers = #tpu.dot_dimension_numbers<[1], [0], [0], [1], [0, 0, 1, 1], [], []>} : vector<24x64xbf16>, vector<64x32xbf16>, vector<24x32xf32> -> vector<24x32xf32>
    %87 = arith.addf %80, %86 : vector<24x32xf32>
    %c0_85 = arith.constant 0 : index
    %c7_86 = arith.constant 7 : index
    %c0_87 = arith.constant 0 : index
    %88 = vector.load %arg1[%c0_85, %c7_86, %c0_87] : memref<1x44x64xf32, #tpu.memory_space<vmem>>, vector<1x24x64xf32>
    %89 = vector.shape_cast %88 : vector<1x24x64xf32> to vector<24x64xf32>
    %90 = arith.truncf %89 : vector<24x64xf32> to vector<24x64xbf16>
    %c2_88 = arith.constant 2 : index
    %c1_89 = arith.constant 1 : index
    %c0_90 = arith.constant 0 : index
    %c0_91 = arith.constant 0 : index
    %91 = vector.load %arg2[%c2_88, %c1_89, %c0_90, %c0_91] : memref<4x4x64x32xbf16, #tpu.memory_space<vmem>>, vector<1x1x64x32xbf16>
    %92 = vector.shape_cast %91 : vector<1x1x64x32xbf16> to vector<64x32xbf16>
    %cst_92 = arith.constant dense<0.000000e+00> : vector<24x32xf32>
    %93 = tpu.matmul %90, %92, %cst_92 {dimension_numbers = #tpu.dot_dimension_numbers<[1], [0], [0], [1], [0, 0, 1, 1], [], []>} : vector<24x64xbf16>, vector<64x32xbf16>, vector<24x32xf32> -> vector<24x32xf32>
    %94 = arith.addf %87, %93 : vector<24x32xf32>
    %c0_93 = arith.constant 0 : index
    %c12 = arith.constant 12 : index
    %c0_94 = arith.constant 0 : index
    %95 = vector.load %arg1[%c0_93, %c12, %c0_94] : memref<1x44x64xf32, #tpu.memory_space<vmem>>, vector<1x24x64xf32>
    %96 = vector.shape_cast %95 : vector<1x24x64xf32> to vector<24x64xf32>
    %97 = arith.truncf %96 : vector<24x64xf32> to vector<24x64xbf16>
    %c2_95 = arith.constant 2 : index
    %c2_96 = arith.constant 2 : index
    %c0_97 = arith.constant 0 : index
    %c0_98 = arith.constant 0 : index
    %98 = vector.load %arg2[%c2_95, %c2_96, %c0_97, %c0_98] : memref<4x4x64x32xbf16, #tpu.memory_space<vmem>>, vector<1x1x64x32xbf16>
    %99 = vector.shape_cast %98 : vector<1x1x64x32xbf16> to vector<64x32xbf16>
    %cst_99 = arith.constant dense<0.000000e+00> : vector<24x32xf32>
    %100 = tpu.matmul %97, %99, %cst_99 {dimension_numbers = #tpu.dot_dimension_numbers<[1], [0], [0], [1], [0, 0, 1, 1], [], []>} : vector<24x64xbf16>, vector<64x32xbf16>, vector<24x32xf32> -> vector<24x32xf32>
    %101 = arith.addf %94, %100 : vector<24x32xf32>
    %c0_100 = arith.constant 0 : index
    %c13 = arith.constant 13 : index
    %c0_101 = arith.constant 0 : index
    %102 = vector.load %arg1[%c0_100, %c13, %c0_101] : memref<1x44x64xf32, #tpu.memory_space<vmem>>, vector<1x24x64xf32>
    %103 = vector.shape_cast %102 : vector<1x24x64xf32> to vector<24x64xf32>
    %104 = arith.truncf %103 : vector<24x64xf32> to vector<24x64xbf16>
    %c2_102 = arith.constant 2 : index
    %c3_103 = arith.constant 3 : index
    %c0_104 = arith.constant 0 : index
    %c0_105 = arith.constant 0 : index
    %105 = vector.load %arg2[%c2_102, %c3_103, %c0_104, %c0_105] : memref<4x4x64x32xbf16, #tpu.memory_space<vmem>>, vector<1x1x64x32xbf16>
    %106 = vector.shape_cast %105 : vector<1x1x64x32xbf16> to vector<64x32xbf16>
    %cst_106 = arith.constant dense<0.000000e+00> : vector<24x32xf32>
    %107 = tpu.matmul %104, %106, %cst_106 {dimension_numbers = #tpu.dot_dimension_numbers<[1], [0], [0], [1], [0, 0, 1, 1], [], []>} : vector<24x64xbf16>, vector<64x32xbf16>, vector<24x32xf32> -> vector<24x32xf32>
    %108 = arith.addf %101, %107 : vector<24x32xf32>
    %c0_107 = arith.constant 0 : index
    %c0_108 = arith.constant 0 : index
    %109 = vector.load %arg3[%c0_107, %c0_108] : memref<1x32xf32, #tpu.memory_space<vmem>>, vector<1x32xf32>
    %110 = vector.broadcast %109 : vector<1x32xf32> to vector<24x32xf32>
    %111 = arith.mulf %108, %110 : vector<24x32xf32>
    %c0_109 = arith.constant 0 : index
    %c0_110 = arith.constant 0 : index
    %112 = vector.load %arg4[%c0_109, %c0_110] : memref<1x32xf32, #tpu.memory_space<vmem>>, vector<1x32xf32>
    %113 = vector.broadcast %112 : vector<1x32xf32> to vector<24x32xf32>
    %114 = arith.addf %111, %113 : vector<24x32xf32>
    %cst_111 = arith.constant 0.000000e+00 : f32
    %115 = vector.broadcast %cst_111 : f32 to vector<24x32xf32>
    %116 = arith.maximumf %114, %115 : vector<24x32xf32>
    %c0_112 = arith.constant 0 : index
    %c2_113 = arith.constant 2 : index
    %c0_114 = arith.constant 0 : index
    %c0_115 = arith.constant 0 : index
    %117 = vector.load %arg5[%c0_112, %c2_113, %c0_114, %c0_115] : memref<1x4x24x32xf32, #tpu.memory_space<vmem>>, vector<1x1x24x32xf32>
    %118 = vector.shape_cast %117 : vector<1x1x24x32xf32> to vector<24x32xf32>
    %119 = vector.shape_cast %116 : vector<24x32xf32> to vector<1x1x24x32xf32>
    tpu.vector_store %arg5[%c0_112, %c2_113, %c0_114, %c0_115], %119 {strides = array<i32>} : memref<1x4x24x32xf32, #tpu.memory_space<vmem>>, vector<1x1x24x32xf32>,
    %cst_116 = arith.constant 0.000000e+00 : f32
    %120 = vector.broadcast %cst_116 : f32 to vector<24x32xf32>
    %c0_117 = arith.constant 0 : index
    %c7_118 = arith.constant 7 : index
    %c0_119 = arith.constant 0 : index
    %121 = vector.load %arg1[%c0_117, %c7_118, %c0_119] : memref<1x44x64xf32, #tpu.memory_space<vmem>>, vector<1x24x64xf32>
    %122 = vector.shape_cast %121 : vector<1x24x64xf32> to vector<24x64xf32>
    %123 = arith.truncf %122 : vector<24x64xf32> to vector<24x64xbf16>
    %c3_120 = arith.constant 3 : index
    %c0_121 = arith.constant 0 : index
    %c0_122 = arith.constant 0 : index
    %c0_123 = arith.constant 0 : index
    %124 = vector.load %arg2[%c3_120, %c0_121, %c0_122, %c0_123] : memref<4x4x64x32xbf16, #tpu.memory_space<vmem>>, vector<1x1x64x32xbf16>
    %125 = vector.shape_cast %124 : vector<1x1x64x32xbf16> to vector<64x32xbf16>
    %cst_124 = arith.constant dense<0.000000e+00> : vector<24x32xf32>
    %126 = tpu.matmul %123, %125, %cst_124 {dimension_numbers = #tpu.dot_dimension_numbers<[1], [0], [0], [1], [0, 0, 1, 1], [], []>} : vector<24x64xbf16>, vector<64x32xbf16>, vector<24x32xf32> -> vector<24x32xf32>
    %127 = arith.addf %120, %126 : vector<24x32xf32>
    %c0_125 = arith.constant 0 : index
    %c8_126 = arith.constant 8 : index
    %c0_127 = arith.constant 0 : index
    %128 = vector.load %arg1[%c0_125, %c8_126, %c0_127] : memref<1x44x64xf32, #tpu.memory_space<vmem>>, vector<1x24x64xf32>
    %129 = vector.shape_cast %128 : vector<1x24x64xf32> to vector<24x64xf32>
    %130 = arith.truncf %129 : vector<24x64xf32> to vector<24x64xbf16>
    %c3_128 = arith.constant 3 : index
    %c1_129 = arith.constant 1 : index
    %c0_130 = arith.constant 0 : index
    %c0_131 = arith.constant 0 : index
    %131 = vector.load %arg2[%c3_128, %c1_129, %c0_130, %c0_131] : memref<4x4x64x32xbf16, #tpu.memory_space<vmem>>, vector<1x1x64x32xbf16>
    %132 = vector.shape_cast %131 : vector<1x1x64x32xbf16> to vector<64x32xbf16>
    %cst_132 = arith.constant dense<0.000000e+00> : vector<24x32xf32>
    %133 = tpu.matmul %130, %132, %cst_132 {dimension_numbers = #tpu.dot_dimension_numbers<[1], [0], [0], [1], [0, 0, 1, 1], [], []>} : vector<24x64xbf16>, vector<64x32xbf16>, vector<24x32xf32> -> vector<24x32xf32>
    %134 = arith.addf %127, %133 : vector<24x32xf32>
    %c0_133 = arith.constant 0 : index
    %c13_134 = arith.constant 13 : index
    %c0_135 = arith.constant 0 : index
    %135 = vector.load %arg1[%c0_133, %c13_134, %c0_135] : memref<1x44x64xf32, #tpu.memory_space<vmem>>, vector<1x24x64xf32>
    %136 = vector.shape_cast %135 : vector<1x24x64xf32> to vector<24x64xf32>
    %137 = arith.truncf %136 : vector<24x64xf32> to vector<24x64xbf16>
    %c3_136 = arith.constant 3 : index
    %c2_137 = arith.constant 2 : index
    %c0_138 = arith.constant 0 : index
    %c0_139 = arith.constant 0 : index
    %138 = vector.load %arg2[%c3_136, %c2_137, %c0_138, %c0_139] : memref<4x4x64x32xbf16, #tpu.memory_space<vmem>>, vector<1x1x64x32xbf16>
    %139 = vector.shape_cast %138 : vector<1x1x64x32xbf16> to vector<64x32xbf16>
    %cst_140 = arith.constant dense<0.000000e+00> : vector<24x32xf32>
    %140 = tpu.matmul %137, %139, %cst_140 {dimension_numbers = #tpu.dot_dimension_numbers<[1], [0], [0], [1], [0, 0, 1, 1], [], []>} : vector<24x64xbf16>, vector<64x32xbf16>, vector<24x32xf32> -> vector<24x32xf32>
    %141 = arith.addf %134, %140 : vector<24x32xf32>
    %c0_141 = arith.constant 0 : index
    %c14 = arith.constant 14 : index
    %c0_142 = arith.constant 0 : index
    %142 = vector.load %arg1[%c0_141, %c14, %c0_142] : memref<1x44x64xf32, #tpu.memory_space<vmem>>, vector<1x24x64xf32>
    %143 = vector.shape_cast %142 : vector<1x24x64xf32> to vector<24x64xf32>
    %144 = arith.truncf %143 : vector<24x64xf32> to vector<24x64xbf16>
    %c3_143 = arith.constant 3 : index
    %c3_144 = arith.constant 3 : index
    %c0_145 = arith.constant 0 : index
    %c0_146 = arith.constant 0 : index
    %145 = vector.load %arg2[%c3_143, %c3_144, %c0_145, %c0_146] : memref<4x4x64x32xbf16, #tpu.memory_space<vmem>>, vector<1x1x64x32xbf16>
    %146 = vector.shape_cast %145 : vector<1x1x64x32xbf16> to vector<64x32xbf16>
    %cst_147 = arith.constant dense<0.000000e+00> : vector<24x32xf32>
    %147 = tpu.matmul %144, %146, %cst_147 {dimension_numbers = #tpu.dot_dimension_numbers<[1], [0], [0], [1], [0, 0, 1, 1], [], []>} : vector<24x64xbf16>, vector<64x32xbf16>, vector<24x32xf32> -> vector<24x32xf32>
    %148 = arith.addf %141, %147 : vector<24x32xf32>
    %c0_148 = arith.constant 0 : index
    %c0_149 = arith.constant 0 : index
    %149 = vector.load %arg3[%c0_148, %c0_149] : memref<1x32xf32, #tpu.memory_space<vmem>>, vector<1x32xf32>
    %150 = vector.broadcast %149 : vector<1x32xf32> to vector<24x32xf32>
    %151 = arith.mulf %148, %150 : vector<24x32xf32>
    %c0_150 = arith.constant 0 : index
    %c0_151 = arith.constant 0 : index
    %152 = vector.load %arg4[%c0_150, %c0_151] : memref<1x32xf32, #tpu.memory_space<vmem>>, vector<1x32xf32>
    %153 = vector.broadcast %152 : vector<1x32xf32> to vector<24x32xf32>
    %154 = arith.addf %151, %153 : vector<24x32xf32>
    %cst_152 = arith.constant 0.000000e+00 : f32
    %155 = vector.broadcast %cst_152 : f32 to vector<24x32xf32>
    %156 = arith.maximumf %154, %155 : vector<24x32xf32>
    %c0_153 = arith.constant 0 : index
    %c3_154 = arith.constant 3 : index
    %c0_155 = arith.constant 0 : index
    %c0_156 = arith.constant 0 : index
    %157 = vector.load %arg5[%c0_153, %c3_154, %c0_155, %c0_156] : memref<1x4x24x32xf32, #tpu.memory_space<vmem>>, vector<1x1x24x32xf32>
    %158 = vector.shape_cast %157 : vector<1x1x24x32xf32> to vector<24x32xf32>
    %159 = vector.shape_cast %156 : vector<24x32xf32> to vector<1x1x24x32xf32>
    tpu.vector_store %arg5[%c0_153, %c3_154, %c0_155, %c0_156], %159 {strides = array<i32>} : memref<1x4x24x32xf32, #tpu.memory_space<vmem>>, vector<1x1x24x32xf32>,
    return
  }
  func.func @transform_0(%arg0: i32) -> (i32, i32, i32) {
    %c0_i32 = arith.constant 0 : i32
    %c0_i32_0 = arith.constant 0 : i32
    %c0_i32_1 = arith.constant 0 : i32
    return %arg0, %c0_i32, %c0_i32_0 : i32, i32, i32
  }
  func.func @transform_1(%arg0: i32) -> (i32, i32, i32, i32) {
    %c0_i32 = arith.constant 0 : i32
    %c0_i32_0 = arith.constant 0 : i32
    %c0_i32_1 = arith.constant 0 : i32
    %c0_i32_2 = arith.constant 0 : i32
    %c0_i32_3 = arith.constant 0 : i32
    return %c0_i32, %c0_i32_0, %c0_i32_1, %c0_i32_2 : i32, i32, i32, i32
  }
  func.func @transform_2(%arg0: i32) -> (i32, i32) {
    %c0_i32 = arith.constant 0 : i32
    %c0_i32_0 = arith.constant 0 : i32
    %c0_i32_1 = arith.constant 0 : i32
    return %c0_i32, %c0_i32_0 : i32, i32
  }
  func.func @transform_3(%arg0: i32) -> (i32, i32) {
    %c0_i32 = arith.constant 0 : i32
    %c0_i32_0 = arith.constant 0 : i32
    %c0_i32_1 = arith.constant 0 : i32
    return %c0_i32, %c0_i32_0 : i32, i32
  }
  func.func @transform_4(%arg0: i32) -> (i32, i32, i32, i32) {
    %c0_i32 = arith.constant 0 : i32
    %c0_i32_0 = arith.constant 0 : i32
    %c0_i32_1 = arith.constant 0 : i32
    %c0_i32_2 = arith.constant 0 : i32
    return %arg0, %c0_i32, %c0_i32_0, %c0_i32_1 : i32, i32, i32, i32
  }
}

module attributes {stable_mosaic.version = 11 : i64} {
  func.func @_deconv_phase_kernel(%arg0: i32, %arg1: memref<1x108x32xf32, #tpu.memory_space<vmem>>, %arg2: memref<4x4x32x16xbf16, #tpu.memory_space<vmem>>, %arg3: memref<1x16xf32, #tpu.memory_space<vmem>>, %arg4: memref<1x16xf32, #tpu.memory_space<vmem>>, %arg5: memref<1x4x80x16xf32, #tpu.memory_space<vmem>>) attributes {dimension_semantics = [#tpu.dimension_semantics<parallel>], iteration_bounds = array<i64: 2>, scalar_prefetch = 0 : i64, scratch_operands = 0 : i64, tpu.core_type = #tpu.core_type<tc>, window_params = [{transform_indices = @transform_0, window_bounds = array<i64: 1, 108, 32>}, {pipeline_mode = #tpu.pipeline_mode<synchronous>, transform_indices = @transform_1, window_bounds = array<i64: 4, 4, 32, 16>}, {pipeline_mode = #tpu.pipeline_mode<synchronous>, transform_indices = @transform_2, window_bounds = array<i64: 1, 16>}, {pipeline_mode = #tpu.pipeline_mode<synchronous>, transform_indices = @transform_3, window_bounds = array<i64: 1, 16>}, {transform_indices = @transform_4, window_bounds = array<i64: 1, 4, 80, 16>}]} {
    %cst = arith.constant 0.000000e+00 : f32
    %0 = vector.broadcast %cst : f32 to vector<80x16xf32>
    %c0 = arith.constant 0 : index
    %c0_0 = arith.constant 0 : index
    %c0_1 = arith.constant 0 : index
    %1 = vector.load %arg1[%c0, %c0_0, %c0_1] : memref<1x108x32xf32, #tpu.memory_space<vmem>>, vector<1x80x32xf32>
    %2 = vector.shape_cast %1 : vector<1x80x32xf32> to vector<80x32xf32>
    %3 = arith.truncf %2 : vector<80x32xf32> to vector<80x32xbf16>
    %c0_2 = arith.constant 0 : index
    %c0_3 = arith.constant 0 : index
    %c0_4 = arith.constant 0 : index
    %c0_5 = arith.constant 0 : index
    %4 = vector.load %arg2[%c0_2, %c0_3, %c0_4, %c0_5] : memref<4x4x32x16xbf16, #tpu.memory_space<vmem>>, vector<1x1x32x16xbf16>
    %5 = vector.shape_cast %4 : vector<1x1x32x16xbf16> to vector<32x16xbf16>
    %cst_6 = arith.constant dense<0.000000e+00> : vector<80x16xf32>
    %6 = tpu.matmul %3, %5, %cst_6 {dimension_numbers = #tpu.dot_dimension_numbers<[1], [0], [0], [1], [0, 0, 1, 1], [], []>} : vector<80x32xbf16>, vector<32x16xbf16>, vector<80x16xf32> -> vector<80x16xf32>
    %7 = arith.addf %0, %6 : vector<80x16xf32>
    %c0_7 = arith.constant 0 : index
    %c1 = arith.constant 1 : index
    %c0_8 = arith.constant 0 : index
    %8 = vector.load %arg1[%c0_7, %c1, %c0_8] : memref<1x108x32xf32, #tpu.memory_space<vmem>>, vector<1x80x32xf32>
    %9 = vector.shape_cast %8 : vector<1x80x32xf32> to vector<80x32xf32>
    %10 = arith.truncf %9 : vector<80x32xf32> to vector<80x32xbf16>
    %c0_9 = arith.constant 0 : index
    %c1_10 = arith.constant 1 : index
    %c0_11 = arith.constant 0 : index
    %c0_12 = arith.constant 0 : index
    %11 = vector.load %arg2[%c0_9, %c1_10, %c0_11, %c0_12] : memref<4x4x32x16xbf16, #tpu.memory_space<vmem>>, vector<1x1x32x16xbf16>
    %12 = vector.shape_cast %11 : vector<1x1x32x16xbf16> to vector<32x16xbf16>
    %cst_13 = arith.constant dense<0.000000e+00> : vector<80x16xf32>
    %13 = tpu.matmul %10, %12, %cst_13 {dimension_numbers = #tpu.dot_dimension_numbers<[1], [0], [0], [1], [0, 0, 1, 1], [], []>} : vector<80x32xbf16>, vector<32x16xbf16>, vector<80x16xf32> -> vector<80x16xf32>
    %14 = arith.addf %7, %13 : vector<80x16xf32>
    %c0_14 = arith.constant 0 : index
    %c10 = arith.constant 10 : index
    %c0_15 = arith.constant 0 : index
    %15 = vector.load %arg1[%c0_14, %c10, %c0_15] : memref<1x108x32xf32, #tpu.memory_space<vmem>>, vector<1x80x32xf32>
    %16 = vector.shape_cast %15 : vector<1x80x32xf32> to vector<80x32xf32>
    %17 = arith.truncf %16 : vector<80x32xf32> to vector<80x32xbf16>
    %c0_16 = arith.constant 0 : index
    %c2 = arith.constant 2 : index
    %c0_17 = arith.constant 0 : index
    %c0_18 = arith.constant 0 : index
    %18 = vector.load %arg2[%c0_16, %c2, %c0_17, %c0_18] : memref<4x4x32x16xbf16, #tpu.memory_space<vmem>>, vector<1x1x32x16xbf16>
    %19 = vector.shape_cast %18 : vector<1x1x32x16xbf16> to vector<32x16xbf16>
    %cst_19 = arith.constant dense<0.000000e+00> : vector<80x16xf32>
    %20 = tpu.matmul %17, %19, %cst_19 {dimension_numbers = #tpu.dot_dimension_numbers<[1], [0], [0], [1], [0, 0, 1, 1], [], []>} : vector<80x32xbf16>, vector<32x16xbf16>, vector<80x16xf32> -> vector<80x16xf32>
    %21 = arith.addf %14, %20 : vector<80x16xf32>
    %c0_20 = arith.constant 0 : index
    %c11 = arith.constant 11 : index
    %c0_21 = arith.constant 0 : index
    %22 = vector.load %arg1[%c0_20, %c11, %c0_21] : memref<1x108x32xf32, #tpu.memory_space<vmem>>, vector<1x80x32xf32>
    %23 = vector.shape_cast %22 : vector<1x80x32xf32> to vector<80x32xf32>
    %24 = arith.truncf %23 : vector<80x32xf32> to vector<80x32xbf16>
    %c0_22 = arith.constant 0 : index
    %c3 = arith.constant 3 : index
    %c0_23 = arith.constant 0 : index
    %c0_24 = arith.constant 0 : index
    %25 = vector.load %arg2[%c0_22, %c3, %c0_23, %c0_24] : memref<4x4x32x16xbf16, #tpu.memory_space<vmem>>, vector<1x1x32x16xbf16>
    %26 = vector.shape_cast %25 : vector<1x1x32x16xbf16> to vector<32x16xbf16>
    %cst_25 = arith.constant dense<0.000000e+00> : vector<80x16xf32>
    %27 = tpu.matmul %24, %26, %cst_25 {dimension_numbers = #tpu.dot_dimension_numbers<[1], [0], [0], [1], [0, 0, 1, 1], [], []>} : vector<80x32xbf16>, vector<32x16xbf16>, vector<80x16xf32> -> vector<80x16xf32>
    %28 = arith.addf %21, %27 : vector<80x16xf32>
    %c0_26 = arith.constant 0 : index
    %c0_27 = arith.constant 0 : index
    %29 = vector.load %arg3[%c0_26, %c0_27] : memref<1x16xf32, #tpu.memory_space<vmem>>, vector<1x16xf32>
    %30 = vector.broadcast %29 : vector<1x16xf32> to vector<80x16xf32>
    %31 = arith.mulf %28, %30 : vector<80x16xf32>
    %c0_28 = arith.constant 0 : index
    %c0_29 = arith.constant 0 : index
    %32 = vector.load %arg4[%c0_28, %c0_29] : memref<1x16xf32, #tpu.memory_space<vmem>>, vector<1x16xf32>
    %33 = vector.broadcast %32 : vector<1x16xf32> to vector<80x16xf32>
    %34 = arith.addf %31, %33 : vector<80x16xf32>
    %cst_30 = arith.constant 0.000000e+00 : f32
    %35 = vector.broadcast %cst_30 : f32 to vector<80x16xf32>
    %36 = arith.maximumf %34, %35 : vector<80x16xf32>
    %c0_31 = arith.constant 0 : index
    %c0_32 = arith.constant 0 : index
    %c0_33 = arith.constant 0 : index
    %c0_34 = arith.constant 0 : index
    %37 = vector.load %arg5[%c0_31, %c0_32, %c0_33, %c0_34] : memref<1x4x80x16xf32, #tpu.memory_space<vmem>>, vector<1x1x80x16xf32>
    %38 = vector.shape_cast %37 : vector<1x1x80x16xf32> to vector<80x16xf32>
    %39 = vector.shape_cast %36 : vector<80x16xf32> to vector<1x1x80x16xf32>
    tpu.vector_store %arg5[%c0_31, %c0_32, %c0_33, %c0_34], %39 {strides = array<i32>} : memref<1x4x80x16xf32, #tpu.memory_space<vmem>>, vector<1x1x80x16xf32>,
    %cst_35 = arith.constant 0.000000e+00 : f32
    %40 = vector.broadcast %cst_35 : f32 to vector<80x16xf32>
    %c0_36 = arith.constant 0 : index
    %c1_37 = arith.constant 1 : index
    %c0_38 = arith.constant 0 : index
    %41 = vector.load %arg1[%c0_36, %c1_37, %c0_38] : memref<1x108x32xf32, #tpu.memory_space<vmem>>, vector<1x80x32xf32>
    %42 = vector.shape_cast %41 : vector<1x80x32xf32> to vector<80x32xf32>
    %43 = arith.truncf %42 : vector<80x32xf32> to vector<80x32xbf16>
    %c1_39 = arith.constant 1 : index
    %c0_40 = arith.constant 0 : index
    %c0_41 = arith.constant 0 : index
    %c0_42 = arith.constant 0 : index
    %44 = vector.load %arg2[%c1_39, %c0_40, %c0_41, %c0_42] : memref<4x4x32x16xbf16, #tpu.memory_space<vmem>>, vector<1x1x32x16xbf16>
    %45 = vector.shape_cast %44 : vector<1x1x32x16xbf16> to vector<32x16xbf16>
    %cst_43 = arith.constant dense<0.000000e+00> : vector<80x16xf32>
    %46 = tpu.matmul %43, %45, %cst_43 {dimension_numbers = #tpu.dot_dimension_numbers<[1], [0], [0], [1], [0, 0, 1, 1], [], []>} : vector<80x32xbf16>, vector<32x16xbf16>, vector<80x16xf32> -> vector<80x16xf32>
    %47 = arith.addf %40, %46 : vector<80x16xf32>
    %c0_44 = arith.constant 0 : index
    %c2_45 = arith.constant 2 : index
    %c0_46 = arith.constant 0 : index
    %48 = vector.load %arg1[%c0_44, %c2_45, %c0_46] : memref<1x108x32xf32, #tpu.memory_space<vmem>>, vector<1x80x32xf32>
    %49 = vector.shape_cast %48 : vector<1x80x32xf32> to vector<80x32xf32>
    %50 = arith.truncf %49 : vector<80x32xf32> to vector<80x32xbf16>
    %c1_47 = arith.constant 1 : index
    %c1_48 = arith.constant 1 : index
    %c0_49 = arith.constant 0 : index
    %c0_50 = arith.constant 0 : index
    %51 = vector.load %arg2[%c1_47, %c1_48, %c0_49, %c0_50] : memref<4x4x32x16xbf16, #tpu.memory_space<vmem>>, vector<1x1x32x16xbf16>
    %52 = vector.shape_cast %51 : vector<1x1x32x16xbf16> to vector<32x16xbf16>
    %cst_51 = arith.constant dense<0.000000e+00> : vector<80x16xf32>
    %53 = tpu.matmul %50, %52, %cst_51 {dimension_numbers = #tpu.dot_dimension_numbers<[1], [0], [0], [1], [0, 0, 1, 1], [], []>} : vector<80x32xbf16>, vector<32x16xbf16>, vector<80x16xf32> -> vector<80x16xf32>
    %54 = arith.addf %47, %53 : vector<80x16xf32>
    %c0_52 = arith.constant 0 : index
    %c11_53 = arith.constant 11 : index
    %c0_54 = arith.constant 0 : index
    %55 = vector.load %arg1[%c0_52, %c11_53, %c0_54] : memref<1x108x32xf32, #tpu.memory_space<vmem>>, vector<1x80x32xf32>
    %56 = vector.shape_cast %55 : vector<1x80x32xf32> to vector<80x32xf32>
    %57 = arith.truncf %56 : vector<80x32xf32> to vector<80x32xbf16>
    %c1_55 = arith.constant 1 : index
    %c2_56 = arith.constant 2 : index
    %c0_57 = arith.constant 0 : index
    %c0_58 = arith.constant 0 : index
    %58 = vector.load %arg2[%c1_55, %c2_56, %c0_57, %c0_58] : memref<4x4x32x16xbf16, #tpu.memory_space<vmem>>, vector<1x1x32x16xbf16>
    %59 = vector.shape_cast %58 : vector<1x1x32x16xbf16> to vector<32x16xbf16>
    %cst_59 = arith.constant dense<0.000000e+00> : vector<80x16xf32>
    %60 = tpu.matmul %57, %59, %cst_59 {dimension_numbers = #tpu.dot_dimension_numbers<[1], [0], [0], [1], [0, 0, 1, 1], [], []>} : vector<80x32xbf16>, vector<32x16xbf16>, vector<80x16xf32> -> vector<80x16xf32>
    %61 = arith.addf %54, %60 : vector<80x16xf32>
    %c0_60 = arith.constant 0 : index
    %c12 = arith.constant 12 : index
    %c0_61 = arith.constant 0 : index
    %62 = vector.load %arg1[%c0_60, %c12, %c0_61] : memref<1x108x32xf32, #tpu.memory_space<vmem>>, vector<1x80x32xf32>
    %63 = vector.shape_cast %62 : vector<1x80x32xf32> to vector<80x32xf32>
    %64 = arith.truncf %63 : vector<80x32xf32> to vector<80x32xbf16>
    %c1_62 = arith.constant 1 : index
    %c3_63 = arith.constant 3 : index
    %c0_64 = arith.constant 0 : index
    %c0_65 = arith.constant 0 : index
    %65 = vector.load %arg2[%c1_62, %c3_63, %c0_64, %c0_65] : memref<4x4x32x16xbf16, #tpu.memory_space<vmem>>, vector<1x1x32x16xbf16>
    %66 = vector.shape_cast %65 : vector<1x1x32x16xbf16> to vector<32x16xbf16>
    %cst_66 = arith.constant dense<0.000000e+00> : vector<80x16xf32>
    %67 = tpu.matmul %64, %66, %cst_66 {dimension_numbers = #tpu.dot_dimension_numbers<[1], [0], [0], [1], [0, 0, 1, 1], [], []>} : vector<80x32xbf16>, vector<32x16xbf16>, vector<80x16xf32> -> vector<80x16xf32>
    %68 = arith.addf %61, %67 : vector<80x16xf32>
    %c0_67 = arith.constant 0 : index
    %c0_68 = arith.constant 0 : index
    %69 = vector.load %arg3[%c0_67, %c0_68] : memref<1x16xf32, #tpu.memory_space<vmem>>, vector<1x16xf32>
    %70 = vector.broadcast %69 : vector<1x16xf32> to vector<80x16xf32>
    %71 = arith.mulf %68, %70 : vector<80x16xf32>
    %c0_69 = arith.constant 0 : index
    %c0_70 = arith.constant 0 : index
    %72 = vector.load %arg4[%c0_69, %c0_70] : memref<1x16xf32, #tpu.memory_space<vmem>>, vector<1x16xf32>
    %73 = vector.broadcast %72 : vector<1x16xf32> to vector<80x16xf32>
    %74 = arith.addf %71, %73 : vector<80x16xf32>
    %cst_71 = arith.constant 0.000000e+00 : f32
    %75 = vector.broadcast %cst_71 : f32 to vector<80x16xf32>
    %76 = arith.maximumf %74, %75 : vector<80x16xf32>
    %c0_72 = arith.constant 0 : index
    %c1_73 = arith.constant 1 : index
    %c0_74 = arith.constant 0 : index
    %c0_75 = arith.constant 0 : index
    %77 = vector.load %arg5[%c0_72, %c1_73, %c0_74, %c0_75] : memref<1x4x80x16xf32, #tpu.memory_space<vmem>>, vector<1x1x80x16xf32>
    %78 = vector.shape_cast %77 : vector<1x1x80x16xf32> to vector<80x16xf32>
    %79 = vector.shape_cast %76 : vector<80x16xf32> to vector<1x1x80x16xf32>
    tpu.vector_store %arg5[%c0_72, %c1_73, %c0_74, %c0_75], %79 {strides = array<i32>} : memref<1x4x80x16xf32, #tpu.memory_space<vmem>>, vector<1x1x80x16xf32>,
    %cst_76 = arith.constant 0.000000e+00 : f32
    %80 = vector.broadcast %cst_76 : f32 to vector<80x16xf32>
    %c0_77 = arith.constant 0 : index
    %c10_78 = arith.constant 10 : index
    %c0_79 = arith.constant 0 : index
    %81 = vector.load %arg1[%c0_77, %c10_78, %c0_79] : memref<1x108x32xf32, #tpu.memory_space<vmem>>, vector<1x80x32xf32>
    %82 = vector.shape_cast %81 : vector<1x80x32xf32> to vector<80x32xf32>
    %83 = arith.truncf %82 : vector<80x32xf32> to vector<80x32xbf16>
    %c2_80 = arith.constant 2 : index
    %c0_81 = arith.constant 0 : index
    %c0_82 = arith.constant 0 : index
    %c0_83 = arith.constant 0 : index
    %84 = vector.load %arg2[%c2_80, %c0_81, %c0_82, %c0_83] : memref<4x4x32x16xbf16, #tpu.memory_space<vmem>>, vector<1x1x32x16xbf16>
    %85 = vector.shape_cast %84 : vector<1x1x32x16xbf16> to vector<32x16xbf16>
    %cst_84 = arith.constant dense<0.000000e+00> : vector<80x16xf32>
    %86 = tpu.matmul %83, %85, %cst_84 {dimension_numbers = #tpu.dot_dimension_numbers<[1], [0], [0], [1], [0, 0, 1, 1], [], []>} : vector<80x32xbf16>, vector<32x16xbf16>, vector<80x16xf32> -> vector<80x16xf32>
    %87 = arith.addf %80, %86 : vector<80x16xf32>
    %c0_85 = arith.constant 0 : index
    %c11_86 = arith.constant 11 : index
    %c0_87 = arith.constant 0 : index
    %88 = vector.load %arg1[%c0_85, %c11_86, %c0_87] : memref<1x108x32xf32, #tpu.memory_space<vmem>>, vector<1x80x32xf32>
    %89 = vector.shape_cast %88 : vector<1x80x32xf32> to vector<80x32xf32>
    %90 = arith.truncf %89 : vector<80x32xf32> to vector<80x32xbf16>
    %c2_88 = arith.constant 2 : index
    %c1_89 = arith.constant 1 : index
    %c0_90 = arith.constant 0 : index
    %c0_91 = arith.constant 0 : index
    %91 = vector.load %arg2[%c2_88, %c1_89, %c0_90, %c0_91] : memref<4x4x32x16xbf16, #tpu.memory_space<vmem>>, vector<1x1x32x16xbf16>
    %92 = vector.shape_cast %91 : vector<1x1x32x16xbf16> to vector<32x16xbf16>
    %cst_92 = arith.constant dense<0.000000e+00> : vector<80x16xf32>
    %93 = tpu.matmul %90, %92, %cst_92 {dimension_numbers = #tpu.dot_dimension_numbers<[1], [0], [0], [1], [0, 0, 1, 1], [], []>} : vector<80x32xbf16>, vector<32x16xbf16>, vector<80x16xf32> -> vector<80x16xf32>
    %94 = arith.addf %87, %93 : vector<80x16xf32>
    %c0_93 = arith.constant 0 : index
    %c20 = arith.constant 20 : index
    %c0_94 = arith.constant 0 : index
    %95 = vector.load %arg1[%c0_93, %c20, %c0_94] : memref<1x108x32xf32, #tpu.memory_space<vmem>>, vector<1x80x32xf32>
    %96 = vector.shape_cast %95 : vector<1x80x32xf32> to vector<80x32xf32>
    %97 = arith.truncf %96 : vector<80x32xf32> to vector<80x32xbf16>
    %c2_95 = arith.constant 2 : index
    %c2_96 = arith.constant 2 : index
    %c0_97 = arith.constant 0 : index
    %c0_98 = arith.constant 0 : index
    %98 = vector.load %arg2[%c2_95, %c2_96, %c0_97, %c0_98] : memref<4x4x32x16xbf16, #tpu.memory_space<vmem>>, vector<1x1x32x16xbf16>
    %99 = vector.shape_cast %98 : vector<1x1x32x16xbf16> to vector<32x16xbf16>
    %cst_99 = arith.constant dense<0.000000e+00> : vector<80x16xf32>
    %100 = tpu.matmul %97, %99, %cst_99 {dimension_numbers = #tpu.dot_dimension_numbers<[1], [0], [0], [1], [0, 0, 1, 1], [], []>} : vector<80x32xbf16>, vector<32x16xbf16>, vector<80x16xf32> -> vector<80x16xf32>
    %101 = arith.addf %94, %100 : vector<80x16xf32>
    %c0_100 = arith.constant 0 : index
    %c21 = arith.constant 21 : index
    %c0_101 = arith.constant 0 : index
    %102 = vector.load %arg1[%c0_100, %c21, %c0_101] : memref<1x108x32xf32, #tpu.memory_space<vmem>>, vector<1x80x32xf32>
    %103 = vector.shape_cast %102 : vector<1x80x32xf32> to vector<80x32xf32>
    %104 = arith.truncf %103 : vector<80x32xf32> to vector<80x32xbf16>
    %c2_102 = arith.constant 2 : index
    %c3_103 = arith.constant 3 : index
    %c0_104 = arith.constant 0 : index
    %c0_105 = arith.constant 0 : index
    %105 = vector.load %arg2[%c2_102, %c3_103, %c0_104, %c0_105] : memref<4x4x32x16xbf16, #tpu.memory_space<vmem>>, vector<1x1x32x16xbf16>
    %106 = vector.shape_cast %105 : vector<1x1x32x16xbf16> to vector<32x16xbf16>
    %cst_106 = arith.constant dense<0.000000e+00> : vector<80x16xf32>
    %107 = tpu.matmul %104, %106, %cst_106 {dimension_numbers = #tpu.dot_dimension_numbers<[1], [0], [0], [1], [0, 0, 1, 1], [], []>} : vector<80x32xbf16>, vector<32x16xbf16>, vector<80x16xf32> -> vector<80x16xf32>
    %108 = arith.addf %101, %107 : vector<80x16xf32>
    %c0_107 = arith.constant 0 : index
    %c0_108 = arith.constant 0 : index
    %109 = vector.load %arg3[%c0_107, %c0_108] : memref<1x16xf32, #tpu.memory_space<vmem>>, vector<1x16xf32>
    %110 = vector.broadcast %109 : vector<1x16xf32> to vector<80x16xf32>
    %111 = arith.mulf %108, %110 : vector<80x16xf32>
    %c0_109 = arith.constant 0 : index
    %c0_110 = arith.constant 0 : index
    %112 = vector.load %arg4[%c0_109, %c0_110] : memref<1x16xf32, #tpu.memory_space<vmem>>, vector<1x16xf32>
    %113 = vector.broadcast %112 : vector<1x16xf32> to vector<80x16xf32>
    %114 = arith.addf %111, %113 : vector<80x16xf32>
    %cst_111 = arith.constant 0.000000e+00 : f32
    %115 = vector.broadcast %cst_111 : f32 to vector<80x16xf32>
    %116 = arith.maximumf %114, %115 : vector<80x16xf32>
    %c0_112 = arith.constant 0 : index
    %c2_113 = arith.constant 2 : index
    %c0_114 = arith.constant 0 : index
    %c0_115 = arith.constant 0 : index
    %117 = vector.load %arg5[%c0_112, %c2_113, %c0_114, %c0_115] : memref<1x4x80x16xf32, #tpu.memory_space<vmem>>, vector<1x1x80x16xf32>
    %118 = vector.shape_cast %117 : vector<1x1x80x16xf32> to vector<80x16xf32>
    %119 = vector.shape_cast %116 : vector<80x16xf32> to vector<1x1x80x16xf32>
    tpu.vector_store %arg5[%c0_112, %c2_113, %c0_114, %c0_115], %119 {strides = array<i32>} : memref<1x4x80x16xf32, #tpu.memory_space<vmem>>, vector<1x1x80x16xf32>,
    %cst_116 = arith.constant 0.000000e+00 : f32
    %120 = vector.broadcast %cst_116 : f32 to vector<80x16xf32>
    %c0_117 = arith.constant 0 : index
    %c11_118 = arith.constant 11 : index
    %c0_119 = arith.constant 0 : index
    %121 = vector.load %arg1[%c0_117, %c11_118, %c0_119] : memref<1x108x32xf32, #tpu.memory_space<vmem>>, vector<1x80x32xf32>
    %122 = vector.shape_cast %121 : vector<1x80x32xf32> to vector<80x32xf32>
    %123 = arith.truncf %122 : vector<80x32xf32> to vector<80x32xbf16>
    %c3_120 = arith.constant 3 : index
    %c0_121 = arith.constant 0 : index
    %c0_122 = arith.constant 0 : index
    %c0_123 = arith.constant 0 : index
    %124 = vector.load %arg2[%c3_120, %c0_121, %c0_122, %c0_123] : memref<4x4x32x16xbf16, #tpu.memory_space<vmem>>, vector<1x1x32x16xbf16>
    %125 = vector.shape_cast %124 : vector<1x1x32x16xbf16> to vector<32x16xbf16>
    %cst_124 = arith.constant dense<0.000000e+00> : vector<80x16xf32>
    %126 = tpu.matmul %123, %125, %cst_124 {dimension_numbers = #tpu.dot_dimension_numbers<[1], [0], [0], [1], [0, 0, 1, 1], [], []>} : vector<80x32xbf16>, vector<32x16xbf16>, vector<80x16xf32> -> vector<80x16xf32>
    %127 = arith.addf %120, %126 : vector<80x16xf32>
    %c0_125 = arith.constant 0 : index
    %c12_126 = arith.constant 12 : index
    %c0_127 = arith.constant 0 : index
    %128 = vector.load %arg1[%c0_125, %c12_126, %c0_127] : memref<1x108x32xf32, #tpu.memory_space<vmem>>, vector<1x80x32xf32>
    %129 = vector.shape_cast %128 : vector<1x80x32xf32> to vector<80x32xf32>
    %130 = arith.truncf %129 : vector<80x32xf32> to vector<80x32xbf16>
    %c3_128 = arith.constant 3 : index
    %c1_129 = arith.constant 1 : index
    %c0_130 = arith.constant 0 : index
    %c0_131 = arith.constant 0 : index
    %131 = vector.load %arg2[%c3_128, %c1_129, %c0_130, %c0_131] : memref<4x4x32x16xbf16, #tpu.memory_space<vmem>>, vector<1x1x32x16xbf16>
    %132 = vector.shape_cast %131 : vector<1x1x32x16xbf16> to vector<32x16xbf16>
    %cst_132 = arith.constant dense<0.000000e+00> : vector<80x16xf32>
    %133 = tpu.matmul %130, %132, %cst_132 {dimension_numbers = #tpu.dot_dimension_numbers<[1], [0], [0], [1], [0, 0, 1, 1], [], []>} : vector<80x32xbf16>, vector<32x16xbf16>, vector<80x16xf32> -> vector<80x16xf32>
    %134 = arith.addf %127, %133 : vector<80x16xf32>
    %c0_133 = arith.constant 0 : index
    %c21_134 = arith.constant 21 : index
    %c0_135 = arith.constant 0 : index
    %135 = vector.load %arg1[%c0_133, %c21_134, %c0_135] : memref<1x108x32xf32, #tpu.memory_space<vmem>>, vector<1x80x32xf32>
    %136 = vector.shape_cast %135 : vector<1x80x32xf32> to vector<80x32xf32>
    %137 = arith.truncf %136 : vector<80x32xf32> to vector<80x32xbf16>
    %c3_136 = arith.constant 3 : index
    %c2_137 = arith.constant 2 : index
    %c0_138 = arith.constant 0 : index
    %c0_139 = arith.constant 0 : index
    %138 = vector.load %arg2[%c3_136, %c2_137, %c0_138, %c0_139] : memref<4x4x32x16xbf16, #tpu.memory_space<vmem>>, vector<1x1x32x16xbf16>
    %139 = vector.shape_cast %138 : vector<1x1x32x16xbf16> to vector<32x16xbf16>
    %cst_140 = arith.constant dense<0.000000e+00> : vector<80x16xf32>
    %140 = tpu.matmul %137, %139, %cst_140 {dimension_numbers = #tpu.dot_dimension_numbers<[1], [0], [0], [1], [0, 0, 1, 1], [], []>} : vector<80x32xbf16>, vector<32x16xbf16>, vector<80x16xf32> -> vector<80x16xf32>
    %141 = arith.addf %134, %140 : vector<80x16xf32>
    %c0_141 = arith.constant 0 : index
    %c22 = arith.constant 22 : index
    %c0_142 = arith.constant 0 : index
    %142 = vector.load %arg1[%c0_141, %c22, %c0_142] : memref<1x108x32xf32, #tpu.memory_space<vmem>>, vector<1x80x32xf32>
    %143 = vector.shape_cast %142 : vector<1x80x32xf32> to vector<80x32xf32>
    %144 = arith.truncf %143 : vector<80x32xf32> to vector<80x32xbf16>
    %c3_143 = arith.constant 3 : index
    %c3_144 = arith.constant 3 : index
    %c0_145 = arith.constant 0 : index
    %c0_146 = arith.constant 0 : index
    %145 = vector.load %arg2[%c3_143, %c3_144, %c0_145, %c0_146] : memref<4x4x32x16xbf16, #tpu.memory_space<vmem>>, vector<1x1x32x16xbf16>
    %146 = vector.shape_cast %145 : vector<1x1x32x16xbf16> to vector<32x16xbf16>
    %cst_147 = arith.constant dense<0.000000e+00> : vector<80x16xf32>
    %147 = tpu.matmul %144, %146, %cst_147 {dimension_numbers = #tpu.dot_dimension_numbers<[1], [0], [0], [1], [0, 0, 1, 1], [], []>} : vector<80x32xbf16>, vector<32x16xbf16>, vector<80x16xf32> -> vector<80x16xf32>
    %148 = arith.addf %141, %147 : vector<80x16xf32>
    %c0_148 = arith.constant 0 : index
    %c0_149 = arith.constant 0 : index
    %149 = vector.load %arg3[%c0_148, %c0_149] : memref<1x16xf32, #tpu.memory_space<vmem>>, vector<1x16xf32>
    %150 = vector.broadcast %149 : vector<1x16xf32> to vector<80x16xf32>
    %151 = arith.mulf %148, %150 : vector<80x16xf32>
    %c0_150 = arith.constant 0 : index
    %c0_151 = arith.constant 0 : index
    %152 = vector.load %arg4[%c0_150, %c0_151] : memref<1x16xf32, #tpu.memory_space<vmem>>, vector<1x16xf32>
    %153 = vector.broadcast %152 : vector<1x16xf32> to vector<80x16xf32>
    %154 = arith.addf %151, %153 : vector<80x16xf32>
    %cst_152 = arith.constant 0.000000e+00 : f32
    %155 = vector.broadcast %cst_152 : f32 to vector<80x16xf32>
    %156 = arith.maximumf %154, %155 : vector<80x16xf32>
    %c0_153 = arith.constant 0 : index
    %c3_154 = arith.constant 3 : index
    %c0_155 = arith.constant 0 : index
    %c0_156 = arith.constant 0 : index
    %157 = vector.load %arg5[%c0_153, %c3_154, %c0_155, %c0_156] : memref<1x4x80x16xf32, #tpu.memory_space<vmem>>, vector<1x1x80x16xf32>
    %158 = vector.shape_cast %157 : vector<1x1x80x16xf32> to vector<80x16xf32>
    %159 = vector.shape_cast %156 : vector<80x16xf32> to vector<1x1x80x16xf32>
    tpu.vector_store %arg5[%c0_153, %c3_154, %c0_155, %c0_156], %159 {strides = array<i32>} : memref<1x4x80x16xf32, #tpu.memory_space<vmem>>, vector<1x1x80x16xf32>,
    return
  }
  func.func @transform_0(%arg0: i32) -> (i32, i32, i32) {
    %c0_i32 = arith.constant 0 : i32
    %c0_i32_0 = arith.constant 0 : i32
    %c0_i32_1 = arith.constant 0 : i32
    return %arg0, %c0_i32, %c0_i32_0 : i32, i32, i32
  }
  func.func @transform_1(%arg0: i32) -> (i32, i32, i32, i32) {
    %c0_i32 = arith.constant 0 : i32
    %c0_i32_0 = arith.constant 0 : i32
    %c0_i32_1 = arith.constant 0 : i32
    %c0_i32_2 = arith.constant 0 : i32
    %c0_i32_3 = arith.constant 0 : i32
    return %c0_i32, %c0_i32_0, %c0_i32_1, %c0_i32_2 : i32, i32, i32, i32
  }
  func.func @transform_2(%arg0: i32) -> (i32, i32) {
    %c0_i32 = arith.constant 0 : i32
    %c0_i32_0 = arith.constant 0 : i32
    %c0_i32_1 = arith.constant 0 : i32
    return %c0_i32, %c0_i32_0 : i32, i32
  }
  func.func @transform_3(%arg0: i32) -> (i32, i32) {
    %c0_i32 = arith.constant 0 : i32
    %c0_i32_0 = arith.constant 0 : i32
    %c0_i32_1 = arith.constant 0 : i32
    return %c0_i32, %c0_i32_0 : i32, i32
  }
  func.func @transform_4(%arg0: i32) -> (i32, i32, i32, i32) {
    %c0_i32 = arith.constant 0 : i32
    %c0_i32_0 = arith.constant 0 : i32
    %c0_i32_1 = arith.constant 0 : i32
    %c0_i32_2 = arith.constant 0 : i32
    return %arg0, %c0_i32, %c0_i32_0, %c0_i32_1 : i32, i32, i32, i32
  }
}

module attributes {stable_mosaic.version = 11 : i64} {
  func.func @_deconv_phase_kernel(%arg0: i32, %arg1: memref<1x332x16xf32, #tpu.memory_space<vmem>>, %arg2: memref<4x4x16x128xbf16, #tpu.memory_space<vmem>>, %arg3: memref<1x128xf32, #tpu.memory_space<vmem>>, %arg4: memref<1x128xf32, #tpu.memory_space<vmem>>, %arg5: memref<1x4x288x128xf32, #tpu.memory_space<vmem>>) attributes {dimension_semantics = [#tpu.dimension_semantics<parallel>], iteration_bounds = array<i64: 2>, scalar_prefetch = 0 : i64, scratch_operands = 0 : i64, tpu.core_type = #tpu.core_type<tc>, window_params = [{transform_indices = @transform_0, window_bounds = array<i64: 1, 332, 16>}, {pipeline_mode = #tpu.pipeline_mode<synchronous>, transform_indices = @transform_1, window_bounds = array<i64: 4, 4, 16, 128>}, {pipeline_mode = #tpu.pipeline_mode<synchronous>, transform_indices = @transform_2, window_bounds = array<i64: 1, 128>}, {pipeline_mode = #tpu.pipeline_mode<synchronous>, transform_indices = @transform_3, window_bounds = array<i64: 1, 128>}, {transform_indices = @transform_4, window_bounds = array<i64: 1, 4, 288, 128>}]} {
    %cst = arith.constant 0.000000e+00 : f32
    %0 = vector.broadcast %cst : f32 to vector<288x128xf32>
    %c0 = arith.constant 0 : index
    %c0_0 = arith.constant 0 : index
    %c0_1 = arith.constant 0 : index
    %1 = vector.load %arg1[%c0, %c0_0, %c0_1] : memref<1x332x16xf32, #tpu.memory_space<vmem>>, vector<1x288x16xf32>
    %2 = vector.shape_cast %1 : vector<1x288x16xf32> to vector<288x16xf32>
    %3 = arith.truncf %2 : vector<288x16xf32> to vector<288x16xbf16>
    %c0_2 = arith.constant 0 : index
    %c0_3 = arith.constant 0 : index
    %c0_4 = arith.constant 0 : index
    %c0_5 = arith.constant 0 : index
    %4 = vector.load %arg2[%c0_2, %c0_3, %c0_4, %c0_5] : memref<4x4x16x128xbf16, #tpu.memory_space<vmem>>, vector<1x1x16x128xbf16>
    %5 = vector.shape_cast %4 : vector<1x1x16x128xbf16> to vector<16x128xbf16>
    %cst_6 = arith.constant dense<0.000000e+00> : vector<288x128xf32>
    %6 = tpu.matmul %3, %5, %cst_6 {dimension_numbers = #tpu.dot_dimension_numbers<[1], [0], [0], [1], [0, 0, 1, 1], [], []>} : vector<288x16xbf16>, vector<16x128xbf16>, vector<288x128xf32> -> vector<288x128xf32>
    %7 = arith.addf %0, %6 : vector<288x128xf32>
    %c0_7 = arith.constant 0 : index
    %c1 = arith.constant 1 : index
    %c0_8 = arith.constant 0 : index
    %8 = vector.load %arg1[%c0_7, %c1, %c0_8] : memref<1x332x16xf32, #tpu.memory_space<vmem>>, vector<1x288x16xf32>
    %9 = vector.shape_cast %8 : vector<1x288x16xf32> to vector<288x16xf32>
    %10 = arith.truncf %9 : vector<288x16xf32> to vector<288x16xbf16>
    %c0_9 = arith.constant 0 : index
    %c1_10 = arith.constant 1 : index
    %c0_11 = arith.constant 0 : index
    %c0_12 = arith.constant 0 : index
    %11 = vector.load %arg2[%c0_9, %c1_10, %c0_11, %c0_12] : memref<4x4x16x128xbf16, #tpu.memory_space<vmem>>, vector<1x1x16x128xbf16>
    %12 = vector.shape_cast %11 : vector<1x1x16x128xbf16> to vector<16x128xbf16>
    %cst_13 = arith.constant dense<0.000000e+00> : vector<288x128xf32>
    %13 = tpu.matmul %10, %12, %cst_13 {dimension_numbers = #tpu.dot_dimension_numbers<[1], [0], [0], [1], [0, 0, 1, 1], [], []>} : vector<288x16xbf16>, vector<16x128xbf16>, vector<288x128xf32> -> vector<288x128xf32>
    %14 = arith.addf %7, %13 : vector<288x128xf32>
    %c0_14 = arith.constant 0 : index
    %c18 = arith.constant 18 : index
    %c0_15 = arith.constant 0 : index
    %15 = vector.load %arg1[%c0_14, %c18, %c0_15] : memref<1x332x16xf32, #tpu.memory_space<vmem>>, vector<1x288x16xf32>
    %16 = vector.shape_cast %15 : vector<1x288x16xf32> to vector<288x16xf32>
    %17 = arith.truncf %16 : vector<288x16xf32> to vector<288x16xbf16>
    %c0_16 = arith.constant 0 : index
    %c2 = arith.constant 2 : index
    %c0_17 = arith.constant 0 : index
    %c0_18 = arith.constant 0 : index
    %18 = vector.load %arg2[%c0_16, %c2, %c0_17, %c0_18] : memref<4x4x16x128xbf16, #tpu.memory_space<vmem>>, vector<1x1x16x128xbf16>
    %19 = vector.shape_cast %18 : vector<1x1x16x128xbf16> to vector<16x128xbf16>
    %cst_19 = arith.constant dense<0.000000e+00> : vector<288x128xf32>
    %20 = tpu.matmul %17, %19, %cst_19 {dimension_numbers = #tpu.dot_dimension_numbers<[1], [0], [0], [1], [0, 0, 1, 1], [], []>} : vector<288x16xbf16>, vector<16x128xbf16>, vector<288x128xf32> -> vector<288x128xf32>
    %21 = arith.addf %14, %20 : vector<288x128xf32>
    %c0_20 = arith.constant 0 : index
    %c19 = arith.constant 19 : index
    %c0_21 = arith.constant 0 : index
    %22 = vector.load %arg1[%c0_20, %c19, %c0_21] : memref<1x332x16xf32, #tpu.memory_space<vmem>>, vector<1x288x16xf32>
    %23 = vector.shape_cast %22 : vector<1x288x16xf32> to vector<288x16xf32>
    %24 = arith.truncf %23 : vector<288x16xf32> to vector<288x16xbf16>
    %c0_22 = arith.constant 0 : index
    %c3 = arith.constant 3 : index
    %c0_23 = arith.constant 0 : index
    %c0_24 = arith.constant 0 : index
    %25 = vector.load %arg2[%c0_22, %c3, %c0_23, %c0_24] : memref<4x4x16x128xbf16, #tpu.memory_space<vmem>>, vector<1x1x16x128xbf16>
    %26 = vector.shape_cast %25 : vector<1x1x16x128xbf16> to vector<16x128xbf16>
    %cst_25 = arith.constant dense<0.000000e+00> : vector<288x128xf32>
    %27 = tpu.matmul %24, %26, %cst_25 {dimension_numbers = #tpu.dot_dimension_numbers<[1], [0], [0], [1], [0, 0, 1, 1], [], []>} : vector<288x16xbf16>, vector<16x128xbf16>, vector<288x128xf32> -> vector<288x128xf32>
    %28 = arith.addf %21, %27 : vector<288x128xf32>
    %c0_26 = arith.constant 0 : index
    %c0_27 = arith.constant 0 : index
    %29 = vector.load %arg3[%c0_26, %c0_27] : memref<1x128xf32, #tpu.memory_space<vmem>>, vector<1x128xf32>
    %30 = vector.broadcast %29 : vector<1x128xf32> to vector<288x128xf32>
    %31 = arith.mulf %28, %30 : vector<288x128xf32>
    %c0_28 = arith.constant 0 : index
    %c0_29 = arith.constant 0 : index
    %32 = vector.load %arg4[%c0_28, %c0_29] : memref<1x128xf32, #tpu.memory_space<vmem>>, vector<1x128xf32>
    %33 = vector.broadcast %32 : vector<1x128xf32> to vector<288x128xf32>
    %34 = arith.addf %31, %33 : vector<288x128xf32>
    %35 = math.tanh %34 : vector<288x128xf32>
    %c0_30 = arith.constant 0 : index
    %c0_31 = arith.constant 0 : index
    %c0_32 = arith.constant 0 : index
    %c0_33 = arith.constant 0 : index
    %36 = vector.load %arg5[%c0_30, %c0_31, %c0_32, %c0_33] : memref<1x4x288x128xf32, #tpu.memory_space<vmem>>, vector<1x1x288x128xf32>
    %37 = vector.shape_cast %36 : vector<1x1x288x128xf32> to vector<288x128xf32>
    %38 = vector.shape_cast %35 : vector<288x128xf32> to vector<1x1x288x128xf32>
    tpu.vector_store %arg5[%c0_30, %c0_31, %c0_32, %c0_33], %38 {strides = array<i32>} : memref<1x4x288x128xf32, #tpu.memory_space<vmem>>, vector<1x1x288x128xf32>,
    %cst_34 = arith.constant 0.000000e+00 : f32
    %39 = vector.broadcast %cst_34 : f32 to vector<288x128xf32>
    %c0_35 = arith.constant 0 : index
    %c1_36 = arith.constant 1 : index
    %c0_37 = arith.constant 0 : index
    %40 = vector.load %arg1[%c0_35, %c1_36, %c0_37] : memref<1x332x16xf32, #tpu.memory_space<vmem>>, vector<1x288x16xf32>
    %41 = vector.shape_cast %40 : vector<1x288x16xf32> to vector<288x16xf32>
    %42 = arith.truncf %41 : vector<288x16xf32> to vector<288x16xbf16>
    %c1_38 = arith.constant 1 : index
    %c0_39 = arith.constant 0 : index
    %c0_40 = arith.constant 0 : index
    %c0_41 = arith.constant 0 : index
    %43 = vector.load %arg2[%c1_38, %c0_39, %c0_40, %c0_41] : memref<4x4x16x128xbf16, #tpu.memory_space<vmem>>, vector<1x1x16x128xbf16>
    %44 = vector.shape_cast %43 : vector<1x1x16x128xbf16> to vector<16x128xbf16>
    %cst_42 = arith.constant dense<0.000000e+00> : vector<288x128xf32>
    %45 = tpu.matmul %42, %44, %cst_42 {dimension_numbers = #tpu.dot_dimension_numbers<[1], [0], [0], [1], [0, 0, 1, 1], [], []>} : vector<288x16xbf16>, vector<16x128xbf16>, vector<288x128xf32> -> vector<288x128xf32>
    %46 = arith.addf %39, %45 : vector<288x128xf32>
    %c0_43 = arith.constant 0 : index
    %c2_44 = arith.constant 2 : index
    %c0_45 = arith.constant 0 : index
    %47 = vector.load %arg1[%c0_43, %c2_44, %c0_45] : memref<1x332x16xf32, #tpu.memory_space<vmem>>, vector<1x288x16xf32>
    %48 = vector.shape_cast %47 : vector<1x288x16xf32> to vector<288x16xf32>
    %49 = arith.truncf %48 : vector<288x16xf32> to vector<288x16xbf16>
    %c1_46 = arith.constant 1 : index
    %c1_47 = arith.constant 1 : index
    %c0_48 = arith.constant 0 : index
    %c0_49 = arith.constant 0 : index
    %50 = vector.load %arg2[%c1_46, %c1_47, %c0_48, %c0_49] : memref<4x4x16x128xbf16, #tpu.memory_space<vmem>>, vector<1x1x16x128xbf16>
    %51 = vector.shape_cast %50 : vector<1x1x16x128xbf16> to vector<16x128xbf16>
    %cst_50 = arith.constant dense<0.000000e+00> : vector<288x128xf32>
    %52 = tpu.matmul %49, %51, %cst_50 {dimension_numbers = #tpu.dot_dimension_numbers<[1], [0], [0], [1], [0, 0, 1, 1], [], []>} : vector<288x16xbf16>, vector<16x128xbf16>, vector<288x128xf32> -> vector<288x128xf32>
    %53 = arith.addf %46, %52 : vector<288x128xf32>
    %c0_51 = arith.constant 0 : index
    %c19_52 = arith.constant 19 : index
    %c0_53 = arith.constant 0 : index
    %54 = vector.load %arg1[%c0_51, %c19_52, %c0_53] : memref<1x332x16xf32, #tpu.memory_space<vmem>>, vector<1x288x16xf32>
    %55 = vector.shape_cast %54 : vector<1x288x16xf32> to vector<288x16xf32>
    %56 = arith.truncf %55 : vector<288x16xf32> to vector<288x16xbf16>
    %c1_54 = arith.constant 1 : index
    %c2_55 = arith.constant 2 : index
    %c0_56 = arith.constant 0 : index
    %c0_57 = arith.constant 0 : index
    %57 = vector.load %arg2[%c1_54, %c2_55, %c0_56, %c0_57] : memref<4x4x16x128xbf16, #tpu.memory_space<vmem>>, vector<1x1x16x128xbf16>
    %58 = vector.shape_cast %57 : vector<1x1x16x128xbf16> to vector<16x128xbf16>
    %cst_58 = arith.constant dense<0.000000e+00> : vector<288x128xf32>
    %59 = tpu.matmul %56, %58, %cst_58 {dimension_numbers = #tpu.dot_dimension_numbers<[1], [0], [0], [1], [0, 0, 1, 1], [], []>} : vector<288x16xbf16>, vector<16x128xbf16>, vector<288x128xf32> -> vector<288x128xf32>
    %60 = arith.addf %53, %59 : vector<288x128xf32>
    %c0_59 = arith.constant 0 : index
    %c20 = arith.constant 20 : index
    %c0_60 = arith.constant 0 : index
    %61 = vector.load %arg1[%c0_59, %c20, %c0_60] : memref<1x332x16xf32, #tpu.memory_space<vmem>>, vector<1x288x16xf32>
    %62 = vector.shape_cast %61 : vector<1x288x16xf32> to vector<288x16xf32>
    %63 = arith.truncf %62 : vector<288x16xf32> to vector<288x16xbf16>
    %c1_61 = arith.constant 1 : index
    %c3_62 = arith.constant 3 : index
    %c0_63 = arith.constant 0 : index
    %c0_64 = arith.constant 0 : index
    %64 = vector.load %arg2[%c1_61, %c3_62, %c0_63, %c0_64] : memref<4x4x16x128xbf16, #tpu.memory_space<vmem>>, vector<1x1x16x128xbf16>
    %65 = vector.shape_cast %64 : vector<1x1x16x128xbf16> to vector<16x128xbf16>
    %cst_65 = arith.constant dense<0.000000e+00> : vector<288x128xf32>
    %66 = tpu.matmul %63, %65, %cst_65 {dimension_numbers = #tpu.dot_dimension_numbers<[1], [0], [0], [1], [0, 0, 1, 1], [], []>} : vector<288x16xbf16>, vector<16x128xbf16>, vector<288x128xf32> -> vector<288x128xf32>
    %67 = arith.addf %60, %66 : vector<288x128xf32>
    %c0_66 = arith.constant 0 : index
    %c0_67 = arith.constant 0 : index
    %68 = vector.load %arg3[%c0_66, %c0_67] : memref<1x128xf32, #tpu.memory_space<vmem>>, vector<1x128xf32>
    %69 = vector.broadcast %68 : vector<1x128xf32> to vector<288x128xf32>
    %70 = arith.mulf %67, %69 : vector<288x128xf32>
    %c0_68 = arith.constant 0 : index
    %c0_69 = arith.constant 0 : index
    %71 = vector.load %arg4[%c0_68, %c0_69] : memref<1x128xf32, #tpu.memory_space<vmem>>, vector<1x128xf32>
    %72 = vector.broadcast %71 : vector<1x128xf32> to vector<288x128xf32>
    %73 = arith.addf %70, %72 : vector<288x128xf32>
    %74 = math.tanh %73 : vector<288x128xf32>
    %c0_70 = arith.constant 0 : index
    %c1_71 = arith.constant 1 : index
    %c0_72 = arith.constant 0 : index
    %c0_73 = arith.constant 0 : index
    %75 = vector.load %arg5[%c0_70, %c1_71, %c0_72, %c0_73] : memref<1x4x288x128xf32, #tpu.memory_space<vmem>>, vector<1x1x288x128xf32>
    %76 = vector.shape_cast %75 : vector<1x1x288x128xf32> to vector<288x128xf32>
    %77 = vector.shape_cast %74 : vector<288x128xf32> to vector<1x1x288x128xf32>
    tpu.vector_store %arg5[%c0_70, %c1_71, %c0_72, %c0_73], %77 {strides = array<i32>} : memref<1x4x288x128xf32, #tpu.memory_space<vmem>>, vector<1x1x288x128xf32>,
    %cst_74 = arith.constant 0.000000e+00 : f32
    %78 = vector.broadcast %cst_74 : f32 to vector<288x128xf32>
    %c0_75 = arith.constant 0 : index
    %c18_76 = arith.constant 18 : index
    %c0_77 = arith.constant 0 : index
    %79 = vector.load %arg1[%c0_75, %c18_76, %c0_77] : memref<1x332x16xf32, #tpu.memory_space<vmem>>, vector<1x288x16xf32>
    %80 = vector.shape_cast %79 : vector<1x288x16xf32> to vector<288x16xf32>
    %81 = arith.truncf %80 : vector<288x16xf32> to vector<288x16xbf16>
    %c2_78 = arith.constant 2 : index
    %c0_79 = arith.constant 0 : index
    %c0_80 = arith.constant 0 : index
    %c0_81 = arith.constant 0 : index
    %82 = vector.load %arg2[%c2_78, %c0_79, %c0_80, %c0_81] : memref<4x4x16x128xbf16, #tpu.memory_space<vmem>>, vector<1x1x16x128xbf16>
    %83 = vector.shape_cast %82 : vector<1x1x16x128xbf16> to vector<16x128xbf16>
    %cst_82 = arith.constant dense<0.000000e+00> : vector<288x128xf32>
    %84 = tpu.matmul %81, %83, %cst_82 {dimension_numbers = #tpu.dot_dimension_numbers<[1], [0], [0], [1], [0, 0, 1, 1], [], []>} : vector<288x16xbf16>, vector<16x128xbf16>, vector<288x128xf32> -> vector<288x128xf32>
    %85 = arith.addf %78, %84 : vector<288x128xf32>
    %c0_83 = arith.constant 0 : index
    %c19_84 = arith.constant 19 : index
    %c0_85 = arith.constant 0 : index
    %86 = vector.load %arg1[%c0_83, %c19_84, %c0_85] : memref<1x332x16xf32, #tpu.memory_space<vmem>>, vector<1x288x16xf32>
    %87 = vector.shape_cast %86 : vector<1x288x16xf32> to vector<288x16xf32>
    %88 = arith.truncf %87 : vector<288x16xf32> to vector<288x16xbf16>
    %c2_86 = arith.constant 2 : index
    %c1_87 = arith.constant 1 : index
    %c0_88 = arith.constant 0 : index
    %c0_89 = arith.constant 0 : index
    %89 = vector.load %arg2[%c2_86, %c1_87, %c0_88, %c0_89] : memref<4x4x16x128xbf16, #tpu.memory_space<vmem>>, vector<1x1x16x128xbf16>
    %90 = vector.shape_cast %89 : vector<1x1x16x128xbf16> to vector<16x128xbf16>
    %cst_90 = arith.constant dense<0.000000e+00> : vector<288x128xf32>
    %91 = tpu.matmul %88, %90, %cst_90 {dimension_numbers = #tpu.dot_dimension_numbers<[1], [0], [0], [1], [0, 0, 1, 1], [], []>} : vector<288x16xbf16>, vector<16x128xbf16>, vector<288x128xf32> -> vector<288x128xf32>
    %92 = arith.addf %85, %91 : vector<288x128xf32>
    %c0_91 = arith.constant 0 : index
    %c36 = arith.constant 36 : index
    %c0_92 = arith.constant 0 : index
    %93 = vector.load %arg1[%c0_91, %c36, %c0_92] : memref<1x332x16xf32, #tpu.memory_space<vmem>>, vector<1x288x16xf32>
    %94 = vector.shape_cast %93 : vector<1x288x16xf32> to vector<288x16xf32>
    %95 = arith.truncf %94 : vector<288x16xf32> to vector<288x16xbf16>
    %c2_93 = arith.constant 2 : index
    %c2_94 = arith.constant 2 : index
    %c0_95 = arith.constant 0 : index
    %c0_96 = arith.constant 0 : index
    %96 = vector.load %arg2[%c2_93, %c2_94, %c0_95, %c0_96] : memref<4x4x16x128xbf16, #tpu.memory_space<vmem>>, vector<1x1x16x128xbf16>
    %97 = vector.shape_cast %96 : vector<1x1x16x128xbf16> to vector<16x128xbf16>
    %cst_97 = arith.constant dense<0.000000e+00> : vector<288x128xf32>
    %98 = tpu.matmul %95, %97, %cst_97 {dimension_numbers = #tpu.dot_dimension_numbers<[1], [0], [0], [1], [0, 0, 1, 1], [], []>} : vector<288x16xbf16>, vector<16x128xbf16>, vector<288x128xf32> -> vector<288x128xf32>
    %99 = arith.addf %92, %98 : vector<288x128xf32>
    %c0_98 = arith.constant 0 : index
    %c37 = arith.constant 37 : index
    %c0_99 = arith.constant 0 : index
    %100 = vector.load %arg1[%c0_98, %c37, %c0_99] : memref<1x332x16xf32, #tpu.memory_space<vmem>>, vector<1x288x16xf32>
    %101 = vector.shape_cast %100 : vector<1x288x16xf32> to vector<288x16xf32>
    %102 = arith.truncf %101 : vector<288x16xf32> to vector<288x16xbf16>
    %c2_100 = arith.constant 2 : index
    %c3_101 = arith.constant 3 : index
    %c0_102 = arith.constant 0 : index
    %c0_103 = arith.constant 0 : index
    %103 = vector.load %arg2[%c2_100, %c3_101, %c0_102, %c0_103] : memref<4x4x16x128xbf16, #tpu.memory_space<vmem>>, vector<1x1x16x128xbf16>
    %104 = vector.shape_cast %103 : vector<1x1x16x128xbf16> to vector<16x128xbf16>
    %cst_104 = arith.constant dense<0.000000e+00> : vector<288x128xf32>
    %105 = tpu.matmul %102, %104, %cst_104 {dimension_numbers = #tpu.dot_dimension_numbers<[1], [0], [0], [1], [0, 0, 1, 1], [], []>} : vector<288x16xbf16>, vector<16x128xbf16>, vector<288x128xf32> -> vector<288x128xf32>
    %106 = arith.addf %99, %105 : vector<288x128xf32>
    %c0_105 = arith.constant 0 : index
    %c0_106 = arith.constant 0 : index
    %107 = vector.load %arg3[%c0_105, %c0_106] : memref<1x128xf32, #tpu.memory_space<vmem>>, vector<1x128xf32>
    %108 = vector.broadcast %107 : vector<1x128xf32> to vector<288x128xf32>
    %109 = arith.mulf %106, %108 : vector<288x128xf32>
    %c0_107 = arith.constant 0 : index
    %c0_108 = arith.constant 0 : index
    %110 = vector.load %arg4[%c0_107, %c0_108] : memref<1x128xf32, #tpu.memory_space<vmem>>, vector<1x128xf32>
    %111 = vector.broadcast %110 : vector<1x128xf32> to vector<288x128xf32>
    %112 = arith.addf %109, %111 : vector<288x128xf32>
    %113 = math.tanh %112 : vector<288x128xf32>
    %c0_109 = arith.constant 0 : index
    %c2_110 = arith.constant 2 : index
    %c0_111 = arith.constant 0 : index
    %c0_112 = arith.constant 0 : index
    %114 = vector.load %arg5[%c0_109, %c2_110, %c0_111, %c0_112] : memref<1x4x288x128xf32, #tpu.memory_space<vmem>>, vector<1x1x288x128xf32>
    %115 = vector.shape_cast %114 : vector<1x1x288x128xf32> to vector<288x128xf32>
    %116 = vector.shape_cast %113 : vector<288x128xf32> to vector<1x1x288x128xf32>
    tpu.vector_store %arg5[%c0_109, %c2_110, %c0_111, %c0_112], %116 {strides = array<i32>} : memref<1x4x288x128xf32, #tpu.memory_space<vmem>>, vector<1x1x288x128xf32>,
    %cst_113 = arith.constant 0.000000e+00 : f32
    %117 = vector.broadcast %cst_113 : f32 to vector<288x128xf32>
    %c0_114 = arith.constant 0 : index
    %c19_115 = arith.constant 19 : index
    %c0_116 = arith.constant 0 : index
    %118 = vector.load %arg1[%c0_114, %c19_115, %c0_116] : memref<1x332x16xf32, #tpu.memory_space<vmem>>, vector<1x288x16xf32>
    %119 = vector.shape_cast %118 : vector<1x288x16xf32> to vector<288x16xf32>
    %120 = arith.truncf %119 : vector<288x16xf32> to vector<288x16xbf16>
    %c3_117 = arith.constant 3 : index
    %c0_118 = arith.constant 0 : index
    %c0_119 = arith.constant 0 : index
    %c0_120 = arith.constant 0 : index
    %121 = vector.load %arg2[%c3_117, %c0_118, %c0_119, %c0_120] : memref<4x4x16x128xbf16, #tpu.memory_space<vmem>>, vector<1x1x16x128xbf16>
    %122 = vector.shape_cast %121 : vector<1x1x16x128xbf16> to vector<16x128xbf16>
    %cst_121 = arith.constant dense<0.000000e+00> : vector<288x128xf32>
    %123 = tpu.matmul %120, %122, %cst_121 {dimension_numbers = #tpu.dot_dimension_numbers<[1], [0], [0], [1], [0, 0, 1, 1], [], []>} : vector<288x16xbf16>, vector<16x128xbf16>, vector<288x128xf32> -> vector<288x128xf32>
    %124 = arith.addf %117, %123 : vector<288x128xf32>
    %c0_122 = arith.constant 0 : index
    %c20_123 = arith.constant 20 : index
    %c0_124 = arith.constant 0 : index
    %125 = vector.load %arg1[%c0_122, %c20_123, %c0_124] : memref<1x332x16xf32, #tpu.memory_space<vmem>>, vector<1x288x16xf32>
    %126 = vector.shape_cast %125 : vector<1x288x16xf32> to vector<288x16xf32>
    %127 = arith.truncf %126 : vector<288x16xf32> to vector<288x16xbf16>
    %c3_125 = arith.constant 3 : index
    %c1_126 = arith.constant 1 : index
    %c0_127 = arith.constant 0 : index
    %c0_128 = arith.constant 0 : index
    %128 = vector.load %arg2[%c3_125, %c1_126, %c0_127, %c0_128] : memref<4x4x16x128xbf16, #tpu.memory_space<vmem>>, vector<1x1x16x128xbf16>
    %129 = vector.shape_cast %128 : vector<1x1x16x128xbf16> to vector<16x128xbf16>
    %cst_129 = arith.constant dense<0.000000e+00> : vector<288x128xf32>
    %130 = tpu.matmul %127, %129, %cst_129 {dimension_numbers = #tpu.dot_dimension_numbers<[1], [0], [0], [1], [0, 0, 1, 1], [], []>} : vector<288x16xbf16>, vector<16x128xbf16>, vector<288x128xf32> -> vector<288x128xf32>
    %131 = arith.addf %124, %130 : vector<288x128xf32>
    %c0_130 = arith.constant 0 : index
    %c37_131 = arith.constant 37 : index
    %c0_132 = arith.constant 0 : index
    %132 = vector.load %arg1[%c0_130, %c37_131, %c0_132] : memref<1x332x16xf32, #tpu.memory_space<vmem>>, vector<1x288x16xf32>
    %133 = vector.shape_cast %132 : vector<1x288x16xf32> to vector<288x16xf32>
    %134 = arith.truncf %133 : vector<288x16xf32> to vector<288x16xbf16>
    %c3_133 = arith.constant 3 : index
    %c2_134 = arith.constant 2 : index
    %c0_135 = arith.constant 0 : index
    %c0_136 = arith.constant 0 : index
    %135 = vector.load %arg2[%c3_133, %c2_134, %c0_135, %c0_136] : memref<4x4x16x128xbf16, #tpu.memory_space<vmem>>, vector<1x1x16x128xbf16>
    %136 = vector.shape_cast %135 : vector<1x1x16x128xbf16> to vector<16x128xbf16>
    %cst_137 = arith.constant dense<0.000000e+00> : vector<288x128xf32>
    %137 = tpu.matmul %134, %136, %cst_137 {dimension_numbers = #tpu.dot_dimension_numbers<[1], [0], [0], [1], [0, 0, 1, 1], [], []>} : vector<288x16xbf16>, vector<16x128xbf16>, vector<288x128xf32> -> vector<288x128xf32>
    %138 = arith.addf %131, %137 : vector<288x128xf32>
    %c0_138 = arith.constant 0 : index
    %c38 = arith.constant 38 : index
    %c0_139 = arith.constant 0 : index
    %139 = vector.load %arg1[%c0_138, %c38, %c0_139] : memref<1x332x16xf32, #tpu.memory_space<vmem>>, vector<1x288x16xf32>
    %140 = vector.shape_cast %139 : vector<1x288x16xf32> to vector<288x16xf32>
    %141 = arith.truncf %140 : vector<288x16xf32> to vector<288x16xbf16>
    %c3_140 = arith.constant 3 : index
    %c3_141 = arith.constant 3 : index
    %c0_142 = arith.constant 0 : index
    %c0_143 = arith.constant 0 : index
    %142 = vector.load %arg2[%c3_140, %c3_141, %c0_142, %c0_143] : memref<4x4x16x128xbf16, #tpu.memory_space<vmem>>, vector<1x1x16x128xbf16>
    %143 = vector.shape_cast %142 : vector<1x1x16x128xbf16> to vector<16x128xbf16>
    %cst_144 = arith.constant dense<0.000000e+00> : vector<288x128xf32>
    %144 = tpu.matmul %141, %143, %cst_144 {dimension_numbers = #tpu.dot_dimension_numbers<[1], [0], [0], [1], [0, 0, 1, 1], [], []>} : vector<288x16xbf16>, vector<16x128xbf16>, vector<288x128xf32> -> vector<288x128xf32>
    %145 = arith.addf %138, %144 : vector<288x128xf32>
    %c0_145 = arith.constant 0 : index
    %c0_146 = arith.constant 0 : index
    %146 = vector.load %arg3[%c0_145, %c0_146] : memref<1x128xf32, #tpu.memory_space<vmem>>, vector<1x128xf32>
    %147 = vector.broadcast %146 : vector<1x128xf32> to vector<288x128xf32>
    %148 = arith.mulf %145, %147 : vector<288x128xf32>
    %c0_147 = arith.constant 0 : index
    %c0_148 = arith.constant 0 : index
    %149 = vector.load %arg4[%c0_147, %c0_148] : memref<1x128xf32, #tpu.memory_space<vmem>>, vector<1x128xf32>
    %150 = vector.broadcast %149 : vector<1x128xf32> to vector<288x128xf32>
    %151 = arith.addf %148, %150 : vector<288x128xf32>
    %152 = math.tanh %151 : vector<288x128xf32>
    %c0_149 = arith.constant 0 : index
    %c3_150 = arith.constant 3 : index
    %c0_151 = arith.constant 0 : index
    %c0_152 = arith.constant 0 : index
    %153 = vector.load %arg5[%c0_149, %c3_150, %c0_151, %c0_152] : memref<1x4x288x128xf32, #tpu.memory_space<vmem>>, vector<1x1x288x128xf32>
    %154 = vector.shape_cast %153 : vector<1x1x288x128xf32> to vector<288x128xf32>
    %155 = vector.shape_cast %152 : vector<288x128xf32> to vector<1x1x288x128xf32>
    tpu.vector_store %arg5[%c0_149, %c3_150, %c0_151, %c0_152], %155 {strides = array<i32>} : memref<1x4x288x128xf32, #tpu.memory_space<vmem>>, vector<1x1x288x128xf32>,
    return
  }
  func.func @transform_0(%arg0: i32) -> (i32, i32, i32) {
    %c0_i32 = arith.constant 0 : i32
    %c0_i32_0 = arith.constant 0 : i32
    %c0_i32_1 = arith.constant 0 : i32
    return %arg0, %c0_i32, %c0_i32_0 : i32, i32, i32
  }
  func.func @transform_1(%arg0: i32) -> (i32, i32, i32, i32) {
    %c0_i32 = arith.constant 0 : i32
    %c0_i32_0 = arith.constant 0 : i32
    %c0_i32_1 = arith.constant 0 : i32
    %c0_i32_2 = arith.constant 0 : i32
    %c0_i32_3 = arith.constant 0 : i32
    return %c0_i32, %c0_i32_0, %c0_i32_1, %c0_i32_2 : i32, i32, i32, i32
  }
  func.func @transform_2(%arg0: i32) -> (i32, i32) {
    %c0_i32 = arith.constant 0 : i32
    %c0_i32_0 = arith.constant 0 : i32
    %c0_i32_1 = arith.constant 0 : i32
    return %c0_i32, %c0_i32_0 : i32, i32
  }
  func.func @transform_3(%arg0: i32) -> (i32, i32) {
    %c0_i32 = arith.constant 0 : i32
    %c0_i32_0 = arith.constant 0 : i32
    %c0_i32_1 = arith.constant 0 : i32
    return %c0_i32, %c0_i32_0 : i32, i32
  }
  func.func @transform_4(%arg0: i32) -> (i32, i32, i32, i32) {
    %c0_i32 = arith.constant 0 : i32
    %c0_i32_0 = arith.constant 0 : i32
    %c0_i32_1 = arith.constant 0 : i32
    %c0_i32_2 = arith.constant 0 : i32
    return %arg0, %c0_i32, %c0_i32_0, %c0_i32_1 : i32, i32, i32, i32
  }
}

</mosaic_0001>

<llo_original>
// kernel: tile.13
$region0: #{tile.13}
  #allocation0 [shape = 's32[1]{0}', space=sflag, size = 0x4, scoped, tag = 'scoped memory for tile.13']
  %s0 = inlined_call_operand.vmem [shape: f32[64], index: 0, kind: input, shape index: {}]
  %s1 = inlined_call_operand.vmem [shape: f32[16,64], index: 1, kind: output, shape index: {}]
  // Predicated region
  $region2: #{tile.13} parent=0 // pred_check
    _
  $region3: #{tile.13} parent=0 // pred_check_branch
    %3 = sbr.rel (0) target = $region5
  $region4: #{tile.13} parent=0 // pred_region
    _
  $region5: #{tile.13} parent=0 // pred_fallthru
    _
  %v4 = vld [vmem:[%s0] ss:$0 sm:$0xff]
  %5 = vst [vmem:[%s1] sm:$0xff] %v4
  %s6 = scalar_lea.vmem %s1, 8
  %7 = vst [vmem:[%s6] sm:$0xff] %v4

// kernel: tile.18
$region0: #{tile.18}
  %s0 = inlined_call_operand.vmem [shape: f32[16,64], index: 0, kind: input, shape index: {}]
  %s1 = inlined_call_operand.vmem [shape: f32[1,1024], index: 1, kind: output, shape index: {}]
  $region1: #{tile.18} parent=0
    #allocation0 [shape = 'u8[32768]{0}', space=vmem, size = 0x8000, scoped, tag = 'scoped mem for output reshape']
    %v2 = vld [vmem:[%s0] ss:$2 sm:$0xff]
    %vm3 = vcmask 523264
    %4 = vst.msk [vmem:[#allocation0] ss:$8 sm:$0xf] %vm3, %v2
    %5 = vst.msk [vmem:[#allocation0] ss:$8 sm:$0xf0] %vm3, %v2
    %s6 = scalar_lea.vmem %s0, 1
    %v7 = vld [vmem:[%s6] ss:$2 sm:$0xff]
    %8 = vrot.lane.b32.xlu0 %v7, 64
    %v9 = vpop.permute.xlu0 %8
    %vm10 = vcmask 1048064
    %11 = vst.msk [vmem:[#allocation0] ss:$8 sm:$0xf] %vm10, %v9
    %12 = vst.msk [vmem:[#allocation0] ss:$8 sm:$0xf0] %vm10, %v9
    %s14 = sshllo.u32 0, 1
    %v16 = vld [vmem:[#allocation0] sm:%s14]
    %s17 = sshllo.u32 0, 1
    %18 = vst [vmem:[%s1] sm:%s17] %v16
    %s19 = scalar_lea.vmem [#allocation0], 8
    %v20 = vld [vmem:[%s19] sm:%s14]
    %s21 = sshllo.u32 0, 1
    %s22 = scalar_lea.vmem %s1, 1
    %23 = vst [vmem:[%s22] sm:%s21] %v20
    %s24 = scalar_lea.vmem [#allocation0], 16
    %v25 = vld [vmem:[%s24] sm:%s14]
    %s26 = sshllo.u32 0, 1
    %s27 = smul.addr 1, 2
    %s28 = scalar_lea.vmem %s1, %s27
    %29 = vst [vmem:[%s28] sm:%s26] %v25
    %s30 = scalar_lea.vmem [#allocation0], 24
    %v31 = vld [vmem:[%s30] sm:%s14]
    %s32 = sshllo.u32 0, 1
    %s33 = smul.addr 1, 3
    %s34 = scalar_lea.vmem %s1, %s33
    %35 = vst [vmem:[%s34] sm:%s32] %v31
    %s36 = scalar_lea.vmem [#allocation0], 32
    %v37 = vld [vmem:[%s36] sm:%s14]
    %s38 = sshllo.u32 0, 1
    %s39 = smul.addr 1, 4
    %s40 = scalar_lea.vmem %s1, %s39
    %41 = vst [vmem:[%s40] sm:%s38] %v37
    %s42 = scalar_lea.vmem [#allocation0], 40
    %v43 = vld [vmem:[%s42] sm:%s14]
    %s44 = sshllo.u32 0, 1
    %s45 = smul.addr 1, 5
    %s46 = scalar_lea.vmem %s1, %s45
    %47 = vst [vmem:[%s46] sm:%s44] %v43
    %s48 = scalar_lea.vmem [#allocation0], 48
    %v49 = vld [vmem:[%s48] sm:%s14]
    %s50 = sshllo.u32 0, 1
    %s51 = smul.addr 1, 6
    %s52 = scalar_lea.vmem %s1, %s51
    %53 = vst [vmem:[%s52] sm:%s50] %v49
    %s54 = scalar_lea.vmem [#allocation0], 56
    %v55 = vld [vmem:[%s54] sm:%s14]
    %s56 = sshllo.u32 0, 1
    %s57 = smul.addr 1, 7
    %s58 = scalar_lea.vmem %s1, %s57
    %59 = vst [vmem:[%s58] sm:%s56] %v55

// kernel: generator_forward.4
$region0: #{generator_forward.4}
  #allocation0 [shape = 'u32[]', space=smem, size = 0x4, offset = 0x4, fixed_abs, tag = 'smem constant byte address 0x4 - core index']
  #allocation1 [shape = 'u32[144,128]{1,0:T(1,128)}', space=vmem, size = 0x12000, scoped, tag = 'internal scratch']
  %s0 = inlined_call_operand.vmem [shape: bf16[2,110], index: 0, kind: input, shape index: {}]
  %s1 = inlined_call_operand.vmem [shape: bf16[110,1024], index: 1, kind: input, shape index: {}]
  %s2 = inlined_call_operand.vmem [shape: f32[1,1024], index: 2, kind: input, shape index: {}]
  %s3 = inlined_call_operand.vmem [shape: f32[1,1024], index: 3, kind: input, shape index: {}]
  %s4 = inlined_call_operand.vmem [shape: f32[2,1024], index: 4, kind: output, shape index: {}]
  %s5 = sld [smem:[#allocation0]]
  $region26: #{generator_forward.4} parent=0
    _
  %s7 = ssub.s32 1, %s5
  %s8 = scalar_select 0, %s7, %s5
  // Predicated region
  $region2: #{generator_forward.4} parent=0 // pred_check
    _
  $region3: #{generator_forward.4} parent=0 // pred_check_branch
    %10 = sbr.rel (0) target = $region5
  $region4: #{generator_forward.4} parent=0 // pred_region
    _
  $region5: #{generator_forward.4} parent=0 // pred_fallthru
    _
  // Predicated region
  $region6: #{generator_forward.4} parent=0 // pred_check
    _
  $region7: #{generator_forward.4} parent=0 // pred_check_branch
    %12 = sbr.rel (0) target = $region9
  $region8: #{generator_forward.4} parent=0 // pred_region
    _
  $region9: #{generator_forward.4} parent=0 // pred_fallthru
    _
  // Predicated region
  $region10: #{generator_forward.4} parent=0 // pred_check
    _
  $region11: #{generator_forward.4} parent=0 // pred_check_branch
    %14 = sbr.rel (0) target = $region13
  $region12: #{generator_forward.4} parent=0 // pred_region
    _
  $region13: #{generator_forward.4} parent=0 // pred_fallthru
    _
  // Predicated region
  $region14: #{generator_forward.4} parent=0 // pred_check
    _
  $region15: #{generator_forward.4} parent=0 // pred_check_branch
    %16 = sbr.rel (0) target = $region17
  $region16: #{generator_forward.4} parent=0 // pred_region
    _
  $region17: #{generator_forward.4} parent=0 // pred_fallthru
    _
  %v18 = vld [vmem:[%s0] sm:$0x1]
  %v19 = vld [vmem:[%s1] sm:$0xff]
  %v20 = vld [vmem:[%s1 + $0x8] sm:$0xff]
  %v21 = vld [vmem:[%s1 + $0x10] sm:$0xff]
  %v22 = vld [vmem:[%s1 + $0x18] sm:$0xff]
  %v23 = vld [vmem:[%s1 + $0x20] sm:$0xff]
  %v24 = vld [vmem:[%s1 + $0x28] sm:$0xff]
  %v25 = vld [vmem:[%s1 + $0x30] sm:$0xff]
  %v26 = vld [vmem:[%s1 + $0x38] sm:$0xff]
  %v27 = vld [vmem:[%s1 + $0x40] sm:$0xff]
  %v28 = vld [vmem:[%s1 + $0x48] sm:$0xff]
  %v29 = vld [vmem:[%s1 + $0x50] sm:$0xff]
  %v30 = vld [vmem:[%s1 + $0x58] sm:$0xff]
  %v31 = vld [vmem:[%s1 + $0x60] sm:$0xff]
  %v32 = vld [vmem:[%s1 + $0x68] sm:$0xff]
  %v33 = vld [vmem:[%s1 + $0x70] sm:$0xff]
  %v34 = vld [vmem:[%s1 + $0x78] sm:$0xff]
  %v35 = vld [vmem:[%s1 + $0x80] sm:$0xff]
  %v36 = vld [vmem:[%s1 + $0x88] sm:$0xff]
  %v37 = vld [vmem:[%s1 + $0x90] sm:$0xff]
  %v38 = vld [vmem:[%s1 + $0x98] sm:$0xff]
  %v39 = vld [vmem:[%s1 + $0xa0] sm:$0xff]
  %v40 = vld [vmem:[%s1 + $0xa8] sm:$0xff]
  %v41 = vld [vmem:[%s1 + $0xb0] sm:$0xff]
  %v42 = vld [vmem:[%s1 + $0xb8] sm:$0xff]
  %v43 = vld [vmem:[%s1 + $0xc0] sm:$0xff]
  %v44 = vld [vmem:[%s1 + $0xc8] sm:$0xff]
  %v45 = vld [vmem:[%s1 + $0xd0] sm:$0xff]
  %v46 = vld [vmem:[%s1 + $0xd8] sm:$0xff]
  %v47 = vld [vmem:[%s1 + $0xe0] sm:$0xff]
  %v48 = vld [vmem:[%s1 + $0xe8] sm:$0xff]
  %v49 = vld [vmem:[%s1 + $0xf0] sm:$0xff]
  %v50 = vld [vmem:[%s1 + $0xf8] sm:$0xff]
  %v51 = vld [vmem:[%s1 + $0x100] sm:$0xff]
  %v52 = vld [vmem:[%s1 + $0x108] sm:$0xff]
  %v53 = vld [vmem:[%s1 + $0x110] sm:$0xff]
  %v54 = vld [vmem:[%s1 + $0x118] sm:$0xff]
  %v55 = vld [vmem:[%s1 + $0x120] sm:$0xff]
  %v56 = vld [vmem:[%s1 + $0x128] sm:$0xff]
  %v57 = vld [vmem:[%s1 + $0x130] sm:$0xff]
  %v58 = vld [vmem:[%s1 + $0x138] sm:$0xff]
  %v59 = vld [vmem:[%s1 + $0x140] sm:$0xff]
  %v60 = vld [vmem:[%s1 + $0x148] sm:$0xff]
  %v61 = vld [vmem:[%s1 + $0x150] sm:$0xff]
  %v62 = vld [vmem:[%s1 + $0x158] sm:$0xff]
  %v63 = vld [vmem:[%s1 + $0x160] sm:$0xff]
  %v64 = vld [vmem:[%s1 + $0x168] sm:$0xff]
  %v65 = vld [vmem:[%s1 + $0x170] sm:$0xff]
  %v66 = vld [vmem:[%s1 + $0x178] sm:$0xff]
  %v67 = vld [vmem:[%s1 + $0x180] sm:$0xff]
  %v68 = vld [vmem:[%s1 + $0x188] sm:$0xff]
  %v69 = vld [vmem:[%s1 + $0x190] sm:$0xff]
  %v70 = vld [vmem:[%s1 + $0x198] sm:$0xff]
  %v71 = vld [vmem:[%s1 + $0x1a0] sm:$0x77]
  %v72 = vld [vmem:[%s1 + $0x1a8] sm:$0x77]
  %v73 = vld [vmem:[%s1 + $0x1b0] sm:$0x77]
  %v74 = vld [vmem:[%s1 + $0x1b8] sm:$0x77]
  %v131 = vunpack.c.l.b16 %v19
  %v132 = vunpack.c.h.b16 %v19
  %v133 = vunpack.c.l.b16 %v20
  %v134 = vunpack.c.h.b16 %v20
  %v135 = vunpack.c.l.b16 %v21
  %v136 = vunpack.c.h.b16 %v21
  %v137 = vunpack.c.l.b16 %v22
  %v138 = vunpack.c.h.b16 %v22
  %v139 = vunpack.c.l.b16 %v23
  %v140 = vunpack.c.h.b16 %v23
  %v141 = vunpack.c.l.b16 %v24
  %v142 = vunpack.c.h.b16 %v24
  %v143 = vunpack.c.l.b16 %v25
  %v144 = vunpack.c.h.b16 %v25
  %v145 = vunpack.c.l.b16 %v26
  %v146 = vunpack.c.h.b16 %v26
  %v147 = vunpack.c.l.b16 %v27
  %v148 = vunpack.c.h.b16 %v27
  %v149 = vunpack.c.l.b16 %v28
  %v150 = vunpack.c.h.b16 %v28
  %v151 = vunpack.c.l.b16 %v29
  %v152 = vunpack.c.h.b16 %v29
  %v153 = vunpack.c.l.b16 %v30
  %v154 = vunpack.c.h.b16 %v30
  %v155 = vunpack.c.l.b16 %v31
  %v156 = vunpack.c.h.b16 %v31
  %v157 = vunpack.c.l.b16 %v32
  %v158 = vunpack.c.h.b16 %v32
  %v159 = vunpack.c.l.b16 %v33
  %v160 = vunpack.c.h.b16 %v33
  %v161 = vunpack.c.l.b16 %v34
  %v162 = vunpack.c.h.b16 %v34
  %v163 = vunpack.c.l.b16 %v35
  %v164 = vunpack.c.h.b16 %v35
  %v165 = vunpack.c.l.b16 %v36
  %v166 = vunpack.c.h.b16 %v36
  %v167 = vunpack.c.l.b16 %v37
  %v168 = vunpack.c.h.b16 %v37
  %v169 = vunpack.c.l.b16 %v38
  %v170 = vunpack.c.h.b16 %v38
  %v171 = vunpack.c.l.b16 %v39
  %v172 = vunpack.c.h.b16 %v39
  %v173 = vunpack.c.l.b16 %v40
  %v174 = vunpack.c.h.b16 %v40
  %v175 = vunpack.c.l.b16 %v41
  %v176 = vunpack.c.h.b16 %v41
  %v177 = vunpack.c.l.b16 %v42
  %v178 = vunpack.c.h.b16 %v42
  %v179 = vunpack.c.l.b16 %v43
  %v180 = vunpack.c.h.b16 %v43
  %v181 = vunpack.c.l.b16 %v44
  %v182 = vunpack.c.h.b16 %v44
  %v183 = vunpack.c.l.b16 %v45
  %v184 = vunpack.c.h.b16 %v45
  %v185 = vunpack.c.l.b16 %v46
  %v186 = vunpack.c.h.b16 %v46
  %v187 = vunpack.c.l.b16 %v47
  %v188 = vunpack.c.h.b16 %v47
  %v189 = vunpack.c.l.b16 %v48
  %v190 = vunpack.c.h.b16 %v48
  %v191 = vunpack.c.l.b16 %v49
  %v192 = vunpack.c.h.b16 %v49
  %v193 = vunpack.c.l.b16 %v50
  %v194 = vunpack.c.h.b16 %v50
  %v195 = vunpack.c.l.b16 %v51
  %v196 = vunpack.c.h.b16 %v51
  %v197 = vunpack.c.l.b16 %v52
  %v198 = vunpack.c.h.b16 %v52
  %v199 = vunpack.c.l.b16 %v53
  %v200 = vunpack.c.h.b16 %v53
  %v201 = vunpack.c.l.b16 %v54
  %v202 = vunpack.c.h.b16 %v54
  %v203 = vunpack.c.l.b16 %v55
  %v204 = vunpack.c.h.b16 %v55
  %v205 = vunpack.c.l.b16 %v56
  %v206 = vunpack.c.h.b16 %v56
  %v207 = vunpack.c.l.b16 %v57
  %v208 = vunpack.c.h.b16 %v57
  %v209 = vunpack.c.l.b16 %v58
  %v210 = vunpack.c.h.b16 %v58
  %v211 = vunpack.c.l.b16 %v59
  %v212 = vunpack.c.h.b16 %v59
  %v213 = vunpack.c.l.b16 %v60
  %v214 = vunpack.c.h.b16 %v60
  %v215 = vunpack.c.l.b16 %v61
  %v216 = vunpack.c.h.b16 %v61
  %v217 = vunpack.c.l.b16 %v62
  %v218 = vunpack.c.h.b16 %v62
  %v219 = vunpack.c.l.b16 %v63
  %v220 = vunpack.c.h.b16 %v63
  %v221 = vunpack.c.l.b16 %v64
  %v222 = vunpack.c.h.b16 %v64
  %v223 = vunpack.c.l.b16 %v65
  %v224 = vunpack.c.h.b16 %v65
  %v225 = vunpack.c.l.b16 %v66
  %v226 = vunpack.c.h.b16 %v66
  %v227 = vunpack.c.l.b16 %v67
  %v228 = vunpack.c.h.b16 %v67
  %v229 = vunpack.c.l.b16 %v68
  %v230 = vunpack.c.h.b16 %v68
  %v231 = vunpack.c.l.b16 %v69
  %v232 = vunpack.c.h.b16 %v69
  %v233 = vunpack.c.l.b16 %v70
  %v234 = vunpack.c.h.b16 %v70
  %v235 = vunpack.c.l.b16 %v71
  %v236 = vunpack.c.h.b16 %v71
  %v237 = vunpack.c.l.b16 %v72
  %v238 = vunpack.c.h.b16 %v72
  %v239 = vunpack.c.l.b16 %v73
  %v240 = vunpack.c.h.b16 %v73
  %v241 = vunpack.c.l.b16 %v74
  %v242 = vunpack.c.h.b16 %v74
  %v243 = vpack.c.b16 %v139, %v131
  %v244 = vpack.c.b16 %v140, %v132
  %v245 = vpack.c.b16 %v141, %v133
  %v246 = vpack.c.b16 %v142, %v134
  %v247 = vpack.c.b16 %v143, %v135
  %v248 = vpack.c.b16 %v144, %v136
  %v249 = vpack.c.b16 %v145, %v137
  %v250 = vpack.c.b16 %v146, %v138
  %v251 = vpack.c.b16 %v155, %v147
  %v252 = vpack.c.b16 %v156, %v148
  %v253 = vpack.c.b16 %v157, %v149
  %v254 = vpack.c.b16 %v158, %v150
  %v255 = vpack.c.b16 %v159, %v151
  %v256 = vpack.c.b16 %v160, %v152
  %v257 = vpack.c.b16 %v161, %v153
  %v258 = vpack.c.b16 %v162, %v154
  %v259 = vpack.c.b16 %v171, %v163
  %v260 = vpack.c.b16 %v172, %v164
  %v261 = vpack.c.b16 %v173, %v165
  %v262 = vpack.c.b16 %v174, %v166
  %v263 = vpack.c.b16 %v175, %v167
  %v264 = vpack.c.b16 %v176, %v168
  %v265 = vpack.c.b16 %v177, %v169
  %v266 = vpack.c.b16 %v178, %v170
  %v267 = vpack.c.b16 %v187, %v179
  %v268 = vpack.c.b16 %v188, %v180
  %v269 = vpack.c.b16 %v189, %v181
  %v270 = vpack.c.b16 %v190, %v182
  %v271 = vpack.c.b16 %v191, %v183
  %v272 = vpack.c.b16 %v192, %v184
  %v273 = vpack.c.b16 %v193, %v185
  %v274 = vpack.c.b16 %v194, %v186
  %v275 = vpack.c.b16 %v203, %v195
  %v276 = vpack.c.b16 %v204, %v196
  %v277 = vpack.c.b16 %v205, %v197
  %v278 = vpack.c.b16 %v206, %v198
  %v279 = vpack.c.b16 %v207, %v199
  %v280 = vpack.c.b16 %v208, %v200
  %v281 = vpack.c.b16 %v209, %v201
  %v282 = vpack.c.b16 %v210, %v202
  %v283 = vpack.c.b16 %v219, %v211
  %v284 = vpack.c.b16 %v220, %v212
  %v285 = vpack.c.b16 %v221, %v213
  %v286 = vpack.c.b16 %v222, %v214
  %v287 = vpack.c.b16 %v223, %v215
  %v288 = vpack.c.b16 %v224, %v216
  %v289 = vpack.c.b16 %v225, %v217
  %v290 = vpack.c.b16 %v226, %v218
  %v291 = vpack.c.b16 %v235, %v227
  %v292 = vpack.c.b16 %v236, %v228
  %v293 = vpack.c.b16 %v237, %v229
  %v294 = vpack.c.b16 %v238, %v230
  %v295 = vpack.c.b16 %v239, %v231
  %v296 = vpack.c.b16 %v240, %v232
  %v297 = vpack.c.b16 %v241, %v233
  %v298 = vpack.c.b16 %v242, %v234
  %vm347 = vcmask 900096
  %v349 = vsel %vm347, %v18, 0
  %vm351 = vcmask 1046528
  %v353 = vsel %vm351, %v291, 0
  %v356 = vsel %vm351, %v292, 0
  %v359 = vsel %vm351, %v293, 0
  %v362 = vsel %vm351, %v294, 0
  %v365 = vsel %vm351, %v295, 0
  %v368 = vsel %vm351, %v296, 0
  %v371 = vsel %vm351, %v297, 0
  %v374 = vsel %vm351, %v298, 0
  %376 = vmatprep.subr.bf16.mxu0 %v244
  %377 = vmatpush1.bf16.msra.mxu0 %v243
  %378 = vmatprep.subr.bf16.mxu0 %v252
  %379 = vmatpush1.bf16.msra.mxu0 %v251
  %380 = vmatprep.subr.bf16.mxu0 %v260
  %381 = vmatpush1.bf16.msra.mxu0 %v259
  %382 = vmatprep.subr.bf16.mxu0 %v268
  %383 = vmatpush1.bf16.msra.mxu0 %v267
  %384 = vmatprep.subr.bf16.mxu0 %v276
  %385 = vmatpush1.bf16.msra.mxu0 %v275
  %386 = vmatprep.subr.bf16.mxu0 %v284
  %387 = vmatpush1.bf16.msra.mxu0 %v283
  %388 = vmatprep.subr.bf16.mxu0 %v356
  %389 = vmatpush1.bf16.msra.mxu0 %v353
  %390 = vmatprep.subr.bf16.mxu0 0
  %391 = vmatpush1.bf16.msra.mxu0 0
  %392 = vmatprep.subr.bf16.mxu0 0
  %393 = vmatpush1.bf16.msra.mxu0 0
  %394 = vmatprep.subr.bf16.mxu0 0
  %395 = vmatpush1.bf16.msra.mxu0 0
  %396 = vmatprep.subr.bf16.mxu0 0
  %397 = vmatpush1.bf16.msra.mxu0 0
  %398 = vmatprep.subr.bf16.mxu0 0
  %399 = vmatpush1.bf16.msra.mxu0 0
  %400 = vmatprep.subr.bf16.mxu0 0
  %401 = vmatpush1.bf16.msra.mxu0 0
  %402 = vmatprep.subr.bf16.mxu0 0
  %403 = vmatpush1.bf16.msra.mxu0 0
  %404 = vmatprep.subr.bf16.mxu0 0
  %405 = vmatpush1.bf16.msra.mxu0 0
  %406 = vmatprep.subr.bf16.mxu0 0
  %407 = vmatpush1.bf16.msra.mxu0 0
  %408 = vmatprep.mubr.bf16.mxu0 0
  %409 = vmatmul.mubr.bf16.gmra.mrb[0].mxu0 %v349
  %v410 = vpop.f32.mrb[0].mxu0
  %v411 = vadd.f32 0.0, %v410
  %v412 = vpop.f32.mrb[0].mxu0
  %v413 = vadd.f32 0.0, %v412
  %v414 = vpop.f32.mrb[0].mxu0
  %v415 = vpop.f32.mrb[0].mxu0
  %416 = vdwg.mxu0
  %417 = vmatprep.subr.bf16.mxu0 %v246
  %418 = vmatpush1.bf16.msra.mxu0 %v245
  %419 = vmatprep.subr.bf16.mxu0 %v254
  %420 = vmatpush1.bf16.msra.mxu0 %v253
  %421 = vmatprep.subr.bf16.mxu0 %v262
  %422 = vmatpush1.bf16.msra.mxu0 %v261
  %423 = vmatprep.subr.bf16.mxu0 %v270
  %424 = vmatpush1.bf16.msra.mxu0 %v269
  %425 = vmatprep.subr.bf16.mxu0 %v278
  %426 = vmatpush1.bf16.msra.mxu0 %v277
  %427 = vmatprep.subr.bf16.mxu0 %v286
  %428 = vmatpush1.bf16.msra.mxu0 %v285
  %429 = vmatprep.subr.bf16.mxu0 %v362
  %430 = vmatpush1.bf16.msra.mxu0 %v359
  %431 = vmatprep.subr.bf16.mxu0 0
  %432 = vmatpush1.bf16.msra.mxu0 0
  %433 = vmatprep.subr.bf16.mxu0 0
  %434 = vmatpush1.bf16.msra.mxu0 0
  %435 = vmatprep.subr.bf16.mxu0 0
  %436 = vmatpush1.bf16.msra.mxu0 0
  %437 = vmatprep.subr.bf16.mxu0 0
  %438 = vmatpush1.bf16.msra.mxu0 0
  %439 = vmatprep.subr.bf16.mxu0 0
  %440 = vmatpush1.bf16.msra.mxu0 0
  %441 = vmatprep.subr.bf16.mxu0 0
  %442 = vmatpush1.bf16.msra.mxu0 0
  %443 = vmatprep.subr.bf16.mxu0 0
  %444 = vmatpush1.bf16.msra.mxu0 0
  %445 = vmatprep.subr.bf16.mxu0 0
  %446 = vmatpush1.bf16.msra.mxu0 0
  %447 = vmatprep.subr.bf16.mxu0 0
  %448 = vmatpush1.bf16.msra.mxu0 0
  %449 = vmatprep.mubr.bf16.mxu0 0
  %450 = vmatmul.mubr.bf16.gmra.mrb[0].mxu0 %v349
  %v451 = vpop.f32.mrb[0].mxu0
  %v452 = vadd.f32 0.0, %v451
  %v453 = vpop.f32.mrb[0].mxu0
  %v454 = vadd.f32 0.0, %v453
  %v455 = vpop.f32.mrb[0].mxu0
  %v456 = vpop.f32.mrb[0].mxu0
  %457 = vdwg.mxu0
  %458 = vmatprep.subr.bf16.mxu0 %v248
  %459 = vmatpush1.bf16.msra.mxu0 %v247
  %460 = vmatprep.subr.bf16.mxu0 %v256
  %461 = vmatpush1.bf16.msra.mxu0 %v255
  %462 = vmatprep.subr.bf16.mxu0 %v264
  %463 = vmatpush1.bf16.msra.mxu0 %v263
  %464 = vmatprep.subr.bf16.mxu0 %v272
  %465 = vmatpush1.bf16.msra.mxu0 %v271
  %466 = vmatprep.subr.bf16.mxu0 %v280
  %467 = vmatpush1.bf16.msra.mxu0 %v279
  %468 = vmatprep.subr.bf16.mxu0 %v288
  %469 = vmatpush1.bf16.msra.mxu0 %v287
  %470 = vmatprep.subr.bf16.mxu0 %v368
  %471 = vmatpush1.bf16.msra.mxu0 %v365
  %472 = vmatprep.subr.bf16.mxu0 0
  %473 = vmatpush1.bf16.msra.mxu0 0
  %474 = vmatprep.subr.bf16.mxu0 0
  %475 = vmatpush1.bf16.msra.mxu0 0
  %476 = vmatprep.subr.bf16.mxu0 0
  %477 = vmatpush1.bf16.msra.mxu0 0
  %478 = vmatprep.subr.bf16.mxu0 0
  %479 = vmatpush1.bf16.msra.mxu0 0
  %480 = vmatprep.subr.bf16.mxu0 0
  %481 = vmatpush1.bf16.msra.mxu0 0
  %482 = vmatprep.subr.bf16.mxu0 0
  %483 = vmatpush1.bf16.msra.mxu0 0
  %484 = vmatprep.subr.bf16.mxu0 0
  %485 = vmatpush1.bf16.msra.mxu0 0
  %486 = vmatprep.subr.bf16.mxu0 0
  %487 = vmatpush1.bf16.msra.mxu0 0
  %488 = vmatprep.subr.bf16.mxu0 0
  %489 = vmatpush1.bf16.msra.mxu0 0
  %490 = vmatprep.mubr.bf16.mxu0 0
  %491 = vmatmul.mubr.bf16.gmra.mrb[0].mxu0 %v349
  %v492 = vpop.f32.mrb[0].mxu0
  %v493 = vadd.f32 0.0, %v492
  %v494 = vpop.f32.mrb[0].mxu0
  %v495 = vadd.f32 0.0, %v494
  %v496 = vpop.f32.mrb[0].mxu0
  %v497 = vpop.f32.mrb[0].mxu0
  %498 = vdwg.mxu0
  %499 = vmatprep.subr.bf16.mxu0 %v250
  %500 = vmatpush1.bf16.msra.mxu0 %v249
  %501 = vmatprep.subr.bf16.mxu0 %v258
  %502 = vmatpush1.bf16.msra.mxu0 %v257
  %503 = vmatprep.subr.bf16.mxu0 %v266
  %504 = vmatpush1.bf16.msra.mxu0 %v265
  %505 = vmatprep.subr.bf16.mxu0 %v274
  %506 = vmatpush1.bf16.msra.mxu0 %v273
  %507 = vmatprep.subr.bf16.mxu0 %v282
  %508 = vmatpush1.bf16.msra.mxu0 %v281
  %509 = vmatprep.subr.bf16.mxu0 %v290
  %510 = vmatpush1.bf16.msra.mxu0 %v289
  %511 = vmatprep.subr.bf16.mxu0 %v374
  %512 = vmatpush1.bf16.msra.mxu0 %v371
  %513 = vmatprep.subr.bf16.mxu0 0
  %514 = vmatpush1.bf16.msra.mxu0 0
  %515 = vmatprep.subr.bf16.mxu0 0
  %516 = vmatpush1.bf16.msra.mxu0 0
  %517 = vmatprep.subr.bf16.mxu0 0
  %518 = vmatpush1.bf16.msra.mxu0 0
  %519 = vmatprep.subr.bf16.mxu0 0
  %520 = vmatpush1.bf16.msra.mxu0 0
  %521 = vmatprep.subr.bf16.mxu0 0
  %522 = vmatpush1.bf16.msra.mxu0 0
  %523 = vmatprep.subr.bf16.mxu0 0
  %524 = vmatpush1.bf16.msra.mxu0 0
  %525 = vmatprep.subr.bf16.mxu0 0
  %526 = vmatpush1.bf16.msra.mxu0 0
  %527 = vmatprep.subr.bf16.mxu0 0
  %528 = vmatpush1.bf16.msra.mxu0 0
  %529 = vmatprep.subr.bf16.mxu0 0
  %530 = vmatpush1.bf16.msra.mxu0 0
  %531 = vmatprep.mubr.bf16.mxu0 0
  %532 = vmatmul.mubr.bf16.gmra.mrb[0].mxu0 %v349
  %v533 = vpop.f32.mrb[0].mxu0
  %v534 = vadd.f32 0.0, %v533
  %v535 = vpop.f32.mrb[0].mxu0
  %v536 = vadd.f32 0.0, %v535
  %v537 = vpop.f32.mrb[0].mxu0
  %v538 = vpop.f32.mrb[0].mxu0
  %539 = vdwg.mxu0
  %v540 = vld [vmem:[%s2] sm:$0xff]
  %v542 = vlaneseq
  %v543 = vshrl.u32 %v542, 7
  %v544 = vsub.s32 0, %v543
  %v545 = vrot.slane %v540, %v544
  %v546 = vlaneseq
  %v547 = vshrl.u32 %v546, 7
  %v548 = vsub.s32 1, %v547
  %v549 = vrot.slane %v540, %v548
  %v550 = vlaneseq
  %v551 = vshrl.u32 %v550, 7
  %v552 = vsub.s32 2, %v551
  %v553 = vrot.slane %v540, %v552
  %v554 = vlaneseq
  %v555 = vshrl.u32 %v554, 7
  %v556 = vsub.s32 3, %v555
  %v557 = vrot.slane %v540, %v556
  %v558 = vlaneseq
  %v559 = vshrl.u32 %v558, 7
  %v560 = vsub.s32 4, %v559
  %v561 = vrot.slane %v540, %v560
  %v562 = vlaneseq
  %v563 = vshrl.u32 %v562, 7
  %v564 = vsub.s32 5, %v563
  %v565 = vrot.slane %v540, %v564
  %v566 = vlaneseq
  %v567 = vshrl.u32 %v566, 7
  %v568 = vsub.s32 6, %v567
  %v569 = vrot.slane %v540, %v568
  %v570 = vlaneseq
  %v571 = vshrl.u32 %v570, 7
  %v572 = vsub.s32 7, %v571
  %v573 = vrot.slane %v540, %v572
  %v582 = vmul.f32 %v411, %v545
  %v583 = vmul.f32 %v413, %v549
  %v584 = vmul.f32 %v452, %v553
  %v585 = vmul.f32 %v454, %v557
  %v586 = vmul.f32 %v493, %v561
  %v587 = vmul.f32 %v495, %v565
  %v588 = vmul.f32 %v534, %v569
  %v589 = vmul.f32 %v536, %v573
  %v590 = vld [vmem:[%s3] sm:$0xff]
  %v592 = vlaneseq
  %v593 = vshrl.u32 %v592, 7
  %v594 = vsub.s32 0, %v593
  %v595 = vrot.slane %v590, %v594
  %v596 = vlaneseq
  %v597 = vshrl.u32 %v596, 7
  %v598 = vsub.s32 1, %v597
  %v599 = vrot.slane %v590, %v598
  %v600 = vlaneseq
  %v601 = vshrl.u32 %v600, 7
  %v602 = vsub.s32 2, %v601
  %v603 = vrot.slane %v590, %v602
  %v604 = vlaneseq
  %v605 = vshrl.u32 %v604, 7
  %v606 = vsub.s32 3, %v605
  %v607 = vrot.slane %v590, %v606
  %v608 = vlaneseq
  %v609 = vshrl.u32 %v608, 7
  %v610 = vsub.s32 4, %v609
  %v611 = vrot.slane %v590, %v610
  %v612 = vlaneseq
  %v613 = vshrl.u32 %v612, 7
  %v614 = vsub.s32 5, %v613
  %v615 = vrot.slane %v590, %v614
  %v616 = vlaneseq
  %v617 = vshrl.u32 %v616, 7
  %v618 = vsub.s32 6, %v617
  %v619 = vrot.slane %v590, %v618
  %v620 = vlaneseq
  %v621 = vshrl.u32 %v620, 7
  %v622 = vsub.s32 7, %v621
  %v623 = vrot.slane %v590, %v622
  %v632 = vadd.f32 %v582, %v595
  %v633 = vadd.f32 %v583, %v599
  %v634 = vadd.f32 %v584, %v603
  %v635 = vadd.f32 %v585, %v607
  %v636 = vadd.f32 %v586, %v611
  %v637 = vadd.f32 %v587, %v615
  %v638 = vadd.f32 %v588, %v619
  %v639 = vadd.f32 %v589, %v623
  %v640 = vmax.f32 %v632, 0.0
  %v641 = vmax.f32 %v633, 0.0
  %v642 = vmax.f32 %v634, 0.0
  %v643 = vmax.f32 %v635, 0.0
  %v644 = vmax.f32 %v636, 0.0
  %v645 = vmax.f32 %v637, 0.0
  %v646 = vmax.f32 %v638, 0.0
  %v647 = vmax.f32 %v639, 0.0
  %v656 = vcombine.low %v640, %v641
  %v657 = vcombine.low %v642, %v643
  %v659 = vunpack.c.l.s4 1983009808
  %v660 = vunpack.c.0.s8 %v659
  %v661 = vlaneseq
  %v662 = vshrl.u32 %v661, 7
  %v663 = vsub.s32 %v660, %v662
  %v664 = vrot.slane %v656, %v663
  %v666 = vunpack.c.l.s4 1983009808
  %v667 = vunpack.c.0.s8 %v666
  %v668 = vlaneseq
  %v669 = vshrl.u32 %v668, 7
  %v670 = vsub.s32 %v667, %v669
  %v671 = vrot.slane %v657, %v670
  %v672 = vcombine.low %v664, %v671
  %v673 = vcombine.low %v644, %v645
  %v674 = vcombine.low %v646, %v647
  %v676 = vunpack.c.l.s4 1983009808
  %v677 = vunpack.c.0.s8 %v676
  %v678 = vlaneseq
  %v679 = vshrl.u32 %v678, 7
  %v680 = vsub.s32 %v677, %v679
  %v681 = vrot.slane %v673, %v680
  %v683 = vunpack.c.l.s4 1983009808
  %v684 = vunpack.c.0.s8 %v683
  %v685 = vlaneseq
  %v686 = vshrl.u32 %v685, 7
  %v687 = vsub.s32 %v684, %v686
  %v688 = vrot.slane %v674, %v687
  %v689 = vcombine.low %v681, %v688
  %692 = vst [vmem:[%s4] sm:$0xff] %v672
  %693 = vst [vmem:[%s4 + $0x8] sm:$0xff] %v689
  // Predicated region
  $region18: #{generator_forward.4} parent=0 // pred_check
    _
  $region19: #{generator_forward.4} parent=0 // pred_check_branch
    %695 = sbr.rel (0) target = $region21
  $region20: #{generator_forward.4} parent=0 // pred_region
    _
  $region21: #{generator_forward.4} parent=0 // pred_fallthru
    _
  // Predicated region
  $region22: #{generator_forward.4} parent=0 // pred_check
    _
  $region23: #{generator_forward.4} parent=0 // pred_check_branch
    %697 = sbr.rel (0) target = $region25
  $region24: #{generator_forward.4} parent=0 // pred_region
    _
  $region25: #{generator_forward.4} parent=0 // pred_fallthru
    _

// kernel: generator_forward.5
$region0: #{generator_forward.5}
  #allocation0 [shape = 'u32[]', space=smem, size = 0x4, offset = 0x4, fixed_abs, tag = 'smem constant byte address 0x4 - core index']
  #allocation1 [shape = 'u32[144,128]{1,0:T(1,128)}', space=vmem, size = 0x12000, scoped, tag = 'internal scratch']
  %s0 = inlined_call_operand.vmem [shape: f32[2,44,64], index: 0, kind: input, shape index: {}]
  %s1 = inlined_call_operand.vmem [shape: bf16[4,4,64,32], index: 1, kind: input, shape index: {}]
  %s2 = inlined_call_operand.vmem [shape: f32[1,32], index: 2, kind: input, shape index: {}]
  %s3 = inlined_call_operand.vmem [shape: f32[1,32], index: 3, kind: input, shape index: {}]
  %s4 = inlined_call_operand.vmem [shape: f32[2,4,24,32], index: 4, kind: output, shape index: {}]
  %s5 = sld [smem:[#allocation0]]
  $region49: #{generator_forward.5} parent=0
    _
  %s7 = ssub.s32 1, %s5
  %s8 = scalar_select 0, %s7, %s5
  loop: start=0, step=1, limit=4
  $region2: #{generator_forward.5} parent=0 // loop_pre_header
    _
  $region3: #{generator_forward.5} parent=0 // loop_header
    %s10 = sphi 0, %s14
    %p11 = scmp.ge.s32.totalorder %s10, 4
    %s20 = sphi 0, %s22
    %s23 = sphi 0, %s20
    %s24 = sphi 0, %s23
    %s40 = sphi 0, %s24
    %s44 = sphi 0, %s44
    %s46 = sphi 0, %s44
    %s47 = sphi 0, %s46
    %s61 = sphi 0, %s47
    %s65 = sphi 0, %s65
    %s67 = sphi 0, %s65
    %s68 = sphi 0, %s67
    %s82 = sphi 0, %s68
    %s86 = sphi 0, %s86
    %s88 = sphi 0, %s86
    %s89 = sphi 0, %s88
    %s103 = sphi 0, %s89
    %s109 = sphi 0, %s111
    %s112 = sphi 0, %s109
    %s113 = sphi 0, %s112
    %s129 = sphi 0, %s113
  $region4: #{generator_forward.5} parent=0 // loop_header_branch
    %13 = sbr.rel (%p11) target = $region8
  $region5: #{generator_forward.5} parent=0 // loop_body
    %s15 = ssub.s32 %s10, 1
    %s16 = ssub.s32 %s10, 2
    %s17 = sadd.s32 %s10, 1
    %s18 = ssub.s32 %s10, %s17
    %p19 = scmp.eq.s32.totalorder %s18, 0
    %s21 = sadd.s32 %s20, 1
    %s22 = scalar_select %p19, %s20, %s21
    %p25 = pneg %p19
    %p26 = scmp.eq.s32.totalorder %s10, 1
    %p27 = por %p25, %p26
    %p28 = scmp.ne.s32.totalorder %s20, %s23
    %p29 = scmp.eq.s32.totalorder %s10, 0
    %p30 = por %p28, %p29
    %p31 = scmp.ne.s32.totalorder %s20, %s23
    %p32 = scmp.eq.s32.totalorder %s15, 1
    %p33 = por %p31, %p32
    %p34 = scmp.ne.s32.totalorder %s23, %s24
    %p35 = scmp.eq.s32.totalorder %s15, 0
    %p36 = por %p34, %p35
    %p37 = scmp.ne.s32.totalorder %s23, %s24
    %p38 = scmp.eq.s32.totalorder %s16, 1
    %p39 = por %p37, %p38
    %p41 = scmp.ne.s32.totalorder %s24, %s40
    %p42 = scmp.eq.s32.totalorder %s16, 0
    %p43 = por %p41, %p42
    %s45 = sadd.s32 %s44, 1
    %p48 = scmp.eq.s32.totalorder %s10, 1
    %p49 = scmp.ne.s32.totalorder %s44, %s46
    %p50 = scmp.eq.s32.totalorder %s10, 0
    %p51 = por %p49, %p50
    %p52 = scmp.ne.s32.totalorder %s44, %s46
    %p53 = scmp.eq.s32.totalorder %s15, 1
    %p54 = por %p52, %p53
    %p55 = scmp.ne.s32.totalorder %s46, %s47
    %p56 = scmp.eq.s32.totalorder %s15, 0
    %p57 = por %p55, %p56
    %p58 = scmp.ne.s32.totalorder %s46, %s47
    %p59 = scmp.eq.s32.totalorder %s16, 1
    %p60 = por %p58, %p59
    %p62 = scmp.ne.s32.totalorder %s47, %s61
    %p63 = scmp.eq.s32.totalorder %s16, 0
    %p64 = por %p62, %p63
    %s66 = sadd.s32 %s65, 1
    %p69 = scmp.eq.s32.totalorder %s10, 1
    %p70 = scmp.ne.s32.totalorder %s65, %s67
    %p71 = scmp.eq.s32.totalorder %s10, 0
    %p72 = por %p70, %p71
    %p73 = scmp.ne.s32.totalorder %s65, %s67
    %p74 = scmp.eq.s32.totalorder %s15, 1
    %p75 = por %p73, %p74
    %p76 = scmp.ne.s32.totalorder %s67, %s68
    %p77 = scmp.eq.s32.totalorder %s15, 0
    %p78 = por %p76, %p77
    %p79 = scmp.ne.s32.totalorder %s67, %s68
    %p80 = scmp.eq.s32.totalorder %s16, 1
    %p81 = por %p79, %p80
    %p83 = scmp.ne.s32.totalorder %s68, %s82
    %p84 = scmp.eq.s32.totalorder %s16, 0
    %p85 = por %p83, %p84
    %s87 = sadd.s32 %s86, 1
    %p90 = scmp.eq.s32.totalorder %s10, 1
    %p91 = scmp.ne.s32.totalorder %s86, %s88
    %p92 = scmp.eq.s32.totalorder %s10, 0
    %p93 = por %p91, %p92
    %p94 = scmp.ne.s32.totalorder %s86, %s88
    %p95 = scmp.eq.s32.totalorder %s15, 1
    %p96 = por %p94, %p95
    %p97 = scmp.ne.s32.totalorder %s88, %s89
    %p98 = scmp.eq.s32.totalorder %s15, 0
    %p99 = por %p97, %p98
    %p100 = scmp.ne.s32.totalorder %s88, %s89
    %p101 = scmp.eq.s32.totalorder %s16, 1
    %p102 = por %p100, %p101
    %p104 = scmp.ne.s32.totalorder %s89, %s103
    %p105 = scmp.eq.s32.totalorder %s16, 0
    %p106 = por %p104, %p105
    %s107 = ssub.s32 %s10, %s17
    %p108 = scmp.eq.s32.totalorder %s107, 0
    %s110 = sadd.s32 %s109, 1
    %s111 = scalar_select %p108, %s109, %s110
    %p114 = pneg %p108
    %p115 = scmp.eq.s32.totalorder %s10, 1
    %p116 = por %p114, %p115
    %p117 = scmp.ne.s32.totalorder %s109, %s112
    %p118 = scmp.eq.s32.totalorder %s10, 0
    %p119 = por %p117, %p118
    %p120 = scmp.ne.s32.totalorder %s109, %s112
    %p121 = scmp.eq.s32.totalorder %s15, 1
    %p122 = por %p120, %p121
    %p123 = scmp.ne.s32.totalorder %s112, %s113
    %p124 = scmp.eq.s32.totalorder %s15, 0
    %p125 = por %p123, %p124
    %p126 = scmp.ne.s32.totalorder %s112, %s113
    %p127 = scmp.eq.s32.totalorder %s16, 1
    %p128 = por %p126, %p127
    %p130 = scmp.ne.s32.totalorder %s113, %s129
    %p131 = scmp.eq.s32.totalorder %s16, 0
    %p132 = por %p130, %p131
    %p133 = scmp.le.s32.totalorder 1, %s10
    %p134 = scmp.lt.s32.totalorder %s10, 3
    %p135 = pnand %p133, %p134
    %p136 = pneg %p135
    // Predicated region
    $region9: #{generator_forward.5} parent=5 // pred_check
      _
    $region10: #{generator_forward.5} parent=5 // pred_check_branch
      %138 = sbr.rel (%p135) target = $region12
    $region11: #{generator_forward.5} parent=5 // pred_region
      %s139 = ssub.s32 %s10, 1
      // Predicated region
      $region13: #{generator_forward.5} parent=11 // pred_check
        %p140 = pneg %p57
      $region14: #{generator_forward.5} parent=11 // pred_check_branch
        %142 = sbr.rel (%p140) target = $region16
      $region15: #{generator_forward.5} parent=11 // pred_region
        _
      $region16: #{generator_forward.5} parent=11 // pred_fallthru
        _
      // Predicated region
      $region17: #{generator_forward.5} parent=11 // pred_check
        %p143 = pneg %p78
      $region18: #{generator_forward.5} parent=11 // pred_check_branch
        %145 = sbr.rel (%p143) target = $region20
      $region19: #{generator_forward.5} parent=11 // pred_region
        _
      $region20: #{generator_forward.5} parent=11 // pred_fallthru
        _
      // Predicated region
      $region21: #{generator_forward.5} parent=11 // pred_check
        %p146 = pneg %p99
      $region22: #{generator_forward.5} parent=11 // pred_check_branch
        %148 = sbr.rel (%p146) target = $region24
      $region23: #{generator_forward.5} parent=11 // pred_region
        _
      $region24: #{generator_forward.5} parent=11 // pred_fallthru
        _
    $region12: #{generator_forward.5} parent=5 // pred_fallthru
      _
    %p149 = scmp.lt.s32.totalorder %s10, 2
    // Predicated region
    $region25: #{generator_forward.5} parent=5 // pred_check
      %p150 = pneg %p149
    $region26: #{generator_forward.5} parent=5 // pred_check_branch
      %152 = sbr.rel (%p150) target = $region28
    $region27: #{generator_forward.5} parent=5 // pred_region
      // Predicated region
      $region29: #{generator_forward.5} parent=27 // pred_check
        %p153 = pneg %p30
      $region30: #{generator_forward.5} parent=27 // pred_check_branch
        %155 = sbr.rel (%p153) target = $region32
      $region31: #{generator_forward.5} parent=27 // pred_region
        %p156 = scmp.lt.s32.totalorder %s10, 1
        %s157 = scalar_select %p156, %s10, 1
        %s158 = smul.addr %s157, 6
        %s159 = smul.addr %s158, 8
        %s160 = scalar_lea.vmem %s0, %s159
      $region32: #{generator_forward.5} parent=27 // pred_fallthru
        _
    $region28: #{generator_forward.5} parent=5 // pred_fallthru
      _
    %p161 = scmp.le.s32.totalorder 1, %s10
    %p162 = scmp.lt.s32.totalorder %s10, 3
    %p163 = pnand %p161, %p162
    %p164 = pneg %p163
    // Predicated region
    $region33: #{generator_forward.5} parent=5 // pred_check
      _
    $region34: #{generator_forward.5} parent=5 // pred_check_branch
      %166 = sbr.rel (%p163) target = $region36
    $region35: #{generator_forward.5} parent=5 // pred_region
      %s167 = ssub.s32 %s10, 1
      %p168 = scmp.lt.s32.totalorder %s15, 1
      %s169 = scalar_select %p168, %s15, 1
      %s170 = smul.addr %s169, 6
      %s171 = smul.addr %s170, 8
      %s172 = scalar_lea.vmem %s0, %s171
      %p173 = pneg %p36
      %p174 = pneg %p33
      %p175 = pneg %p57
      %p176 = pneg %p54
      %p177 = pneg %p78
      %p178 = pneg %p75
      %p179 = pneg %p99
      %p180 = pneg %p96
      %p181 = pneg %p125
      %p182 = pneg %p122
      %p183 = scmp.lt.s32.totalorder %s15, 1
      %s184 = scalar_select %p183, %s15, 1
      %s185 = smul.addr %s184, 12
      %s186 = smul.addr %s185, 8
      %s187 = scalar_lea.vmem %s4, %s186
      %p188 = scmp.lt.s32.totalorder %s15, 1
      %s189 = scalar_select %p188, %s15, 1
      %s190 = smul.addr %s189, 6
      %s191 = smul.addr %s190, 8
      %s192 = scalar_lea.vmem %s0, %s191
      %p193 = scmp.lt.s32.totalorder %s15, 1
      %s194 = scalar_select %p193, %s15, 1
      %s195 = smul.addr %s194, 12
      %s196 = smul.addr %s195, 8
      %s197 = scalar_lea.vmem %s4, %s196
      %v199 = vld [vmem:[%s192] sm:$0xff]
      %v200 = vld [vmem:[%s192 + $0x8] sm:$0xff]
      %v201 = vld [vmem:[%s192 + $0x10] sm:$0xff]
      %v202 = vpack.c.bf16 %v200, %v199
      %v203 = vpack.c.bf16 %v201, %v201
      %v204 = vld [vmem:[%s1] sm:$0xf]
      %v205 = vld [vmem:[%s1 + $0x4] sm:$0xf]
      %v206 = vld [vmem:[%s1 + $0x8] sm:$0xf]
      %v207 = vld [vmem:[%s1 + $0xc] sm:$0xf]
      %v208 = vld [vmem:[%s1 + $0x10] sm:$0xf]
      %v209 = vld [vmem:[%s1 + $0x14] sm:$0xf]
      %v210 = vld [vmem:[%s1 + $0x18] sm:$0xf]
      %v211 = vld [vmem:[%s1 + $0x1c] sm:$0xf]
      %v212 = vld [vmem:[%s192 + $0x1] sm:$0xff]
      %v213 = vld [vmem:[%s192 + $0x9] sm:$0xff]
      %v214 = vld [vmem:[%s192 + $0x11] sm:$0xff]
      %v215 = vpack.c.bf16 %v213, %v212
      %v216 = vpack.c.bf16 %v214, %v214
      %s217 = scalar_lea.vmem %s1, 32
      %v218 = vld [vmem:[%s217] sm:$0xf]
      %v219 = vld [vmem:[%s217 + $0x4] sm:$0xf]
      %v220 = vld [vmem:[%s217 + $0x8] sm:$0xf]
      %v221 = vld [vmem:[%s217 + $0xc] sm:$0xf]
      %v222 = vld [vmem:[%s217 + $0x10] sm:$0xf]
      %v223 = vld [vmem:[%s217 + $0x14] sm:$0xf]
      %v224 = vld [vmem:[%s217 + $0x18] sm:$0xf]
      %v225 = vld [vmem:[%s217 + $0x1c] sm:$0xf]
      %v234 = vunpack.c.l.b16 %v218
      %v235 = vunpack.c.l.b16 %v219
      %v236 = vunpack.c.l.b16 %v220
      %v237 = vunpack.c.l.b16 %v221
      %v238 = vunpack.c.l.b16 %v222
      %v239 = vunpack.c.l.b16 %v223
      %v240 = vunpack.c.l.b16 %v224
      %v241 = vunpack.c.l.b16 %v225
      %v242 = vpack.c.b16 %v235, %v234
      %v243 = vpack.c.b16 %v237, %v236
      %v244 = vpack.c.b16 %v239, %v238
      %v245 = vpack.c.b16 %v241, %v240
      %vm250 = vcmask 523264
      %v252 = vsel %vm250, %v215, 0
      %v255 = vsel %vm250, %v216, 0
      %257 = vmatprep.subr.bf16.mxu0 0
      %258 = vmatpush1.bf16.msra.mxu0 %v242
      %259 = vmatprep.subr.bf16.mxu0 0
      %260 = vmatpush1.bf16.msra.mxu0 %v243
      %261 = vmatprep.subr.bf16.mxu0 0
      %262 = vmatpush1.bf16.msra.mxu0 %v244
      %263 = vmatprep.subr.bf16.mxu0 0
      %264 = vmatpush1.bf16.msra.mxu0 %v245
      %265 = vmatprep.subr.bf16.mxu0 0
      %266 = vmatpush1.bf16.msra.mxu0 0
      %267 = vmatprep.subr.bf16.mxu0 0
      %268 = vmatpush1.bf16.msra.mxu0 0
      %269 = vmatprep.subr.bf16.mxu0 0
      %270 = vmatpush1.bf16.msra.mxu0 0
      %271 = vmatprep.subr.bf16.mxu0 0
      %272 = vmatpush1.bf16.msra.mxu0 0
      %273 = vmatprep.subr.bf16.mxu0 0
      %274 = vmatpush1.bf16.msra.mxu0 0
      %275 = vmatprep.subr.bf16.mxu0 0
      %276 = vmatpush1.bf16.msra.mxu0 0
      %277 = vmatprep.subr.bf16.mxu0 0
      %278 = vmatpush1.bf16.msra.mxu0 0
      %279 = vmatprep.subr.bf16.mxu0 0
      %280 = vmatpush1.bf16.msra.mxu0 0
      %281 = vmatprep.subr.bf16.mxu0 0
      %282 = vmatpush1.bf16.msra.mxu0 0
      %283 = vmatprep.subr.bf16.mxu0 0
      %284 = vmatpush1.bf16.msra.mxu0 0
      %285 = vmatprep.subr.bf16.mxu0 0
      %286 = vmatpush1.bf16.msra.mxu0 0
      %287 = vmatprep.subr.bf16.mxu0 0
      %288 = vmatpush1.bf16.msra.mxu0 0
      %289 = vmatprep.mubr.bf16.mxu0 0
      %290 = vmatmul.mubr.bf16.gmra.mrb[0].mxu0 %v252
      %v291 = vpop.f32.mrb[0].mxu0
      %v292 = vadd.f32 0.0, %v291
      %v293 = vpop.f32.mrb[0].mxu0
      %v294 = vpop.f32.mrb[0].mxu0
      %v295 = vadd.f32 0.0, %v294
      %v296 = vpop.f32.mrb[0].mxu0
      %297 = vmatprep.mubr.bf16.mxu0 0
      %298 = vmatmul.mubr.bf16.gmra.mrb[0].mxu0 %v255
      %v299 = vpop.f32.mrb[0].mxu0
      %v300 = vadd.f32 0.0, %v299
      %v301 = vpop.f32.mrb[0].mxu0
      %v302 = vpop.f32.mrb[0].mxu0
      %v303 = vpop.f32.mrb[0].mxu0
      %304 = vdwg.mxu0
      %v313 = vunpack.c.l.b16 %v204
      %v314 = vunpack.c.l.b16 %v205
      %v315 = vunpack.c.l.b16 %v206
      %v316 = vunpack.c.l.b16 %v207
      %v317 = vunpack.c.l.b16 %v208
      %v318 = vunpack.c.l.b16 %v209
      %v319 = vunpack.c.l.b16 %v210
      %v320 = vunpack.c.l.b16 %v211
      %v321 = vpack.c.b16 %v314, %v313
      %v322 = vpack.c.b16 %v316, %v315
      %v323 = vpack.c.b16 %v318, %v317
      %v324 = vpack.c.b16 %v320, %v319
      %v330 = vsel %vm250, %v202, 0
      %v333 = vsel %vm250, %v203, 0
      %335 = vmatprep.subr.bf16.mxu0 0
      %336 = vmatpush1.bf16.msra.mxu0 %v321
      %337 = vmatprep.subr.bf16.mxu0 0
      %338 = vmatpush1.bf16.msra.mxu0 %v322
      %339 = vmatprep.subr.bf16.mxu0 0
      %340 = vmatpush1.bf16.msra.mxu0 %v323
      %341 = vmatprep.subr.bf16.mxu0 0
      %342 = vmatpush1.bf16.msra.mxu0 %v324
      %343 = vmatprep.subr.bf16.mxu0 0
      %344 = vmatpush1.bf16.msra.mxu0 0
      %345 = vmatprep.subr.bf16.mxu0 0
      %346 = vmatpush1.bf16.msra.mxu0 0
      %347 = vmatprep.subr.bf16.mxu0 0
      %348 = vmatpush1.bf16.msra.mxu0 0
      %349 = vmatprep.subr.bf16.mxu0 0
      %350 = vmatpush1.bf16.msra.mxu0 0
      %351 = vmatprep.subr.bf16.mxu0 0
      %352 = vmatpush1.bf16.msra.mxu0 0
      %353 = vmatprep.subr.bf16.mxu0 0
      %354 = vmatpush1.bf16.msra.mxu0 0
      %355 = vmatprep.subr.bf16.mxu0 0
      %356 = vmatpush1.bf16.msra.mxu0 0
      %357 = vmatprep.subr.bf16.mxu0 0
      %358 = vmatpush1.bf16.msra.mxu0 0
      %359 = vmatprep.subr.bf16.mxu0 0
      %360 = vmatpush1.bf16.msra.mxu0 0
      %361 = vmatprep.subr.bf16.mxu0 0
      %362 = vmatpush1.bf16.msra.mxu0 0
      %363 = vmatprep.subr.bf16.mxu0 0
      %364 = vmatpush1.bf16.msra.mxu0 0
      %365 = vmatprep.subr.bf16.mxu0 0
      %366 = vmatpush1.bf16.msra.mxu0 0
      %367 = vmatprep.mubr.bf16.mxu0 0
      %368 = vmatmul.mubr.bf16.gmra.mrb[0].mxu0 %v330
      %v369 = vpop.f32.mrb[0].mxu0
      %v370 = vadd.f32 %v292, %v369
      %v371 = vpop.f32.mrb[0].mxu0
      %v372 = vpop.f32.mrb[0].mxu0
      %v373 = vadd.f32 %v295, %v372
      %v374 = vpop.f32.mrb[0].mxu0
      %375 = vmatprep.mubr.bf16.mxu0 0
      %376 = vmatmul.mubr.bf16.gmra.mrb[0].mxu0 %v333
      %v377 = vpop.f32.mrb[0].mxu0
      %v378 = vadd.f32 %v300, %v377
      %v379 = vpop.f32.mrb[0].mxu0
      %v380 = vpop.f32.mrb[0].mxu0
      %v381 = vpop.f32.mrb[0].mxu0
      %382 = vdwg.mxu0
      %v383 = vld [vmem:[%s192 + $0x6] sm:$0xff]
      %v384 = vld [vmem:[%s192 + $0xe] sm:$0xff]
      %v385 = vld [vmem:[%s192 + $0x16] sm:$0xff]
      %v386 = vpack.c.bf16 %v384, %v383
      %v387 = vpack.c.bf16 %v385, %v385
      %s388 = scalar_lea.vmem %s1, 64
      %v389 = vld [vmem:[%s388] sm:$0xf]
      %v390 = vld [vmem:[%s388 + $0x4] sm:$0xf]
      %v391 = vld [vmem:[%s388 + $0x8] sm:$0xf]
      %v392 = vld [vmem:[%s388 + $0xc] sm:$0xf]
      %v393 = vld [vmem:[%s388 + $0x10] sm:$0xf]
      %v394 = vld [vmem:[%s388 + $0x14] sm:$0xf]
      %v395 = vld [vmem:[%s388 + $0x18] sm:$0xf]
      %v396 = vld [vmem:[%s388 + $0x1c] sm:$0xf]
      %v405 = vunpack.c.l.b16 %v389
      %v406 = vunpack.c.l.b16 %v390
      %v407 = vunpack.c.l.b16 %v391
      %v408 = vunpack.c.l.b16 %v392
      %v409 = vunpack.c.l.b16 %v393
      %v410 = vunpack.c.l.b16 %v394
      %v411 = vunpack.c.l.b16 %v395
      %v412 = vunpack.c.l.b16 %v396
      %v413 = vpack.c.b16 %v406, %v405
      %v414 = vpack.c.b16 %v408, %v407
      %v415 = vpack.c.b16 %v410, %v409
      %v416 = vpack.c.b16 %v412, %v411
      %v422 = vsel %vm250, %v386, 0
      %v425 = vsel %vm250, %v387, 0
      %427 = vmatprep.subr.bf16.mxu0 0
      %428 = vmatpush1.bf16.msra.mxu0 %v413
      %429 = vmatprep.subr.bf16.mxu0 0
      %430 = vmatpush1.bf16.msra.mxu0 %v414
      %431 = vmatprep.subr.bf16.mxu0 0
      %432 = vmatpush1.bf16.msra.mxu0 %v415
      %433 = vmatprep.subr.bf16.mxu0 0
      %434 = vmatpush1.bf16.msra.mxu0 %v416
      %435 = vmatprep.subr.bf16.mxu0 0
      %436 = vmatpush1.bf16.msra.mxu0 0
      %437 = vmatprep.subr.bf16.mxu0 0
      %438 = vmatpush1.bf16.msra.mxu0 0
      %439 = vmatprep.subr.bf16.mxu0 0
      %440 = vmatpush1.bf16.msra.mxu0 0
      %441 = vmatprep.subr.bf16.mxu0 0
      %442 = vmatpush1.bf16.msra.mxu0 0
      %443 = vmatprep.subr.bf16.mxu0 0
      %444 = vmatpush1.bf16.msra.mxu0 0
      %445 = vmatprep.subr.bf16.mxu0 0
      %446 = vmatpush1.bf16.msra.mxu0 0
      %447 = vmatprep.subr.bf16.mxu0 0
      %448 = vmatpush1.bf16.msra.mxu0 0
      %449 = vmatprep.subr.bf16.mxu0 0
      %450 = vmatpush1.bf16.msra.mxu0 0
      %451 = vmatprep.subr.bf16.mxu0 0
      %452 = vmatpush1.bf16.msra.mxu0 0
      %453 = vmatprep.subr.bf16.mxu0 0
      %454 = vmatpush1.bf16.msra.mxu0 0
      %455 = vmatprep.subr.bf16.mxu0 0
      %456 = vmatpush1.bf16.msra.mxu0 0
      %457 = vmatprep.subr.bf16.mxu0 0
      %458 = vmatpush1.bf16.msra.mxu0 0
      %459 = vmatprep.mubr.bf16.mxu0 0
      %460 = vmatmul.mubr.bf16.gmra.mrb[0].mxu0 %v422
      %v461 = vpop.f32.mrb[0].mxu0
      %v462 = vadd.f32 0.0, %v461
      %v463 = vpop.f32.mrb[0].mxu0
      %v464 = vpop.f32.mrb[0].mxu0
      %v465 = vadd.f32 0.0, %v464
      %v466 = vpop.f32.mrb[0].mxu0
      %467 = vmatprep.mubr.bf16.mxu0 0
      %468 = vmatmul.mubr.bf16.gmra.mrb[0].mxu0 %v425
      %v469 = vpop.f32.mrb[0].mxu0
      %v470 = vadd.f32 0.0, %v469
      %v471 = vpop.f32.mrb[0].mxu0
      %v472 = vpop.f32.mrb[0].mxu0
      %v473 = vpop.f32.mrb[0].mxu0
      %474 = vdwg.mxu0
      %v475 = vadd.f32 %v370, %v462
      %v476 = vadd.f32 %v373, %v465
      %v477 = vadd.f32 %v378, %v470
      %v478 = vld [vmem:[%s192 + $0x7] sm:$0xff]
      %v479 = vld [vmem:[%s192 + $0xf] sm:$0xff]
      %v480 = vld [vmem:[%s192 + $0x17] sm:$0xff]
      %v481 = vpack.c.bf16 %v479, %v478
      %v482 = vpack.c.bf16 %v480, %v480
      %s483 = scalar_lea.vmem %s1, 96
      %v484 = vld [vmem:[%s483] sm:$0xf]
      %v485 = vld [vmem:[%s483 + $0x4] sm:$0xf]
      %v486 = vld [vmem:[%s483 + $0x8] sm:$0xf]
      %v487 = vld [vmem:[%s483 + $0xc] sm:$0xf]
      %v488 = vld [vmem:[%s483 + $0x10] sm:$0xf]
      %v489 = vld [vmem:[%s483 + $0x14] sm:$0xf]
      %v490 = vld [vmem:[%s483 + $0x18] sm:$0xf]
      %v491 = vld [vmem:[%s483 + $0x1c] sm:$0xf]
      %v500 = vunpack.c.l.b16 %v484
      %v501 = vunpack.c.l.b16 %v485
      %v502 = vunpack.c.l.b16 %v486
      %v503 = vunpack.c.l.b16 %v487
      %v504 = vunpack.c.l.b16 %v488
      %v505 = vunpack.c.l.b16 %v489
      %v506 = vunpack.c.l.b16 %v490
      %v507 = vunpack.c.l.b16 %v491
      %v508 = vpack.c.b16 %v501, %v500
      %v509 = vpack.c.b16 %v503, %v502
      %v510 = vpack.c.b16 %v505, %v504
      %v511 = vpack.c.b16 %v507, %v506
      %v517 = vsel %vm250, %v481, 0
      %v520 = vsel %vm250, %v482, 0
      %522 = vmatprep.subr.bf16.mxu0 0
      %523 = vmatpush1.bf16.msra.mxu0 %v508
      %524 = vmatprep.subr.bf16.mxu0 0
      %525 = vmatpush1.bf16.msra.mxu0 %v509
      %526 = vmatprep.subr.bf16.mxu0 0
      %527 = vmatpush1.bf16.msra.mxu0 %v510
      %528 = vmatprep.subr.bf16.mxu0 0
      %529 = vmatpush1.bf16.msra.mxu0 %v511
      %530 = vmatprep.subr.bf16.mxu0 0
      %531 = vmatpush1.bf16.msra.mxu0 0
      %532 = vmatprep.subr.bf16.mxu0 0
      %533 = vmatpush1.bf16.msra.mxu0 0
      %534 = vmatprep.subr.bf16.mxu0 0
      %535 = vmatpush1.bf16.msra.mxu0 0
      %536 = vmatprep.subr.bf16.mxu0 0
      %537 = vmatpush1.bf16.msra.mxu0 0
      %538 = vmatprep.subr.bf16.mxu0 0
      %539 = vmatpush1.bf16.msra.mxu0 0
      %540 = vmatprep.subr.bf16.mxu0 0
      %541 = vmatpush1.bf16.msra.mxu0 0
      %542 = vmatprep.subr.bf16.mxu0 0
      %543 = vmatpush1.bf16.msra.mxu0 0
      %544 = vmatprep.subr.bf16.mxu0 0
      %545 = vmatpush1.bf16.msra.mxu0 0
      %546 = vmatprep.subr.bf16.mxu0 0
      %547 = vmatpush1.bf16.msra.mxu0 0
      %548 = vmatprep.subr.bf16.mxu0 0
      %549 = vmatpush1.bf16.msra.mxu0 0
      %550 = vmatprep.subr.bf16.mxu0 0
      %551 = vmatpush1.bf16.msra.mxu0 0
      %552 = vmatprep.subr.bf16.mxu0 0
      %553 = vmatpush1.bf16.msra.mxu0 0
      %554 = vmatprep.mubr.bf16.mxu0 0
      %555 = vmatmul.mubr.bf16.gmra.mrb[0].mxu0 %v517
      %v556 = vpop.f32.mrb[0].mxu0
      %v557 = vadd.f32 0.0, %v556
      %v558 = vpop.f32.mrb[0].mxu0
      %v559 = vpop.f32.mrb[0].mxu0
      %v560 = vadd.f32 0.0, %v559
      %v561 = vpop.f32.mrb[0].mxu0
      %562 = vmatprep.mubr.bf16.mxu0 0
      %563 = vmatmul.mubr.bf16.gmra.mrb[0].mxu0 %v520
      %v564 = vpop.f32.mrb[0].mxu0
      %v565 = vadd.f32 0.0, %v564
      %v566 = vpop.f32.mrb[0].mxu0
      %v567 = vpop.f32.mrb[0].mxu0
      %v568 = vpop.f32.mrb[0].mxu0
      %569 = vdwg.mxu0
      %v570 = vadd.f32 %v475, %v557
      %v571 = vadd.f32 %v476, %v560
      %v572 = vadd.f32 %v477, %v565
      %v573 = vld [vmem:[%s2] sm:$0x1]
      %v575 = vlaneseq
      %v576 = vshrl.u32 %v575, 7
      %v577 = vsub.s32 0, %v576
      %v578 = vrot.slane %v573, %v577
      %v580 = vmul.f32 %v570, %v578
      %v581 = vmul.f32 %v571, %v578
      %v582 = vmul.f32 %v572, %v578
      %v583 = vld [vmem:[%s3] sm:$0x1]
      %v585 = vlaneseq
      %v586 = vshrl.u32 %v585, 7
      %v587 = vsub.s32 0, %v586
      %v588 = vrot.slane %v583, %v587
      %v590 = vadd.f32 %v580, %v588
      %v591 = vadd.f32 %v581, %v588
      %v592 = vadd.f32 %v582, %v588
      %v593 = vmax.f32 %v590, 0.0
      %v594 = vmax.f32 %v591, 0.0
      %v595 = vmax.f32 %v592, 0.0
      %vm596 = vcmask 261120
      %597 = vst.msk [vmem:[%s197] sm:$0xff] %vm596, %v593
      %598 = vst.msk [vmem:[%s197 + $0x8] sm:$0xff] %vm596, %v594
      %599 = vst.msk [vmem:[%s197 + $0x10] sm:$0xff] %vm596, %v595
      %v600 = vld [vmem:[%s192 + $0x1] sm:$0xff]
      %v601 = vld [vmem:[%s192 + $0x9] sm:$0xff]
      %v602 = vld [vmem:[%s192 + $0x11] sm:$0xff]
      %v603 = vpack.c.bf16 %v601, %v600
      %v604 = vpack.c.bf16 %v602, %v602
      %s605 = scalar_lea.vmem %s1, 128
      %v606 = vld [vmem:[%s605] sm:$0xf]
      %v607 = vld [vmem:[%s605 + $0x4] sm:$0xf]
      %v608 = vld [vmem:[%s605 + $0x8] sm:$0xf]
      %v609 = vld [vmem:[%s605 + $0xc] sm:$0xf]
      %v610 = vld [vmem:[%s605 + $0x10] sm:$0xf]
      %v611 = vld [vmem:[%s605 + $0x14] sm:$0xf]
      %v612 = vld [vmem:[%s605 + $0x18] sm:$0xf]
      %v613 = vld [vmem:[%s605 + $0x1c] sm:$0xf]
      %v614 = vld [vmem:[%s192 + $0x2] sm:$0xff]
      %v615 = vld [vmem:[%s192 + $0xa] sm:$0xff]
      %v616 = vld [vmem:[%s192 + $0x12] sm:$0xff]
      %v617 = vpack.c.bf16 %v615, %v614
      %v618 = vpack.c.bf16 %v616, %v616
      %s619 = scalar_lea.vmem %s1, 160
      %v620 = vld [vmem:[%s619] sm:$0xf]
      %v621 = vld [vmem:[%s619 + $0x4] sm:$0xf]
      %v622 = vld [vmem:[%s619 + $0x8] sm:$0xf]
      %v623 = vld [vmem:[%s619 + $0xc] sm:$0xf]
      %v624 = vld [vmem:[%s619 + $0x10] sm:$0xf]
      %v625 = vld [vmem:[%s619 + $0x14] sm:$0xf]
      %v626 = vld [vmem:[%s619 + $0x18] sm:$0xf]
      %v627 = vld [vmem:[%s619 + $0x1c] sm:$0xf]
      %v636 = vunpack.c.l.b16 %v620
      %v637 = vunpack.c.l.b16 %v621
      %v638 = vunpack.c.l.b16 %v622
      %v639 = vunpack.c.l.b16 %v623
      %v640 = vunpack.c.l.b16 %v624
      %v641 = vunpack.c.l.b16 %v625
      %v642 = vunpack.c.l.b16 %v626
      %v643 = vunpack.c.l.b16 %v627
      %v644 = vpack.c.b16 %v637, %v636
      %v645 = vpack.c.b16 %v639, %v638
      %v646 = vpack.c.b16 %v641, %v640
      %v647 = vpack.c.b16 %v643, %v642
      %v653 = vsel %vm250, %v617, 0
      %v656 = vsel %vm250, %v618, 0
      %658 = vmatprep.subr.bf16.mxu0 0
      %659 = vmatpush1.bf16.msra.mxu0 %v644
      %660 = vmatprep.subr.bf16.mxu0 0
      %661 = vmatpush1.bf16.msra.mxu0 %v645
      %662 = vmatprep.subr.bf16.mxu0 0
      %663 = vmatpush1.bf16.msra.mxu0 %v646
      %664 = vmatprep.subr.bf16.mxu0 0
      %665 = vmatpush1.bf16.msra.mxu0 %v647
      %666 = vmatprep.subr.bf16.mxu0 0
      %667 = vmatpush1.bf16.msra.mxu0 0
      %668 = vmatprep.subr.bf16.mxu0 0
      %669 = vmatpush1.bf16.msra.mxu0 0
      %670 = vmatprep.subr.bf16.mxu0 0
      %671 = vmatpush1.bf16.msra.mxu0 0
      %672 = vmatprep.subr.bf16.mxu0 0
      %673 = vmatpush1.bf16.msra.mxu0 0
      %674 = vmatprep.subr.bf16.mxu0 0
      %675 = vmatpush1.bf16.msra.mxu0 0
      %676 = vmatprep.subr.bf16.mxu0 0
      %677 = vmatpush1.bf16.msra.mxu0 0
      %678 = vmatprep.subr.bf16.mxu0 0
      %679 = vmatpush1.bf16.msra.mxu0 0
      %680 = vmatprep.subr.bf16.mxu0 0
      %681 = vmatpush1.bf16.msra.mxu0 0
      %682 = vmatprep.subr.bf16.mxu0 0
      %683 = vmatpush1.bf16.msra.mxu0 0
      %684 = vmatprep.subr.bf16.mxu0 0
      %685 = vmatpush1.bf16.msra.mxu0 0
      %686 = vmatprep.subr.bf16.mxu0 0
      %687 = vmatpush1.bf16.msra.mxu0 0
      %688 = vmatprep.subr.bf16.mxu0 0
      %689 = vmatpush1.bf16.msra.mxu0 0
      %690 = vmatprep.mubr.bf16.mxu0 0
      %691 = vmatmul.mubr.bf16.gmra.mrb[0].mxu0 %v653
      %v692 = vpop.f32.mrb[0].mxu0
      %v693 = vadd.f32 0.0, %v692
      %v694 = vpop.f32.mrb[0].mxu0
      %v695 = vpop.f32.mrb[0].mxu0
      %v696 = vadd.f32 0.0, %v695
      %v697 = vpop.f32.mrb[0].mxu0
      %698 = vmatprep.mubr.bf16.mxu0 0
      %699 = vmatmul.mubr.bf16.gmra.mrb[0].mxu0 %v656
      %v700 = vpop.f32.mrb[0].mxu0
      %v701 = vadd.f32 0.0, %v700
      %v702 = vpop.f32.mrb[0].mxu0
      %v703 = vpop.f32.mrb[0].mxu0
      %v704 = vpop.f32.mrb[0].mxu0
      %705 = vdwg.mxu0
      %v714 = vunpack.c.l.b16 %v606
      %v715 = vunpack.c.l.b16 %v607
      %v716 = vunpack.c.l.b16 %v608
      %v717 = vunpack.c.l.b16 %v609
      %v718 = vunpack.c.l.b16 %v610
      %v719 = vunpack.c.l.b16 %v611
      %v720 = vunpack.c.l.b16 %v612
      %v721 = vunpack.c.l.b16 %v613
      %v722 = vpack.c.b16 %v715, %v714
      %v723 = vpack.c.b16 %v717, %v716
      %v724 = vpack.c.b16 %v719, %v718
      %v725 = vpack.c.b16 %v721, %v720
      %v731 = vsel %vm250, %v603, 0
      %v734 = vsel %vm250, %v604, 0
      %736 = vmatprep.subr.bf16.mxu0 0
      %737 = vmatpush1.bf16.msra.mxu0 %v722
      %738 = vmatprep.subr.bf16.mxu0 0
      %739 = vmatpush1.bf16.msra.mxu0 %v723
      %740 = vmatprep.subr.bf16.mxu0 0
      %741 = vmatpush1.bf16.msra.mxu0 %v724
      %742 = vmatprep.subr.bf16.mxu0 0
      %743 = vmatpush1.bf16.msra.mxu0 %v725
      %744 = vmatprep.subr.bf16.mxu0 0
      %745 = vmatpush1.bf16.msra.mxu0 0
      %746 = vmatprep.subr.bf16.mxu0 0
      %747 = vmatpush1.bf16.msra.mxu0 0
      %748 = vmatprep.subr.bf16.mxu0 0
      %749 = vmatpush1.bf16.msra.mxu0 0
      %750 = vmatprep.subr.bf16.mxu0 0
      %751 = vmatpush1.bf16.msra.mxu0 0
      %752 = vmatprep.subr.bf16.mxu0 0
      %753 = vmatpush1.bf16.msra.mxu0 0
      %754 = vmatprep.subr.bf16.mxu0 0
      %755 = vmatpush1.bf16.msra.mxu0 0
      %756 = vmatprep.subr.bf16.mxu0 0
      %757 = vmatpush1.bf16.msra.mxu0 0
      %758 = vmatprep.subr.bf16.mxu0 0
      %759 = vmatpush1.bf16.msra.mxu0 0
      %760 = vmatprep.subr.bf16.mxu0 0
      %761 = vmatpush1.bf16.msra.mxu0 0
      %762 = vmatprep.subr.bf16.mxu0 0
      %763 = vmatpush1.bf16.msra.mxu0 0
      %764 = vmatprep.subr.bf16.mxu0 0
      %765 = vmatpush1.bf16.msra.mxu0 0
      %766 = vmatprep.subr.bf16.mxu0 0
      %767 = vmatpush1.bf16.msra.mxu0 0
      %768 = vmatprep.mubr.bf16.mxu0 0
      %769 = vmatmul.mubr.bf16.gmra.mrb[0].mxu0 %v731
      %v770 = vpop.f32.mrb[0].mxu0
      %v771 = vadd.f32 %v693, %v770
      %v772 = vpop.f32.mrb[0].mxu0
      %v773 = vpop.f32.mrb[0].mxu0
      %v774 = vadd.f32 %v696, %v773
      %v775 = vpop.f32.mrb[0].mxu0
      %776 = vmatprep.mubr.bf16.mxu0 0
      %777 = vmatmul.mubr.bf16.gmra.mrb[0].mxu0 %v734
      %v778 = vpop.f32.mrb[0].mxu0
      %v779 = vadd.f32 %v701, %v778
      %v780 = vpop.f32.mrb[0].mxu0
      %v781 = vpop.f32.mrb[0].mxu0
      %v782 = vpop.f32.mrb[0].mxu0
      %783 = vdwg.mxu0
      %v784 = vld [vmem:[%s192 + $0x7] sm:$0xff]
      %v785 = vld [vmem:[%s192 + $0xf] sm:$0xff]
      %v786 = vld [vmem:[%s192 + $0x17] sm:$0xff]
      %v787 = vpack.c.bf16 %v785, %v784
      %v788 = vpack.c.bf16 %v786, %v786
      %s789 = scalar_lea.vmem %s1, 192
      %v790 = vld [vmem:[%s789] sm:$0xf]
      %v791 = vld [vmem:[%s789 + $0x4] sm:$0xf]
      %v792 = vld [vmem:[%s789 + $0x8] sm:$0xf]
      %v793 = vld [vmem:[%s789 + $0xc] sm:$0xf]
      %v794 = vld [vmem:[%s789 + $0x10] sm:$0xf]
      %v795 = vld [vmem:[%s789 + $0x14] sm:$0xf]
      %v796 = vld [vmem:[%s789 + $0x18] sm:$0xf]
      %v797 = vld [vmem:[%s789 + $0x1c] sm:$0xf]
      %v806 = vunpack.c.l.b16 %v790
      %v807 = vunpack.c.l.b16 %v791
      %v808 = vunpack.c.l.b16 %v792
      %v809 = vunpack.c.l.b16 %v793
      %v810 = vunpack.c.l.b16 %v794
      %v811 = vunpack.c.l.b16 %v795
      %v812 = vunpack.c.l.b16 %v796
      %v813 = vunpack.c.l.b16 %v797
      %v814 = vpack.c.b16 %v807, %v806
      %v815 = vpack.c.b16 %v809, %v808
      %v816 = vpack.c.b16 %v811, %v810
      %v817 = vpack.c.b16 %v813, %v812
      %v823 = vsel %vm250, %v787, 0
      %v826 = vsel %vm250, %v788, 0
      %828 = vmatprep.subr.bf16.mxu0 0
      %829 = vmatpush1.bf16.msra.mxu0 %v814
      %830 = vmatprep.subr.bf16.mxu0 0
      %831 = vmatpush1.bf16.msra.mxu0 %v815
      %832 = vmatprep.subr.bf16.mxu0 0
      %833 = vmatpush1.bf16.msra.mxu0 %v816
      %834 = vmatprep.subr.bf16.mxu0 0
      %835 = vmatpush1.bf16.msra.mxu0 %v817
      %836 = vmatprep.subr.bf16.mxu0 0
      %837 = vmatpush1.bf16.msra.mxu0 0
      %838 = vmatprep.subr.bf16.mxu0 0
      %839 = vmatpush1.bf16.msra.mxu0 0
      %840 = vmatprep.subr.bf16.mxu0 0
      %841 = vmatpush1.bf16.msra.mxu0 0
      %842 = vmatprep.subr.bf16.mxu0 0
      %843 = vmatpush1.bf16.msra.mxu0 0
      %844 = vmatprep.subr.bf16.mxu0 0
      %845 = vmatpush1.bf16.msra.mxu0 0
      %846 = vmatprep.subr.bf16.mxu0 0
      %847 = vmatpush1.bf16.msra.mxu0 0
      %848 = vmatprep.subr.bf16.mxu0 0
      %849 = vmatpush1.bf16.msra.mxu0 0
      %850 = vmatprep.subr.bf16.mxu0 0
      %851 = vmatpush1.bf16.msra.mxu0 0
      %852 = vmatprep.subr.bf16.mxu0 0
      %853 = vmatpush1.bf16.msra.mxu0 0
      %854 = vmatprep.subr.bf16.mxu0 0
      %855 = vmatpush1.bf16.msra.mxu0 0
      %856 = vmatprep.subr.bf16.mxu0 0
      %857 = vmatpush1.bf16.msra.mxu0 0
      %858 = vmatprep.subr.bf16.mxu0 0
      %859 = vmatpush1.bf16.msra.mxu0 0
      %860 = vmatprep.mubr.bf16.mxu0 0
      %861 = vmatmul.mubr.bf16.gmra.mrb[0].mxu0 %v823
      %v862 = vpop.f32.mrb[0].mxu0
      %v863 = vadd.f32 0.0, %v862
      %v864 = vpop.f32.mrb[0].mxu0
      %v865 = vpop.f32.mrb[0].mxu0
      %v866 = vadd.f32 0.0, %v865
      %v867 = vpop.f32.mrb[0].mxu0
      %868 = vmatprep.mubr.bf16.mxu0 0
      %869 = vmatmul.mubr.bf16.gmra.mrb[0].mxu0 %v826
      %v870 = vpop.f32.mrb[0].mxu0
      %v871 = vadd.f32 0.0, %v870
      %v872 = vpop.f32.mrb[0].mxu0
      %v873 = vpop.f32.mrb[0].mxu0
      %v874 = vpop.f32.mrb[0].mxu0
      %875 = vdwg.mxu0
      %v876 = vadd.f32 %v771, %v863
      %v877 = vadd.f32 %v774, %v866
      %v878 = vadd.f32 %v779, %v871
      %v879 = vld [vmem:[%s192 + $0x8] sm:$0xff]
      %v880 = vld [vmem:[%s192 + $0x10] sm:$0xff]
      %v881 = vld [vmem:[%s192 + $0x18] sm:$0xff]
      %v882 = vpack.c.bf16 %v880, %v879
      %v883 = vpack.c.bf16 %v881, %v881
      %s884 = scalar_lea.vmem %s1, 224
      %v885 = vld [vmem:[%s884] sm:$0xf]
      %v886 = vld [vmem:[%s884 + $0x4] sm:$0xf]
      %v887 = vld [vmem:[%s884 + $0x8] sm:$0xf]
      %v888 = vld [vmem:[%s884 + $0xc] sm:$0xf]
      %v889 = vld [vmem:[%s884 + $0x10] sm:$0xf]
      %v890 = vld [vmem:[%s884 + $0x14] sm:$0xf]
      %v891 = vld [vmem:[%s884 + $0x18] sm:$0xf]
      %v892 = vld [vmem:[%s884 + $0x1c] sm:$0xf]
      %v901 = vunpack.c.l.b16 %v885
      %v902 = vunpack.c.l.b16 %v886
      %v903 = vunpack.c.l.b16 %v887
      %v904 = vunpack.c.l.b16 %v888
      %v905 = vunpack.c.l.b16 %v889
      %v906 = vunpack.c.l.b16 %v890
      %v907 = vunpack.c.l.b16 %v891
      %v908 = vunpack.c.l.b16 %v892
      %v909 = vpack.c.b16 %v902, %v901
      %v910 = vpack.c.b16 %v904, %v903
      %v911 = vpack.c.b16 %v906, %v905
      %v912 = vpack.c.b16 %v908, %v907
      %v918 = vsel %vm250, %v882, 0
      %v921 = vsel %vm250, %v883, 0
      %923 = vmatprep.subr.bf16.mxu0 0
      %924 = vmatpush1.bf16.msra.mxu0 %v909
      %925 = vmatprep.subr.bf16.mxu0 0
      %926 = vmatpush1.bf16.msra.mxu0 %v910
      %927 = vmatprep.subr.bf16.mxu0 0
      %928 = vmatpush1.bf16.msra.mxu0 %v911
      %929 = vmatprep.subr.bf16.mxu0 0
      %930 = vmatpush1.bf16.msra.mxu0 %v912
      %931 = vmatprep.subr.bf16.mxu0 0
      %932 = vmatpush1.bf16.msra.mxu0 0
      %933 = vmatprep.subr.bf16.mxu0 0
      %934 = vmatpush1.bf16.msra.mxu0 0
      %935 = vmatprep.subr.bf16.mxu0 0
      %936 = vmatpush1.bf16.msra.mxu0 0
      %937 = vmatprep.subr.bf16.mxu0 0
      %938 = vmatpush1.bf16.msra.mxu0 0
      %939 = vmatprep.subr.bf16.mxu0 0
      %940 = vmatpush1.bf16.msra.mxu0 0
      %941 = vmatprep.subr.bf16.mxu0 0
      %942 = vmatpush1.bf16.msra.mxu0 0
      %943 = vmatprep.subr.bf16.mxu0 0
      %944 = vmatpush1.bf16.msra.mxu0 0
      %945 = vmatprep.subr.bf16.mxu0 0
      %946 = vmatpush1.bf16.msra.mxu0 0
      %947 = vmatprep.subr.bf16.mxu0 0
      %948 = vmatpush1.bf16.msra.mxu0 0
      %949 = vmatprep.subr.bf16.mxu0 0
      %950 = vmatpush1.bf16.msra.mxu0 0
      %951 = vmatprep.subr.bf16.mxu0 0
      %952 = vmatpush1.bf16.msra.mxu0 0
      %953 = vmatprep.subr.bf16.mxu0 0
      %954 = vmatpush1.bf16.msra.mxu0 0
      %955 = vmatprep.mubr.bf16.mxu0 0
      %956 = vmatmul.mubr.bf16.gmra.mrb[0].mxu0 %v918
      %v957 = vpop.f32.mrb[0].mxu0
      %v958 = vadd.f32 0.0, %v957
      %v959 = vpop.f32.mrb[0].mxu0
      %v960 = vpop.f32.mrb[0].mxu0
      %v961 = vadd.f32 0.0, %v960
      %v962 = vpop.f32.mrb[0].mxu0
      %963 = vmatprep.mubr.bf16.mxu0 0
      %964 = vmatmul.mubr.bf16.gmra.mrb[0].mxu0 %v921
      %v965 = vpop.f32.mrb[0].mxu0
      %v966 = vadd.f32 0.0, %v965
      %v967 = vpop.f32.mrb[0].mxu0
      %v968 = vpop.f32.mrb[0].mxu0
      %v969 = vpop.f32.mrb[0].mxu0
      %970 = vdwg.mxu0
      %v971 = vadd.f32 %v876, %v958
      %v972 = vadd.f32 %v877, %v961
      %v973 = vadd.f32 %v878, %v966
      %v974 = vld [vmem:[%s2] sm:$0x1]
      %v976 = vlaneseq
      %v977 = vshrl.u32 %v976, 7
      %v978 = vsub.s32 0, %v977
      %v979 = vrot.slane %v974, %v978
      %v981 = vmul.f32 %v971, %v979
      %v982 = vmul.f32 %v972, %v979
      %v983 = vmul.f32 %v973, %v979
      %v984 = vld [vmem:[%s3] sm:$0x1]
      %v986 = vlaneseq
      %v987 = vshrl.u32 %v986, 7
      %v988 = vsub.s32 0, %v987
      %v989 = vrot.slane %v984, %v988
      %v991 = vadd.f32 %v981, %v989
      %v992 = vadd.f32 %v982, %v989
      %v993 = vadd.f32 %v983, %v989
      %v994 = vmax.f32 %v991, 0.0
      %v995 = vmax.f32 %v992, 0.0
      %v996 = vmax.f32 %v993, 0.0
      %s997 = scalar_lea.vmem %s197, 24
      %998 = vst.msk [vmem:[%s997] sm:$0xff] %vm596, %v994
      %999 = vst.msk [vmem:[%s997 + $0x8] sm:$0xff] %vm596, %v995
      %1000 = vst.msk [vmem:[%s997 + $0x10] sm:$0xff] %vm596, %v996
      %v1001 = vld [vmem:[%s192 + $0x6] sm:$0xff]
      %v1002 = vld [vmem:[%s192 + $0xe] sm:$0xff]
      %v1003 = vld [vmem:[%s192 + $0x16] sm:$0xff]
      %v1004 = vpack.c.bf16 %v1002, %v1001
      %v1005 = vpack.c.bf16 %v1003, %v1003
      %s1006 = scalar_lea.vmem %s1, 256
      %v1007 = vld [vmem:[%s1006] sm:$0xf]
      %v1008 = vld [vmem:[%s1006 + $0x4] sm:$0xf]
      %v1009 = vld [vmem:[%s1006 + $0x8] sm:$0xf]
      %v1010 = vld [vmem:[%s1006 + $0xc] sm:$0xf]
      %v1011 = vld [vmem:[%s1006 + $0x10] sm:$0xf]
      %v1012 = vld [vmem:[%s1006 + $0x14] sm:$0xf]
      %v1013 = vld [vmem:[%s1006 + $0x18] sm:$0xf]
      %v1014 = vld [vmem:[%s1006 + $0x1c] sm:$0xf]
      %v1015 = vld [vmem:[%s192 + $0x7] sm:$0xff]
      %v1016 = vld [vmem:[%s192 + $0xf] sm:$0xff]
      %v1017 = vld [vmem:[%s192 + $0x17] sm:$0xff]
      %v1018 = vpack.c.bf16 %v1016, %v1015
      %v1019 = vpack.c.bf16 %v1017, %v1017
      %s1020 = scalar_lea.vmem %s1, 288
      %v1021 = vld [vmem:[%s1020] sm:$0xf]
      %v1022 = vld [vmem:[%s1020 + $0x4] sm:$0xf]
      %v1023 = vld [vmem:[%s1020 + $0x8] sm:$0xf]
      %v1024 = vld [vmem:[%s1020 + $0xc] sm:$0xf]
      %v1025 = vld [vmem:[%s1020 + $0x10] sm:$0xf]
      %v1026 = vld [vmem:[%s1020 + $0x14] sm:$0xf]
      %v1027 = vld [vmem:[%s1020 + $0x18] sm:$0xf]
      %v1028 = vld [vmem:[%s1020 + $0x1c] sm:$0xf]
      %v1037 = vunpack.c.l.b16 %v1021
      %v1038 = vunpack.c.l.b16 %v1022
      %v1039 = vunpack.c.l.b16 %v1023
      %v1040 = vunpack.c.l.b16 %v1024
      %v1041 = vunpack.c.l.b16 %v1025
      %v1042 = vunpack.c.l.b16 %v1026
      %v1043 = vunpack.c.l.b16 %v1027
      %v1044 = vunpack.c.l.b16 %v1028
      %v1045 = vpack.c.b16 %v1038, %v1037
      %v1046 = vpack.c.b16 %v1040, %v1039
      %v1047 = vpack.c.b16 %v1042, %v1041
      %v1048 = vpack.c.b16 %v1044, %v1043
      %v1054 = vsel %vm250, %v1018, 0
      %v1057 = vsel %vm250, %v1019, 0
      %1059 = vmatprep.subr.bf16.mxu0 0
      %1060 = vmatpush1.bf16.msra.mxu0 %v1045
      %1061 = vmatprep.subr.bf16.mxu0 0
      %1062 = vmatpush1.bf16.msra.mxu0 %v1046
      %1063 = vmatprep.subr.bf16.mxu0 0
      %1064 = vmatpush1.bf16.msra.mxu0 %v1047
      %1065 = vmatprep.subr.bf16.mxu0 0
      %1066 = vmatpush1.bf16.msra.mxu0 %v1048
      %1067 = vmatprep.subr.bf16.mxu0 0
      %1068 = vmatpush1.bf16.msra.mxu0 0
      %1069 = vmatprep.subr.bf16.mxu0 0
      %1070 = vmatpush1.bf16.msra.mxu0 0
      %1071 = vmatprep.subr.bf16.mxu0 0
      %1072 = vmatpush1.bf16.msra.mxu0 0
      %1073 = vmatprep.subr.bf16.mxu0 0
      %1074 = vmatpush1.bf16.msra.mxu0 0
      %1075 = vmatprep.subr.bf16.mxu0 0
      %1076 = vmatpush1.bf16.msra.mxu0 0
      %1077 = vmatprep.subr.bf16.mxu0 0
      %1078 = vmatpush1.bf16.msra.mxu0 0
      %1079 = vmatprep.subr.bf16.mxu0 0
      %1080 = vmatpush1.bf16.msra.mxu0 0
      %1081 = vmatprep.subr.bf16.mxu0 0
      %1082 = vmatpush1.bf16.msra.mxu0 0
      %1083 = vmatprep.subr.bf16.mxu0 0
      %1084 = vmatpush1.bf16.msra.mxu0 0
      %1085 = vmatprep.subr.bf16.mxu0 0
      %1086 = vmatpush1.bf16.msra.mxu0 0
      %1087 = vmatprep.subr.bf16.mxu0 0
      %1088 = vmatpush1.bf16.msra.mxu0 0
      %1089 = vmatprep.subr.bf16.mxu0 0
      %1090 = vmatpush1.bf16.msra.mxu0 0
      %1091 = vmatprep.mubr.bf16.mxu0 0
      %1092 = vmatmul.mubr.bf16.gmra.mrb[0].mxu0 %v1054
      %v1093 = vpop.f32.mrb[0].mxu0
      %v1094 = vadd.f32 0.0, %v1093
      %v1095 = vpop.f32.mrb[0].mxu0
      %v1096 = vpop.f32.mrb[0].mxu0
      %v1097 = vadd.f32 0.0, %v1096
      %v1098 = vpop.f32.mrb[0].mxu0
      %1099 = vmatprep.mubr.bf16.mxu0 0
      %1100 = vmatmul.mubr.bf16.gmra.mrb[0].mxu0 %v1057
      %v1101 = vpop.f32.mrb[0].mxu0
      %v1102 = vadd.f32 0.0, %v1101
      %v1103 = vpop.f32.mrb[0].mxu0
      %v1104 = vpop.f32.mrb[0].mxu0
      %v1105 = vpop.f32.mrb[0].mxu0
      %1106 = vdwg.mxu0
      %v1115 = vunpack.c.l.b16 %v1007
      %v1116 = vunpack.c.l.b16 %v1008
      %v1117 = vunpack.c.l.b16 %v1009
      %v1118 = vunpack.c.l.b16 %v1010
      %v1119 = vunpack.c.l.b16 %v1011
      %v1120 = vunpack.c.l.b16 %v1012
      %v1121 = vunpack.c.l.b16 %v1013
      %v1122 = vunpack.c.l.b16 %v1014
      %v1123 = vpack.c.b16 %v1116, %v1115
      %v1124 = vpack.c.b16 %v1118, %v1117
      %v1125 = vpack.c.b16 %v1120, %v1119
      %v1126 = vpack.c.b16 %v1122, %v1121
      %v1132 = vsel %vm250, %v1004, 0
      %v1135 = vsel %vm250, %v1005, 0
      %1137 = vmatprep.subr.bf16.mxu0 0
      %1138 = vmatpush1.bf16.msra.mxu0 %v1123
      %1139 = vmatprep.subr.bf16.mxu0 0
      %1140 = vmatpush1.bf16.msra.mxu0 %v1124
      %1141 = vmatprep.subr.bf16.mxu0 0
      %1142 = vmatpush1.bf16.msra.mxu0 %v1125
      %1143 = vmatprep.subr.bf16.mxu0 0
      %1144 = vmatpush1.bf16.msra.mxu0 %v1126
      %1145 = vmatprep.subr.bf16.mxu0 0
      %1146 = vmatpush1.bf16.msra.mxu0 0
      %1147 = vmatprep.subr.bf16.mxu0 0
      %1148 = vmatpush1.bf16.msra.mxu0 0
      %1149 = vmatprep.subr.bf16.mxu0 0
      %1150 = vmatpush1.bf16.msra.mxu0 0
      %1151 = vmatprep.subr.bf16.mxu0 0
      %1152 = vmatpush1.bf16.msra.mxu0 0
      %1153 = vmatprep.subr.bf16.mxu0 0
      %1154 = vmatpush1.bf16.msra.mxu0 0
      %1155 = vmatprep.subr.bf16.mxu0 0
      %1156 = vmatpush1.bf16.msra.mxu0 0
      %1157 = vmatprep.subr.bf16.mxu0 0
      %1158 = vmatpush1.bf16.msra.mxu0 0
      %1159 = vmatprep.subr.bf16.mxu0 0
      %1160 = vmatpush1.bf16.msra.mxu0 0
      %1161 = vmatprep.subr.bf16.mxu0 0
      %1162 = vmatpush1.bf16.msra.mxu0 0
      %1163 = vmatprep.subr.bf16.mxu0 0
      %1164 = vmatpush1.bf16.msra.mxu0 0
      %1165 = vmatprep.subr.bf16.mxu0 0
      %1166 = vmatpush1.bf16.msra.mxu0 0
      %1167 = vmatprep.subr.bf16.mxu0 0
      %1168 = vmatpush1.bf16.msra.mxu0 0
      %1169 = vmatprep.mubr.bf16.mxu0 0
      %1170 = vmatmul.mubr.bf16.gmra.mrb[0].mxu0 %v1132
      %v1171 = vpop.f32.mrb[0].mxu0
      %v1172 = vadd.f32 %v1094, %v1171
      %v1173 = vpop.f32.mrb[0].mxu0
      %v1174 = vpop.f32.mrb[0].mxu0
      %v1175 = vadd.f32 %v1097, %v1174
      %v1176 = vpop.f32.mrb[0].mxu0
      %1177 = vmatprep.mubr.bf16.mxu0 0
      %1178 = vmatmul.mubr.bf16.gmra.mrb[0].mxu0 %v1135
      %v1179 = vpop.f32.mrb[0].mxu0
      %v1180 = vadd.f32 %v1102, %v1179
      %v1181 = vpop.f32.mrb[0].mxu0
      %v1182 = vpop.f32.mrb[0].mxu0
      %v1183 = vpop.f32.mrb[0].mxu0
      %1184 = vdwg.mxu0
      %v1185 = vld [vmem:[%s192 + $0xc] sm:$0xff]
      %v1186 = vld [vmem:[%s192 + $0x14] sm:$0xff]
      %v1187 = vld [vmem:[%s192 + $0x1c] sm:$0xff]
      %v1188 = vpack.c.bf16 %v1186, %v1185
      %v1189 = vpack.c.bf16 %v1187, %v1187
      %s1190 = scalar_lea.vmem %s1, 320
      %v1191 = vld [vmem:[%s1190] sm:$0xf]
      %v1192 = vld [vmem:[%s1190 + $0x4] sm:$0xf]
      %v1193 = vld [vmem:[%s1190 + $0x8] sm:$0xf]
      %v1194 = vld [vmem:[%s1190 + $0xc] sm:$0xf]
      %v1195 = vld [vmem:[%s1190 + $0x10] sm:$0xf]
      %v1196 = vld [vmem:[%s1190 + $0x14] sm:$0xf]
      %v1197 = vld [vmem:[%s1190 + $0x18] sm:$0xf]
      %v1198 = vld [vmem:[%s1190 + $0x1c] sm:$0xf]
      %v1207 = vunpack.c.l.b16 %v1191
      %v1208 = vunpack.c.l.b16 %v1192
      %v1209 = vunpack.c.l.b16 %v1193
      %v1210 = vunpack.c.l.b16 %v1194
      %v1211 = vunpack.c.l.b16 %v1195
      %v1212 = vunpack.c.l.b16 %v1196
      %v1213 = vunpack.c.l.b16 %v1197
      %v1214 = vunpack.c.l.b16 %v1198
      %v1215 = vpack.c.b16 %v1208, %v1207
      %v1216 = vpack.c.b16 %v1210, %v1209
      %v1217 = vpack.c.b16 %v1212, %v1211
      %v1218 = vpack.c.b16 %v1214, %v1213
      %v1224 = vsel %vm250, %v1188, 0
      %v1227 = vsel %vm250, %v1189, 0
      %1229 = vmatprep.subr.bf16.mxu0 0
      %1230 = vmatpush1.bf16.msra.mxu0 %v1215
      %1231 = vmatprep.subr.bf16.mxu0 0
      %1232 = vmatpush1.bf16.msra.mxu0 %v1216
      %1233 = vmatprep.subr.bf16.mxu0 0
      %1234 = vmatpush1.bf16.msra.mxu0 %v1217
      %1235 = vmatprep.subr.bf16.mxu0 0
      %1236 = vmatpush1.bf16.msra.mxu0 %v1218
      %1237 = vmatprep.subr.bf16.mxu0 0
      %1238 = vmatpush1.bf16.msra.mxu0 0
      %1239 = vmatprep.subr.bf16.mxu0 0
      %1240 = vmatpush1.bf16.msra.mxu0 0
      %1241 = vmatprep.subr.bf16.mxu0 0
      %1242 = vmatpush1.bf16.msra.mxu0 0
      %1243 = vmatprep.subr.bf16.mxu0 0
      %1244 = vmatpush1.bf16.msra.mxu0 0
      %1245 = vmatprep.subr.bf16.mxu0 0
      %1246 = vmatpush1.bf16.msra.mxu0 0
      %1247 = vmatprep.subr.bf16.mxu0 0
      %1248 = vmatpush1.bf16.msra.mxu0 0
      %1249 = vmatprep.subr.bf16.mxu0 0
      %1250 = vmatpush1.bf16.msra.mxu0 0
      %1251 = vmatprep.subr.bf16.mxu0 0
      %1252 = vmatpush1.bf16.msra.mxu0 0
      %1253 = vmatprep.subr.bf16.mxu0 0
      %1254 = vmatpush1.bf16.msra.mxu0 0
      %1255 = vmatprep.subr.bf16.mxu0 0
      %1256 = vmatpush1.bf16.msra.mxu0 0
      %1257 = vmatprep.subr.bf16.mxu0 0
      %1258 = vmatpush1.bf16.msra.mxu0 0
      %1259 = vmatprep.subr.bf16.mxu0 0
      %1260 = vmatpush1.bf16.msra.mxu0 0
      %1261 = vmatprep.mubr.bf16.mxu0 0
      %1262 = vmatmul.mubr.bf16.gmra.mrb[0].mxu0 %v1224
      %v1263 = vpop.f32.mrb[0].mxu0
      %v1264 = vadd.f32 0.0, %v1263
      %v1265 = vpop.f32.mrb[0].mxu0
      %v1266 = vpop.f32.mrb[0].mxu0
      %v1267 = vadd.f32 0.0, %v1266
      %v1268 = vpop.f32.mrb[0].mxu0
      %1269 = vmatprep.mubr.bf16.mxu0 0
      %1270 = vmatmul.mubr.bf16.gmra.mrb[0].mxu0 %v1227
      %v1271 = vpop.f32.mrb[0].mxu0
      %v1272 = vadd.f32 0.0, %v1271
      %v1273 = vpop.f32.mrb[0].mxu0
      %v1274 = vpop.f32.mrb[0].mxu0
      %v1275 = vpop.f32.mrb[0].mxu0
      %1276 = vdwg.mxu0
      %v1277 = vadd.f32 %v1172, %v1264
      %v1278 = vadd.f32 %v1175, %v1267
      %v1279 = vadd.f32 %v1180, %v1272
      %v1280 = vld [vmem:[%s192 + $0xd] sm:$0xff]
      %v1281 = vld [vmem:[%s192 + $0x15] sm:$0xff]
      %v1282 = vld [vmem:[%s192 + $0x1d] sm:$0xff]
      %v1283 = vpack.c.bf16 %v1281, %v1280
      %v1284 = vpack.c.bf16 %v1282, %v1282
      %s1285 = scalar_lea.vmem %s1, 352
      %v1286 = vld [vmem:[%s1285] sm:$0xf]
      %v1287 = vld [vmem:[%s1285 + $0x4] sm:$0xf]
      %v1288 = vld [vmem:[%s1285 + $0x8] sm:$0xf]
      %v1289 = vld [vmem:[%s1285 + $0xc] sm:$0xf]
      %v1290 = vld [vmem:[%s1285 + $0x10] sm:$0xf]
      %v1291 = vld [vmem:[%s1285 + $0x14] sm:$0xf]
      %v1292 = vld [vmem:[%s1285 + $0x18] sm:$0xf]
      %v1293 = vld [vmem:[%s1285 + $0x1c] sm:$0xf]
      %v1302 = vunpack.c.l.b16 %v1286
      %v1303 = vunpack.c.l.b16 %v1287
      %v1304 = vunpack.c.l.b16 %v1288
      %v1305 = vunpack.c.l.b16 %v1289
      %v1306 = vunpack.c.l.b16 %v1290
      %v1307 = vunpack.c.l.b16 %v1291
      %v1308 = vunpack.c.l.b16 %v1292
      %v1309 = vunpack.c.l.b16 %v1293
      %v1310 = vpack.c.b16 %v1303, %v1302
      %v1311 = vpack.c.b16 %v1305, %v1304
      %v1312 = vpack.c.b16 %v1307, %v1306
      %v1313 = vpack.c.b16 %v1309, %v1308
      %v1319 = vsel %vm250, %v1283, 0
      %v1322 = vsel %vm250, %v1284, 0
      %1324 = vmatprep.subr.bf16.mxu0 0
      %1325 = vmatpush1.bf16.msra.mxu0 %v1310
      %1326 = vmatprep.subr.bf16.mxu0 0
      %1327 = vmatpush1.bf16.msra.mxu0 %v1311
      %1328 = vmatprep.subr.bf16.mxu0 0
      %1329 = vmatpush1.bf16.msra.mxu0 %v1312
      %1330 = vmatprep.subr.bf16.mxu0 0
      %1331 = vmatpush1.bf16.msra.mxu0 %v1313
      %1332 = vmatprep.subr.bf16.mxu0 0
      %1333 = vmatpush1.bf16.msra.mxu0 0
      %1334 = vmatprep.subr.bf16.mxu0 0
      %1335 = vmatpush1.bf16.msra.mxu0 0
      %1336 = vmatprep.subr.bf16.mxu0 0
      %1337 = vmatpush1.bf16.msra.mxu0 0
      %1338 = vmatprep.subr.bf16.mxu0 0
      %1339 = vmatpush1.bf16.msra.mxu0 0
      %1340 = vmatprep.subr.bf16.mxu0 0
      %1341 = vmatpush1.bf16.msra.mxu0 0
      %1342 = vmatprep.subr.bf16.mxu0 0
      %1343 = vmatpush1.bf16.msra.mxu0 0
      %1344 = vmatprep.subr.bf16.mxu0 0
      %1345 = vmatpush1.bf16.msra.mxu0 0
      %1346 = vmatprep.subr.bf16.mxu0 0
      %1347 = vmatpush1.bf16.msra.mxu0 0
      %1348 = vmatprep.subr.bf16.mxu0 0
      %1349 = vmatpush1.bf16.msra.mxu0 0
      %1350 = vmatprep.subr.bf16.mxu0 0
      %1351 = vmatpush1.bf16.msra.mxu0 0
      %1352 = vmatprep.subr.bf16.mxu0 0
      %1353 = vmatpush1.bf16.msra.mxu0 0
      %1354 = vmatprep.subr.bf16.mxu0 0
      %1355 = vmatpush1.bf16.msra.mxu0 0
      %1356 = vmatprep.mubr.bf16.mxu0 0
      %1357 = vmatmul.mubr.bf16.gmra.mrb[0].mxu0 %v1319
      %v1358 = vpop.f32.mrb[0].mxu0
      %v1359 = vadd.f32 0.0, %v1358
      %v1360 = vpop.f32.mrb[0].mxu0
      %v1361 = vpop.f32.mrb[0].mxu0
      %v1362 = vadd.f32 0.0, %v1361
      %v1363 = vpop.f32.mrb[0].mxu0
      %1364 = vmatprep.mubr.bf16.mxu0 0
      %1365 = vmatmul.mubr.bf16.gmra.mrb[0].mxu0 %v1322
      %v1366 = vpop.f32.mrb[0].mxu0
      %v1367 = vadd.f32 0.0, %v1366
      %v1368 = vpop.f32.mrb[0].mxu0
      %v1369 = vpop.f32.mrb[0].mxu0
      %v1370 = vpop.f32.mrb[0].mxu0
      %1371 = vdwg.mxu0
      %v1372 = vadd.f32 %v1277, %v1359
      %v1373 = vadd.f32 %v1278, %v1362
      %v1374 = vadd.f32 %v1279, %v1367
      %v1375 = vld [vmem:[%s2] sm:$0x1]
      %v1377 = vlaneseq
      %v1378 = vshrl.u32 %v1377, 7
      %v1379 = vsub.s32 0, %v1378
      %v1380 = vrot.slane %v1375, %v1379
      %v1382 = vmul.f32 %v1372, %v1380
      %v1383 = vmul.f32 %v1373, %v1380
      %v1384 = vmul.f32 %v1374, %v1380
      %v1385 = vld [vmem:[%s3] sm:$0x1]
      %v1387 = vlaneseq
      %v1388 = vshrl.u32 %v1387, 7
      %v1389 = vsub.s32 0, %v1388
      %v1390 = vrot.slane %v1385, %v1389
      %v1392 = vadd.f32 %v1382, %v1390
      %v1393 = vadd.f32 %v1383, %v1390
      %v1394 = vadd.f32 %v1384, %v1390
      %v1395 = vmax.f32 %v1392, 0.0
      %v1396 = vmax.f32 %v1393, 0.0
      %v1397 = vmax.f32 %v1394, 0.0
      %s1398 = scalar_lea.vmem %s197, 48
      %1399 = vst.msk [vmem:[%s1398] sm:$0xff] %vm596, %v1395
      %1400 = vst.msk [vmem:[%s1398 + $0x8] sm:$0xff] %vm596, %v1396
      %1401 = vst.msk [vmem:[%s1398 + $0x10] sm:$0xff] %vm596, %v1397
      %v1402 = vld [vmem:[%s192 + $0x7] sm:$0xff]
      %v1403 = vld [vmem:[%s192 + $0xf] sm:$0xff]
      %v1404 = vld [vmem:[%s192 + $0x17] sm:$0xff]
      %v1405 = vpack.c.bf16 %v1403, %v1402
      %v1406 = vpack.c.bf16 %v1404, %v1404
      %s1407 = scalar_lea.vmem %s1, 384
      %v1408 = vld [vmem:[%s1407] sm:$0xf]
      %v1409 = vld [vmem:[%s1407 + $0x4] sm:$0xf]
      %v1410 = vld [vmem:[%s1407 + $0x8] sm:$0xf]
      %v1411 = vld [vmem:[%s1407 + $0xc] sm:$0xf]
      %v1412 = vld [vmem:[%s1407 + $0x10] sm:$0xf]
      %v1413 = vld [vmem:[%s1407 + $0x14] sm:$0xf]
      %v1414 = vld [vmem:[%s1407 + $0x18] sm:$0xf]
      %v1415 = vld [vmem:[%s1407 + $0x1c] sm:$0xf]
      %v1416 = vld [vmem:[%s192 + $0x8] sm:$0xff]
      %v1417 = vld [vmem:[%s192 + $0x10] sm:$0xff]
      %v1418 = vld [vmem:[%s192 + $0x18] sm:$0xff]
      %v1419 = vpack.c.bf16 %v1417, %v1416
      %v1420 = vpack.c.bf16 %v1418, %v1418
      %s1421 = scalar_lea.vmem %s1, 416
      %v1422 = vld [vmem:[%s1421] sm:$0xf]
      %v1423 = vld [vmem:[%s1421 + $0x4] sm:$0xf]
      %v1424 = vld [vmem:[%s1421 + $0x8] sm:$0xf]
      %v1425 = vld [vmem:[%s1421 + $0xc] sm:$0xf]
      %v1426 = vld [vmem:[%s1421 + $0x10] sm:$0xf]
      %v1427 = vld [vmem:[%s1421 + $0x14] sm:$0xf]
      %v1428 = vld [vmem:[%s1421 + $0x18] sm:$0xf]
      %v1429 = vld [vmem:[%s1421 + $0x1c] sm:$0xf]
      %v1438 = vunpack.c.l.b16 %v1422
      %v1439 = vunpack.c.l.b16 %v1423
      %v1440 = vunpack.c.l.b16 %v1424
      %v1441 = vunpack.c.l.b16 %v1425
      %v1442 = vunpack.c.l.b16 %v1426
      %v1443 = vunpack.c.l.b16 %v1427
      %v1444 = vunpack.c.l.b16 %v1428
      %v1445 = vunpack.c.l.b16 %v1429
      %v1446 = vpack.c.b16 %v1439, %v1438
      %v1447 = vpack.c.b16 %v1441, %v1440
      %v1448 = vpack.c.b16 %v1443, %v1442
      %v1449 = vpack.c.b16 %v1445, %v1444
      %v1455 = vsel %vm250, %v1419, 0
      %v1458 = vsel %vm250, %v1420, 0
      %1460 = vmatprep.subr.bf16.mxu0 0
      %1461 = vmatpush1.bf16.msra.mxu0 %v1446
      %1462 = vmatprep.subr.bf16.mxu0 0
      %1463 = vmatpush1.bf16.msra.mxu0 %v1447
      %1464 = vmatprep.subr.bf16.mxu0 0
      %1465 = vmatpush1.bf16.msra.mxu0 %v1448
      %1466 = vmatprep.subr.bf16.mxu0 0
      %1467 = vmatpush1.bf16.msra.mxu0 %v1449
      %1468 = vmatprep.subr.bf16.mxu0 0
      %1469 = vmatpush1.bf16.msra.mxu0 0
      %1470 = vmatprep.subr.bf16.mxu0 0
      %1471 = vmatpush1.bf16.msra.mxu0 0
      %1472 = vmatprep.subr.bf16.mxu0 0
      %1473 = vmatpush1.bf16.msra.mxu0 0
      %1474 = vmatprep.subr.bf16.mxu0 0
      %1475 = vmatpush1.bf16.msra.mxu0 0
      %1476 = vmatprep.subr.bf16.mxu0 0
      %1477 = vmatpush1.bf16.msra.mxu0 0
      %1478 = vmatprep.subr.bf16.mxu0 0
      %1479 = vmatpush1.bf16.msra.mxu0 0
      %1480 = vmatprep.subr.bf16.mxu0 0
      %1481 = vmatpush1.bf16.msra.mxu0 0
      %1482 = vmatprep.subr.bf16.mxu0 0
      %1483 = vmatpush1.bf16.msra.mxu0 0
      %1484 = vmatprep.subr.bf16.mxu0 0
      %1485 = vmatpush1.bf16.msra.mxu0 0
      %1486 = vmatprep.subr.bf16.mxu0 0
      %1487 = vmatpush1.bf16.msra.mxu0 0
      %1488 = vmatprep.subr.bf16.mxu0 0
      %1489 = vmatpush1.bf16.msra.mxu0 0
      %1490 = vmatprep.subr.bf16.mxu0 0
      %1491 = vmatpush1.bf16.msra.mxu0 0
      %1492 = vmatprep.mubr.bf16.mxu0 0
      %1493 = vmatmul.mubr.bf16.gmra.mrb[0].mxu0 %v1455
      %v1494 = vpop.f32.mrb[0].mxu0
      %v1495 = vadd.f32 0.0, %v1494
      %v1496 = vpop.f32.mrb[0].mxu0
      %v1497 = vpop.f32.mrb[0].mxu0
      %v1498 = vadd.f32 0.0, %v1497
      %v1499 = vpop.f32.mrb[0].mxu0
      %1500 = vmatprep.mubr.bf16.mxu0 0
      %1501 = vmatmul.mubr.bf16.gmra.mrb[0].mxu0 %v1458
      %v1502 = vpop.f32.mrb[0].mxu0
      %v1503 = vadd.f32 0.0, %v1502
      %v1504 = vpop.f32.mrb[0].mxu0
      %v1505 = vpop.f32.mrb[0].mxu0
      %v1506 = vpop.f32.mrb[0].mxu0
      %1507 = vdwg.mxu0
      %v1516 = vunpack.c.l.b16 %v1408
      %v1517 = vunpack.c.l.b16 %v1409
      %v1518 = vunpack.c.l.b16 %v1410
      %v1519 = vunpack.c.l.b16 %v1411
      %v1520 = vunpack.c.l.b16 %v1412
      %v1521 = vunpack.c.l.b16 %v1413
      %v1522 = vunpack.c.l.b16 %v1414
      %v1523 = vunpack.c.l.b16 %v1415
      %v1524 = vpack.c.b16 %v1517, %v1516
      %v1525 = vpack.c.b16 %v1519, %v1518
      %v1526 = vpack.c.b16 %v1521, %v1520
      %v1527 = vpack.c.b16 %v1523, %v1522
      %v1533 = vsel %vm250, %v1405, 0
      %v1536 = vsel %vm250, %v1406, 0
      %1538 = vmatprep.subr.bf16.mxu0 0
      %1539 = vmatpush1.bf16.msra.mxu0 %v1524
      %1540 = vmatprep.subr.bf16.mxu0 0
      %1541 = vmatpush1.bf16.msra.mxu0 %v1525
      %1542 = vmatprep.subr.bf16.mxu0 0
      %1543 = vmatpush1.bf16.msra.mxu0 %v1526
      %1544 = vmatprep.subr.bf16.mxu0 0
      %1545 = vmatpush1.bf16.msra.mxu0 %v1527
      %1546 = vmatprep.subr.bf16.mxu0 0
      %1547 = vmatpush1.bf16.msra.mxu0 0
      %1548 = vmatprep.subr.bf16.mxu0 0
      %1549 = vmatpush1.bf16.msra.mxu0 0
      %1550 = vmatprep.subr.bf16.mxu0 0
      %1551 = vmatpush1.bf16.msra.mxu0 0
      %1552 = vmatprep.subr.bf16.mxu0 0
      %1553 = vmatpush1.bf16.msra.mxu0 0
      %1554 = vmatprep.subr.bf16.mxu0 0
      %1555 = vmatpush1.bf16.msra.mxu0 0
      %1556 = vmatprep.subr.bf16.mxu0 0
      %1557 = vmatpush1.bf16.msra.mxu0 0
      %1558 = vmatprep.subr.bf16.mxu0 0
      %1559 = vmatpush1.bf16.msra.mxu0 0
      %1560 = vmatprep.subr.bf16.mxu0 0
      %1561 = vmatpush1.bf16.msra.mxu0 0
      %1562 = vmatprep.subr.bf16.mxu0 0
      %1563 = vmatpush1.bf16.msra.mxu0 0
      %1564 = vmatprep.subr.bf16.mxu0 0
      %1565 = vmatpush1.bf16.msra.mxu0 0
      %1566 = vmatprep.subr.bf16.mxu0 0
      %1567 = vmatpush1.bf16.msra.mxu0 0
      %1568 = vmatprep.subr.bf16.mxu0 0
      %1569 = vmatpush1.bf16.msra.mxu0 0
      %1570 = vmatprep.mubr.bf16.mxu0 0
      %1571 = vmatmul.mubr.bf16.gmra.mrb[0].mxu0 %v1533
      %v1572 = vpop.f32.mrb[0].mxu0
      %v1573 = vadd.f32 %v1495, %v1572
      %v1574 = vpop.f32.mrb[0].mxu0
      %v1575 = vpop.f32.mrb[0].mxu0
      %v1576 = vadd.f32 %v1498, %v1575
      %v1577 = vpop.f32.mrb[0].mxu0
      %1578 = vmatprep.mubr.bf16.mxu0 0
      %1579 = vmatmul.mubr.bf16.gmra.mrb[0].mxu0 %v1536
      %v1580 = vpop.f32.mrb[0].mxu0
      %v1581 = vadd.f32 %v1503, %v1580
      %v1582 = vpop.f32.mrb[0].mxu0
      %v1583 = vpop.f32.mrb[0].mxu0
      %v1584 = vpop.f32.mrb[0].mxu0
      %1585 = vdwg.mxu0
      %v1586 = vld [vmem:[%s192 + $0xd] sm:$0xff]
      %v1587 = vld [vmem:[%s192 + $0x15] sm:$0xff]
      %v1588 = vld [vmem:[%s192 + $0x1d] sm:$0xff]
      %v1589 = vpack.c.bf16 %v1587, %v1586
      %v1590 = vpack.c.bf16 %v1588, %v1588
      %s1591 = scalar_lea.vmem %s1, 448
      %v1592 = vld [vmem:[%s1591] sm:$0xf]
      %v1593 = vld [vmem:[%s1591 + $0x4] sm:$0xf]
      %v1594 = vld [vmem:[%s1591 + $0x8] sm:$0xf]
      %v1595 = vld [vmem:[%s1591 + $0xc] sm:$0xf]
      %v1596 = vld [vmem:[%s1591 + $0x10] sm:$0xf]
      %v1597 = vld [vmem:[%s1591 + $0x14] sm:$0xf]
      %v1598 = vld [vmem:[%s1591 + $0x18] sm:$0xf]
      %v1599 = vld [vmem:[%s1591 + $0x1c] sm:$0xf]
      %v1608 = vunpack.c.l.b16 %v1592
      %v1609 = vunpack.c.l.b16 %v1593
      %v1610 = vunpack.c.l.b16 %v1594
      %v1611 = vunpack.c.l.b16 %v1595
      %v1612 = vunpack.c.l.b16 %v1596
      %v1613 = vunpack.c.l.b16 %v1597
      %v1614 = vunpack.c.l.b16 %v1598
      %v1615 = vunpack.c.l.b16 %v1599
      %v1616 = vpack.c.b16 %v1609, %v1608
      %v1617 = vpack.c.b16 %v1611, %v1610
      %v1618 = vpack.c.b16 %v1613, %v1612
      %v1619 = vpack.c.b16 %v1615, %v1614
      %v1625 = vsel %vm250, %v1589, 0
      %v1628 = vsel %vm250, %v1590, 0
      %1630 = vmatprep.subr.bf16.mxu0 0
      %1631 = vmatpush1.bf16.msra.mxu0 %v1616
      %1632 = vmatprep.subr.bf16.mxu0 0
      %1633 = vmatpush1.bf16.msra.mxu0 %v1617
      %1634 = vmatprep.subr.bf16.mxu0 0
      %1635 = vmatpush1.bf16.msra.mxu0 %v1618
      %1636 = vmatprep.subr.bf16.mxu0 0
      %1637 = vmatpush1.bf16.msra.mxu0 %v1619
      %1638 = vmatprep.subr.bf16.mxu0 0
      %1639 = vmatpush1.bf16.msra.mxu0 0
      %1640 = vmatprep.subr.bf16.mxu0 0
      %1641 = vmatpush1.bf16.msra.mxu0 0
      %1642 = vmatprep.subr.bf16.mxu0 0
      %1643 = vmatpush1.bf16.msra.mxu0 0
      %1644 = vmatprep.subr.bf16.mxu0 0
      %1645 = vmatpush1.bf16.msra.mxu0 0
      %1646 = vmatprep.subr.bf16.mxu0 0
      %1647 = vmatpush1.bf16.msra.mxu0 0
      %1648 = vmatprep.subr.bf16.mxu0 0
      %1649 = vmatpush1.bf16.msra.mxu0 0
      %1650 = vmatprep.subr.bf16.mxu0 0
      %1651 = vmatpush1.bf16.msra.mxu0 0
      %1652 = vmatprep.subr.bf16.mxu0 0
      %1653 = vmatpush1.bf16.msra.mxu0 0
      %1654 = vmatprep.subr.bf16.mxu0 0
      %1655 = vmatpush1.bf16.msra.mxu0 0
      %1656 = vmatprep.subr.bf16.mxu0 0
      %1657 = vmatpush1.bf16.msra.mxu0 0
      %1658 = vmatprep.subr.bf16.mxu0 0
      %1659 = vmatpush1.bf16.msra.mxu0 0
      %1660 = vmatprep.subr.bf16.mxu0 0
      %1661 = vmatpush1.bf16.msra.mxu0 0
      %1662 = vmatprep.mubr.bf16.mxu0 0
      %1663 = vmatmul.mubr.bf16.gmra.mrb[0].mxu0 %v1625
      %v1664 = vpop.f32.mrb[0].mxu0
      %v1665 = vadd.f32 0.0, %v1664
      %v1666 = vpop.f32.mrb[0].mxu0
      %v1667 = vpop.f32.mrb[0].mxu0
      %v1668 = vadd.f32 0.0, %v1667
      %v1669 = vpop.f32.mrb[0].mxu0
      %1670 = vmatprep.mubr.bf16.mxu0 0
      %1671 = vmatmul.mubr.bf16.gmra.mrb[0].mxu0 %v1628
      %v1672 = vpop.f32.mrb[0].mxu0
      %v1673 = vadd.f32 0.0, %v1672
      %v1674 = vpop.f32.mrb[0].mxu0
      %v1675 = vpop.f32.mrb[0].mxu0
      %v1676 = vpop.f32.mrb[0].mxu0
      %1677 = vdwg.mxu0
      %v1678 = vadd.f32 %v1573, %v1665
      %v1679 = vadd.f32 %v1576, %v1668
      %v1680 = vadd.f32 %v1581, %v1673
      %v1681 = vld [vmem:[%s192 + $0xe] sm:$0xff]
      %v1682 = vld [vmem:[%s192 + $0x16] sm:$0xff]
      %v1683 = vld [vmem:[%s192 + $0x1e] sm:$0xff]
      %v1684 = vpack.c.bf16 %v1682, %v1681
      %v1685 = vpack.c.bf16 %v1683, %v1683
      %s1686 = scalar_lea.vmem %s1, 480
      %v1687 = vld [vmem:[%s1686] sm:$0xf]
      %v1688 = vld [vmem:[%s1686 + $0x4] sm:$0xf]
      %v1689 = vld [vmem:[%s1686 + $0x8] sm:$0xf]
      %v1690 = vld [vmem:[%s1686 + $0xc] sm:$0xf]
      %v1691 = vld [vmem:[%s1686 + $0x10] sm:$0xf]
      %v1692 = vld [vmem:[%s1686 + $0x14] sm:$0xf]
      %v1693 = vld [vmem:[%s1686 + $0x18] sm:$0xf]
      %v1694 = vld [vmem:[%s1686 + $0x1c] sm:$0xf]
      %v1703 = vunpack.c.l.b16 %v1687
      %v1704 = vunpack.c.l.b16 %v1688
      %v1705 = vunpack.c.l.b16 %v1689
      %v1706 = vunpack.c.l.b16 %v1690
      %v1707 = vunpack.c.l.b16 %v1691
      %v1708 = vunpack.c.l.b16 %v1692
      %v1709 = vunpack.c.l.b16 %v1693
      %v1710 = vunpack.c.l.b16 %v1694
      %v1711 = vpack.c.b16 %v1704, %v1703
      %v1712 = vpack.c.b16 %v1706, %v1705
      %v1713 = vpack.c.b16 %v1708, %v1707
      %v1714 = vpack.c.b16 %v1710, %v1709
      %v1720 = vsel %vm250, %v1684, 0
      %v1723 = vsel %vm250, %v1685, 0
      %1725 = vmatprep.subr.bf16.mxu0 0
      %1726 = vmatpush1.bf16.msra.mxu0 %v1711
      %1727 = vmatprep.subr.bf16.mxu0 0
      %1728 = vmatpush1.bf16.msra.mxu0 %v1712
      %1729 = vmatprep.subr.bf16.mxu0 0
      %1730 = vmatpush1.bf16.msra.mxu0 %v1713
      %1731 = vmatprep.subr.bf16.mxu0 0
      %1732 = vmatpush1.bf16.msra.mxu0 %v1714
      %1733 = vmatprep.subr.bf16.mxu0 0
      %1734 = vmatpush1.bf16.msra.mxu0 0
      %1735 = vmatprep.subr.bf16.mxu0 0
      %1736 = vmatpush1.bf16.msra.mxu0 0
      %1737 = vmatprep.subr.bf16.mxu0 0
      %1738 = vmatpush1.bf16.msra.mxu0 0
      %1739 = vmatprep.subr.bf16.mxu0 0
      %1740 = vmatpush1.bf16.msra.mxu0 0
      %1741 = vmatprep.subr.bf16.mxu0 0
      %1742 = vmatpush1.bf16.msra.mxu0 0
      %1743 = vmatprep.subr.bf16.mxu0 0
      %1744 = vmatpush1.bf16.msra.mxu0 0
      %1745 = vmatprep.subr.bf16.mxu0 0
      %1746 = vmatpush1.bf16.msra.mxu0 0
      %1747 = vmatprep.subr.bf16.mxu0 0
      %1748 = vmatpush1.bf16.msra.mxu0 0
      %1749 = vmatprep.subr.bf16.mxu0 0
      %1750 = vmatpush1.bf16.msra.mxu0 0
      %1751 = vmatprep.subr.bf16.mxu0 0
      %1752 = vmatpush1.bf16.msra.mxu0 0
      %1753 = vmatprep.subr.bf16.mxu0 0
      %1754 = vmatpush1.bf16.msra.mxu0 0
      %1755 = vmatprep.subr.bf16.mxu0 0
      %1756 = vmatpush1.bf16.msra.mxu0 0
      %1757 = vmatprep.mubr.bf16.mxu0 0
      %1758 = vmatmul.mubr.bf16.gmra.mrb[0].mxu0 %v1720
      %v1759 = vpop.f32.mrb[0].mxu0
      %v1760 = vadd.f32 0.0, %v1759
      %v1761 = vpop.f32.mrb[0].mxu0
      %v1762 = vpop.f32.mrb[0].mxu0
      %v1763 = vadd.f32 0.0, %v1762
      %v1764 = vpop.f32.mrb[0].mxu0
      %1765 = vmatprep.mubr.bf16.mxu0 0
      %1766 = vmatmul.mubr.bf16.gmra.mrb[0].mxu0 %v1723
      %v1767 = vpop.f32.mrb[0].mxu0
      %v1768 = vadd.f32 0.0, %v1767
      %v1769 = vpop.f32.mrb[0].mxu0
      %v1770 = vpop.f32.mrb[0].mxu0
      %v1771 = vpop.f32.mrb[0].mxu0
      %1772 = vdwg.mxu0
      %v1773 = vadd.f32 %v1678, %v1760
      %v1774 = vadd.f32 %v1679, %v1763
      %v1775 = vadd.f32 %v1680, %v1768
      %v1776 = vld [vmem:[%s2] sm:$0x1]
      %v1778 = vlaneseq
      %v1779 = vshrl.u32 %v1778, 7
      %v1780 = vsub.s32 0, %v1779
      %v1781 = vrot.slane %v1776, %v1780
      %v1783 = vmul.f32 %v1773, %v1781
      %v1784 = vmul.f32 %v1774, %v1781
      %v1785 = vmul.f32 %v1775, %v1781
      %v1786 = vld [vmem:[%s3] sm:$0x1]
      %v1788 = vlaneseq
      %v1789 = vshrl.u32 %v1788, 7
      %v1790 = vsub.s32 0, %v1789
      %v1791 = vrot.slane %v1786, %v1790
      %v1793 = vadd.f32 %v1783, %v1791
      %v1794 = vadd.f32 %v1784, %v1791
      %v1795 = vadd.f32 %v1785, %v1791
      %v1796 = vmax.f32 %v1793, 0.0
      %v1797 = vmax.f32 %v1794, 0.0
      %v1798 = vmax.f32 %v1795, 0.0
      %s1799 = scalar_lea.vmem %s197, 72
      %1800 = vst.msk [vmem:[%s1799] sm:$0xff] %vm596, %v1796
      %1801 = vst.msk [vmem:[%s1799 + $0x8] sm:$0xff] %vm596, %v1797
      %1802 = vst.msk [vmem:[%s1799 + $0x10] sm:$0xff] %vm596, %v1798
      %p1803 = scmp.lt.s32.totalorder %s15, 1
      %s1804 = scalar_select %p1803, %s15, 1
      %s1805 = smul.addr %s1804, 12
      %s1806 = smul.addr %s1805, 8
      %s1807 = scalar_lea.vmem %s4, %s1806
      // Predicated region
      $region37: #{generator_forward.5} parent=35 // pred_check
        %p1808 = pneg %p122
      $region38: #{generator_forward.5} parent=35 // pred_check_branch
        %1810 = sbr.rel (%p1808) target = $region40
      $region39: #{generator_forward.5} parent=35 // pred_region
        _
      $region40: #{generator_forward.5} parent=35 // pred_fallthru
        _
    $region36: #{generator_forward.5} parent=5 // pred_fallthru
      _
    %p1811 = scmp.le.s32.totalorder 2, %s10
    // Predicated region
    $region41: #{generator_forward.5} parent=5 // pred_check
      %p1812 = pneg %p1811
    $region42: #{generator_forward.5} parent=5 // pred_check_branch
      %1814 = sbr.rel (%p1812) target = $region44
    $region43: #{generator_forward.5} parent=5 // pred_region
      %s1815 = ssub.s32 %s10, 2
      // Predicated region
      $region45: #{generator_forward.5} parent=43 // pred_check
        %p1816 = pneg %p128
      $region46: #{generator_forward.5} parent=43 // pred_check_branch
        %1818 = sbr.rel (%p1816) target = $region48
      $region47: #{generator_forward.5} parent=43 // pred_region
        %p1819 = scmp.lt.s32.totalorder %s16, 1
        %s1820 = scalar_select %p1819, %s16, 1
        %s1821 = smul.addr %s1820, 12
        %s1822 = smul.addr %s1821, 8
        %s1823 = scalar_lea.vmem %s4, %s1822
      $region48: #{generator_forward.5} parent=43 // pred_fallthru
        _
    $region44: #{generator_forward.5} parent=5 // pred_fallthru
      _
  $region6: #{generator_forward.5} parent=0 // loop_footer
    %s14 = sadd.s32 1, %s10
  $region7: #{generator_forward.5} parent=0 // loop_footer_branch
    %9 = sbr.rel target = $region3
  $region8: #{generator_forward.5} parent=0 // loop_exit
    _

// kernel: generator_forward.6
$region0: #{generator_forward.6}
  #allocation0 [shape = 'u32[]', space=smem, size = 0x4, offset = 0x4, fixed_abs, tag = 'smem constant byte address 0x4 - core index']
  #allocation1 [shape = 'u32[144,128]{1,0:T(1,128)}', space=vmem, size = 0x12000, scoped, tag = 'internal scratch']
  %s0 = inlined_call_operand.vmem [shape: f32[2,108,32], index: 0, kind: input, shape index: {}]
  %s1 = inlined_call_operand.vmem [shape: bf16[4,4,32,16], index: 1, kind: input, shape index: {}]
  %s2 = inlined_call_operand.vmem [shape: f32[1,16], index: 2, kind: input, shape index: {}]
  %s3 = inlined_call_operand.vmem [shape: f32[1,16], index: 3, kind: input, shape index: {}]
  %s4 = inlined_call_operand.vmem [shape: f32[2,4,80,16], index: 4, kind: output, shape index: {}]
  %s5 = sld [smem:[#allocation0]]
  $region49: #{generator_forward.6} parent=0
    _
  %s7 = ssub.s32 1, %s5
  %s8 = scalar_select 0, %s7, %s5
  loop: start=0, step=1, limit=4
  $region2: #{generator_forward.6} parent=0 // loop_pre_header
    _
  $region3: #{generator_forward.6} parent=0 // loop_header
    %s10 = sphi 0, %s14
    %p11 = scmp.ge.s32.totalorder %s10, 4
    %s20 = sphi 0, %s22
    %s23 = sphi 0, %s20
    %s24 = sphi 0, %s23
    %s40 = sphi 0, %s24
    %s44 = sphi 0, %s44
    %s46 = sphi 0, %s44
    %s47 = sphi 0, %s46
    %s61 = sphi 0, %s47
    %s65 = sphi 0, %s65
    %s67 = sphi 0, %s65
    %s68 = sphi 0, %s67
    %s82 = sphi 0, %s68
    %s86 = sphi 0, %s86
    %s88 = sphi 0, %s86
    %s89 = sphi 0, %s88
    %s103 = sphi 0, %s89
    %s109 = sphi 0, %s111
    %s112 = sphi 0, %s109
    %s113 = sphi 0, %s112
    %s129 = sphi 0, %s113
  $region4: #{generator_forward.6} parent=0 // loop_header_branch
    %13 = sbr.rel (%p11) target = $region8
  $region5: #{generator_forward.6} parent=0 // loop_body
    %s15 = ssub.s32 %s10, 1
    %s16 = ssub.s32 %s10, 2
    %s17 = sadd.s32 %s10, 1
    %s18 = ssub.s32 %s10, %s17
    %p19 = scmp.eq.s32.totalorder %s18, 0
    %s21 = sadd.s32 %s20, 1
    %s22 = scalar_select %p19, %s20, %s21
    %p25 = pneg %p19
    %p26 = scmp.eq.s32.totalorder %s10, 1
    %p27 = por %p25, %p26
    %p28 = scmp.ne.s32.totalorder %s20, %s23
    %p29 = scmp.eq.s32.totalorder %s10, 0
    %p30 = por %p28, %p29
    %p31 = scmp.ne.s32.totalorder %s20, %s23
    %p32 = scmp.eq.s32.totalorder %s15, 1
    %p33 = por %p31, %p32
    %p34 = scmp.ne.s32.totalorder %s23, %s24
    %p35 = scmp.eq.s32.totalorder %s15, 0
    %p36 = por %p34, %p35
    %p37 = scmp.ne.s32.totalorder %s23, %s24
    %p38 = scmp.eq.s32.totalorder %s16, 1
    %p39 = por %p37, %p38
    %p41 = scmp.ne.s32.totalorder %s24, %s40
    %p42 = scmp.eq.s32.totalorder %s16, 0
    %p43 = por %p41, %p42
    %s45 = sadd.s32 %s44, 1
    %p48 = scmp.eq.s32.totalorder %s10, 1
    %p49 = scmp.ne.s32.totalorder %s44, %s46
    %p50 = scmp.eq.s32.totalorder %s10, 0
    %p51 = por %p49, %p50
    %p52 = scmp.ne.s32.totalorder %s44, %s46
    %p53 = scmp.eq.s32.totalorder %s15, 1
    %p54 = por %p52, %p53
    %p55 = scmp.ne.s32.totalorder %s46, %s47
    %p56 = scmp.eq.s32.totalorder %s15, 0
    %p57 = por %p55, %p56
    %p58 = scmp.ne.s32.totalorder %s46, %s47
    %p59 = scmp.eq.s32.totalorder %s16, 1
    %p60 = por %p58, %p59
    %p62 = scmp.ne.s32.totalorder %s47, %s61
    %p63 = scmp.eq.s32.totalorder %s16, 0
    %p64 = por %p62, %p63
    %s66 = sadd.s32 %s65, 1
    %p69 = scmp.eq.s32.totalorder %s10, 1
    %p70 = scmp.ne.s32.totalorder %s65, %s67
    %p71 = scmp.eq.s32.totalorder %s10, 0
    %p72 = por %p70, %p71
    %p73 = scmp.ne.s32.totalorder %s65, %s67
    %p74 = scmp.eq.s32.totalorder %s15, 1
    %p75 = por %p73, %p74
    %p76 = scmp.ne.s32.totalorder %s67, %s68
    %p77 = scmp.eq.s32.totalorder %s15, 0
    %p78 = por %p76, %p77
    %p79 = scmp.ne.s32.totalorder %s67, %s68
    %p80 = scmp.eq.s32.totalorder %s16, 1
    %p81 = por %p79, %p80
    %p83 = scmp.ne.s32.totalorder %s68, %s82
    %p84 = scmp.eq.s32.totalorder %s16, 0
    %p85 = por %p83, %p84
    %s87 = sadd.s32 %s86, 1
    %p90 = scmp.eq.s32.totalorder %s10, 1
    %p91 = scmp.ne.s32.totalorder %s86, %s88
    %p92 = scmp.eq.s32.totalorder %s10, 0
    %p93 = por %p91, %p92
    %p94 = scmp.ne.s32.totalorder %s86, %s88
    %p95 = scmp.eq.s32.totalorder %s15, 1
    %p96 = por %p94, %p95
    %p97 = scmp.ne.s32.totalorder %s88, %s89
    %p98 = scmp.eq.s32.totalorder %s15, 0
    %p99 = por %p97, %p98
    %p100 = scmp.ne.s32.totalorder %s88, %s89
    %p101 = scmp.eq.s32.totalorder %s16, 1
    %p102 = por %p100, %p101
    %p104 = scmp.ne.s32.totalorder %s89, %s103
    %p105 = scmp.eq.s32.totalorder %s16, 0
    %p106 = por %p104, %p105
    %s107 = ssub.s32 %s10, %s17
    %p108 = scmp.eq.s32.totalorder %s107, 0
    %s110 = sadd.s32 %s109, 1
    %s111 = scalar_select %p108, %s109, %s110
    %p114 = pneg %p108
    %p115 = scmp.eq.s32.totalorder %s10, 1
    %p116 = por %p114, %p115
    %p117 = scmp.ne.s32.totalorder %s109, %s112
    %p118 = scmp.eq.s32.totalorder %s10, 0
    %p119 = por %p117, %p118
    %p120 = scmp.ne.s32.totalorder %s109, %s112
    %p121 = scmp.eq.s32.totalorder %s15, 1
    %p122 = por %p120, %p121
    %p123 = scmp.ne.s32.totalorder %s112, %s113
    %p124 = scmp.eq.s32.totalorder %s15, 0
    %p125 = por %p123, %p124
    %p126 = scmp.ne.s32.totalorder %s112, %s113
    %p127 = scmp.eq.s32.totalorder %s16, 1
    %p128 = por %p126, %p127
    %p130 = scmp.ne.s32.totalorder %s113, %s129
    %p131 = scmp.eq.s32.totalorder %s16, 0
    %p132 = por %p130, %p131
    %p133 = scmp.le.s32.totalorder 1, %s10
    %p134 = scmp.lt.s32.totalorder %s10, 3
    %p135 = pnand %p133, %p134
    %p136 = pneg %p135
    // Predicated region
    $region9: #{generator_forward.6} parent=5 // pred_check
      _
    $region10: #{generator_forward.6} parent=5 // pred_check_branch
      %138 = sbr.rel (%p135) target = $region12
    $region11: #{generator_forward.6} parent=5 // pred_region
      %s139 = ssub.s32 %s10, 1
      // Predicated region
      $region13: #{generator_forward.6} parent=11 // pred_check
        %p140 = pneg %p57
      $region14: #{generator_forward.6} parent=11 // pred_check_branch
        %142 = sbr.rel (%p140) target = $region16
      $region15: #{generator_forward.6} parent=11 // pred_region
        _
      $region16: #{generator_forward.6} parent=11 // pred_fallthru
        _
      // Predicated region
      $region17: #{generator_forward.6} parent=11 // pred_check
        %p143 = pneg %p78
      $region18: #{generator_forward.6} parent=11 // pred_check_branch
        %145 = sbr.rel (%p143) target = $region20
      $region19: #{generator_forward.6} parent=11 // pred_region
        _
      $region20: #{generator_forward.6} parent=11 // pred_fallthru
        _
      // Predicated region
      $region21: #{generator_forward.6} parent=11 // pred_check
        %p146 = pneg %p99
      $region22: #{generator_forward.6} parent=11 // pred_check_branch
        %148 = sbr.rel (%p146) target = $region24
      $region23: #{generator_forward.6} parent=11 // pred_region
        _
      $region24: #{generator_forward.6} parent=11 // pred_fallthru
        _
    $region12: #{generator_forward.6} parent=5 // pred_fallthru
      _
    %p149 = scmp.lt.s32.totalorder %s10, 2
    // Predicated region
    $region25: #{generator_forward.6} parent=5 // pred_check
      %p150 = pneg %p149
    $region26: #{generator_forward.6} parent=5 // pred_check_branch
      %152 = sbr.rel (%p150) target = $region28
    $region27: #{generator_forward.6} parent=5 // pred_region
      // Predicated region
      $region29: #{generator_forward.6} parent=27 // pred_check
        %p153 = pneg %p30
      $region30: #{generator_forward.6} parent=27 // pred_check_branch
        %155 = sbr.rel (%p153) target = $region32
      $region31: #{generator_forward.6} parent=27 // pred_region
        %p156 = scmp.lt.s32.totalorder %s10, 1
        %s157 = scalar_select %p156, %s10, 1
        %s158 = smul.addr %s157, 14
        %s159 = smul.addr %s158, 8
        %s160 = scalar_lea.vmem %s0, %s159
      $region32: #{generator_forward.6} parent=27 // pred_fallthru
        _
    $region28: #{generator_forward.6} parent=5 // pred_fallthru
      _
    %p161 = scmp.le.s32.totalorder 1, %s10
    %p162 = scmp.lt.s32.totalorder %s10, 3
    %p163 = pnand %p161, %p162
    %p164 = pneg %p163
    // Predicated region
    $region33: #{generator_forward.6} parent=5 // pred_check
      _
    $region34: #{generator_forward.6} parent=5 // pred_check_branch
      %166 = sbr.rel (%p163) target = $region36
    $region35: #{generator_forward.6} parent=5 // pred_region
      %s167 = ssub.s32 %s10, 1
      %p168 = scmp.lt.s32.totalorder %s15, 1
      %s169 = scalar_select %p168, %s15, 1
      %s170 = smul.addr %s169, 14
      %s171 = smul.addr %s170, 8
      %s172 = scalar_lea.vmem %s0, %s171
      %p173 = pneg %p36
      %p174 = pneg %p33
      %p175 = pneg %p57
      %p176 = pneg %p54
      %p177 = pneg %p78
      %p178 = pneg %p75
      %p179 = pneg %p99
      %p180 = pneg %p96
      %p181 = pneg %p125
      %p182 = pneg %p122
      %p183 = scmp.lt.s32.totalorder %s15, 1
      %s184 = scalar_select %p183, %s15, 1
      %s185 = smul.addr %s184, 40
      %s186 = smul.addr %s185, 8
      %s187 = scalar_lea.vmem %s4, %s186
      %p188 = scmp.lt.s32.totalorder %s15, 1
      %s189 = scalar_select %p188, %s15, 1
      %s190 = smul.addr %s189, 14
      %s191 = smul.addr %s190, 8
      %s192 = scalar_lea.vmem %s0, %s191
      %p193 = scmp.lt.s32.totalorder %s15, 1
      %s194 = scalar_select %p193, %s15, 1
      %s195 = smul.addr %s194, 40
      %s196 = smul.addr %s195, 8
      %s197 = scalar_lea.vmem %s4, %s196
      %v199 = vld [vmem:[%s192] sm:$0xff]
      %v200 = vld [vmem:[%s192 + $0x8] sm:$0xff]
      %v201 = vld [vmem:[%s192 + $0x10] sm:$0xff]
      %v202 = vld [vmem:[%s192 + $0x18] sm:$0xff]
      %v203 = vld [vmem:[%s192 + $0x20] sm:$0xff]
      %v204 = vld [vmem:[%s192 + $0x28] sm:$0xff]
      %v205 = vld [vmem:[%s192 + $0x30] sm:$0xff]
      %v206 = vld [vmem:[%s192 + $0x38] sm:$0xff]
      %v207 = vld [vmem:[%s192 + $0x40] sm:$0xff]
      %v208 = vld [vmem:[%s192 + $0x48] sm:$0xff]
      %v209 = vpack.c.bf16 %v200, %v199
      %v210 = vpack.c.bf16 %v202, %v201
      %v211 = vpack.c.bf16 %v204, %v203
      %v212 = vpack.c.bf16 %v206, %v205
      %v213 = vpack.c.bf16 %v208, %v207
      %v214 = vld [vmem:[%s1] sm:$0xf]
      %v215 = vld [vmem:[%s1 + $0x4] sm:$0xf]
      %v216 = vld [vmem:[%s1 + $0x8] sm:$0xf]
      %v217 = vld [vmem:[%s1 + $0xc] sm:$0xf]
      %v218 = vld [vmem:[%s192 + $0x1] sm:$0xff]
      %v219 = vld [vmem:[%s192 + $0x9] sm:$0xff]
      %v220 = vld [vmem:[%s192 + $0x11] sm:$0xff]
      %v221 = vld [vmem:[%s192 + $0x19] sm:$0xff]
      %v222 = vld [vmem:[%s192 + $0x21] sm:$0xff]
      %v223 = vld [vmem:[%s192 + $0x29] sm:$0xff]
      %v224 = vld [vmem:[%s192 + $0x31] sm:$0xff]
      %v225 = vld [vmem:[%s192 + $0x39] sm:$0xff]
      %v226 = vld [vmem:[%s192 + $0x41] sm:$0xff]
      %v227 = vld [vmem:[%s192 + $0x49] sm:$0xff]
      %v228 = vpack.c.bf16 %v219, %v218
      %v229 = vpack.c.bf16 %v221, %v220
      %v230 = vpack.c.bf16 %v223, %v222
      %v231 = vpack.c.bf16 %v225, %v224
      %v232 = vpack.c.bf16 %v227, %v226
      %s233 = scalar_lea.vmem %s1, 16
      %v234 = vld [vmem:[%s233] sm:$0xf]
      %v235 = vld [vmem:[%s233 + $0x4] sm:$0xf]
      %v236 = vld [vmem:[%s233 + $0x8] sm:$0xf]
      %v237 = vld [vmem:[%s233 + $0xc] sm:$0xf]
      %v242 = vunpack.c.l.b16 %v234
      %v243 = vunpack.c.l.b16 %v235
      %v244 = vunpack.c.l.b16 %v236
      %v245 = vunpack.c.l.b16 %v237
      %v246 = vpack.c.b16 %v243, %v242
      %v247 = vpack.c.b16 %v245, %v244
      %vm250 = vcmask 261120
      %v252 = vsel %vm250, %v228, 0
      %v255 = vsel %vm250, %v229, 0
      %v258 = vsel %vm250, %v230, 0
      %v261 = vsel %vm250, %v231, 0
      %v264 = vsel %vm250, %v232, 0
      %266 = vmatprep.subr.bf16.mxu0 0
      %267 = vmatpush1.bf16.msra.mxu0 %v246
      %268 = vmatprep.subr.bf16.mxu0 0
      %269 = vmatpush1.bf16.msra.mxu0 %v247
      %270 = vmatprep.subr.bf16.mxu0 0
      %271 = vmatpush1.bf16.msra.mxu0 0
      %272 = vmatprep.subr.bf16.mxu0 0
      %273 = vmatpush1.bf16.msra.mxu0 0
      %274 = vmatprep.subr.bf16.mxu0 0
      %275 = vmatpush1.bf16.msra.mxu0 0
      %276 = vmatprep.subr.bf16.mxu0 0
      %277 = vmatpush1.bf16.msra.mxu0 0
      %278 = vmatprep.subr.bf16.mxu0 0
      %279 = vmatpush1.bf16.msra.mxu0 0
      %280 = vmatprep.subr.bf16.mxu0 0
      %281 = vmatpush1.bf16.msra.mxu0 0
      %282 = vmatprep.subr.bf16.mxu0 0
      %283 = vmatpush1.bf16.msra.mxu0 0
      %284 = vmatprep.subr.bf16.mxu0 0
      %285 = vmatpush1.bf16.msra.mxu0 0
      %286 = vmatprep.subr.bf16.mxu0 0
      %287 = vmatpush1.bf16.msra.mxu0 0
      %288 = vmatprep.subr.bf16.mxu0 0
      %289 = vmatpush1.bf16.msra.mxu0 0
      %290 = vmatprep.subr.bf16.mxu0 0
      %291 = vmatpush1.bf16.msra.mxu0 0
      %292 = vmatprep.subr.bf16.mxu0 0
      %293 = vmatpush1.bf16.msra.mxu0 0
      %294 = vmatprep.subr.bf16.mxu0 0
      %295 = vmatpush1.bf16.msra.mxu0 0
      %296 = vmatprep.subr.bf16.mxu0 0
      %297 = vmatpush1.bf16.msra.mxu0 0
      %298 = vmatprep.mubr.bf16.mxu0 0
      %299 = vmatmul.mubr.bf16.gmra.mrb[0].mxu0 %v252
      %v300 = vpop.f32.mrb[0].mxu0
      %v301 = vadd.f32 0.0, %v300
      %v302 = vpop.f32.mrb[0].mxu0
      %v303 = vpop.f32.mrb[0].mxu0
      %v304 = vadd.f32 0.0, %v303
      %v305 = vpop.f32.mrb[0].mxu0
      %306 = vmatprep.mubr.bf16.mxu0 0
      %307 = vmatmul.mubr.bf16.gmra.mrb[0].mxu0 %v255
      %v308 = vpop.f32.mrb[0].mxu0
      %v309 = vadd.f32 0.0, %v308
      %v310 = vpop.f32.mrb[0].mxu0
      %v311 = vpop.f32.mrb[0].mxu0
      %v312 = vadd.f32 0.0, %v311
      %v313 = vpop.f32.mrb[0].mxu0
      %314 = vmatprep.mubr.bf16.mxu0 0
      %315 = vmatmul.mubr.bf16.gmra.mrb[0].mxu0 %v258
      %v316 = vpop.f32.mrb[0].mxu0
      %v317 = vadd.f32 0.0, %v316
      %v318 = vpop.f32.mrb[0].mxu0
      %v319 = vpop.f32.mrb[0].mxu0
      %v320 = vadd.f32 0.0, %v319
      %v321 = vpop.f32.mrb[0].mxu0
      %322 = vmatprep.mubr.bf16.mxu0 0
      %323 = vmatmul.mubr.bf16.gmra.mrb[0].mxu0 %v261
      %v324 = vpop.f32.mrb[0].mxu0
      %v325 = vadd.f32 0.0, %v324
      %v326 = vpop.f32.mrb[0].mxu0
      %v327 = vpop.f32.mrb[0].mxu0
      %v328 = vadd.f32 0.0, %v327
      %v329 = vpop.f32.mrb[0].mxu0
      %330 = vmatprep.mubr.bf16.mxu0 0
      %331 = vmatmul.mubr.bf16.gmra.mrb[0].mxu0 %v264
      %v332 = vpop.f32.mrb[0].mxu0
      %v333 = vadd.f32 0.0, %v332
      %v334 = vpop.f32.mrb[0].mxu0
      %v335 = vpop.f32.mrb[0].mxu0
      %v336 = vadd.f32 0.0, %v335
      %v337 = vpop.f32.mrb[0].mxu0
      %338 = vdwg.mxu0
      %v343 = vunpack.c.l.b16 %v214
      %v344 = vunpack.c.l.b16 %v215
      %v345 = vunpack.c.l.b16 %v216
      %v346 = vunpack.c.l.b16 %v217
      %v347 = vpack.c.b16 %v344, %v343
      %v348 = vpack.c.b16 %v346, %v345
      %v352 = vsel %vm250, %v209, 0
      %v355 = vsel %vm250, %v210, 0
      %v358 = vsel %vm250, %v211, 0
      %v361 = vsel %vm250, %v212, 0
      %v364 = vsel %vm250, %v213, 0
      %366 = vmatprep.subr.bf16.mxu0 0
      %367 = vmatpush1.bf16.msra.mxu0 %v347
      %368 = vmatprep.subr.bf16.mxu0 0
      %369 = vmatpush1.bf16.msra.mxu0 %v348
      %370 = vmatprep.subr.bf16.mxu0 0
      %371 = vmatpush1.bf16.msra.mxu0 0
      %372 = vmatprep.subr.bf16.mxu0 0
      %373 = vmatpush1.bf16.msra.mxu0 0
      %374 = vmatprep.subr.bf16.mxu0 0
      %375 = vmatpush1.bf16.msra.mxu0 0
      %376 = vmatprep.subr.bf16.mxu0 0
      %377 = vmatpush1.bf16.msra.mxu0 0
      %378 = vmatprep.subr.bf16.mxu0 0
      %379 = vmatpush1.bf16.msra.mxu0 0
      %380 = vmatprep.subr.bf16.mxu0 0
      %381 = vmatpush1.bf16.msra.mxu0 0
      %382 = vmatprep.subr.bf16.mxu0 0
      %383 = vmatpush1.bf16.msra.mxu0 0
      %384 = vmatprep.subr.bf16.mxu0 0
      %385 = vmatpush1.bf16.msra.mxu0 0
      %386 = vmatprep.subr.bf16.mxu0 0
      %387 = vmatpush1.bf16.msra.mxu0 0
      %388 = vmatprep.subr.bf16.mxu0 0
      %389 = vmatpush1.bf16.msra.mxu0 0
      %390 = vmatprep.subr.bf16.mxu0 0
      %391 = vmatpush1.bf16.msra.mxu0 0
      %392 = vmatprep.subr.bf16.mxu0 0
      %393 = vmatpush1.bf16.msra.mxu0 0
      %394 = vmatprep.subr.bf16.mxu0 0
      %395 = vmatpush1.bf16.msra.mxu0 0
      %396 = vmatprep.subr.bf16.mxu0 0
      %397 = vmatpush1.bf16.msra.mxu0 0
      %398 = vmatprep.mubr.bf16.mxu0 0
      %399 = vmatmul.mubr.bf16.gmra.mrb[0].mxu0 %v352
      %v400 = vpop.f32.mrb[0].mxu0
      %v401 = vadd.f32 %v301, %v400
      %v402 = vpop.f32.mrb[0].mxu0
      %v403 = vpop.f32.mrb[0].mxu0
      %v404 = vadd.f32 %v304, %v403
      %v405 = vpop.f32.mrb[0].mxu0
      %406 = vmatprep.mubr.bf16.mxu0 0
      %407 = vmatmul.mubr.bf16.gmra.mrb[0].mxu0 %v355
      %v408 = vpop.f32.mrb[0].mxu0
      %v409 = vadd.f32 %v309, %v408
      %v410 = vpop.f32.mrb[0].mxu0
      %v411 = vpop.f32.mrb[0].mxu0
      %v412 = vadd.f32 %v312, %v411
      %v413 = vpop.f32.mrb[0].mxu0
      %414 = vmatprep.mubr.bf16.mxu0 0
      %415 = vmatmul.mubr.bf16.gmra.mrb[0].mxu0 %v358
      %v416 = vpop.f32.mrb[0].mxu0
      %v417 = vadd.f32 %v317, %v416
      %v418 = vpop.f32.mrb[0].mxu0
      %v419 = vpop.f32.mrb[0].mxu0
      %v420 = vadd.f32 %v320, %v419
      %v421 = vpop.f32.mrb[0].mxu0
      %422 = vmatprep.mubr.bf16.mxu0 0
      %423 = vmatmul.mubr.bf16.gmra.mrb[0].mxu0 %v361
      %v424 = vpop.f32.mrb[0].mxu0
      %v425 = vadd.f32 %v325, %v424
      %v426 = vpop.f32.mrb[0].mxu0
      %v427 = vpop.f32.mrb[0].mxu0
      %v428 = vadd.f32 %v328, %v427
      %v429 = vpop.f32.mrb[0].mxu0
      %430 = vmatprep.mubr.bf16.mxu0 0
      %431 = vmatmul.mubr.bf16.gmra.mrb[0].mxu0 %v364
      %v432 = vpop.f32.mrb[0].mxu0
      %v433 = vadd.f32 %v333, %v432
      %v434 = vpop.f32.mrb[0].mxu0
      %v435 = vpop.f32.mrb[0].mxu0
      %v436 = vadd.f32 %v336, %v435
      %v437 = vpop.f32.mrb[0].mxu0
      %438 = vdwg.mxu0
      %v439 = vld [vmem:[%s192 + $0xa] sm:$0xff]
      %v440 = vld [vmem:[%s192 + $0x12] sm:$0xff]
      %v441 = vld [vmem:[%s192 + $0x1a] sm:$0xff]
      %v442 = vld [vmem:[%s192 + $0x22] sm:$0xff]
      %v443 = vld [vmem:[%s192 + $0x2a] sm:$0xff]
      %v444 = vld [vmem:[%s192 + $0x32] sm:$0xff]
      %v445 = vld [vmem:[%s192 + $0x3a] sm:$0xff]
      %v446 = vld [vmem:[%s192 + $0x42] sm:$0xff]
      %v447 = vld [vmem:[%s192 + $0x4a] sm:$0xff]
      %v448 = vld [vmem:[%s192 + $0x52] sm:$0xff]
      %v449 = vpack.c.bf16 %v440, %v439
      %v450 = vpack.c.bf16 %v442, %v441
      %v451 = vpack.c.bf16 %v444, %v443
      %v452 = vpack.c.bf16 %v446, %v445
      %v453 = vpack.c.bf16 %v448, %v447
      %s454 = scalar_lea.vmem %s1, 32
      %v455 = vld [vmem:[%s454] sm:$0xf]
      %v456 = vld [vmem:[%s454 + $0x4] sm:$0xf]
      %v457 = vld [vmem:[%s454 + $0x8] sm:$0xf]
      %v458 = vld [vmem:[%s454 + $0xc] sm:$0xf]
      %v463 = vunpack.c.l.b16 %v455
      %v464 = vunpack.c.l.b16 %v456
      %v465 = vunpack.c.l.b16 %v457
      %v466 = vunpack.c.l.b16 %v458
      %v467 = vpack.c.b16 %v464, %v463
      %v468 = vpack.c.b16 %v466, %v465
      %v472 = vsel %vm250, %v449, 0
      %v475 = vsel %vm250, %v450, 0
      %v478 = vsel %vm250, %v451, 0
      %v481 = vsel %vm250, %v452, 0
      %v484 = vsel %vm250, %v453, 0
      %486 = vmatprep.subr.bf16.mxu0 0
      %487 = vmatpush1.bf16.msra.mxu0 %v467
      %488 = vmatprep.subr.bf16.mxu0 0
      %489 = vmatpush1.bf16.msra.mxu0 %v468
      %490 = vmatprep.subr.bf16.mxu0 0
      %491 = vmatpush1.bf16.msra.mxu0 0
      %492 = vmatprep.subr.bf16.mxu0 0
      %493 = vmatpush1.bf16.msra.mxu0 0
      %494 = vmatprep.subr.bf16.mxu0 0
      %495 = vmatpush1.bf16.msra.mxu0 0
      %496 = vmatprep.subr.bf16.mxu0 0
      %497 = vmatpush1.bf16.msra.mxu0 0
      %498 = vmatprep.subr.bf16.mxu0 0
      %499 = vmatpush1.bf16.msra.mxu0 0
      %500 = vmatprep.subr.bf16.mxu0 0
      %501 = vmatpush1.bf16.msra.mxu0 0
      %502 = vmatprep.subr.bf16.mxu0 0
      %503 = vmatpush1.bf16.msra.mxu0 0
      %504 = vmatprep.subr.bf16.mxu0 0
      %505 = vmatpush1.bf16.msra.mxu0 0
      %506 = vmatprep.subr.bf16.mxu0 0
      %507 = vmatpush1.bf16.msra.mxu0 0
      %508 = vmatprep.subr.bf16.mxu0 0
      %509 = vmatpush1.bf16.msra.mxu0 0
      %510 = vmatprep.subr.bf16.mxu0 0
      %511 = vmatpush1.bf16.msra.mxu0 0
      %512 = vmatprep.subr.bf16.mxu0 0
      %513 = vmatpush1.bf16.msra.mxu0 0
      %514 = vmatprep.subr.bf16.mxu0 0
      %515 = vmatpush1.bf16.msra.mxu0 0
      %516 = vmatprep.subr.bf16.mxu0 0
      %517 = vmatpush1.bf16.msra.mxu0 0
      %518 = vmatprep.mubr.bf16.mxu0 0
      %519 = vmatmul.mubr.bf16.gmra.mrb[0].mxu0 %v472
      %v520 = vpop.f32.mrb[0].mxu0
      %v521 = vadd.f32 0.0, %v520
      %v522 = vpop.f32.mrb[0].mxu0
      %v523 = vpop.f32.mrb[0].mxu0
      %v524 = vadd.f32 0.0, %v523
      %v525 = vpop.f32.mrb[0].mxu0
      %526 = vmatprep.mubr.bf16.mxu0 0
      %527 = vmatmul.mubr.bf16.gmra.mrb[0].mxu0 %v475
      %v528 = vpop.f32.mrb[0].mxu0
      %v529 = vadd.f32 0.0, %v528
      %v530 = vpop.f32.mrb[0].mxu0
      %v531 = vpop.f32.mrb[0].mxu0
      %v532 = vadd.f32 0.0, %v531
      %v533 = vpop.f32.mrb[0].mxu0
      %534 = vmatprep.mubr.bf16.mxu0 0
      %535 = vmatmul.mubr.bf16.gmra.mrb[0].mxu0 %v478
      %v536 = vpop.f32.mrb[0].mxu0
      %v537 = vadd.f32 0.0, %v536
      %v538 = vpop.f32.mrb[0].mxu0
      %v539 = vpop.f32.mrb[0].mxu0
      %v540 = vadd.f32 0.0, %v539
      %v541 = vpop.f32.mrb[0].mxu0
      %542 = vmatprep.mubr.bf16.mxu0 0
      %543 = vmatmul.mubr.bf16.gmra.mrb[0].mxu0 %v481
      %v544 = vpop.f32.mrb[0].mxu0
      %v545 = vadd.f32 0.0, %v544
      %v546 = vpop.f32.mrb[0].mxu0
      %v547 = vpop.f32.mrb[0].mxu0
      %v548 = vadd.f32 0.0, %v547
      %v549 = vpop.f32.mrb[0].mxu0
      %550 = vmatprep.mubr.bf16.mxu0 0
      %551 = vmatmul.mubr.bf16.gmra.mrb[0].mxu0 %v484
      %v552 = vpop.f32.mrb[0].mxu0
      %v553 = vadd.f32 0.0, %v552
      %v554 = vpop.f32.mrb[0].mxu0
      %v555 = vpop.f32.mrb[0].mxu0
      %v556 = vadd.f32 0.0, %v555
      %v557 = vpop.f32.mrb[0].mxu0
      %558 = vdwg.mxu0
      %v559 = vadd.f32 %v401, %v521
      %v560 = vadd.f32 %v404, %v524
      %v561 = vadd.f32 %v409, %v529
      %v562 = vadd.f32 %v412, %v532
      %v563 = vadd.f32 %v417, %v537
      %v564 = vadd.f32 %v420, %v540
      %v565 = vadd.f32 %v425, %v545
      %v566 = vadd.f32 %v428, %v548
      %v567 = vadd.f32 %v433, %v553
      %v568 = vadd.f32 %v436, %v556
      %v569 = vld [vmem:[%s192 + $0xb] sm:$0xff]
      %v570 = vld [vmem:[%s192 + $0x13] sm:$0xff]
      %v571 = vld [vmem:[%s192 + $0x1b] sm:$0xff]
      %v572 = vld [vmem:[%s192 + $0x23] sm:$0xff]
      %v573 = vld [vmem:[%s192 + $0x2b] sm:$0xff]
      %v574 = vld [vmem:[%s192 + $0x33] sm:$0xff]
      %v575 = vld [vmem:[%s192 + $0x3b] sm:$0xff]
      %v576 = vld [vmem:[%s192 + $0x43] sm:$0xff]
      %v577 = vld [vmem:[%s192 + $0x4b] sm:$0xff]
      %v578 = vld [vmem:[%s192 + $0x53] sm:$0xff]
      %v579 = vpack.c.bf16 %v570, %v569
      %v580 = vpack.c.bf16 %v572, %v571
      %v581 = vpack.c.bf16 %v574, %v573
      %v582 = vpack.c.bf16 %v576, %v575
      %v583 = vpack.c.bf16 %v578, %v577
      %s584 = scalar_lea.vmem %s1, 48
      %v585 = vld [vmem:[%s584] sm:$0xf]
      %v586 = vld [vmem:[%s584 + $0x4] sm:$0xf]
      %v587 = vld [vmem:[%s584 + $0x8] sm:$0xf]
      %v588 = vld [vmem:[%s584 + $0xc] sm:$0xf]
      %v593 = vunpack.c.l.b16 %v585
      %v594 = vunpack.c.l.b16 %v586
      %v595 = vunpack.c.l.b16 %v587
      %v596 = vunpack.c.l.b16 %v588
      %v597 = vpack.c.b16 %v594, %v593
      %v598 = vpack.c.b16 %v596, %v595
      %v602 = vsel %vm250, %v579, 0
      %v605 = vsel %vm250, %v580, 0
      %v608 = vsel %vm250, %v581, 0
      %v611 = vsel %vm250, %v582, 0
      %v614 = vsel %vm250, %v583, 0
      %616 = vmatprep.subr.bf16.mxu0 0
      %617 = vmatpush1.bf16.msra.mxu0 %v597
      %618 = vmatprep.subr.bf16.mxu0 0
      %619 = vmatpush1.bf16.msra.mxu0 %v598
      %620 = vmatprep.subr.bf16.mxu0 0
      %621 = vmatpush1.bf16.msra.mxu0 0
      %622 = vmatprep.subr.bf16.mxu0 0
      %623 = vmatpush1.bf16.msra.mxu0 0
      %624 = vmatprep.subr.bf16.mxu0 0
      %625 = vmatpush1.bf16.msra.mxu0 0
      %626 = vmatprep.subr.bf16.mxu0 0
      %627 = vmatpush1.bf16.msra.mxu0 0
      %628 = vmatprep.subr.bf16.mxu0 0
      %629 = vmatpush1.bf16.msra.mxu0 0
      %630 = vmatprep.subr.bf16.mxu0 0
      %631 = vmatpush1.bf16.msra.mxu0 0
      %632 = vmatprep.subr.bf16.mxu0 0
      %633 = vmatpush1.bf16.msra.mxu0 0
      %634 = vmatprep.subr.bf16.mxu0 0
      %635 = vmatpush1.bf16.msra.mxu0 0
      %636 = vmatprep.subr.bf16.mxu0 0
      %637 = vmatpush1.bf16.msra.mxu0 0
      %638 = vmatprep.subr.bf16.mxu0 0
      %639 = vmatpush1.bf16.msra.mxu0 0
      %640 = vmatprep.subr.bf16.mxu0 0
      %641 = vmatpush1.bf16.msra.mxu0 0
      %642 = vmatprep.subr.bf16.mxu0 0
      %643 = vmatpush1.bf16.msra.mxu0 0
      %644 = vmatprep.subr.bf16.mxu0 0
      %645 = vmatpush1.bf16.msra.mxu0 0
      %646 = vmatprep.subr.bf16.mxu0 0
      %647 = vmatpush1.bf16.msra.mxu0 0
      %648 = vmatprep.mubr.bf16.mxu0 0
      %649 = vmatmul.mubr.bf16.gmra.mrb[0].mxu0 %v602
      %v650 = vpop.f32.mrb[0].mxu0
      %v651 = vadd.f32 0.0, %v650
      %v652 = vpop.f32.mrb[0].mxu0
      %v653 = vpop.f32.mrb[0].mxu0
      %v654 = vadd.f32 0.0, %v653
      %v655 = vpop.f32.mrb[0].mxu0
      %656 = vmatprep.mubr.bf16.mxu0 0
      %657 = vmatmul.mubr.bf16.gmra.mrb[0].mxu0 %v605
      %v658 = vpop.f32.mrb[0].mxu0
      %v659 = vadd.f32 0.0, %v658
      %v660 = vpop.f32.mrb[0].mxu0
      %v661 = vpop.f32.mrb[0].mxu0
      %v662 = vadd.f32 0.0, %v661
      %v663 = vpop.f32.mrb[0].mxu0
      %664 = vmatprep.mubr.bf16.mxu0 0
      %665 = vmatmul.mubr.bf16.gmra.mrb[0].mxu0 %v608
      %v666 = vpop.f32.mrb[0].mxu0
      %v667 = vadd.f32 0.0, %v666
      %v668 = vpop.f32.mrb[0].mxu0
      %v669 = vpop.f32.mrb[0].mxu0
      %v670 = vadd.f32 0.0, %v669
      %v671 = vpop.f32.mrb[0].mxu0
      %672 = vmatprep.mubr.bf16.mxu0 0
      %673 = vmatmul.mubr.bf16.gmra.mrb[0].mxu0 %v611
      %v674 = vpop.f32.mrb[0].mxu0
      %v675 = vadd.f32 0.0, %v674
      %v676 = vpop.f32.mrb[0].mxu0
      %v677 = vpop.f32.mrb[0].mxu0
      %v678 = vadd.f32 0.0, %v677
      %v679 = vpop.f32.mrb[0].mxu0
      %680 = vmatprep.mubr.bf16.mxu0 0
      %681 = vmatmul.mubr.bf16.gmra.mrb[0].mxu0 %v614
      %v682 = vpop.f32.mrb[0].mxu0
      %v683 = vadd.f32 0.0, %v682
      %v684 = vpop.f32.mrb[0].mxu0
      %v685 = vpop.f32.mrb[0].mxu0
      %v686 = vadd.f32 0.0, %v685
      %v687 = vpop.f32.mrb[0].mxu0
      %688 = vdwg.mxu0
      %v689 = vadd.f32 %v559, %v651
      %v690 = vadd.f32 %v560, %v654
      %v691 = vadd.f32 %v561, %v659
      %v692 = vadd.f32 %v562, %v662
      %v693 = vadd.f32 %v563, %v667
      %v694 = vadd.f32 %v564, %v670
      %v695 = vadd.f32 %v565, %v675
      %v696 = vadd.f32 %v566, %v678
      %v697 = vadd.f32 %v567, %v683
      %v698 = vadd.f32 %v568, %v686
      %v699 = vld [vmem:[%s2] sm:$0x1]
      %v701 = vlaneseq
      %v702 = vshrl.u32 %v701, 7
      %v703 = vsub.s32 0, %v702
      %v704 = vrot.slane %v699, %v703
      %v706 = vmul.f32 %v689, %v704
      %v707 = vmul.f32 %v690, %v704
      %v708 = vmul.f32 %v691, %v704
      %v709 = vmul.f32 %v692, %v704
      %v710 = vmul.f32 %v693, %v704
      %v711 = vmul.f32 %v694, %v704
      %v712 = vmul.f32 %v695, %v704
      %v713 = vmul.f32 %v696, %v704
      %v714 = vmul.f32 %v697, %v704
      %v715 = vmul.f32 %v698, %v704
      %v716 = vld [vmem:[%s3] sm:$0x1]
      %v718 = vlaneseq
      %v719 = vshrl.u32 %v718, 7
      %v720 = vsub.s32 0, %v719
      %v721 = vrot.slane %v716, %v720
      %v723 = vadd.f32 %v706, %v721
      %v724 = vadd.f32 %v707, %v721
      %v725 = vadd.f32 %v708, %v721
      %v726 = vadd.f32 %v709, %v721
      %v727 = vadd.f32 %v710, %v721
      %v728 = vadd.f32 %v711, %v721
      %v729 = vadd.f32 %v712, %v721
      %v730 = vadd.f32 %v713, %v721
      %v731 = vadd.f32 %v714, %v721
      %v732 = vadd.f32 %v715, %v721
      %v733 = vmax.f32 %v723, 0.0
      %v734 = vmax.f32 %v724, 0.0
      %v735 = vmax.f32 %v725, 0.0
      %v736 = vmax.f32 %v726, 0.0
      %v737 = vmax.f32 %v727, 0.0
      %v738 = vmax.f32 %v728, 0.0
      %v739 = vmax.f32 %v729, 0.0
      %v740 = vmax.f32 %v730, 0.0
      %v741 = vmax.f32 %v731, 0.0
      %v742 = vmax.f32 %v732, 0.0
      %vm743 = vcmask 130048
      %744 = vst.msk [vmem:[%s197] sm:$0xff] %vm743, %v733
      %745 = vst.msk [vmem:[%s197 + $0x8] sm:$0xff] %vm743, %v734
      %746 = vst.msk [vmem:[%s197 + $0x10] sm:$0xff] %vm743, %v735
      %747 = vst.msk [vmem:[%s197 + $0x18] sm:$0xff] %vm743, %v736
      %748 = vst.msk [vmem:[%s197 + $0x20] sm:$0xff] %vm743, %v737
      %749 = vst.msk [vmem:[%s197 + $0x28] sm:$0xff] %vm743, %v738
      %750 = vst.msk [vmem:[%s197 + $0x30] sm:$0xff] %vm743, %v739
      %751 = vst.msk [vmem:[%s197 + $0x38] sm:$0xff] %vm743, %v740
      %752 = vst.msk [vmem:[%s197 + $0x40] sm:$0xff] %vm743, %v741
      %753 = vst.msk [vmem:[%s197 + $0x48] sm:$0xff] %vm743, %v742
      %v754 = vld [vmem:[%s192 + $0x1] sm:$0xff]
      %v755 = vld [vmem:[%s192 + $0x9] sm:$0xff]
      %v756 = vld [vmem:[%s192 + $0x11] sm:$0xff]
      %v757 = vld [vmem:[%s192 + $0x19] sm:$0xff]
      %v758 = vld [vmem:[%s192 + $0x21] sm:$0xff]
      %v759 = vld [vmem:[%s192 + $0x29] sm:$0xff]
      %v760 = vld [vmem:[%s192 + $0x31] sm:$0xff]
      %v761 = vld [vmem:[%s192 + $0x39] sm:$0xff]
      %v762 = vld [vmem:[%s192 + $0x41] sm:$0xff]
      %v763 = vld [vmem:[%s192 + $0x49] sm:$0xff]
      %v764 = vpack.c.bf16 %v755, %v754
      %v765 = vpack.c.bf16 %v757, %v756
      %v766 = vpack.c.bf16 %v759, %v758
      %v767 = vpack.c.bf16 %v761, %v760
      %v768 = vpack.c.bf16 %v763, %v762
      %s769 = scalar_lea.vmem %s1, 64
      %v770 = vld [vmem:[%s769] sm:$0xf]
      %v771 = vld [vmem:[%s769 + $0x4] sm:$0xf]
      %v772 = vld [vmem:[%s769 + $0x8] sm:$0xf]
      %v773 = vld [vmem:[%s769 + $0xc] sm:$0xf]
      %v774 = vld [vmem:[%s192 + $0x2] sm:$0xff]
      %v775 = vld [vmem:[%s192 + $0xa] sm:$0xff]
      %v776 = vld [vmem:[%s192 + $0x12] sm:$0xff]
      %v777 = vld [vmem:[%s192 + $0x1a] sm:$0xff]
      %v778 = vld [vmem:[%s192 + $0x22] sm:$0xff]
      %v779 = vld [vmem:[%s192 + $0x2a] sm:$0xff]
      %v780 = vld [vmem:[%s192 + $0x32] sm:$0xff]
      %v781 = vld [vmem:[%s192 + $0x3a] sm:$0xff]
      %v782 = vld [vmem:[%s192 + $0x42] sm:$0xff]
      %v783 = vld [vmem:[%s192 + $0x4a] sm:$0xff]
      %v784 = vpack.c.bf16 %v775, %v774
      %v785 = vpack.c.bf16 %v777, %v776
      %v786 = vpack.c.bf16 %v779, %v778
      %v787 = vpack.c.bf16 %v781, %v780
      %v788 = vpack.c.bf16 %v783, %v782
      %s789 = scalar_lea.vmem %s1, 80
      %v790 = vld [vmem:[%s789] sm:$0xf]
      %v791 = vld [vmem:[%s789 + $0x4] sm:$0xf]
      %v792 = vld [vmem:[%s789 + $0x8] sm:$0xf]
      %v793 = vld [vmem:[%s789 + $0xc] sm:$0xf]
      %v798 = vunpack.c.l.b16 %v790
      %v799 = vunpack.c.l.b16 %v791
      %v800 = vunpack.c.l.b16 %v792
      %v801 = vunpack.c.l.b16 %v793
      %v802 = vpack.c.b16 %v799, %v798
      %v803 = vpack.c.b16 %v801, %v800
      %v807 = vsel %vm250, %v784, 0
      %v810 = vsel %vm250, %v785, 0
      %v813 = vsel %vm250, %v786, 0
      %v816 = vsel %vm250, %v787, 0
      %v819 = vsel %vm250, %v788, 0
      %821 = vmatprep.subr.bf16.mxu0 0
      %822 = vmatpush1.bf16.msra.mxu0 %v802
      %823 = vmatprep.subr.bf16.mxu0 0
      %824 = vmatpush1.bf16.msra.mxu0 %v803
      %825 = vmatprep.subr.bf16.mxu0 0
      %826 = vmatpush1.bf16.msra.mxu0 0
      %827 = vmatprep.subr.bf16.mxu0 0
      %828 = vmatpush1.bf16.msra.mxu0 0
      %829 = vmatprep.subr.bf16.mxu0 0
      %830 = vmatpush1.bf16.msra.mxu0 0
      %831 = vmatprep.subr.bf16.mxu0 0
      %832 = vmatpush1.bf16.msra.mxu0 0
      %833 = vmatprep.subr.bf16.mxu0 0
      %834 = vmatpush1.bf16.msra.mxu0 0
      %835 = vmatprep.subr.bf16.mxu0 0
      %836 = vmatpush1.bf16.msra.mxu0 0
      %837 = vmatprep.subr.bf16.mxu0 0
      %838 = vmatpush1.bf16.msra.mxu0 0
      %839 = vmatprep.subr.bf16.mxu0 0
      %840 = vmatpush1.bf16.msra.mxu0 0
      %841 = vmatprep.subr.bf16.mxu0 0
      %842 = vmatpush1.bf16.msra.mxu0 0
      %843 = vmatprep.subr.bf16.mxu0 0
      %844 = vmatpush1.bf16.msra.mxu0 0
      %845 = vmatprep.subr.bf16.mxu0 0
      %846 = vmatpush1.bf16.msra.mxu0 0
      %847 = vmatprep.subr.bf16.mxu0 0
      %848 = vmatpush1.bf16.msra.mxu0 0
      %849 = vmatprep.subr.bf16.mxu0 0
      %850 = vmatpush1.bf16.msra.mxu0 0
      %851 = vmatprep.subr.bf16.mxu0 0
      %852 = vmatpush1.bf16.msra.mxu0 0
      %853 = vmatprep.mubr.bf16.mxu0 0
      %854 = vmatmul.mubr.bf16.gmra.mrb[0].mxu0 %v807
      %v855 = vpop.f32.mrb[0].mxu0
      %v856 = vadd.f32 0.0, %v855
      %v857 = vpop.f32.mrb[0].mxu0
      %v858 = vpop.f32.mrb[0].mxu0
      %v859 = vadd.f32 0.0, %v858
      %v860 = vpop.f32.mrb[0].mxu0
      %861 = vmatprep.mubr.bf16.mxu0 0
      %862 = vmatmul.mubr.bf16.gmra.mrb[0].mxu0 %v810
      %v863 = vpop.f32.mrb[0].mxu0
      %v864 = vadd.f32 0.0, %v863
      %v865 = vpop.f32.mrb[0].mxu0
      %v866 = vpop.f32.mrb[0].mxu0
      %v867 = vadd.f32 0.0, %v866
      %v868 = vpop.f32.mrb[0].mxu0
      %869 = vmatprep.mubr.bf16.mxu0 0
      %870 = vmatmul.mubr.bf16.gmra.mrb[0].mxu0 %v813
      %v871 = vpop.f32.mrb[0].mxu0
      %v872 = vadd.f32 0.0, %v871
      %v873 = vpop.f32.mrb[0].mxu0
      %v874 = vpop.f32.mrb[0].mxu0
      %v875 = vadd.f32 0.0, %v874
      %v876 = vpop.f32.mrb[0].mxu0
      %877 = vmatprep.mubr.bf16.mxu0 0
      %878 = vmatmul.mubr.bf16.gmra.mrb[0].mxu0 %v816
      %v879 = vpop.f32.mrb[0].mxu0
      %v880 = vadd.f32 0.0, %v879
      %v881 = vpop.f32.mrb[0].mxu0
      %v882 = vpop.f32.mrb[0].mxu0
      %v883 = vadd.f32 0.0, %v882
      %v884 = vpop.f32.mrb[0].mxu0
      %885 = vmatprep.mubr.bf16.mxu0 0
      %886 = vmatmul.mubr.bf16.gmra.mrb[0].mxu0 %v819
      %v887 = vpop.f32.mrb[0].mxu0
      %v888 = vadd.f32 0.0, %v887
      %v889 = vpop.f32.mrb[0].mxu0
      %v890 = vpop.f32.mrb[0].mxu0
      %v891 = vadd.f32 0.0, %v890
      %v892 = vpop.f32.mrb[0].mxu0
      %893 = vdwg.mxu0
      %v898 = vunpack.c.l.b16 %v770
      %v899 = vunpack.c.l.b16 %v771
      %v900 = vunpack.c.l.b16 %v772
      %v901 = vunpack.c.l.b16 %v773
      %v902 = vpack.c.b16 %v899, %v898
      %v903 = vpack.c.b16 %v901, %v900
      %v907 = vsel %vm250, %v764, 0
      %v910 = vsel %vm250, %v765, 0
      %v913 = vsel %vm250, %v766, 0
      %v916 = vsel %vm250, %v767, 0
      %v919 = vsel %vm250, %v768, 0
      %921 = vmatprep.subr.bf16.mxu0 0
      %922 = vmatpush1.bf16.msra.mxu0 %v902
      %923 = vmatprep.subr.bf16.mxu0 0
      %924 = vmatpush1.bf16.msra.mxu0 %v903
      %925 = vmatprep.subr.bf16.mxu0 0
      %926 = vmatpush1.bf16.msra.mxu0 0
      %927 = vmatprep.subr.bf16.mxu0 0
      %928 = vmatpush1.bf16.msra.mxu0 0
      %929 = vmatprep.subr.bf16.mxu0 0
      %930 = vmatpush1.bf16.msra.mxu0 0
      %931 = vmatprep.subr.bf16.mxu0 0
      %932 = vmatpush1.bf16.msra.mxu0 0
      %933 = vmatprep.subr.bf16.mxu0 0
      %934 = vmatpush1.bf16.msra.mxu0 0
      %935 = vmatprep.subr.bf16.mxu0 0
      %936 = vmatpush1.bf16.msra.mxu0 0
      %937 = vmatprep.subr.bf16.mxu0 0
      %938 = vmatpush1.bf16.msra.mxu0 0
      %939 = vmatprep.subr.bf16.mxu0 0
      %940 = vmatpush1.bf16.msra.mxu0 0
      %941 = vmatprep.subr.bf16.mxu0 0
      %942 = vmatpush1.bf16.msra.mxu0 0
      %943 = vmatprep.subr.bf16.mxu0 0
      %944 = vmatpush1.bf16.msra.mxu0 0
      %945 = vmatprep.subr.bf16.mxu0 0
      %946 = vmatpush1.bf16.msra.mxu0 0
      %947 = vmatprep.subr.bf16.mxu0 0
      %948 = vmatpush1.bf16.msra.mxu0 0
      %949 = vmatprep.subr.bf16.mxu0 0
      %950 = vmatpush1.bf16.msra.mxu0 0
      %951 = vmatprep.subr.bf16.mxu0 0
      %952 = vmatpush1.bf16.msra.mxu0 0
      %953 = vmatprep.mubr.bf16.mxu0 0
      %954 = vmatmul.mubr.bf16.gmra.mrb[0].mxu0 %v907
      %v955 = vpop.f32.mrb[0].mxu0
      %v956 = vadd.f32 %v856, %v955
      %v957 = vpop.f32.mrb[0].mxu0
      %v958 = vpop.f32.mrb[0].mxu0
      %v959 = vadd.f32 %v859, %v958
      %v960 = vpop.f32.mrb[0].mxu0
      %961 = vmatprep.mubr.bf16.mxu0 0
      %962 = vmatmul.mubr.bf16.gmra.mrb[0].mxu0 %v910
      %v963 = vpop.f32.mrb[0].mxu0
      %v964 = vadd.f32 %v864, %v963
      %v965 = vpop.f32.mrb[0].mxu0
      %v966 = vpop.f32.mrb[0].mxu0
      %v967 = vadd.f32 %v867, %v966
      %v968 = vpop.f32.mrb[0].mxu0
      %969 = vmatprep.mubr.bf16.mxu0 0
      %970 = vmatmul.mubr.bf16.gmra.mrb[0].mxu0 %v913
      %v971 = vpop.f32.mrb[0].mxu0
      %v972 = vadd.f32 %v872, %v971
      %v973 = vpop.f32.mrb[0].mxu0
      %v974 = vpop.f32.mrb[0].mxu0
      %v975 = vadd.f32 %v875, %v974
      %v976 = vpop.f32.mrb[0].mxu0
      %977 = vmatprep.mubr.bf16.mxu0 0
      %978 = vmatmul.mubr.bf16.gmra.mrb[0].mxu0 %v916
      %v979 = vpop.f32.mrb[0].mxu0
      %v980 = vadd.f32 %v880, %v979
      %v981 = vpop.f32.mrb[0].mxu0
      %v982 = vpop.f32.mrb[0].mxu0
      %v983 = vadd.f32 %v883, %v982
      %v984 = vpop.f32.mrb[0].mxu0
      %985 = vmatprep.mubr.bf16.mxu0 0
      %986 = vmatmul.mubr.bf16.gmra.mrb[0].mxu0 %v919
      %v987 = vpop.f32.mrb[0].mxu0
      %v988 = vadd.f32 %v888, %v987
      %v989 = vpop.f32.mrb[0].mxu0
      %v990 = vpop.f32.mrb[0].mxu0
      %v991 = vadd.f32 %v891, %v990
      %v992 = vpop.f32.mrb[0].mxu0
      %993 = vdwg.mxu0
      %v994 = vld [vmem:[%s192 + $0xb] sm:$0xff]
      %v995 = vld [vmem:[%s192 + $0x13] sm:$0xff]
      %v996 = vld [vmem:[%s192 + $0x1b] sm:$0xff]
      %v997 = vld [vmem:[%s192 + $0x23] sm:$0xff]
      %v998 = vld [vmem:[%s192 + $0x2b] sm:$0xff]
      %v999 = vld [vmem:[%s192 + $0x33] sm:$0xff]
      %v1000 = vld [vmem:[%s192 + $0x3b] sm:$0xff]
      %v1001 = vld [vmem:[%s192 + $0x43] sm:$0xff]
      %v1002 = vld [vmem:[%s192 + $0x4b] sm:$0xff]
      %v1003 = vld [vmem:[%s192 + $0x53] sm:$0xff]
      %v1004 = vpack.c.bf16 %v995, %v994
      %v1005 = vpack.c.bf16 %v997, %v996
      %v1006 = vpack.c.bf16 %v999, %v998
      %v1007 = vpack.c.bf16 %v1001, %v1000
      %v1008 = vpack.c.bf16 %v1003, %v1002
      %s1009 = scalar_lea.vmem %s1, 96
      %v1010 = vld [vmem:[%s1009] sm:$0xf]
      %v1011 = vld [vmem:[%s1009 + $0x4] sm:$0xf]
      %v1012 = vld [vmem:[%s1009 + $0x8] sm:$0xf]
      %v1013 = vld [vmem:[%s1009 + $0xc] sm:$0xf]
      %v1018 = vunpack.c.l.b16 %v1010
      %v1019 = vunpack.c.l.b16 %v1011
      %v1020 = vunpack.c.l.b16 %v1012
      %v1021 = vunpack.c.l.b16 %v1013
      %v1022 = vpack.c.b16 %v1019, %v1018
      %v1023 = vpack.c.b16 %v1021, %v1020
      %v1027 = vsel %vm250, %v1004, 0
      %v1030 = vsel %vm250, %v1005, 0
      %v1033 = vsel %vm250, %v1006, 0
      %v1036 = vsel %vm250, %v1007, 0
      %v1039 = vsel %vm250, %v1008, 0
      %1041 = vmatprep.subr.bf16.mxu0 0
      %1042 = vmatpush1.bf16.msra.mxu0 %v1022
      %1043 = vmatprep.subr.bf16.mxu0 0
      %1044 = vmatpush1.bf16.msra.mxu0 %v1023
      %1045 = vmatprep.subr.bf16.mxu0 0
      %1046 = vmatpush1.bf16.msra.mxu0 0
      %1047 = vmatprep.subr.bf16.mxu0 0
      %1048 = vmatpush1.bf16.msra.mxu0 0
      %1049 = vmatprep.subr.bf16.mxu0 0
      %1050 = vmatpush1.bf16.msra.mxu0 0
      %1051 = vmatprep.subr.bf16.mxu0 0
      %1052 = vmatpush1.bf16.msra.mxu0 0
      %1053 = vmatprep.subr.bf16.mxu0 0
      %1054 = vmatpush1.bf16.msra.mxu0 0
      %1055 = vmatprep.subr.bf16.mxu0 0
      %1056 = vmatpush1.bf16.msra.mxu0 0
      %1057 = vmatprep.subr.bf16.mxu0 0
      %1058 = vmatpush1.bf16.msra.mxu0 0
      %1059 = vmatprep.subr.bf16.mxu0 0
      %1060 = vmatpush1.bf16.msra.mxu0 0
      %1061 = vmatprep.subr.bf16.mxu0 0
      %1062 = vmatpush1.bf16.msra.mxu0 0
      %1063 = vmatprep.subr.bf16.mxu0 0
      %1064 = vmatpush1.bf16.msra.mxu0 0
      %1065 = vmatprep.subr.bf16.mxu0 0
      %1066 = vmatpush1.bf16.msra.mxu0 0
      %1067 = vmatprep.subr.bf16.mxu0 0
      %1068 = vmatpush1.bf16.msra.mxu0 0
      %1069 = vmatprep.subr.bf16.mxu0 0
      %1070 = vmatpush1.bf16.msra.mxu0 0
      %1071 = vmatprep.subr.bf16.mxu0 0
      %1072 = vmatpush1.bf16.msra.mxu0 0
      %1073 = vmatprep.mubr.bf16.mxu0 0
      %1074 = vmatmul.mubr.bf16.gmra.mrb[0].mxu0 %v1027
      %v1075 = vpop.f32.mrb[0].mxu0
      %v1076 = vadd.f32 0.0, %v1075
      %v1077 = vpop.f32.mrb[0].mxu0
      %v1078 = vpop.f32.mrb[0].mxu0
      %v1079 = vadd.f32 0.0, %v1078
      %v1080 = vpop.f32.mrb[0].mxu0
      %1081 = vmatprep.mubr.bf16.mxu0 0
      %1082 = vmatmul.mubr.bf16.gmra.mrb[0].mxu0 %v1030
      %v1083 = vpop.f32.mrb[0].mxu0
      %v1084 = vadd.f32 0.0, %v1083
      %v1085 = vpop.f32.mrb[0].mxu0
      %v1086 = vpop.f32.mrb[0].mxu0
      %v1087 = vadd.f32 0.0, %v1086
      %v1088 = vpop.f32.mrb[0].mxu0
      %1089 = vmatprep.mubr.bf16.mxu0 0
      %1090 = vmatmul.mubr.bf16.gmra.mrb[0].mxu0 %v1033
      %v1091 = vpop.f32.mrb[0].mxu0
      %v1092 = vadd.f32 0.0, %v1091
      %v1093 = vpop.f32.mrb[0].mxu0
      %v1094 = vpop.f32.mrb[0].mxu0
      %v1095 = vadd.f32 0.0, %v1094
      %v1096 = vpop.f32.mrb[0].mxu0
      %1097 = vmatprep.mubr.bf16.mxu0 0
      %1098 = vmatmul.mubr.bf16.gmra.mrb[0].mxu0 %v1036
      %v1099 = vpop.f32.mrb[0].mxu0
      %v1100 = vadd.f32 0.0, %v1099
      %v1101 = vpop.f32.mrb[0].mxu0
      %v1102 = vpop.f32.mrb[0].mxu0
      %v1103 = vadd.f32 0.0, %v1102
      %v1104 = vpop.f32.mrb[0].mxu0
      %1105 = vmatprep.mubr.bf16.mxu0 0
      %1106 = vmatmul.mubr.bf16.gmra.mrb[0].mxu0 %v1039
      %v1107 = vpop.f32.mrb[0].mxu0
      %v1108 = vadd.f32 0.0, %v1107
      %v1109 = vpop.f32.mrb[0].mxu0
      %v1110 = vpop.f32.mrb[0].mxu0
      %v1111 = vadd.f32 0.0, %v1110
      %v1112 = vpop.f32.mrb[0].mxu0
      %1113 = vdwg.mxu0
      %v1114 = vadd.f32 %v956, %v1076
      %v1115 = vadd.f32 %v959, %v1079
      %v1116 = vadd.f32 %v964, %v1084
      %v1117 = vadd.f32 %v967, %v1087
      %v1118 = vadd.f32 %v972, %v1092
      %v1119 = vadd.f32 %v975, %v1095
      %v1120 = vadd.f32 %v980, %v1100
      %v1121 = vadd.f32 %v983, %v1103
      %v1122 = vadd.f32 %v988, %v1108
      %v1123 = vadd.f32 %v991, %v1111
      %v1124 = vld [vmem:[%s192 + $0xc] sm:$0xff]
      %v1125 = vld [vmem:[%s192 + $0x14] sm:$0xff]
      %v1126 = vld [vmem:[%s192 + $0x1c] sm:$0xff]
      %v1127 = vld [vmem:[%s192 + $0x24] sm:$0xff]
      %v1128 = vld [vmem:[%s192 + $0x2c] sm:$0xff]
      %v1129 = vld [vmem:[%s192 + $0x34] sm:$0xff]
      %v1130 = vld [vmem:[%s192 + $0x3c] sm:$0xff]
      %v1131 = vld [vmem:[%s192 + $0x44] sm:$0xff]
      %v1132 = vld [vmem:[%s192 + $0x4c] sm:$0xff]
      %v1133 = vld [vmem:[%s192 + $0x54] sm:$0xff]
      %v1134 = vpack.c.bf16 %v1125, %v1124
      %v1135 = vpack.c.bf16 %v1127, %v1126
      %v1136 = vpack.c.bf16 %v1129, %v1128
      %v1137 = vpack.c.bf16 %v1131, %v1130
      %v1138 = vpack.c.bf16 %v1133, %v1132
      %s1139 = scalar_lea.vmem %s1, 112
      %v1140 = vld [vmem:[%s1139] sm:$0xf]
      %v1141 = vld [vmem:[%s1139 + $0x4] sm:$0xf]
      %v1142 = vld [vmem:[%s1139 + $0x8] sm:$0xf]
      %v1143 = vld [vmem:[%s1139 + $0xc] sm:$0xf]
      %v1148 = vunpack.c.l.b16 %v1140
      %v1149 = vunpack.c.l.b16 %v1141
      %v1150 = vunpack.c.l.b16 %v1142
      %v1151 = vunpack.c.l.b16 %v1143
      %v1152 = vpack.c.b16 %v1149, %v1148
      %v1153 = vpack.c.b16 %v1151, %v1150
      %v1157 = vsel %vm250, %v1134, 0
      %v1160 = vsel %vm250, %v1135, 0
      %v1163 = vsel %vm250, %v1136, 0
      %v1166 = vsel %vm250, %v1137, 0
      %v1169 = vsel %vm250, %v1138, 0
      %1171 = vmatprep.subr.bf16.mxu0 0
      %1172 = vmatpush1.bf16.msra.mxu0 %v1152
      %1173 = vmatprep.subr.bf16.mxu0 0
      %1174 = vmatpush1.bf16.msra.mxu0 %v1153
      %1175 = vmatprep.subr.bf16.mxu0 0
      %1176 = vmatpush1.bf16.msra.mxu0 0
      %1177 = vmatprep.subr.bf16.mxu0 0
      %1178 = vmatpush1.bf16.msra.mxu0 0
      %1179 = vmatprep.subr.bf16.mxu0 0
      %1180 = vmatpush1.bf16.msra.mxu0 0
      %1181 = vmatprep.subr.bf16.mxu0 0
      %1182 = vmatpush1.bf16.msra.mxu0 0
      %1183 = vmatprep.subr.bf16.mxu0 0
      %1184 = vmatpush1.bf16.msra.mxu0 0
      %1185 = vmatprep.subr.bf16.mxu0 0
      %1186 = vmatpush1.bf16.msra.mxu0 0
      %1187 = vmatprep.subr.bf16.mxu0 0
      %1188 = vmatpush1.bf16.msra.mxu0 0
      %1189 = vmatprep.subr.bf16.mxu0 0
      %1190 = vmatpush1.bf16.msra.mxu0 0
      %1191 = vmatprep.subr.bf16.mxu0 0
      %1192 = vmatpush1.bf16.msra.mxu0 0
      %1193 = vmatprep.subr.bf16.mxu0 0
      %1194 = vmatpush1.bf16.msra.mxu0 0
      %1195 = vmatprep.subr.bf16.mxu0 0
      %1196 = vmatpush1.bf16.msra.mxu0 0
      %1197 = vmatprep.subr.bf16.mxu0 0
      %1198 = vmatpush1.bf16.msra.mxu0 0
      %1199 = vmatprep.subr.bf16.mxu0 0
      %1200 = vmatpush1.bf16.msra.mxu0 0
      %1201 = vmatprep.subr.bf16.mxu0 0
      %1202 = vmatpush1.bf16.msra.mxu0 0
      %1203 = vmatprep.mubr.bf16.mxu0 0
      %1204 = vmatmul.mubr.bf16.gmra.mrb[0].mxu0 %v1157
      %v1205 = vpop.f32.mrb[0].mxu0
      %v1206 = vadd.f32 0.0, %v1205
      %v1207 = vpop.f32.mrb[0].mxu0
      %v1208 = vpop.f32.mrb[0].mxu0
      %v1209 = vadd.f32 0.0, %v1208
      %v1210 = vpop.f32.mrb[0].mxu0
      %1211 = vmatprep.mubr.bf16.mxu0 0
      %1212 = vmatmul.mubr.bf16.gmra.mrb[0].mxu0 %v1160
      %v1213 = vpop.f32.mrb[0].mxu0
      %v1214 = vadd.f32 0.0, %v1213
      %v1215 = vpop.f32.mrb[0].mxu0
      %v1216 = vpop.f32.mrb[0].mxu0
      %v1217 = vadd.f32 0.0, %v1216
      %v1218 = vpop.f32.mrb[0].mxu0
      %1219 = vmatprep.mubr.bf16.mxu0 0
      %1220 = vmatmul.mubr.bf16.gmra.mrb[0].mxu0 %v1163
      %v1221 = vpop.f32.mrb[0].mxu0
      %v1222 = vadd.f32 0.0, %v1221
      %v1223 = vpop.f32.mrb[0].mxu0
      %v1224 = vpop.f32.mrb[0].mxu0
      %v1225 = vadd.f32 0.0, %v1224
      %v1226 = vpop.f32.mrb[0].mxu0
      %1227 = vmatprep.mubr.bf16.mxu0 0
      %1228 = vmatmul.mubr.bf16.gmra.mrb[0].mxu0 %v1166
      %v1229 = vpop.f32.mrb[0].mxu0
      %v1230 = vadd.f32 0.0, %v1229
      %v1231 = vpop.f32.mrb[0].mxu0
      %v1232 = vpop.f32.mrb[0].mxu0
      %v1233 = vadd.f32 0.0, %v1232
      %v1234 = vpop.f32.mrb[0].mxu0
      %1235 = vmatprep.mubr.bf16.mxu0 0
      %1236 = vmatmul.mubr.bf16.gmra.mrb[0].mxu0 %v1169
      %v1237 = vpop.f32.mrb[0].mxu0
      %v1238 = vadd.f32 0.0, %v1237
      %v1239 = vpop.f32.mrb[0].mxu0
      %v1240 = vpop.f32.mrb[0].mxu0
      %v1241 = vadd.f32 0.0, %v1240
      %v1242 = vpop.f32.mrb[0].mxu0
      %1243 = vdwg.mxu0
      %v1244 = vadd.f32 %v1114, %v1206
      %v1245 = vadd.f32 %v1115, %v1209
      %v1246 = vadd.f32 %v1116, %v1214
      %v1247 = vadd.f32 %v1117, %v1217
      %v1248 = vadd.f32 %v1118, %v1222
      %v1249 = vadd.f32 %v1119, %v1225
      %v1250 = vadd.f32 %v1120, %v1230
      %v1251 = vadd.f32 %v1121, %v1233
      %v1252 = vadd.f32 %v1122, %v1238
      %v1253 = vadd.f32 %v1123, %v1241
      %v1254 = vld [vmem:[%s2] sm:$0x1]
      %v1256 = vlaneseq
      %v1257 = vshrl.u32 %v1256, 7
      %v1258 = vsub.s32 0, %v1257
      %v1259 = vrot.slane %v1254, %v1258
      %v1261 = vmul.f32 %v1244, %v1259
      %v1262 = vmul.f32 %v1245, %v1259
      %v1263 = vmul.f32 %v1246, %v1259
      %v1264 = vmul.f32 %v1247, %v1259
      %v1265 = vmul.f32 %v1248, %v1259
      %v1266 = vmul.f32 %v1249, %v1259
      %v1267 = vmul.f32 %v1250, %v1259
      %v1268 = vmul.f32 %v1251, %v1259
      %v1269 = vmul.f32 %v1252, %v1259
      %v1270 = vmul.f32 %v1253, %v1259
      %v1271 = vld [vmem:[%s3] sm:$0x1]
      %v1273 = vlaneseq
      %v1274 = vshrl.u32 %v1273, 7
      %v1275 = vsub.s32 0, %v1274
      %v1276 = vrot.slane %v1271, %v1275
      %v1278 = vadd.f32 %v1261, %v1276
      %v1279 = vadd.f32 %v1262, %v1276
      %v1280 = vadd.f32 %v1263, %v1276
      %v1281 = vadd.f32 %v1264, %v1276
      %v1282 = vadd.f32 %v1265, %v1276
      %v1283 = vadd.f32 %v1266, %v1276
      %v1284 = vadd.f32 %v1267, %v1276
      %v1285 = vadd.f32 %v1268, %v1276
      %v1286 = vadd.f32 %v1269, %v1276
      %v1287 = vadd.f32 %v1270, %v1276
      %v1288 = vmax.f32 %v1278, 0.0
      %v1289 = vmax.f32 %v1279, 0.0
      %v1290 = vmax.f32 %v1280, 0.0
      %v1291 = vmax.f32 %v1281, 0.0
      %v1292 = vmax.f32 %v1282, 0.0
      %v1293 = vmax.f32 %v1283, 0.0
      %v1294 = vmax.f32 %v1284, 0.0
      %v1295 = vmax.f32 %v1285, 0.0
      %v1296 = vmax.f32 %v1286, 0.0
      %v1297 = vmax.f32 %v1287, 0.0
      %s1298 = scalar_lea.vmem %s197, 80
      %1299 = vst.msk [vmem:[%s1298] sm:$0xff] %vm743, %v1288
      %1300 = vst.msk [vmem:[%s1298 + $0x8] sm:$0xff] %vm743, %v1289
      %1301 = vst.msk [vmem:[%s1298 + $0x10] sm:$0xff] %vm743, %v1290
      %1302 = vst.msk [vmem:[%s1298 + $0x18] sm:$0xff] %vm743, %v1291
      %1303 = vst.msk [vmem:[%s1298 + $0x20] sm:$0xff] %vm743, %v1292
      %1304 = vst.msk [vmem:[%s1298 + $0x28] sm:$0xff] %vm743, %v1293
      %1305 = vst.msk [vmem:[%s1298 + $0x30] sm:$0xff] %vm743, %v1294
      %1306 = vst.msk [vmem:[%s1298 + $0x38] sm:$0xff] %vm743, %v1295
      %1307 = vst.msk [vmem:[%s1298 + $0x40] sm:$0xff] %vm743, %v1296
      %1308 = vst.msk [vmem:[%s1298 + $0x48] sm:$0xff] %vm743, %v1297
      %v1309 = vld [vmem:[%s192 + $0xa] sm:$0xff]
      %v1310 = vld [vmem:[%s192 + $0x12] sm:$0xff]
      %v1311 = vld [vmem:[%s192 + $0x1a] sm:$0xff]
      %v1312 = vld [vmem:[%s192 + $0x22] sm:$0xff]
      %v1313 = vld [vmem:[%s192 + $0x2a] sm:$0xff]
      %v1314 = vld [vmem:[%s192 + $0x32] sm:$0xff]
      %v1315 = vld [vmem:[%s192 + $0x3a] sm:$0xff]
      %v1316 = vld [vmem:[%s192 + $0x42] sm:$0xff]
      %v1317 = vld [vmem:[%s192 + $0x4a] sm:$0xff]
      %v1318 = vld [vmem:[%s192 + $0x52] sm:$0xff]
      %v1319 = vpack.c.bf16 %v1310, %v1309
      %v1320 = vpack.c.bf16 %v1312, %v1311
      %v1321 = vpack.c.bf16 %v1314, %v1313
      %v1322 = vpack.c.bf16 %v1316, %v1315
      %v1323 = vpack.c.bf16 %v1318, %v1317
      %s1324 = scalar_lea.vmem %s1, 128
      %v1325 = vld [vmem:[%s1324] sm:$0xf]
      %v1326 = vld [vmem:[%s1324 + $0x4] sm:$0xf]
      %v1327 = vld [vmem:[%s1324 + $0x8] sm:$0xf]
      %v1328 = vld [vmem:[%s1324 + $0xc] sm:$0xf]
      %v1329 = vld [vmem:[%s192 + $0xb] sm:$0xff]
      %v1330 = vld [vmem:[%s192 + $0x13] sm:$0xff]
      %v1331 = vld [vmem:[%s192 + $0x1b] sm:$0xff]
      %v1332 = vld [vmem:[%s192 + $0x23] sm:$0xff]
      %v1333 = vld [vmem:[%s192 + $0x2b] sm:$0xff]
      %v1334 = vld [vmem:[%s192 + $0x33] sm:$0xff]
      %v1335 = vld [vmem:[%s192 + $0x3b] sm:$0xff]
      %v1336 = vld [vmem:[%s192 + $0x43] sm:$0xff]
      %v1337 = vld [vmem:[%s192 + $0x4b] sm:$0xff]
      %v1338 = vld [vmem:[%s192 + $0x53] sm:$0xff]
      %v1339 = vpack.c.bf16 %v1330, %v1329
      %v1340 = vpack.c.bf16 %v1332, %v1331
      %v1341 = vpack.c.bf16 %v1334, %v1333
      %v1342 = vpack.c.bf16 %v1336, %v1335
      %v1343 = vpack.c.bf16 %v1338, %v1337
      %s1344 = scalar_lea.vmem %s1, 144
      %v1345 = vld [vmem:[%s1344] sm:$0xf]
      %v1346 = vld [vmem:[%s1344 + $0x4] sm:$0xf]
      %v1347 = vld [vmem:[%s1344 + $0x8] sm:$0xf]
      %v1348 = vld [vmem:[%s1344 + $0xc] sm:$0xf]
      %v1353 = vunpack.c.l.b16 %v1345
      %v1354 = vunpack.c.l.b16 %v1346
      %v1355 = vunpack.c.l.b16 %v1347
      %v1356 = vunpack.c.l.b16 %v1348
      %v1357 = vpack.c.b16 %v1354, %v1353
      %v1358 = vpack.c.b16 %v1356, %v1355
      %v1362 = vsel %vm250, %v1339, 0
      %v1365 = vsel %vm250, %v1340, 0
      %v1368 = vsel %vm250, %v1341, 0
      %v1371 = vsel %vm250, %v1342, 0
      %v1374 = vsel %vm250, %v1343, 0
      %1376 = vmatprep.subr.bf16.mxu0 0
      %1377 = vmatpush1.bf16.msra.mxu0 %v1357
      %1378 = vmatprep.subr.bf16.mxu0 0
      %1379 = vmatpush1.bf16.msra.mxu0 %v1358
      %1380 = vmatprep.subr.bf16.mxu0 0
      %1381 = vmatpush1.bf16.msra.mxu0 0
      %1382 = vmatprep.subr.bf16.mxu0 0
      %1383 = vmatpush1.bf16.msra.mxu0 0
      %1384 = vmatprep.subr.bf16.mxu0 0
      %1385 = vmatpush1.bf16.msra.mxu0 0
      %1386 = vmatprep.subr.bf16.mxu0 0
      %1387 = vmatpush1.bf16.msra.mxu0 0
      %1388 = vmatprep.subr.bf16.mxu0 0
      %1389 = vmatpush1.bf16.msra.mxu0 0
      %1390 = vmatprep.subr.bf16.mxu0 0
      %1391 = vmatpush1.bf16.msra.mxu0 0
      %1392 = vmatprep.subr.bf16.mxu0 0
      %1393 = vmatpush1.bf16.msra.mxu0 0
      %1394 = vmatprep.subr.bf16.mxu0 0
      %1395 = vmatpush1.bf16.msra.mxu0 0
      %1396 = vmatprep.subr.bf16.mxu0 0
      %1397 = vmatpush1.bf16.msra.mxu0 0
      %1398 = vmatprep.subr.bf16.mxu0 0
      %1399 = vmatpush1.bf16.msra.mxu0 0
      %1400 = vmatprep.subr.bf16.mxu0 0
      %1401 = vmatpush1.bf16.msra.mxu0 0
      %1402 = vmatprep.subr.bf16.mxu0 0
      %1403 = vmatpush1.bf16.msra.mxu0 0
      %1404 = vmatprep.subr.bf16.mxu0 0
      %1405 = vmatpush1.bf16.msra.mxu0 0
      %1406 = vmatprep.subr.bf16.mxu0 0
      %1407 = vmatpush1.bf16.msra.mxu0 0
      %1408 = vmatprep.mubr.bf16.mxu0 0
      %1409 = vmatmul.mubr.bf16.gmra.mrb[0].mxu0 %v1362
      %v1410 = vpop.f32.mrb[0].mxu0
      %v1411 = vadd.f32 0.0, %v1410
      %v1412 = vpop.f32.mrb[0].mxu0
      %v1413 = vpop.f32.mrb[0].mxu0
      %v1414 = vadd.f32 0.0, %v1413
      %v1415 = vpop.f32.mrb[0].mxu0
      %1416 = vmatprep.mubr.bf16.mxu0 0
      %1417 = vmatmul.mubr.bf16.gmra.mrb[0].mxu0 %v1365
      %v1418 = vpop.f32.mrb[0].mxu0
      %v1419 = vadd.f32 0.0, %v1418
      %v1420 = vpop.f32.mrb[0].mxu0
      %v1421 = vpop.f32.mrb[0].mxu0
      %v1422 = vadd.f32 0.0, %v1421
      %v1423 = vpop.f32.mrb[0].mxu0
      %1424 = vmatprep.mubr.bf16.mxu0 0
      %1425 = vmatmul.mubr.bf16.gmra.mrb[0].mxu0 %v1368
      %v1426 = vpop.f32.mrb[0].mxu0
      %v1427 = vadd.f32 0.0, %v1426
      %v1428 = vpop.f32.mrb[0].mxu0
      %v1429 = vpop.f32.mrb[0].mxu0
      %v1430 = vadd.f32 0.0, %v1429
      %v1431 = vpop.f32.mrb[0].mxu0
      %1432 = vmatprep.mubr.bf16.mxu0 0
      %1433 = vmatmul.mubr.bf16.gmra.mrb[0].mxu0 %v1371
      %v1434 = vpop.f32.mrb[0].mxu0
      %v1435 = vadd.f32 0.0, %v1434
      %v1436 = vpop.f32.mrb[0].mxu0
      %v1437 = vpop.f32.mrb[0].mxu0
      %v1438 = vadd.f32 0.0, %v1437
      %v1439 = vpop.f32.mrb[0].mxu0
      %1440 = vmatprep.mubr.bf16.mxu0 0
      %1441 = vmatmul.mubr.bf16.gmra.mrb[0].mxu0 %v1374
      %v1442 = vpop.f32.mrb[0].mxu0
      %v1443 = vadd.f32 0.0, %v1442
      %v1444 = vpop.f32.mrb[0].mxu0
      %v1445 = vpop.f32.mrb[0].mxu0
      %v1446 = vadd.f32 0.0, %v1445
      %v1447 = vpop.f32.mrb[0].mxu0
      %1448 = vdwg.mxu0
      %v1453 = vunpack.c.l.b16 %v1325
      %v1454 = vunpack.c.l.b16 %v1326
      %v1455 = vunpack.c.l.b16 %v1327
      %v1456 = vunpack.c.l.b16 %v1328
      %v1457 = vpack.c.b16 %v1454, %v1453
      %v1458 = vpack.c.b16 %v1456, %v1455
      %v1462 = vsel %vm250, %v1319, 0
      %v1465 = vsel %vm250, %v1320, 0
      %v1468 = vsel %vm250, %v1321, 0
      %v1471 = vsel %vm250, %v1322, 0
      %v1474 = vsel %vm250, %v1323, 0
      %1476 = vmatprep.subr.bf16.mxu0 0
      %1477 = vmatpush1.bf16.msra.mxu0 %v1457
      %1478 = vmatprep.subr.bf16.mxu0 0
      %1479 = vmatpush1.bf16.msra.mxu0 %v1458
      %1480 = vmatprep.subr.bf16.mxu0 0
      %1481 = vmatpush1.bf16.msra.mxu0 0
      %1482 = vmatprep.subr.bf16.mxu0 0
      %1483 = vmatpush1.bf16.msra.mxu0 0
      %1484 = vmatprep.subr.bf16.mxu0 0
      %1485 = vmatpush1.bf16.msra.mxu0 0
      %1486 = vmatprep.subr.bf16.mxu0 0
      %1487 = vmatpush1.bf16.msra.mxu0 0
      %1488 = vmatprep.subr.bf16.mxu0 0
      %1489 = vmatpush1.bf16.msra.mxu0 0
      %1490 = vmatprep.subr.bf16.mxu0 0
      %1491 = vmatpush1.bf16.msra.mxu0 0
      %1492 = vmatprep.subr.bf16.mxu0 0
      %1493 = vmatpush1.bf16.msra.mxu0 0
      %1494 = vmatprep.subr.bf16.mxu0 0
      %1495 = vmatpush1.bf16.msra.mxu0 0
      %1496 = vmatprep.subr.bf16.mxu0 0
      %1497 = vmatpush1.bf16.msra.mxu0 0
      %1498 = vmatprep.subr.bf16.mxu0 0
      %1499 = vmatpush1.bf16.msra.mxu0 0
      %1500 = vmatprep.subr.bf16.mxu0 0
      %1501 = vmatpush1.bf16.msra.mxu0 0
      %1502 = vmatprep.subr.bf16.mxu0 0
      %1503 = vmatpush1.bf16.msra.mxu0 0
      %1504 = vmatprep.subr.bf16.mxu0 0
      %1505 = vmatpush1.bf16.msra.mxu0 0
      %1506 = vmatprep.subr.bf16.mxu0 0
      %1507 = vmatpush1.bf16.msra.mxu0 0
      %1508 = vmatprep.mubr.bf16.mxu0 0
      %1509 = vmatmul.mubr.bf16.gmra.mrb[0].mxu0 %v1462
      %v1510 = vpop.f32.mrb[0].mxu0
      %v1511 = vadd.f32 %v1411, %v1510
      %v1512 = vpop.f32.mrb[0].mxu0
      %v1513 = vpop.f32.mrb[0].mxu0
      %v1514 = vadd.f32 %v1414, %v1513
      %v1515 = vpop.f32.mrb[0].mxu0
      %1516 = vmatprep.mubr.bf16.mxu0 0
      %1517 = vmatmul.mubr.bf16.gmra.mrb[0].mxu0 %v1465
      %v1518 = vpop.f32.mrb[0].mxu0
      %v1519 = vadd.f32 %v1419, %v1518
      %v1520 = vpop.f32.mrb[0].mxu0
      %v1521 = vpop.f32.mrb[0].mxu0
      %v1522 = vadd.f32 %v1422, %v1521
      %v1523 = vpop.f32.mrb[0].mxu0
      %1524 = vmatprep.mubr.bf16.mxu0 0
      %1525 = vmatmul.mubr.bf16.gmra.mrb[0].mxu0 %v1468
      %v1526 = vpop.f32.mrb[0].mxu0
      %v1527 = vadd.f32 %v1427, %v1526
      %v1528 = vpop.f32.mrb[0].mxu0
      %v1529 = vpop.f32.mrb[0].mxu0
      %v1530 = vadd.f32 %v1430, %v1529
      %v1531 = vpop.f32.mrb[0].mxu0
      %1532 = vmatprep.mubr.bf16.mxu0 0
      %1533 = vmatmul.mubr.bf16.gmra.mrb[0].mxu0 %v1471
      %v1534 = vpop.f32.mrb[0].mxu0
      %v1535 = vadd.f32 %v1435, %v1534
      %v1536 = vpop.f32.mrb[0].mxu0
      %v1537 = vpop.f32.mrb[0].mxu0
      %v1538 = vadd.f32 %v1438, %v1537
      %v1539 = vpop.f32.mrb[0].mxu0
      %1540 = vmatprep.mubr.bf16.mxu0 0
      %1541 = vmatmul.mubr.bf16.gmra.mrb[0].mxu0 %v1474
      %v1542 = vpop.f32.mrb[0].mxu0
      %v1543 = vadd.f32 %v1443, %v1542
      %v1544 = vpop.f32.mrb[0].mxu0
      %v1545 = vpop.f32.mrb[0].mxu0
      %v1546 = vadd.f32 %v1446, %v1545
      %v1547 = vpop.f32.mrb[0].mxu0
      %1548 = vdwg.mxu0
      %v1549 = vld [vmem:[%s192 + $0x14] sm:$0xff]
      %v1550 = vld [vmem:[%s192 + $0x1c] sm:$0xff]
      %v1551 = vld [vmem:[%s192 + $0x24] sm:$0xff]
      %v1552 = vld [vmem:[%s192 + $0x2c] sm:$0xff]
      %v1553 = vld [vmem:[%s192 + $0x34] sm:$0xff]
      %v1554 = vld [vmem:[%s192 + $0x3c] sm:$0xff]
      %v1555 = vld [vmem:[%s192 + $0x44] sm:$0xff]
      %v1556 = vld [vmem:[%s192 + $0x4c] sm:$0xff]
      %v1557 = vld [vmem:[%s192 + $0x54] sm:$0xff]
      %v1558 = vld [vmem:[%s192 + $0x5c] sm:$0xff]
      %v1559 = vpack.c.bf16 %v1550, %v1549
      %v1560 = vpack.c.bf16 %v1552, %v1551
      %v1561 = vpack.c.bf16 %v1554, %v1553
      %v1562 = vpack.c.bf16 %v1556, %v1555
      %v1563 = vpack.c.bf16 %v1558, %v1557
      %s1564 = scalar_lea.vmem %s1, 160
      %v1565 = vld [vmem:[%s1564] sm:$0xf]
      %v1566 = vld [vmem:[%s1564 + $0x4] sm:$0xf]
      %v1567 = vld [vmem:[%s1564 + $0x8] sm:$0xf]
      %v1568 = vld [vmem:[%s1564 + $0xc] sm:$0xf]
      %v1573 = vunpack.c.l.b16 %v1565
      %v1574 = vunpack.c.l.b16 %v1566
      %v1575 = vunpack.c.l.b16 %v1567
      %v1576 = vunpack.c.l.b16 %v1568
      %v1577 = vpack.c.b16 %v1574, %v1573
      %v1578 = vpack.c.b16 %v1576, %v1575
      %v1582 = vsel %vm250, %v1559, 0
      %v1585 = vsel %vm250, %v1560, 0
      %v1588 = vsel %vm250, %v1561, 0
      %v1591 = vsel %vm250, %v1562, 0
      %v1594 = vsel %vm250, %v1563, 0
      %1596 = vmatprep.subr.bf16.mxu0 0
      %1597 = vmatpush1.bf16.msra.mxu0 %v1577
      %1598 = vmatprep.subr.bf16.mxu0 0
      %1599 = vmatpush1.bf16.msra.mxu0 %v1578
      %1600 = vmatprep.subr.bf16.mxu0 0
      %1601 = vmatpush1.bf16.msra.mxu0 0
      %1602 = vmatprep.subr.bf16.mxu0 0
      %1603 = vmatpush1.bf16.msra.mxu0 0
      %1604 = vmatprep.subr.bf16.mxu0 0
      %1605 = vmatpush1.bf16.msra.mxu0 0
      %1606 = vmatprep.subr.bf16.mxu0 0
      %1607 = vmatpush1.bf16.msra.mxu0 0
      %1608 = vmatprep.subr.bf16.mxu0 0
      %1609 = vmatpush1.bf16.msra.mxu0 0
      %1610 = vmatprep.subr.bf16.mxu0 0
      %1611 = vmatpush1.bf16.msra.mxu0 0
      %1612 = vmatprep.subr.bf16.mxu0 0
      %1613 = vmatpush1.bf16.msra.mxu0 0
      %1614 = vmatprep.subr.bf16.mxu0 0
      %1615 = vmatpush1.bf16.msra.mxu0 0
      %1616 = vmatprep.subr.bf16.mxu0 0
      %1617 = vmatpush1.bf16.msra.mxu0 0
      %1618 = vmatprep.subr.bf16.mxu0 0
      %1619 = vmatpush1.bf16.msra.mxu0 0
      %1620 = vmatprep.subr.bf16.mxu0 0
      %1621 = vmatpush1.bf16.msra.mxu0 0
      %1622 = vmatprep.subr.bf16.mxu0 0
      %1623 = vmatpush1.bf16.msra.mxu0 0
      %1624 = vmatprep.subr.bf16.mxu0 0
      %1625 = vmatpush1.bf16.msra.mxu0 0
      %1626 = vmatprep.subr.bf16.mxu0 0
      %1627 = vmatpush1.bf16.msra.mxu0 0
      %1628 = vmatprep.mubr.bf16.mxu0 0
      %1629 = vmatmul.mubr.bf16.gmra.mrb[0].mxu0 %v1582
      %v1630 = vpop.f32.mrb[0].mxu0
      %v1631 = vadd.f32 0.0, %v1630
      %v1632 = vpop.f32.mrb[0].mxu0
      %v1633 = vpop.f32.mrb[0].mxu0
      %v1634 = vadd.f32 0.0, %v1633
      %v1635 = vpop.f32.mrb[0].mxu0
      %1636 = vmatprep.mubr.bf16.mxu0 0
      %1637 = vmatmul.mubr.bf16.gmra.mrb[0].mxu0 %v1585
      %v1638 = vpop.f32.mrb[0].mxu0
      %v1639 = vadd.f32 0.0, %v1638
      %v1640 = vpop.f32.mrb[0].mxu0
      %v1641 = vpop.f32.mrb[0].mxu0
      %v1642 = vadd.f32 0.0, %v1641
      %v1643 = vpop.f32.mrb[0].mxu0
      %1644 = vmatprep.mubr.bf16.mxu0 0
      %1645 = vmatmul.mubr.bf16.gmra.mrb[0].mxu0 %v1588
      %v1646 = vpop.f32.mrb[0].mxu0
      %v1647 = vadd.f32 0.0, %v1646
      %v1648 = vpop.f32.mrb[0].mxu0
      %v1649 = vpop.f32.mrb[0].mxu0
      %v1650 = vadd.f32 0.0, %v1649
      %v1651 = vpop.f32.mrb[0].mxu0
      %1652 = vmatprep.mubr.bf16.mxu0 0
      %1653 = vmatmul.mubr.bf16.gmra.mrb[0].mxu0 %v1591
      %v1654 = vpop.f32.mrb[0].mxu0
      %v1655 = vadd.f32 0.0, %v1654
      %v1656 = vpop.f32.mrb[0].mxu0
      %v1657 = vpop.f32.mrb[0].mxu0
      %v1658 = vadd.f32 0.0, %v1657
      %v1659 = vpop.f32.mrb[0].mxu0
      %1660 = vmatprep.mubr.bf16.mxu0 0
      %1661 = vmatmul.mubr.bf16.gmra.mrb[0].mxu0 %v1594
      %v1662 = vpop.f32.mrb[0].mxu0
      %v1663 = vadd.f32 0.0, %v1662
      %v1664 = vpop.f32.mrb[0].mxu0
      %v1665 = vpop.f32.mrb[0].mxu0
      %v1666 = vadd.f32 0.0, %v1665
      %v1667 = vpop.f32.mrb[0].mxu0
      %1668 = vdwg.mxu0
      %v1669 = vadd.f32 %v1511, %v1631
      %v1670 = vadd.f32 %v1514, %v1634
      %v1671 = vadd.f32 %v1519, %v1639
      %v1672 = vadd.f32 %v1522, %v1642
      %v1673 = vadd.f32 %v1527, %v1647
      %v1674 = vadd.f32 %v1530, %v1650
      %v1675 = vadd.f32 %v1535, %v1655
      %v1676 = vadd.f32 %v1538, %v1658
      %v1677 = vadd.f32 %v1543, %v1663
      %v1678 = vadd.f32 %v1546, %v1666
      %v1679 = vld [vmem:[%s192 + $0x15] sm:$0xff]
      %v1680 = vld [vmem:[%s192 + $0x1d] sm:$0xff]
      %v1681 = vld [vmem:[%s192 + $0x25] sm:$0xff]
      %v1682 = vld [vmem:[%s192 + $0x2d] sm:$0xff]
      %v1683 = vld [vmem:[%s192 + $0x35] sm:$0xff]
      %v1684 = vld [vmem:[%s192 + $0x3d] sm:$0xff]
      %v1685 = vld [vmem:[%s192 + $0x45] sm:$0xff]
      %v1686 = vld [vmem:[%s192 + $0x4d] sm:$0xff]
      %v1687 = vld [vmem:[%s192 + $0x55] sm:$0xff]
      %v1688 = vld [vmem:[%s192 + $0x5d] sm:$0xff]
      %v1689 = vpack.c.bf16 %v1680, %v1679
      %v1690 = vpack.c.bf16 %v1682, %v1681
      %v1691 = vpack.c.bf16 %v1684, %v1683
      %v1692 = vpack.c.bf16 %v1686, %v1685
      %v1693 = vpack.c.bf16 %v1688, %v1687
      %s1694 = scalar_lea.vmem %s1, 176
      %v1695 = vld [vmem:[%s1694] sm:$0xf]
      %v1696 = vld [vmem:[%s1694 + $0x4] sm:$0xf]
      %v1697 = vld [vmem:[%s1694 + $0x8] sm:$0xf]
      %v1698 = vld [vmem:[%s1694 + $0xc] sm:$0xf]
      %v1703 = vunpack.c.l.b16 %v1695
      %v1704 = vunpack.c.l.b16 %v1696
      %v1705 = vunpack.c.l.b16 %v1697
      %v1706 = vunpack.c.l.b16 %v1698
      %v1707 = vpack.c.b16 %v1704, %v1703
      %v1708 = vpack.c.b16 %v1706, %v1705
      %v1712 = vsel %vm250, %v1689, 0
      %v1715 = vsel %vm250, %v1690, 0
      %v1718 = vsel %vm250, %v1691, 0
      %v1721 = vsel %vm250, %v1692, 0
      %v1724 = vsel %vm250, %v1693, 0
      %1726 = vmatprep.subr.bf16.mxu0 0
      %1727 = vmatpush1.bf16.msra.mxu0 %v1707
      %1728 = vmatprep.subr.bf16.mxu0 0
      %1729 = vmatpush1.bf16.msra.mxu0 %v1708
      %1730 = vmatprep.subr.bf16.mxu0 0
      %1731 = vmatpush1.bf16.msra.mxu0 0
      %1732 = vmatprep.subr.bf16.mxu0 0
      %1733 = vmatpush1.bf16.msra.mxu0 0
      %1734 = vmatprep.subr.bf16.mxu0 0
      %1735 = vmatpush1.bf16.msra.mxu0 0
      %1736 = vmatprep.subr.bf16.mxu0 0
      %1737 = vmatpush1.bf16.msra.mxu0 0
      %1738 = vmatprep.subr.bf16.mxu0 0
      %1739 = vmatpush1.bf16.msra.mxu0 0
      %1740 = vmatprep.subr.bf16.mxu0 0
      %1741 = vmatpush1.bf16.msra.mxu0 0
      %1742 = vmatprep.subr.bf16.mxu0 0
      %1743 = vmatpush1.bf16.msra.mxu0 0
      %1744 = vmatprep.subr.bf16.mxu0 0
      %1745 = vmatpush1.bf16.msra.mxu0 0
      %1746 = vmatprep.subr.bf16.mxu0 0
      %1747 = vmatpush1.bf16.msra.mxu0 0
      %1748 = vmatprep.subr.bf16.mxu0 0
      %1749 = vmatpush1.bf16.msra.mxu0 0
      %1750 = vmatprep.subr.bf16.mxu0 0
      %1751 = vmatpush1.bf16.msra.mxu0 0
      %1752 = vmatprep.subr.bf16.mxu0 0
      %1753 = vmatpush1.bf16.msra.mxu0 0
      %1754 = vmatprep.subr.bf16.mxu0 0
      %1755 = vmatpush1.bf16.msra.mxu0 0
      %1756 = vmatprep.subr.bf16.mxu0 0
      %1757 = vmatpush1.bf16.msra.mxu0 0
      %1758 = vmatprep.mubr.bf16.mxu0 0
      %1759 = vmatmul.mubr.bf16.gmra.mrb[0].mxu0 %v1712
      %v1760 = vpop.f32.mrb[0].mxu0
      %v1761 = vadd.f32 0.0, %v1760
      %v1762 = vpop.f32.mrb[0].mxu0
      %v1763 = vpop.f32.mrb[0].mxu0
      %v1764 = vadd.f32 0.0, %v1763
      %v1765 = vpop.f32.mrb[0].mxu0
      %1766 = vmatprep.mubr.bf16.mxu0 0
      %1767 = vmatmul.mubr.bf16.gmra.mrb[0].mxu0 %v1715
      %v1768 = vpop.f32.mrb[0].mxu0
      %v1769 = vadd.f32 0.0, %v1768
      %v1770 = vpop.f32.mrb[0].mxu0
      %v1771 = vpop.f32.mrb[0].mxu0
      %v1772 = vadd.f32 0.0, %v1771
      %v1773 = vpop.f32.mrb[0].mxu0
      %1774 = vmatprep.mubr.bf16.mxu0 0
      %1775 = vmatmul.mubr.bf16.gmra.mrb[0].mxu0 %v1718
      %v1776 = vpop.f32.mrb[0].mxu0
      %v1777 = vadd.f32 0.0, %v1776
      %v1778 = vpop.f32.mrb[0].mxu0
      %v1779 = vpop.f32.mrb[0].mxu0
      %v1780 = vadd.f32 0.0, %v1779
      %v1781 = vpop.f32.mrb[0].mxu0
      %1782 = vmatprep.mubr.bf16.mxu0 0
      %1783 = vmatmul.mubr.bf16.gmra.mrb[0].mxu0 %v1721
      %v1784 = vpop.f32.mrb[0].mxu0
      %v1785 = vadd.f32 0.0, %v1784
      %v1786 = vpop.f32.mrb[0].mxu0
      %v1787 = vpop.f32.mrb[0].mxu0
      %v1788 = vadd.f32 0.0, %v1787
      %v1789 = vpop.f32.mrb[0].mxu0
      %1790 = vmatprep.mubr.bf16.mxu0 0
      %1791 = vmatmul.mubr.bf16.gmra.mrb[0].mxu0 %v1724
      %v1792 = vpop.f32.mrb[0].mxu0
      %v1793 = vadd.f32 0.0, %v1792
      %v1794 = vpop.f32.mrb[0].mxu0
      %v1795 = vpop.f32.mrb[0].mxu0
      %v1796 = vadd.f32 0.0, %v1795
      %v1797 = vpop.f32.mrb[0].mxu0
      %1798 = vdwg.mxu0
      %v1799 = vadd.f32 %v1669, %v1761
      %v1800 = vadd.f32 %v1670, %v1764
      %v1801 = vadd.f32 %v1671, %v1769
      %v1802 = vadd.f32 %v1672, %v1772
      %v1803 = vadd.f32 %v1673, %v1777
      %v1804 = vadd.f32 %v1674, %v1780
      %v1805 = vadd.f32 %v1675, %v1785
      %v1806 = vadd.f32 %v1676, %v1788
      %v1807 = vadd.f32 %v1677, %v1793
      %v1808 = vadd.f32 %v1678, %v1796
      %v1809 = vld [vmem:[%s2] sm:$0x1]
      %v1811 = vlaneseq
      %v1812 = vshrl.u32 %v1811, 7
      %v1813 = vsub.s32 0, %v1812
      %v1814 = vrot.slane %v1809, %v1813
      %v1816 = vmul.f32 %v1799, %v1814
      %v1817 = vmul.f32 %v1800, %v1814
      %v1818 = vmul.f32 %v1801, %v1814
      %v1819 = vmul.f32 %v1802, %v1814
      %v1820 = vmul.f32 %v1803, %v1814
      %v1821 = vmul.f32 %v1804, %v1814
      %v1822 = vmul.f32 %v1805, %v1814
      %v1823 = vmul.f32 %v1806, %v1814
      %v1824 = vmul.f32 %v1807, %v1814
      %v1825 = vmul.f32 %v1808, %v1814
      %v1826 = vld [vmem:[%s3] sm:$0x1]
      %v1828 = vlaneseq
      %v1829 = vshrl.u32 %v1828, 7
      %v1830 = vsub.s32 0, %v1829
      %v1831 = vrot.slane %v1826, %v1830
      %v1833 = vadd.f32 %v1816, %v1831
      %v1834 = vadd.f32 %v1817, %v1831
      %v1835 = vadd.f32 %v1818, %v1831
      %v1836 = vadd.f32 %v1819, %v1831
      %v1837 = vadd.f32 %v1820, %v1831
      %v1838 = vadd.f32 %v1821, %v1831
      %v1839 = vadd.f32 %v1822, %v1831
      %v1840 = vadd.f32 %v1823, %v1831
      %v1841 = vadd.f32 %v1824, %v1831
      %v1842 = vadd.f32 %v1825, %v1831
      %v1843 = vmax.f32 %v1833, 0.0
      %v1844 = vmax.f32 %v1834, 0.0
      %v1845 = vmax.f32 %v1835, 0.0
      %v1846 = vmax.f32 %v1836, 0.0
      %v1847 = vmax.f32 %v1837, 0.0
      %v1848 = vmax.f32 %v1838, 0.0
      %v1849 = vmax.f32 %v1839, 0.0
      %v1850 = vmax.f32 %v1840, 0.0
      %v1851 = vmax.f32 %v1841, 0.0
      %v1852 = vmax.f32 %v1842, 0.0
      %s1853 = scalar_lea.vmem %s197, 160
      %1854 = vst.msk [vmem:[%s1853] sm:$0xff] %vm743, %v1843
      %1855 = vst.msk [vmem:[%s1853 + $0x8] sm:$0xff] %vm743, %v1844
      %1856 = vst.msk [vmem:[%s1853 + $0x10] sm:$0xff] %vm743, %v1845
      %1857 = vst.msk [vmem:[%s1853 + $0x18] sm:$0xff] %vm743, %v1846
      %1858 = vst.msk [vmem:[%s1853 + $0x20] sm:$0xff] %vm743, %v1847
      %1859 = vst.msk [vmem:[%s1853 + $0x28] sm:$0xff] %vm743, %v1848
      %1860 = vst.msk [vmem:[%s1853 + $0x30] sm:$0xff] %vm743, %v1849
      %1861 = vst.msk [vmem:[%s1853 + $0x38] sm:$0xff] %vm743, %v1850
      %1862 = vst.msk [vmem:[%s1853 + $0x40] sm:$0xff] %vm743, %v1851
      %1863 = vst.msk [vmem:[%s1853 + $0x48] sm:$0xff] %vm743, %v1852
      %v1864 = vld [vmem:[%s192 + $0xb] sm:$0xff]
      %v1865 = vld [vmem:[%s192 + $0x13] sm:$0xff]
      %v1866 = vld [vmem:[%s192 + $0x1b] sm:$0xff]
      %v1867 = vld [vmem:[%s192 + $0x23] sm:$0xff]
      %v1868 = vld [vmem:[%s192 + $0x2b] sm:$0xff]
      %v1869 = vld [vmem:[%s192 + $0x33] sm:$0xff]
      %v1870 = vld [vmem:[%s192 + $0x3b] sm:$0xff]
      %v1871 = vld [vmem:[%s192 + $0x43] sm:$0xff]
      %v1872 = vld [vmem:[%s192 + $0x4b] sm:$0xff]
      %v1873 = vld [vmem:[%s192 + $0x53] sm:$0xff]
      %v1874 = vpack.c.bf16 %v1865, %v1864
      %v1875 = vpack.c.bf16 %v1867, %v1866
      %v1876 = vpack.c.bf16 %v1869, %v1868
      %v1877 = vpack.c.bf16 %v1871, %v1870
      %v1878 = vpack.c.bf16 %v1873, %v1872
      %s1879 = scalar_lea.vmem %s1, 192
      %v1880 = vld [vmem:[%s1879] sm:$0xf]
      %v1881 = vld [vmem:[%s1879 + $0x4] sm:$0xf]
      %v1882 = vld [vmem:[%s1879 + $0x8] sm:$0xf]
      %v1883 = vld [vmem:[%s1879 + $0xc] sm:$0xf]
      %v1884 = vld [vmem:[%s192 + $0xc] sm:$0xff]
      %v1885 = vld [vmem:[%s192 + $0x14] sm:$0xff]
      %v1886 = vld [vmem:[%s192 + $0x1c] sm:$0xff]
      %v1887 = vld [vmem:[%s192 + $0x24] sm:$0xff]
      %v1888 = vld [vmem:[%s192 + $0x2c] sm:$0xff]
      %v1889 = vld [vmem:[%s192 + $0x34] sm:$0xff]
      %v1890 = vld [vmem:[%s192 + $0x3c] sm:$0xff]
      %v1891 = vld [vmem:[%s192 + $0x44] sm:$0xff]
      %v1892 = vld [vmem:[%s192 + $0x4c] sm:$0xff]
      %v1893 = vld [vmem:[%s192 + $0x54] sm:$0xff]
      %v1894 = vpack.c.bf16 %v1885, %v1884
      %v1895 = vpack.c.bf16 %v1887, %v1886
      %v1896 = vpack.c.bf16 %v1889, %v1888
      %v1897 = vpack.c.bf16 %v1891, %v1890
      %v1898 = vpack.c.bf16 %v1893, %v1892
      %s1899 = scalar_lea.vmem %s1, 208
      %v1900 = vld [vmem:[%s1899] sm:$0xf]
      %v1901 = vld [vmem:[%s1899 + $0x4] sm:$0xf]
      %v1902 = vld [vmem:[%s1899 + $0x8] sm:$0xf]
      %v1903 = vld [vmem:[%s1899 + $0xc] sm:$0xf]
      %v1908 = vunpack.c.l.b16 %v1900
      %v1909 = vunpack.c.l.b16 %v1901
      %v1910 = vunpack.c.l.b16 %v1902
      %v1911 = vunpack.c.l.b16 %v1903
      %v1912 = vpack.c.b16 %v1909, %v1908
      %v1913 = vpack.c.b16 %v1911, %v1910
      %v1917 = vsel %vm250, %v1894, 0
      %v1920 = vsel %vm250, %v1895, 0
      %v1923 = vsel %vm250, %v1896, 0
      %v1926 = vsel %vm250, %v1897, 0
      %v1929 = vsel %vm250, %v1898, 0
      %1931 = vmatprep.subr.bf16.mxu0 0
      %1932 = vmatpush1.bf16.msra.mxu0 %v1912
      %1933 = vmatprep.subr.bf16.mxu0 0
      %1934 = vmatpush1.bf16.msra.mxu0 %v1913
      %1935 = vmatprep.subr.bf16.mxu0 0
      %1936 = vmatpush1.bf16.msra.mxu0 0
      %1937 = vmatprep.subr.bf16.mxu0 0
      %1938 = vmatpush1.bf16.msra.mxu0 0
      %1939 = vmatprep.subr.bf16.mxu0 0
      %1940 = vmatpush1.bf16.msra.mxu0 0
      %1941 = vmatprep.subr.bf16.mxu0 0
      %1942 = vmatpush1.bf16.msra.mxu0 0
      %1943 = vmatprep.subr.bf16.mxu0 0
      %1944 = vmatpush1.bf16.msra.mxu0 0
      %1945 = vmatprep.subr.bf16.mxu0 0
      %1946 = vmatpush1.bf16.msra.mxu0 0
      %1947 = vmatprep.subr.bf16.mxu0 0
      %1948 = vmatpush1.bf16.msra.mxu0 0
      %1949 = vmatprep.subr.bf16.mxu0 0
      %1950 = vmatpush1.bf16.msra.mxu0 0
      %1951 = vmatprep.subr.bf16.mxu0 0
      %1952 = vmatpush1.bf16.msra.mxu0 0
      %1953 = vmatprep.subr.bf16.mxu0 0
      %1954 = vmatpush1.bf16.msra.mxu0 0
      %1955 = vmatprep.subr.bf16.mxu0 0
      %1956 = vmatpush1.bf16.msra.mxu0 0
      %1957 = vmatprep.subr.bf16.mxu0 0
      %1958 = vmatpush1.bf16.msra.mxu0 0
      %1959 = vmatprep.subr.bf16.mxu0 0
      %1960 = vmatpush1.bf16.msra.mxu0 0
      %1961 = vmatprep.subr.bf16.mxu0 0
      %1962 = vmatpush1.bf16.msra.mxu0 0
      %1963 = vmatprep.mubr.bf16.mxu0 0
      %1964 = vmatmul.mubr.bf16.gmra.mrb[0].mxu0 %v1917
      %v1965 = vpop.f32.mrb[0].mxu0
      %v1966 = vadd.f32 0.0, %v1965
      %v1967 = vpop.f32.mrb[0].mxu0
      %v1968 = vpop.f32.mrb[0].mxu0
      %v1969 = vadd.f32 0.0, %v1968
      %v1970 = vpop.f32.mrb[0].mxu0
      %1971 = vmatprep.mubr.bf16.mxu0 0
      %1972 = vmatmul.mubr.bf16.gmra.mrb[0].mxu0 %v1920
      %v1973 = vpop.f32.mrb[0].mxu0
      %v1974 = vadd.f32 0.0, %v1973
      %v1975 = vpop.f32.mrb[0].mxu0
      %v1976 = vpop.f32.mrb[0].mxu0
      %v1977 = vadd.f32 0.0, %v1976
      %v1978 = vpop.f32.mrb[0].mxu0
      %1979 = vmatprep.mubr.bf16.mxu0 0
      %1980 = vmatmul.mubr.bf16.gmra.mrb[0].mxu0 %v1923
      %v1981 = vpop.f32.mrb[0].mxu0
      %v1982 = vadd.f32 0.0, %v1981
      %v1983 = vpop.f32.mrb[0].mxu0
      %v1984 = vpop.f32.mrb[0].mxu0
      %v1985 = vadd.f32 0.0, %v1984
      %v1986 = vpop.f32.mrb[0].mxu0
      %1987 = vmatprep.mubr.bf16.mxu0 0
      %1988 = vmatmul.mubr.bf16.gmra.mrb[0].mxu0 %v1926
      %v1989 = vpop.f32.mrb[0].mxu0
      %v1990 = vadd.f32 0.0, %v1989
      %v1991 = vpop.f32.mrb[0].mxu0
      %v1992 = vpop.f32.mrb[0].mxu0
      %v1993 = vadd.f32 0.0, %v1992
      %v1994 = vpop.f32.mrb[0].mxu0
      %1995 = vmatprep.mubr.bf16.mxu0 0
      %1996 = vmatmul.mubr.bf16.gmra.mrb[0].mxu0 %v1929
      %v1997 = vpop.f32.mrb[0].mxu0
      %v1998 = vadd.f32 0.0, %v1997
      %v1999 = vpop.f32.mrb[0].mxu0
      %v2000 = vpop.f32.mrb[0].mxu0
      %v2001 = vadd.f32 0.0, %v2000
      %v2002 = vpop.f32.mrb[0].mxu0
      %2003 = vdwg.mxu0
      %v2008 = vunpack.c.l.b16 %v1880
      %v2009 = vunpack.c.l.b16 %v1881
      %v2010 = vunpack.c.l.b16 %v1882
      %v2011 = vunpack.c.l.b16 %v1883
      %v2012 = vpack.c.b16 %v2009, %v2008
      %v2013 = vpack.c.b16 %v2011, %v2010
      %v2017 = vsel %vm250, %v1874, 0
      %v2020 = vsel %vm250, %v1875, 0
      %v2023 = vsel %vm250, %v1876, 0
      %v2026 = vsel %vm250, %v1877, 0
      %v2029 = vsel %vm250, %v1878, 0
      %2031 = vmatprep.subr.bf16.mxu0 0
      %2032 = vmatpush1.bf16.msra.mxu0 %v2012
      %2033 = vmatprep.subr.bf16.mxu0 0
      %2034 = vmatpush1.bf16.msra.mxu0 %v2013
      %2035 = vmatprep.subr.bf16.mxu0 0
      %2036 = vmatpush1.bf16.msra.mxu0 0
      %2037 = vmatprep.subr.bf16.mxu0 0
      %2038 = vmatpush1.bf16.msra.mxu0 0
      %2039 = vmatprep.subr.bf16.mxu0 0
      %2040 = vmatpush1.bf16.msra.mxu0 0
      %2041 = vmatprep.subr.bf16.mxu0 0
      %2042 = vmatpush1.bf16.msra.mxu0 0
      %2043 = vmatprep.subr.bf16.mxu0 0
      %2044 = vmatpush1.bf16.msra.mxu0 0
      %2045 = vmatprep.subr.bf16.mxu0 0
      %2046 = vmatpush1.bf16.msra.mxu0 0
      %2047 = vmatprep.subr.bf16.mxu0 0
      %2048 = vmatpush1.bf16.msra.mxu0 0
      %2049 = vmatprep.subr.bf16.mxu0 0
      %2050 = vmatpush1.bf16.msra.mxu0 0
      %2051 = vmatprep.subr.bf16.mxu0 0
      %2052 = vmatpush1.bf16.msra.mxu0 0
      %2053 = vmatprep.subr.bf16.mxu0 0
      %2054 = vmatpush1.bf16.msra.mxu0 0
      %2055 = vmatprep.subr.bf16.mxu0 0
      %2056 = vmatpush1.bf16.msra.mxu0 0
      %2057 = vmatprep.subr.bf16.mxu0 0
      %2058 = vmatpush1.bf16.msra.mxu0 0
      %2059 = vmatprep.subr.bf16.mxu0 0
      %2060 = vmatpush1.bf16.msra.mxu0 0
      %2061 = vmatprep.subr.bf16.mxu0 0
      %2062 = vmatpush1.bf16.msra.mxu0 0
      %2063 = vmatprep.mubr.bf16.mxu0 0
      %2064 = vmatmul.mubr.bf16.gmra.mrb[0].mxu0 %v2017
      %v2065 = vpop.f32.mrb[0].mxu0
      %v2066 = vadd.f32 %v1966, %v2065
      %v2067 = vpop.f32.mrb[0].mxu0
      %v2068 = vpop.f32.mrb[0].mxu0
      %v2069 = vadd.f32 %v1969, %v2068
      %v2070 = vpop.f32.mrb[0].mxu0
      %2071 = vmatprep.mubr.bf16.mxu0 0
      %2072 = vmatmul.mubr.bf16.gmra.mrb[0].mxu0 %v2020
      %v2073 = vpop.f32.mrb[0].mxu0
      %v2074 = vadd.f32 %v1974, %v2073
      %v2075 = vpop.f32.mrb[0].mxu0
      %v2076 = vpop.f32.mrb[0].mxu0
      %v2077 = vadd.f32 %v1977, %v2076
      %v2078 = vpop.f32.mrb[0].mxu0
      %2079 = vmatprep.mubr.bf16.mxu0 0
      %2080 = vmatmul.mubr.bf16.gmra.mrb[0].mxu0 %v2023
      %v2081 = vpop.f32.mrb[0].mxu0
      %v2082 = vadd.f32 %v1982, %v2081
      %v2083 = vpop.f32.mrb[0].mxu0
      %v2084 = vpop.f32.mrb[0].mxu0
      %v2085 = vadd.f32 %v1985, %v2084
      %v2086 = vpop.f32.mrb[0].mxu0
      %2087 = vmatprep.mubr.bf16.mxu0 0
      %2088 = vmatmul.mubr.bf16.gmra.mrb[0].mxu0 %v2026
      %v2089 = vpop.f32.mrb[0].mxu0
      %v2090 = vadd.f32 %v1990, %v2089
      %v2091 = vpop.f32.mrb[0].mxu0
      %v2092 = vpop.f32.mrb[0].mxu0
      %v2093 = vadd.f32 %v1993, %v2092
      %v2094 = vpop.f32.mrb[0].mxu0
      %2095 = vmatprep.mubr.bf16.mxu0 0
      %2096 = vmatmul.mubr.bf16.gmra.mrb[0].mxu0 %v2029
      %v2097 = vpop.f32.mrb[0].mxu0
      %v2098 = vadd.f32 %v1998, %v2097
      %v2099 = vpop.f32.mrb[0].mxu0
      %v2100 = vpop.f32.mrb[0].mxu0
      %v2101 = vadd.f32 %v2001, %v2100
      %v2102 = vpop.f32.mrb[0].mxu0
      %2103 = vdwg.mxu0
      %v2104 = vld [vmem:[%s192 + $0x15] sm:$0xff]
      %v2105 = vld [vmem:[%s192 + $0x1d] sm:$0xff]
      %v2106 = vld [vmem:[%s192 + $0x25] sm:$0xff]
      %v2107 = vld [vmem:[%s192 + $0x2d] sm:$0xff]
      %v2108 = vld [vmem:[%s192 + $0x35] sm:$0xff]
      %v2109 = vld [vmem:[%s192 + $0x3d] sm:$0xff]
      %v2110 = vld [vmem:[%s192 + $0x45] sm:$0xff]
      %v2111 = vld [vmem:[%s192 + $0x4d] sm:$0xff]
      %v2112 = vld [vmem:[%s192 + $0x55] sm:$0xff]
      %v2113 = vld [vmem:[%s192 + $0x5d] sm:$0xff]
      %v2114 = vpack.c.bf16 %v2105, %v2104
      %v2115 = vpack.c.bf16 %v2107, %v2106
      %v2116 = vpack.c.bf16 %v2109, %v2108
      %v2117 = vpack.c.bf16 %v2111, %v2110
      %v2118 = vpack.c.bf16 %v2113, %v2112
      %s2119 = scalar_lea.vmem %s1, 224
      %v2120 = vld [vmem:[%s2119] sm:$0xf]
      %v2121 = vld [vmem:[%s2119 + $0x4] sm:$0xf]
      %v2122 = vld [vmem:[%s2119 + $0x8] sm:$0xf]
      %v2123 = vld [vmem:[%s2119 + $0xc] sm:$0xf]
      %v2128 = vunpack.c.l.b16 %v2120
      %v2129 = vunpack.c.l.b16 %v2121
      %v2130 = vunpack.c.l.b16 %v2122
      %v2131 = vunpack.c.l.b16 %v2123
      %v2132 = vpack.c.b16 %v2129, %v2128
      %v2133 = vpack.c.b16 %v2131, %v2130
      %v2137 = vsel %vm250, %v2114, 0
      %v2140 = vsel %vm250, %v2115, 0
      %v2143 = vsel %vm250, %v2116, 0
      %v2146 = vsel %vm250, %v2117, 0
      %v2149 = vsel %vm250, %v2118, 0
      %2151 = vmatprep.subr.bf16.mxu0 0
      %2152 = vmatpush1.bf16.msra.mxu0 %v2132
      %2153 = vmatprep.subr.bf16.mxu0 0
      %2154 = vmatpush1.bf16.msra.mxu0 %v2133
      %2155 = vmatprep.subr.bf16.mxu0 0
      %2156 = vmatpush1.bf16.msra.mxu0 0
      %2157 = vmatprep.subr.bf16.mxu0 0
      %2158 = vmatpush1.bf16.msra.mxu0 0
      %2159 = vmatprep.subr.bf16.mxu0 0
      %2160 = vmatpush1.bf16.msra.mxu0 0
      %2161 = vmatprep.subr.bf16.mxu0 0
      %2162 = vmatpush1.bf16.msra.mxu0 0
      %2163 = vmatprep.subr.bf16.mxu0 0
      %2164 = vmatpush1.bf16.msra.mxu0 0
      %2165 = vmatprep.subr.bf16.mxu0 0
      %2166 = vmatpush1.bf16.msra.mxu0 0
      %2167 = vmatprep.subr.bf16.mxu0 0
      %2168 = vmatpush1.bf16.msra.mxu0 0
      %2169 = vmatprep.subr.bf16.mxu0 0
      %2170 = vmatpush1.bf16.msra.mxu0 0
      %2171 = vmatprep.subr.bf16.mxu0 0
      %2172 = vmatpush1.bf16.msra.mxu0 0
      %2173 = vmatprep.subr.bf16.mxu0 0
      %2174 = vmatpush1.bf16.msra.mxu0 0
      %2175 = vmatprep.subr.bf16.mxu0 0
      %2176 = vmatpush1.bf16.msra.mxu0 0
      %2177 = vmatprep.subr.bf16.mxu0 0
      %2178 = vmatpush1.bf16.msra.mxu0 0
      %2179 = vmatprep.subr.bf16.mxu0 0
      %2180 = vmatpush1.bf16.msra.mxu0 0
      %2181 = vmatprep.subr.bf16.mxu0 0
      %2182 = vmatpush1.bf16.msra.mxu0 0
      %2183 = vmatprep.mubr.bf16.mxu0 0
      %2184 = vmatmul.mubr.bf16.gmra.mrb[0].mxu0 %v2137
      %v2185 = vpop.f32.mrb[0].mxu0
      %v2186 = vadd.f32 0.0, %v2185
      %v2187 = vpop.f32.mrb[0].mxu0
      %v2188 = vpop.f32.mrb[0].mxu0
      %v2189 = vadd.f32 0.0, %v2188
      %v2190 = vpop.f32.mrb[0].mxu0
      %2191 = vmatprep.mubr.bf16.mxu0 0
      %2192 = vmatmul.mubr.bf16.gmra.mrb[0].mxu0 %v2140
      %v2193 = vpop.f32.mrb[0].mxu0
      %v2194 = vadd.f32 0.0, %v2193
      %v2195 = vpop.f32.mrb[0].mxu0
      %v2196 = vpop.f32.mrb[0].mxu0
      %v2197 = vadd.f32 0.0, %v2196
      %v2198 = vpop.f32.mrb[0].mxu0
      %2199 = vmatprep.mubr.bf16.mxu0 0
      %2200 = vmatmul.mubr.bf16.gmra.mrb[0].mxu0 %v2143
      %v2201 = vpop.f32.mrb[0].mxu0
      %v2202 = vadd.f32 0.0, %v2201
      %v2203 = vpop.f32.mrb[0].mxu0
      %v2204 = vpop.f32.mrb[0].mxu0
      %v2205 = vadd.f32 0.0, %v2204
      %v2206 = vpop.f32.mrb[0].mxu0
      %2207 = vmatprep.mubr.bf16.mxu0 0
      %2208 = vmatmul.mubr.bf16.gmra.mrb[0].mxu0 %v2146
      %v2209 = vpop.f32.mrb[0].mxu0
      %v2210 = vadd.f32 0.0, %v2209
      %v2211 = vpop.f32.mrb[0].mxu0
      %v2212 = vpop.f32.mrb[0].mxu0
      %v2213 = vadd.f32 0.0, %v2212
      %v2214 = vpop.f32.mrb[0].mxu0
      %2215 = vmatprep.mubr.bf16.mxu0 0
      %2216 = vmatmul.mubr.bf16.gmra.mrb[0].mxu0 %v2149
      %v2217 = vpop.f32.mrb[0].mxu0
      %v2218 = vadd.f32 0.0, %v2217
      %v2219 = vpop.f32.mrb[0].mxu0
      %v2220 = vpop.f32.mrb[0].mxu0
      %v2221 = vadd.f32 0.0, %v2220
      %v2222 = vpop.f32.mrb[0].mxu0
      %2223 = vdwg.mxu0
      %v2224 = vadd.f32 %v2066, %v2186
      %v2225 = vadd.f32 %v2069, %v2189
      %v2226 = vadd.f32 %v2074, %v2194
      %v2227 = vadd.f32 %v2077, %v2197
      %v2228 = vadd.f32 %v2082, %v2202
      %v2229 = vadd.f32 %v2085, %v2205
      %v2230 = vadd.f32 %v2090, %v2210
      %v2231 = vadd.f32 %v2093, %v2213
      %v2232 = vadd.f32 %v2098, %v2218
      %v2233 = vadd.f32 %v2101, %v2221
      %v2234 = vld [vmem:[%s192 + $0x16] sm:$0xff]
      %v2235 = vld [vmem:[%s192 + $0x1e] sm:$0xff]
      %v2236 = vld [vmem:[%s192 + $0x26] sm:$0xff]
      %v2237 = vld [vmem:[%s192 + $0x2e] sm:$0xff]
      %v2238 = vld [vmem:[%s192 + $0x36] sm:$0xff]
      %v2239 = vld [vmem:[%s192 + $0x3e] sm:$0xff]
      %v2240 = vld [vmem:[%s192 + $0x46] sm:$0xff]
      %v2241 = vld [vmem:[%s192 + $0x4e] sm:$0xff]
      %v2242 = vld [vmem:[%s192 + $0x56] sm:$0xff]
      %v2243 = vld [vmem:[%s192 + $0x5e] sm:$0xff]
      %v2244 = vpack.c.bf16 %v2235, %v2234
      %v2245 = vpack.c.bf16 %v2237, %v2236
      %v2246 = vpack.c.bf16 %v2239, %v2238
      %v2247 = vpack.c.bf16 %v2241, %v2240
      %v2248 = vpack.c.bf16 %v2243, %v2242
      %s2249 = scalar_lea.vmem %s1, 240
      %v2250 = vld [vmem:[%s2249] sm:$0xf]
      %v2251 = vld [vmem:[%s2249 + $0x4] sm:$0xf]
      %v2252 = vld [vmem:[%s2249 + $0x8] sm:$0xf]
      %v2253 = vld [vmem:[%s2249 + $0xc] sm:$0xf]
      %v2258 = vunpack.c.l.b16 %v2250
      %v2259 = vunpack.c.l.b16 %v2251
      %v2260 = vunpack.c.l.b16 %v2252
      %v2261 = vunpack.c.l.b16 %v2253
      %v2262 = vpack.c.b16 %v2259, %v2258
      %v2263 = vpack.c.b16 %v2261, %v2260
      %v2267 = vsel %vm250, %v2244, 0
      %v2270 = vsel %vm250, %v2245, 0
      %v2273 = vsel %vm250, %v2246, 0
      %v2276 = vsel %vm250, %v2247, 0
      %v2279 = vsel %vm250, %v2248, 0
      %2281 = vmatprep.subr.bf16.mxu0 0
      %2282 = vmatpush1.bf16.msra.mxu0 %v2262
      %2283 = vmatprep.subr.bf16.mxu0 0
      %2284 = vmatpush1.bf16.msra.mxu0 %v2263
      %2285 = vmatprep.subr.bf16.mxu0 0
      %2286 = vmatpush1.bf16.msra.mxu0 0
      %2287 = vmatprep.subr.bf16.mxu0 0
      %2288 = vmatpush1.bf16.msra.mxu0 0
      %2289 = vmatprep.subr.bf16.mxu0 0
      %2290 = vmatpush1.bf16.msra.mxu0 0
      %2291 = vmatprep.subr.bf16.mxu0 0
      %2292 = vmatpush1.bf16.msra.mxu0 0
      %2293 = vmatprep.subr.bf16.mxu0 0
      %2294 = vmatpush1.bf16.msra.mxu0 0
      %2295 = vmatprep.subr.bf16.mxu0 0
      %2296 = vmatpush1.bf16.msra.mxu0 0
      %2297 = vmatprep.subr.bf16.mxu0 0
      %2298 = vmatpush1.bf16.msra.mxu0 0
      %2299 = vmatprep.subr.bf16.mxu0 0
      %2300 = vmatpush1.bf16.msra.mxu0 0
      %2301 = vmatprep.subr.bf16.mxu0 0
      %2302 = vmatpush1.bf16.msra.mxu0 0
      %2303 = vmatprep.subr.bf16.mxu0 0
      %2304 = vmatpush1.bf16.msra.mxu0 0
      %2305 = vmatprep.subr.bf16.mxu0 0
      %2306 = vmatpush1.bf16.msra.mxu0 0
      %2307 = vmatprep.subr.bf16.mxu0 0
      %2308 = vmatpush1.bf16.msra.mxu0 0
      %2309 = vmatprep.subr.bf16.mxu0 0
      %2310 = vmatpush1.bf16.msra.mxu0 0
      %2311 = vmatprep.subr.bf16.mxu0 0
      %2312 = vmatpush1.bf16.msra.mxu0 0
      %2313 = vmatprep.mubr.bf16.mxu0 0
      %2314 = vmatmul.mubr.bf16.gmra.mrb[0].mxu0 %v2267
      %v2315 = vpop.f32.mrb[0].mxu0
      %v2316 = vadd.f32 0.0, %v2315
      %v2317 = vpop.f32.mrb[0].mxu0
      %v2318 = vpop.f32.mrb[0].mxu0
      %v2319 = vadd.f32 0.0, %v2318
      %v2320 = vpop.f32.mrb[0].mxu0
      %2321 = vmatprep.mubr.bf16.mxu0 0
      %2322 = vmatmul.mubr.bf16.gmra.mrb[0].mxu0 %v2270
      %v2323 = vpop.f32.mrb[0].mxu0
      %v2324 = vadd.f32 0.0, %v2323
      %v2325 = vpop.f32.mrb[0].mxu0
      %v2326 = vpop.f32.mrb[0].mxu0
      %v2327 = vadd.f32 0.0, %v2326
      %v2328 = vpop.f32.mrb[0].mxu0
      %2329 = vmatprep.mubr.bf16.mxu0 0
      %2330 = vmatmul.mubr.bf16.gmra.mrb[0].mxu0 %v2273
      %v2331 = vpop.f32.mrb[0].mxu0
      %v2332 = vadd.f32 0.0, %v2331
      %v2333 = vpop.f32.mrb[0].mxu0
      %v2334 = vpop.f32.mrb[0].mxu0
      %v2335 = vadd.f32 0.0, %v2334
      %v2336 = vpop.f32.mrb[0].mxu0
      %2337 = vmatprep.mubr.bf16.mxu0 0
      %2338 = vmatmul.mubr.bf16.gmra.mrb[0].mxu0 %v2276
      %v2339 = vpop.f32.mrb[0].mxu0
      %v2340 = vadd.f32 0.0, %v2339
      %v2341 = vpop.f32.mrb[0].mxu0
      %v2342 = vpop.f32.mrb[0].mxu0
      %v2343 = vadd.f32 0.0, %v2342
      %v2344 = vpop.f32.mrb[0].mxu0
      %2345 = vmatprep.mubr.bf16.mxu0 0
      %2346 = vmatmul.mubr.bf16.gmra.mrb[0].mxu0 %v2279
      %v2347 = vpop.f32.mrb[0].mxu0
      %v2348 = vadd.f32 0.0, %v2347
      %v2349 = vpop.f32.mrb[0].mxu0
      %v2350 = vpop.f32.mrb[0].mxu0
      %v2351 = vadd.f32 0.0, %v2350
      %v2352 = vpop.f32.mrb[0].mxu0
      %2353 = vdwg.mxu0
      %v2354 = vadd.f32 %v2224, %v2316
      %v2355 = vadd.f32 %v2225, %v2319
      %v2356 = vadd.f32 %v2226, %v2324
      %v2357 = vadd.f32 %v2227, %v2327
      %v2358 = vadd.f32 %v2228, %v2332
      %v2359 = vadd.f32 %v2229, %v2335
      %v2360 = vadd.f32 %v2230, %v2340
      %v2361 = vadd.f32 %v2231, %v2343
      %v2362 = vadd.f32 %v2232, %v2348
      %v2363 = vadd.f32 %v2233, %v2351
      %v2364 = vld [vmem:[%s2] sm:$0x1]
      %v2366 = vlaneseq
      %v2367 = vshrl.u32 %v2366, 7
      %v2368 = vsub.s32 0, %v2367
      %v2369 = vrot.slane %v2364, %v2368
      %v2371 = vmul.f32 %v2354, %v2369
      %v2372 = vmul.f32 %v2355, %v2369
      %v2373 = vmul.f32 %v2356, %v2369
      %v2374 = vmul.f32 %v2357, %v2369
      %v2375 = vmul.f32 %v2358, %v2369
      %v2376 = vmul.f32 %v2359, %v2369
      %v2377 = vmul.f32 %v2360, %v2369
      %v2378 = vmul.f32 %v2361, %v2369
      %v2379 = vmul.f32 %v2362, %v2369
      %v2380 = vmul.f32 %v2363, %v2369
      %v2381 = vld [vmem:[%s3] sm:$0x1]
      %v2383 = vlaneseq
      %v2384 = vshrl.u32 %v2383, 7
      %v2385 = vsub.s32 0, %v2384
      %v2386 = vrot.slane %v2381, %v2385
      %v2388 = vadd.f32 %v2371, %v2386
      %v2389 = vadd.f32 %v2372, %v2386
      %v2390 = vadd.f32 %v2373, %v2386
      %v2391 = vadd.f32 %v2374, %v2386
      %v2392 = vadd.f32 %v2375, %v2386
      %v2393 = vadd.f32 %v2376, %v2386
      %v2394 = vadd.f32 %v2377, %v2386
      %v2395 = vadd.f32 %v2378, %v2386
      %v2396 = vadd.f32 %v2379, %v2386
      %v2397 = vadd.f32 %v2380, %v2386
      %v2398 = vmax.f32 %v2388, 0.0
      %v2399 = vmax.f32 %v2389, 0.0
      %v2400 = vmax.f32 %v2390, 0.0
      %v2401 = vmax.f32 %v2391, 0.0
      %v2402 = vmax.f32 %v2392, 0.0
      %v2403 = vmax.f32 %v2393, 0.0
      %v2404 = vmax.f32 %v2394, 0.0
      %v2405 = vmax.f32 %v2395, 0.0
      %v2406 = vmax.f32 %v2396, 0.0
      %v2407 = vmax.f32 %v2397, 0.0
      %s2408 = scalar_lea.vmem %s197, 240
      %2409 = vst.msk [vmem:[%s2408] sm:$0xff] %vm743, %v2398
      %2410 = vst.msk [vmem:[%s2408 + $0x8] sm:$0xff] %vm743, %v2399
      %2411 = vst.msk [vmem:[%s2408 + $0x10] sm:$0xff] %vm743, %v2400
      %2412 = vst.msk [vmem:[%s2408 + $0x18] sm:$0xff] %vm743, %v2401
      %2413 = vst.msk [vmem:[%s2408 + $0x20] sm:$0xff] %vm743, %v2402
      %2414 = vst.msk [vmem:[%s2408 + $0x28] sm:$0xff] %vm743, %v2403
      %2415 = vst.msk [vmem:[%s2408 + $0x30] sm:$0xff] %vm743, %v2404
      %2416 = vst.msk [vmem:[%s2408 + $0x38] sm:$0xff] %vm743, %v2405
      %2417 = vst.msk [vmem:[%s2408 + $0x40] sm:$0xff] %vm743, %v2406
      %2418 = vst.msk [vmem:[%s2408 + $0x48] sm:$0xff] %vm743, %v2407
      %p2419 = scmp.lt.s32.totalorder %s15, 1
      %s2420 = scalar_select %p2419, %s15, 1
      %s2421 = smul.addr %s2420, 40
      %s2422 = smul.addr %s2421, 8
      %s2423 = scalar_lea.vmem %s4, %s2422
      // Predicated region
      $region37: #{generator_forward.6} parent=35 // pred_check
        %p2424 = pneg %p122
      $region38: #{generator_forward.6} parent=35 // pred_check_branch
        %2426 = sbr.rel (%p2424) target = $region40
      $region39: #{generator_forward.6} parent=35 // pred_region
        _
      $region40: #{generator_forward.6} parent=35 // pred_fallthru
        _
    $region36: #{generator_forward.6} parent=5 // pred_fallthru
      _
    %p2427 = scmp.le.s32.totalorder 2, %s10
    // Predicated region
    $region41: #{generator_forward.6} parent=5 // pred_check
      %p2428 = pneg %p2427
    $region42: #{generator_forward.6} parent=5 // pred_check_branch
      %2430 = sbr.rel (%p2428) target = $region44
    $region43: #{generator_forward.6} parent=5 // pred_region
      %s2431 = ssub.s32 %s10, 2
      // Predicated region
      $region45: #{generator_forward.6} parent=43 // pred_check
        %p2432 = pneg %p128
      $region46: #{generator_forward.6} parent=43 // pred_check_branch
        %2434 = sbr.rel (%p2432) target = $region48
      $region47: #{generator_forward.6} parent=43 // pred_region
        %p2435 = scmp.lt.s32.totalorder %s16, 1
        %s2436 = scalar_select %p2435, %s16, 1
        %s2437 = smul.addr %s2436, 40
        %s2438 = smul.addr %s2437, 8
        %s2439 = scalar_lea.vmem %s4, %s2438
      $region48: #{generator_forward.6} parent=43 // pred_fallthru
        _
    $region44: #{generator_forward.6} parent=5 // pred_fallthru
      _
  $region6: #{generator_forward.6} parent=0 // loop_footer
    %s14 = sadd.s32 1, %s10
  $region7: #{generator_forward.6} parent=0 // loop_footer_branch
    %9 = sbr.rel target = $region3
  $region8: #{generator_forward.6} parent=0 // loop_exit
    _

// kernel: generator_forward.7
$region0: #{generator_forward.7}
  #allocation0 [shape = 'u32[]', space=smem, size = 0x4, offset = 0x4, fixed_abs, tag = 'smem constant byte address 0x4 - core index']
  #allocation1 [shape = 'u32[144,128]{1,0:T(1,128)}', space=vmem, size = 0x12000, scoped, tag = 'internal scratch']
  %s0 = inlined_call_operand.vmem [shape: f32[2,332,16], index: 0, kind: input, shape index: {}]
  %s1 = inlined_call_operand.vmem [shape: bf16[4,4,16,128], index: 1, kind: input, shape index: {}]
  %s2 = inlined_call_operand.vmem [shape: f32[1,128], index: 2, kind: input, shape index: {}]
  %s3 = inlined_call_operand.vmem [shape: f32[1,128], index: 3, kind: input, shape index: {}]
  %s4 = inlined_call_operand.vmem [shape: f32[2,4,288,128], index: 4, kind: output, shape index: {}]
  %s5 = sld [smem:[#allocation0]]
  $region49: #{generator_forward.7} parent=0
    _
  %s7 = ssub.s32 1, %s5
  %s8 = scalar_select 0, %s7, %s5
  loop: start=0, step=1, limit=4
  $region2: #{generator_forward.7} parent=0 // loop_pre_header
    _
  $region3: #{generator_forward.7} parent=0 // loop_header
    %s10 = sphi 0, %s14
    %p11 = scmp.ge.s32.totalorder %s10, 4
    %s20 = sphi 0, %s22
    %s23 = sphi 0, %s20
    %s24 = sphi 0, %s23
    %s40 = sphi 0, %s24
    %s44 = sphi 0, %s44
    %s46 = sphi 0, %s44
    %s47 = sphi 0, %s46
    %s61 = sphi 0, %s47
    %s65 = sphi 0, %s65
    %s67 = sphi 0, %s65
    %s68 = sphi 0, %s67
    %s82 = sphi 0, %s68
    %s86 = sphi 0, %s86
    %s88 = sphi 0, %s86
    %s89 = sphi 0, %s88
    %s103 = sphi 0, %s89
    %s109 = sphi 0, %s111
    %s112 = sphi 0, %s109
    %s113 = sphi 0, %s112
    %s129 = sphi 0, %s113
  $region4: #{generator_forward.7} parent=0 // loop_header_branch
    %13 = sbr.rel (%p11) target = $region8
  $region5: #{generator_forward.7} parent=0 // loop_body
    %s15 = ssub.s32 %s10, 1
    %s16 = ssub.s32 %s10, 2
    %s17 = sadd.s32 %s10, 1
    %s18 = ssub.s32 %s10, %s17
    %p19 = scmp.eq.s32.totalorder %s18, 0
    %s21 = sadd.s32 %s20, 1
    %s22 = scalar_select %p19, %s20, %s21
    %p25 = pneg %p19
    %p26 = scmp.eq.s32.totalorder %s10, 1
    %p27 = por %p25, %p26
    %p28 = scmp.ne.s32.totalorder %s20, %s23
    %p29 = scmp.eq.s32.totalorder %s10, 0
    %p30 = por %p28, %p29
    %p31 = scmp.ne.s32.totalorder %s20, %s23
    %p32 = scmp.eq.s32.totalorder %s15, 1
    %p33 = por %p31, %p32
    %p34 = scmp.ne.s32.totalorder %s23, %s24
    %p35 = scmp.eq.s32.totalorder %s15, 0
    %p36 = por %p34, %p35
    %p37 = scmp.ne.s32.totalorder %s23, %s24
    %p38 = scmp.eq.s32.totalorder %s16, 1
    %p39 = por %p37, %p38
    %p41 = scmp.ne.s32.totalorder %s24, %s40
    %p42 = scmp.eq.s32.totalorder %s16, 0
    %p43 = por %p41, %p42
    %s45 = sadd.s32 %s44, 1
    %p48 = scmp.eq.s32.totalorder %s10, 1
    %p49 = scmp.ne.s32.totalorder %s44, %s46
    %p50 = scmp.eq.s32.totalorder %s10, 0
    %p51 = por %p49, %p50
    %p52 = scmp.ne.s32.totalorder %s44, %s46
    %p53 = scmp.eq.s32.totalorder %s15, 1
    %p54 = por %p52, %p53
    %p55 = scmp.ne.s32.totalorder %s46, %s47
    %p56 = scmp.eq.s32.totalorder %s15, 0
    %p57 = por %p55, %p56
    %p58 = scmp.ne.s32.totalorder %s46, %s47
    %p59 = scmp.eq.s32.totalorder %s16, 1
    %p60 = por %p58, %p59
    %p62 = scmp.ne.s32.totalorder %s47, %s61
    %p63 = scmp.eq.s32.totalorder %s16, 0
    %p64 = por %p62, %p63
    %s66 = sadd.s32 %s65, 1
    %p69 = scmp.eq.s32.totalorder %s10, 1
    %p70 = scmp.ne.s32.totalorder %s65, %s67
    %p71 = scmp.eq.s32.totalorder %s10, 0
    %p72 = por %p70, %p71
    %p73 = scmp.ne.s32.totalorder %s65, %s67
    %p74 = scmp.eq.s32.totalorder %s15, 1
    %p75 = por %p73, %p74
    %p76 = scmp.ne.s32.totalorder %s67, %s68
    %p77 = scmp.eq.s32.totalorder %s15, 0
    %p78 = por %p76, %p77
    %p79 = scmp.ne.s32.totalorder %s67, %s68
    %p80 = scmp.eq.s32.totalorder %s16, 1
    %p81 = por %p79, %p80
    %p83 = scmp.ne.s32.totalorder %s68, %s82
    %p84 = scmp.eq.s32.totalorder %s16, 0
    %p85 = por %p83, %p84
    %s87 = sadd.s32 %s86, 1
    %p90 = scmp.eq.s32.totalorder %s10, 1
    %p91 = scmp.ne.s32.totalorder %s86, %s88
    %p92 = scmp.eq.s32.totalorder %s10, 0
    %p93 = por %p91, %p92
    %p94 = scmp.ne.s32.totalorder %s86, %s88
    %p95 = scmp.eq.s32.totalorder %s15, 1
    %p96 = por %p94, %p95
    %p97 = scmp.ne.s32.totalorder %s88, %s89
    %p98 = scmp.eq.s32.totalorder %s15, 0
    %p99 = por %p97, %p98
    %p100 = scmp.ne.s32.totalorder %s88, %s89
    %p101 = scmp.eq.s32.totalorder %s16, 1
    %p102 = por %p100, %p101
    %p104 = scmp.ne.s32.totalorder %s89, %s103
    %p105 = scmp.eq.s32.totalorder %s16, 0
    %p106 = por %p104, %p105
    %s107 = ssub.s32 %s10, %s17
    %p108 = scmp.eq.s32.totalorder %s107, 0
    %s110 = sadd.s32 %s109, 1
    %s111 = scalar_select %p108, %s109, %s110
    %p114 = pneg %p108
    %p115 = scmp.eq.s32.totalorder %s10, 1
    %p116 = por %p114, %p115
    %p117 = scmp.ne.s32.totalorder %s109, %s112
    %p118 = scmp.eq.s32.totalorder %s10, 0
    %p119 = por %p117, %p118
    %p120 = scmp.ne.s32.totalorder %s109, %s112
    %p121 = scmp.eq.s32.totalorder %s15, 1
    %p122 = por %p120, %p121
    %p123 = scmp.ne.s32.totalorder %s112, %s113
    %p124 = scmp.eq.s32.totalorder %s15, 0
    %p125 = por %p123, %p124
    %p126 = scmp.ne.s32.totalorder %s112, %s113
    %p127 = scmp.eq.s32.totalorder %s16, 1
    %p128 = por %p126, %p127
    %p130 = scmp.ne.s32.totalorder %s113, %s129
    %p131 = scmp.eq.s32.totalorder %s16, 0
    %p132 = por %p130, %p131
    %p133 = scmp.le.s32.totalorder 1, %s10
    %p134 = scmp.lt.s32.totalorder %s10, 3
    %p135 = pnand %p133, %p134
    %p136 = pneg %p135
    // Predicated region
    $region9: #{generator_forward.7} parent=5 // pred_check
      _
    $region10: #{generator_forward.7} parent=5 // pred_check_branch
      %138 = sbr.rel (%p135) target = $region12
    $region11: #{generator_forward.7} parent=5 // pred_region
      %s139 = ssub.s32 %s10, 1
      // Predicated region
      $region13: #{generator_forward.7} parent=11 // pred_check
        %p140 = pneg %p57
      $region14: #{generator_forward.7} parent=11 // pred_check_branch
        %142 = sbr.rel (%p140) target = $region16
      $region15: #{generator_forward.7} parent=11 // pred_region
        _
      $region16: #{generator_forward.7} parent=11 // pred_fallthru
        _
      // Predicated region
      $region17: #{generator_forward.7} parent=11 // pred_check
        %p143 = pneg %p78
      $region18: #{generator_forward.7} parent=11 // pred_check_branch
        %145 = sbr.rel (%p143) target = $region20
      $region19: #{generator_forward.7} parent=11 // pred_region
        _
      $region20: #{generator_forward.7} parent=11 // pred_fallthru
        _
      // Predicated region
      $region21: #{generator_forward.7} parent=11 // pred_check
        %p146 = pneg %p99
      $region22: #{generator_forward.7} parent=11 // pred_check_branch
        %148 = sbr.rel (%p146) target = $region24
      $region23: #{generator_forward.7} parent=11 // pred_region
        _
      $region24: #{generator_forward.7} parent=11 // pred_fallthru
        _
    $region12: #{generator_forward.7} parent=5 // pred_fallthru
      _
    %p149 = scmp.lt.s32.totalorder %s10, 2
    // Predicated region
    $region25: #{generator_forward.7} parent=5 // pred_check
      %p150 = pneg %p149
    $region26: #{generator_forward.7} parent=5 // pred_check_branch
      %152 = sbr.rel (%p150) target = $region28
    $region27: #{generator_forward.7} parent=5 // pred_region
      // Predicated region
      $region29: #{generator_forward.7} parent=27 // pred_check
        %p153 = pneg %p30
      $region30: #{generator_forward.7} parent=27 // pred_check_branch
        %155 = sbr.rel (%p153) target = $region32
      $region31: #{generator_forward.7} parent=27 // pred_region
        %p156 = scmp.lt.s32.totalorder %s10, 1
        %s157 = scalar_select %p156, %s10, 1
        %s158 = smul.addr %s157, 42
        %s159 = smul.addr %s158, 8
        %s160 = scalar_lea.vmem %s0, %s159
      $region32: #{generator_forward.7} parent=27 // pred_fallthru
        _
    $region28: #{generator_forward.7} parent=5 // pred_fallthru
      _
    %p161 = scmp.le.s32.totalorder 1, %s10
    %p162 = scmp.lt.s32.totalorder %s10, 3
    %p163 = pnand %p161, %p162
    %p164 = pneg %p163
    // Predicated region
    $region33: #{generator_forward.7} parent=5 // pred_check
      _
    $region34: #{generator_forward.7} parent=5 // pred_check_branch
      %166 = sbr.rel (%p163) target = $region36
    $region35: #{generator_forward.7} parent=5 // pred_region
      %s167 = ssub.s32 %s10, 1
      %p168 = scmp.lt.s32.totalorder %s15, 1
      %s169 = scalar_select %p168, %s15, 1
      %s170 = smul.addr %s169, 42
      %s171 = smul.addr %s170, 8
      %s172 = scalar_lea.vmem %s0, %s171
      %p173 = pneg %p36
      %p174 = pneg %p33
      %p175 = pneg %p57
      %p176 = pneg %p54
      %p177 = pneg %p78
      %p178 = pneg %p75
      %p179 = pneg %p99
      %p180 = pneg %p96
      %p181 = pneg %p125
      %p182 = pneg %p122
      %p183 = scmp.lt.s32.totalorder %s15, 1
      %s184 = scalar_select %p183, %s15, 1
      %s185 = smul.addr %s184, 144
      %s186 = smul.addr %s185, 8
      %s187 = scalar_lea.vmem %s4, %s186
      %p188 = scmp.lt.s32.totalorder %s15, 1
      %s189 = scalar_select %p188, %s15, 1
      %s190 = smul.addr %s189, 42
      %s191 = smul.addr %s190, 8
      %s192 = scalar_lea.vmem %s0, %s191
      %p193 = scmp.lt.s32.totalorder %s15, 1
      %s194 = scalar_select %p193, %s15, 1
      %s195 = smul.addr %s194, 144
      %s196 = smul.addr %s195, 8
      %s197 = scalar_lea.vmem %s4, %s196
      %v199 = vld [vmem:[%s192] sm:$0xff]
      %v200 = vld [vmem:[%s192 + $0x8] sm:$0xff]
      %v201 = vld [vmem:[%s192 + $0x10] sm:$0xff]
      %v202 = vld [vmem:[%s192 + $0x18] sm:$0xff]
      %v203 = vld [vmem:[%s192 + $0x20] sm:$0xff]
      %v204 = vld [vmem:[%s192 + $0x28] sm:$0xff]
      %v205 = vld [vmem:[%s192 + $0x30] sm:$0xff]
      %v206 = vld [vmem:[%s192 + $0x38] sm:$0xff]
      %v207 = vld [vmem:[%s192 + $0x40] sm:$0xff]
      %v208 = vld [vmem:[%s192 + $0x48] sm:$0xff]
      %v209 = vld [vmem:[%s192 + $0x50] sm:$0xff]
      %v210 = vld [vmem:[%s192 + $0x58] sm:$0xff]
      %v211 = vld [vmem:[%s192 + $0x60] sm:$0xff]
      %v212 = vld [vmem:[%s192 + $0x68] sm:$0xff]
      %v213 = vld [vmem:[%s192 + $0x70] sm:$0xff]
      %v214 = vld [vmem:[%s192 + $0x78] sm:$0xff]
      %v215 = vld [vmem:[%s192 + $0x80] sm:$0xff]
      %v216 = vld [vmem:[%s192 + $0x88] sm:$0xff]
      %v217 = vld [vmem:[%s192 + $0x90] sm:$0xff]
      %v218 = vld [vmem:[%s192 + $0x98] sm:$0xff]
      %v219 = vld [vmem:[%s192 + $0xa0] sm:$0xff]
      %v220 = vld [vmem:[%s192 + $0xa8] sm:$0xff]
      %v221 = vld [vmem:[%s192 + $0xb0] sm:$0xff]
      %v222 = vld [vmem:[%s192 + $0xb8] sm:$0xff]
      %v223 = vld [vmem:[%s192 + $0xc0] sm:$0xff]
      %v224 = vld [vmem:[%s192 + $0xc8] sm:$0xff]
      %v225 = vld [vmem:[%s192 + $0xd0] sm:$0xff]
      %v226 = vld [vmem:[%s192 + $0xd8] sm:$0xff]
      %v227 = vld [vmem:[%s192 + $0xe0] sm:$0xff]
      %v228 = vld [vmem:[%s192 + $0xe8] sm:$0xff]
      %v229 = vld [vmem:[%s192 + $0xf0] sm:$0xff]
      %v230 = vld [vmem:[%s192 + $0xf8] sm:$0xff]
      %v231 = vld [vmem:[%s192 + $0x100] sm:$0xff]
      %v232 = vld [vmem:[%s192 + $0x108] sm:$0xff]
      %v233 = vld [vmem:[%s192 + $0x110] sm:$0xff]
      %v234 = vld [vmem:[%s192 + $0x118] sm:$0xff]
      %v235 = vpack.c.bf16 %v200, %v199
      %v236 = vpack.c.bf16 %v202, %v201
      %v237 = vpack.c.bf16 %v204, %v203
      %v238 = vpack.c.bf16 %v206, %v205
      %v239 = vpack.c.bf16 %v208, %v207
      %v240 = vpack.c.bf16 %v210, %v209
      %v241 = vpack.c.bf16 %v212, %v211
      %v242 = vpack.c.bf16 %v214, %v213
      %v243 = vpack.c.bf16 %v216, %v215
      %v244 = vpack.c.bf16 %v218, %v217
      %v245 = vpack.c.bf16 %v220, %v219
      %v246 = vpack.c.bf16 %v222, %v221
      %v247 = vpack.c.bf16 %v224, %v223
      %v248 = vpack.c.bf16 %v226, %v225
      %v249 = vpack.c.bf16 %v228, %v227
      %v250 = vpack.c.bf16 %v230, %v229
      %v251 = vpack.c.bf16 %v232, %v231
      %v252 = vpack.c.bf16 %v234, %v233
      %v253 = vld [vmem:[%s1] sm:$0xf]
      %v254 = vld [vmem:[%s1 + $0x4] sm:$0xf]
      %v255 = vld [vmem:[%s192 + $0x1] sm:$0xff]
      %v256 = vld [vmem:[%s192 + $0x9] sm:$0xff]
      %v257 = vld [vmem:[%s192 + $0x11] sm:$0xff]
      %v258 = vld [vmem:[%s192 + $0x19] sm:$0xff]
      %v259 = vld [vmem:[%s192 + $0x21] sm:$0xff]
      %v260 = vld [vmem:[%s192 + $0x29] sm:$0xff]
      %v261 = vld [vmem:[%s192 + $0x31] sm:$0xff]
      %v262 = vld [vmem:[%s192 + $0x39] sm:$0xff]
      %v263 = vld [vmem:[%s192 + $0x41] sm:$0xff]
      %v264 = vld [vmem:[%s192 + $0x49] sm:$0xff]
      %v265 = vld [vmem:[%s192 + $0x51] sm:$0xff]
      %v266 = vld [vmem:[%s192 + $0x59] sm:$0xff]
      %v267 = vld [vmem:[%s192 + $0x61] sm:$0xff]
      %v268 = vld [vmem:[%s192 + $0x69] sm:$0xff]
      %v269 = vld [vmem:[%s192 + $0x71] sm:$0xff]
      %v270 = vld [vmem:[%s192 + $0x79] sm:$0xff]
      %v271 = vld [vmem:[%s192 + $0x81] sm:$0xff]
      %v272 = vld [vmem:[%s192 + $0x89] sm:$0xff]
      %v273 = vld [vmem:[%s192 + $0x91] sm:$0xff]
      %v274 = vld [vmem:[%s192 + $0x99] sm:$0xff]
      %v275 = vld [vmem:[%s192 + $0xa1] sm:$0xff]
      %v276 = vld [vmem:[%s192 + $0xa9] sm:$0xff]
      %v277 = vld [vmem:[%s192 + $0xb1] sm:$0xff]
      %v278 = vld [vmem:[%s192 + $0xb9] sm:$0xff]
      %v279 = vld [vmem:[%s192 + $0xc1] sm:$0xff]
      %v280 = vld [vmem:[%s192 + $0xc9] sm:$0xff]
      %v281 = vld [vmem:[%s192 + $0xd1] sm:$0xff]
      %v282 = vld [vmem:[%s192 + $0xd9] sm:$0xff]
      %v283 = vld [vmem:[%s192 + $0xe1] sm:$0xff]
      %v284 = vld [vmem:[%s192 + $0xe9] sm:$0xff]
      %v285 = vld [vmem:[%s192 + $0xf1] sm:$0xff]
      %v286 = vld [vmem:[%s192 + $0xf9] sm:$0xff]
      %v287 = vld [vmem:[%s192 + $0x101] sm:$0xff]
      %v288 = vld [vmem:[%s192 + $0x109] sm:$0xff]
      %v289 = vld [vmem:[%s192 + $0x111] sm:$0xff]
      %v290 = vld [vmem:[%s192 + $0x119] sm:$0xff]
      %v291 = vpack.c.bf16 %v256, %v255
      %v292 = vpack.c.bf16 %v258, %v257
      %v293 = vpack.c.bf16 %v260, %v259
      %v294 = vpack.c.bf16 %v262, %v261
      %v295 = vpack.c.bf16 %v264, %v263
      %v296 = vpack.c.bf16 %v266, %v265
      %v297 = vpack.c.bf16 %v268, %v267
      %v298 = vpack.c.bf16 %v270, %v269
      %v299 = vpack.c.bf16 %v272, %v271
      %v300 = vpack.c.bf16 %v274, %v273
      %v301 = vpack.c.bf16 %v276, %v275
      %v302 = vpack.c.bf16 %v278, %v277
      %v303 = vpack.c.bf16 %v280, %v279
      %v304 = vpack.c.bf16 %v282, %v281
      %v305 = vpack.c.bf16 %v284, %v283
      %v306 = vpack.c.bf16 %v286, %v285
      %v307 = vpack.c.bf16 %v288, %v287
      %v308 = vpack.c.bf16 %v290, %v289
      %s309 = scalar_lea.vmem %s1, 8
      %v310 = vld [vmem:[%s309] sm:$0xf]
      %v311 = vld [vmem:[%s309 + $0x4] sm:$0xf]
      %v314 = vunpack.c.l.b16 %v310
      %v315 = vunpack.c.l.b16 %v311
      %v316 = vpack.c.b16 %v315, %v314
      %vm318 = vcmask 130048
      %v320 = vsel %vm318, %v291, 0
      %v323 = vsel %vm318, %v292, 0
      %v326 = vsel %vm318, %v293, 0
      %v329 = vsel %vm318, %v294, 0
      %v332 = vsel %vm318, %v295, 0
      %v335 = vsel %vm318, %v296, 0
      %v338 = vsel %vm318, %v297, 0
      %v341 = vsel %vm318, %v298, 0
      %v344 = vsel %vm318, %v299, 0
      %v347 = vsel %vm318, %v300, 0
      %v350 = vsel %vm318, %v301, 0
      %v353 = vsel %vm318, %v302, 0
      %v356 = vsel %vm318, %v303, 0
      %v359 = vsel %vm318, %v304, 0
      %v362 = vsel %vm318, %v305, 0
      %v365 = vsel %vm318, %v306, 0
      %v368 = vsel %vm318, %v307, 0
      %v371 = vsel %vm318, %v308, 0
      %373 = vmatprep.subr.bf16.mxu0 0
      %374 = vmatpush1.bf16.msra.mxu0 %v316
      %375 = vmatprep.subr.bf16.mxu0 0
      %376 = vmatpush1.bf16.msra.mxu0 0
      %377 = vmatprep.subr.bf16.mxu0 0
      %378 = vmatpush1.bf16.msra.mxu0 0
      %379 = vmatprep.subr.bf16.mxu0 0
      %380 = vmatpush1.bf16.msra.mxu0 0
      %381 = vmatprep.subr.bf16.mxu0 0
      %382 = vmatpush1.bf16.msra.mxu0 0
      %383 = vmatprep.subr.bf16.mxu0 0
      %384 = vmatpush1.bf16.msra.mxu0 0
      %385 = vmatprep.subr.bf16.mxu0 0
      %386 = vmatpush1.bf16.msra.mxu0 0
      %387 = vmatprep.subr.bf16.mxu0 0
      %388 = vmatpush1.bf16.msra.mxu0 0
      %389 = vmatprep.subr.bf16.mxu0 0
      %390 = vmatpush1.bf16.msra.mxu0 0
      %391 = vmatprep.subr.bf16.mxu0 0
      %392 = vmatpush1.bf16.msra.mxu0 0
      %393 = vmatprep.subr.bf16.mxu0 0
      %394 = vmatpush1.bf16.msra.mxu0 0
      %395 = vmatprep.subr.bf16.mxu0 0
      %396 = vmatpush1.bf16.msra.mxu0 0
      %397 = vmatprep.subr.bf16.mxu0 0
      %398 = vmatpush1.bf16.msra.mxu0 0
      %399 = vmatprep.subr.bf16.mxu0 0
      %400 = vmatpush1.bf16.msra.mxu0 0
      %401 = vmatprep.subr.bf16.mxu0 0
      %402 = vmatpush1.bf16.msra.mxu0 0
      %403 = vmatprep.subr.bf16.mxu0 0
      %404 = vmatpush1.bf16.msra.mxu0 0
      %405 = vmatprep.mubr.bf16.mxu0 0
      %406 = vmatmul.mubr.bf16.gmra.mrb[0].mxu0 %v320
      %v407 = vpop.f32.mrb[0].mxu0
      %v408 = vadd.f32 0.0, %v407
      %v409 = vpop.f32.mrb[0].mxu0
      %v410 = vpop.f32.mrb[0].mxu0
      %v411 = vadd.f32 0.0, %v410
      %v412 = vpop.f32.mrb[0].mxu0
      %413 = vmatprep.mubr.bf16.mxu0 0
      %414 = vmatmul.mubr.bf16.gmra.mrb[0].mxu0 %v323
      %v415 = vpop.f32.mrb[0].mxu0
      %v416 = vadd.f32 0.0, %v415
      %v417 = vpop.f32.mrb[0].mxu0
      %v418 = vpop.f32.mrb[0].mxu0
      %v419 = vadd.f32 0.0, %v418
      %v420 = vpop.f32.mrb[0].mxu0
      %421 = vmatprep.mubr.bf16.mxu0 0
      %422 = vmatmul.mubr.bf16.gmra.mrb[0].mxu0 %v326
      %v423 = vpop.f32.mrb[0].mxu0
      %v424 = vadd.f32 0.0, %v423
      %v425 = vpop.f32.mrb[0].mxu0
      %v426 = vpop.f32.mrb[0].mxu0
      %v427 = vadd.f32 0.0, %v426
      %v428 = vpop.f32.mrb[0].mxu0
      %429 = vmatprep.mubr.bf16.mxu0 0
      %430 = vmatmul.mubr.bf16.gmra.mrb[0].mxu0 %v329
      %v431 = vpop.f32.mrb[0].mxu0
      %v432 = vadd.f32 0.0, %v431
      %v433 = vpop.f32.mrb[0].mxu0
      %v434 = vpop.f32.mrb[0].mxu0
      %v435 = vadd.f32 0.0, %v434
      %v436 = vpop.f32.mrb[0].mxu0
      %437 = vmatprep.mubr.bf16.mxu0 0
      %438 = vmatmul.mubr.bf16.gmra.mrb[0].mxu0 %v332
      %v439 = vpop.f32.mrb[0].mxu0
      %v440 = vadd.f32 0.0, %v439
      %v441 = vpop.f32.mrb[0].mxu0
      %v442 = vpop.f32.mrb[0].mxu0
      %v443 = vadd.f32 0.0, %v442
      %v444 = vpop.f32.mrb[0].mxu0
      %445 = vmatprep.mubr.bf16.mxu0 0
      %446 = vmatmul.mubr.bf16.gmra.mrb[0].mxu0 %v335
      %v447 = vpop.f32.mrb[0].mxu0
      %v448 = vadd.f32 0.0, %v447
      %v449 = vpop.f32.mrb[0].mxu0
      %v450 = vpop.f32.mrb[0].mxu0
      %v451 = vadd.f32 0.0, %v450
      %v452 = vpop.f32.mrb[0].mxu0
      %453 = vmatprep.mubr.bf16.mxu0 0
      %454 = vmatmul.mubr.bf16.gmra.mrb[0].mxu0 %v338
      %v455 = vpop.f32.mrb[0].mxu0
      %v456 = vadd.f32 0.0, %v455
      %v457 = vpop.f32.mrb[0].mxu0
      %v458 = vpop.f32.mrb[0].mxu0
      %v459 = vadd.f32 0.0, %v458
      %v460 = vpop.f32.mrb[0].mxu0
      %461 = vmatprep.mubr.bf16.mxu0 0
      %462 = vmatmul.mubr.bf16.gmra.mrb[0].mxu0 %v341
      %v463 = vpop.f32.mrb[0].mxu0
      %v464 = vadd.f32 0.0, %v463
      %v465 = vpop.f32.mrb[0].mxu0
      %v466 = vpop.f32.mrb[0].mxu0
      %v467 = vadd.f32 0.0, %v466
      %v468 = vpop.f32.mrb[0].mxu0
      %469 = vmatprep.mubr.bf16.mxu0 0
      %470 = vmatmul.mubr.bf16.gmra.mrb[0].mxu0 %v344
      %v471 = vpop.f32.mrb[0].mxu0
      %v472 = vadd.f32 0.0, %v471
      %v473 = vpop.f32.mrb[0].mxu0
      %v474 = vpop.f32.mrb[0].mxu0
      %v475 = vadd.f32 0.0, %v474
      %v476 = vpop.f32.mrb[0].mxu0
      %477 = vmatprep.mubr.bf16.mxu0 0
      %478 = vmatmul.mubr.bf16.gmra.mrb[0].mxu0 %v347
      %v479 = vpop.f32.mrb[0].mxu0
      %v480 = vadd.f32 0.0, %v479
      %v481 = vpop.f32.mrb[0].mxu0
      %v482 = vpop.f32.mrb[0].mxu0
      %v483 = vadd.f32 0.0, %v482
      %v484 = vpop.f32.mrb[0].mxu0
      %485 = vmatprep.mubr.bf16.mxu0 0
      %486 = vmatmul.mubr.bf16.gmra.mrb[0].mxu0 %v350
      %v487 = vpop.f32.mrb[0].mxu0
      %v488 = vadd.f32 0.0, %v487
      %v489 = vpop.f32.mrb[0].mxu0
      %v490 = vpop.f32.mrb[0].mxu0
      %v491 = vadd.f32 0.0, %v490
      %v492 = vpop.f32.mrb[0].mxu0
      %493 = vmatprep.mubr.bf16.mxu0 0
      %494 = vmatmul.mubr.bf16.gmra.mrb[0].mxu0 %v353
      %v495 = vpop.f32.mrb[0].mxu0
      %v496 = vadd.f32 0.0, %v495
      %v497 = vpop.f32.mrb[0].mxu0
      %v498 = vpop.f32.mrb[0].mxu0
      %v499 = vadd.f32 0.0, %v498
      %v500 = vpop.f32.mrb[0].mxu0
      %501 = vmatprep.mubr.bf16.mxu0 0
      %502 = vmatmul.mubr.bf16.gmra.mrb[0].mxu0 %v356
      %v503 = vpop.f32.mrb[0].mxu0
      %v504 = vadd.f32 0.0, %v503
      %v505 = vpop.f32.mrb[0].mxu0
      %v506 = vpop.f32.mrb[0].mxu0
      %v507 = vadd.f32 0.0, %v506
      %v508 = vpop.f32.mrb[0].mxu0
      %509 = vmatprep.mubr.bf16.mxu0 0
      %510 = vmatmul.mubr.bf16.gmra.mrb[0].mxu0 %v359
      %v511 = vpop.f32.mrb[0].mxu0
      %v512 = vadd.f32 0.0, %v511
      %v513 = vpop.f32.mrb[0].mxu0
      %v514 = vpop.f32.mrb[0].mxu0
      %v515 = vadd.f32 0.0, %v514
      %v516 = vpop.f32.mrb[0].mxu0
      %517 = vmatprep.mubr.bf16.mxu0 0
      %518 = vmatmul.mubr.bf16.gmra.mrb[0].mxu0 %v362
      %v519 = vpop.f32.mrb[0].mxu0
      %v520 = vadd.f32 0.0, %v519
      %v521 = vpop.f32.mrb[0].mxu0
      %v522 = vpop.f32.mrb[0].mxu0
      %v523 = vadd.f32 0.0, %v522
      %v524 = vpop.f32.mrb[0].mxu0
      %525 = vmatprep.mubr.bf16.mxu0 0
      %526 = vmatmul.mubr.bf16.gmra.mrb[0].mxu0 %v365
      %v527 = vpop.f32.mrb[0].mxu0
      %v528 = vadd.f32 0.0, %v527
      %v529 = vpop.f32.mrb[0].mxu0
      %v530 = vpop.f32.mrb[0].mxu0
      %v531 = vadd.f32 0.0, %v530
      %v532 = vpop.f32.mrb[0].mxu0
      %533 = vmatprep.mubr.bf16.mxu0 0
      %534 = vmatmul.mubr.bf16.gmra.mrb[0].mxu0 %v368
      %v535 = vpop.f32.mrb[0].mxu0
      %v536 = vadd.f32 0.0, %v535
      %v537 = vpop.f32.mrb[0].mxu0
      %v538 = vpop.f32.mrb[0].mxu0
      %v539 = vadd.f32 0.0, %v538
      %v540 = vpop.f32.mrb[0].mxu0
      %541 = vmatprep.mubr.bf16.mxu0 0
      %542 = vmatmul.mubr.bf16.gmra.mrb[0].mxu0 %v371
      %v543 = vpop.f32.mrb[0].mxu0
      %v544 = vadd.f32 0.0, %v543
      %v545 = vpop.f32.mrb[0].mxu0
      %v546 = vpop.f32.mrb[0].mxu0
      %v547 = vadd.f32 0.0, %v546
      %v548 = vpop.f32.mrb[0].mxu0
      %549 = vdwg.mxu0
      %v552 = vunpack.c.l.b16 %v253
      %v553 = vunpack.c.l.b16 %v254
      %v554 = vpack.c.b16 %v553, %v552
      %v557 = vsel %vm318, %v235, 0
      %v560 = vsel %vm318, %v236, 0
      %v563 = vsel %vm318, %v237, 0
      %v566 = vsel %vm318, %v238, 0
      %v569 = vsel %vm318, %v239, 0
      %v572 = vsel %vm318, %v240, 0
      %v575 = vsel %vm318, %v241, 0
      %v578 = vsel %vm318, %v242, 0
      %v581 = vsel %vm318, %v243, 0
      %v584 = vsel %vm318, %v244, 0
      %v587 = vsel %vm318, %v245, 0
      %v590 = vsel %vm318, %v246, 0
      %v593 = vsel %vm318, %v247, 0
      %v596 = vsel %vm318, %v248, 0
      %v599 = vsel %vm318, %v249, 0
      %v602 = vsel %vm318, %v250, 0
      %v605 = vsel %vm318, %v251, 0
      %v608 = vsel %vm318, %v252, 0
      %610 = vmatprep.subr.bf16.mxu0 0
      %611 = vmatpush1.bf16.msra.mxu0 %v554
      %612 = vmatprep.subr.bf16.mxu0 0
      %613 = vmatpush1.bf16.msra.mxu0 0
      %614 = vmatprep.subr.bf16.mxu0 0
      %615 = vmatpush1.bf16.msra.mxu0 0
      %616 = vmatprep.subr.bf16.mxu0 0
      %617 = vmatpush1.bf16.msra.mxu0 0
      %618 = vmatprep.subr.bf16.mxu0 0
      %619 = vmatpush1.bf16.msra.mxu0 0
      %620 = vmatprep.subr.bf16.mxu0 0
      %621 = vmatpush1.bf16.msra.mxu0 0
      %622 = vmatprep.subr.bf16.mxu0 0
      %623 = vmatpush1.bf16.msra.mxu0 0
      %624 = vmatprep.subr.bf16.mxu0 0
      %625 = vmatpush1.bf16.msra.mxu0 0
      %626 = vmatprep.subr.bf16.mxu0 0
      %627 = vmatpush1.bf16.msra.mxu0 0
      %628 = vmatprep.subr.bf16.mxu0 0
      %629 = vmatpush1.bf16.msra.mxu0 0
      %630 = vmatprep.subr.bf16.mxu0 0
      %631 = vmatpush1.bf16.msra.mxu0 0
      %632 = vmatprep.subr.bf16.mxu0 0
      %633 = vmatpush1.bf16.msra.mxu0 0
      %634 = vmatprep.subr.bf16.mxu0 0
      %635 = vmatpush1.bf16.msra.mxu0 0
      %636 = vmatprep.subr.bf16.mxu0 0
      %637 = vmatpush1.bf16.msra.mxu0 0
      %638 = vmatprep.subr.bf16.mxu0 0
      %639 = vmatpush1.bf16.msra.mxu0 0
      %640 = vmatprep.subr.bf16.mxu0 0
      %641 = vmatpush1.bf16.msra.mxu0 0
      %642 = vmatprep.mubr.bf16.mxu0 0
      %643 = vmatmul.mubr.bf16.gmra.mrb[0].mxu0 %v557
      %v644 = vpop.f32.mrb[0].mxu0
      %v645 = vadd.f32 %v408, %v644
      %v646 = vpop.f32.mrb[0].mxu0
      %v647 = vpop.f32.mrb[0].mxu0
      %v648 = vadd.f32 %v411, %v647
      %v649 = vpop.f32.mrb[0].mxu0
      %650 = vmatprep.mubr.bf16.mxu0 0
      %651 = vmatmul.mubr.bf16.gmra.mrb[0].mxu0 %v560
      %v652 = vpop.f32.mrb[0].mxu0
      %v653 = vadd.f32 %v416, %v652
      %v654 = vpop.f32.mrb[0].mxu0
      %v655 = vpop.f32.mrb[0].mxu0
      %v656 = vadd.f32 %v419, %v655
      %v657 = vpop.f32.mrb[0].mxu0
      %658 = vmatprep.mubr.bf16.mxu0 0
      %659 = vmatmul.mubr.bf16.gmra.mrb[0].mxu0 %v563
      %v660 = vpop.f32.mrb[0].mxu0
      %v661 = vadd.f32 %v424, %v660
      %v662 = vpop.f32.mrb[0].mxu0
      %v663 = vpop.f32.mrb[0].mxu0
      %v664 = vadd.f32 %v427, %v663
      %v665 = vpop.f32.mrb[0].mxu0
      %666 = vmatprep.mubr.bf16.mxu0 0
      %667 = vmatmul.mubr.bf16.gmra.mrb[0].mxu0 %v566
      %v668 = vpop.f32.mrb[0].mxu0
      %v669 = vadd.f32 %v432, %v668
      %v670 = vpop.f32.mrb[0].mxu0
      %v671 = vpop.f32.mrb[0].mxu0
      %v672 = vadd.f32 %v435, %v671
      %v673 = vpop.f32.mrb[0].mxu0
      %674 = vmatprep.mubr.bf16.mxu0 0
      %675 = vmatmul.mubr.bf16.gmra.mrb[0].mxu0 %v569
      %v676 = vpop.f32.mrb[0].mxu0
      %v677 = vadd.f32 %v440, %v676
      %v678 = vpop.f32.mrb[0].mxu0
      %v679 = vpop.f32.mrb[0].mxu0
      %v680 = vadd.f32 %v443, %v679
      %v681 = vpop.f32.mrb[0].mxu0
      %682 = vmatprep.mubr.bf16.mxu0 0
      %683 = vmatmul.mubr.bf16.gmra.mrb[0].mxu0 %v572
      %v684 = vpop.f32.mrb[0].mxu0
      %v685 = vadd.f32 %v448, %v684
      %v686 = vpop.f32.mrb[0].mxu0
      %v687 = vpop.f32.mrb[0].mxu0
      %v688 = vadd.f32 %v451, %v687
      %v689 = vpop.f32.mrb[0].mxu0
      %690 = vmatprep.mubr.bf16.mxu0 0
      %691 = vmatmul.mubr.bf16.gmra.mrb[0].mxu0 %v575
      %v692 = vpop.f32.mrb[0].mxu0
      %v693 = vadd.f32 %v456, %v692
      %v694 = vpop.f32.mrb[0].mxu0
      %v695 = vpop.f32.mrb[0].mxu0
      %v696 = vadd.f32 %v459, %v695
      %v697 = vpop.f32.mrb[0].mxu0
      %698 = vmatprep.mubr.bf16.mxu0 0
      %699 = vmatmul.mubr.bf16.gmra.mrb[0].mxu0 %v578
      %v700 = vpop.f32.mrb[0].mxu0
      %v701 = vadd.f32 %v464, %v700
      %v702 = vpop.f32.mrb[0].mxu0
      %v703 = vpop.f32.mrb[0].mxu0
      %v704 = vadd.f32 %v467, %v703
      %v705 = vpop.f32.mrb[0].mxu0
      %706 = vmatprep.mubr.bf16.mxu0 0
      %707 = vmatmul.mubr.bf16.gmra.mrb[0].mxu0 %v581
      %v708 = vpop.f32.mrb[0].mxu0
      %v709 = vadd.f32 %v472, %v708
      %v710 = vpop.f32.mrb[0].mxu0
      %v711 = vpop.f32.mrb[0].mxu0
      %v712 = vadd.f32 %v475, %v711
      %v713 = vpop.f32.mrb[0].mxu0
      %714 = vmatprep.mubr.bf16.mxu0 0
      %715 = vmatmul.mubr.bf16.gmra.mrb[0].mxu0 %v584
      %v716 = vpop.f32.mrb[0].mxu0
      %v717 = vadd.f32 %v480, %v716
      %v718 = vpop.f32.mrb[0].mxu0
      %v719 = vpop.f32.mrb[0].mxu0
      %v720 = vadd.f32 %v483, %v719
      %v721 = vpop.f32.mrb[0].mxu0
      %722 = vmatprep.mubr.bf16.mxu0 0
      %723 = vmatmul.mubr.bf16.gmra.mrb[0].mxu0 %v587
      %v724 = vpop.f32.mrb[0].mxu0
      %v725 = vadd.f32 %v488, %v724
      %v726 = vpop.f32.mrb[0].mxu0
      %v727 = vpop.f32.mrb[0].mxu0
      %v728 = vadd.f32 %v491, %v727
      %v729 = vpop.f32.mrb[0].mxu0
      %730 = vmatprep.mubr.bf16.mxu0 0
      %731 = vmatmul.mubr.bf16.gmra.mrb[0].mxu0 %v590
      %v732 = vpop.f32.mrb[0].mxu0
      %v733 = vadd.f32 %v496, %v732
      %v734 = vpop.f32.mrb[0].mxu0
      %v735 = vpop.f32.mrb[0].mxu0
      %v736 = vadd.f32 %v499, %v735
      %v737 = vpop.f32.mrb[0].mxu0
      %738 = vmatprep.mubr.bf16.mxu0 0
      %739 = vmatmul.mubr.bf16.gmra.mrb[0].mxu0 %v593
      %v740 = vpop.f32.mrb[0].mxu0
      %v741 = vadd.f32 %v504, %v740
      %v742 = vpop.f32.mrb[0].mxu0
      %v743 = vpop.f32.mrb[0].mxu0
      %v744 = vadd.f32 %v507, %v743
      %v745 = vpop.f32.mrb[0].mxu0
      %746 = vmatprep.mubr.bf16.mxu0 0
      %747 = vmatmul.mubr.bf16.gmra.mrb[0].mxu0 %v596
      %v748 = vpop.f32.mrb[0].mxu0
      %v749 = vadd.f32 %v512, %v748
      %v750 = vpop.f32.mrb[0].mxu0
      %v751 = vpop.f32.mrb[0].mxu0
      %v752 = vadd.f32 %v515, %v751
      %v753 = vpop.f32.mrb[0].mxu0
      %754 = vmatprep.mubr.bf16.mxu0 0
      %755 = vmatmul.mubr.bf16.gmra.mrb[0].mxu0 %v599
      %v756 = vpop.f32.mrb[0].mxu0
      %v757 = vadd.f32 %v520, %v756
      %v758 = vpop.f32.mrb[0].mxu0
      %v759 = vpop.f32.mrb[0].mxu0
      %v760 = vadd.f32 %v523, %v759
      %v761 = vpop.f32.mrb[0].mxu0
      %762 = vmatprep.mubr.bf16.mxu0 0
      %763 = vmatmul.mubr.bf16.gmra.mrb[0].mxu0 %v602
      %v764 = vpop.f32.mrb[0].mxu0
      %v765 = vadd.f32 %v528, %v764
      %v766 = vpop.f32.mrb[0].mxu0
      %v767 = vpop.f32.mrb[0].mxu0
      %v768 = vadd.f32 %v531, %v767
      %v769 = vpop.f32.mrb[0].mxu0
      %770 = vmatprep.mubr.bf16.mxu0 0
      %771 = vmatmul.mubr.bf16.gmra.mrb[0].mxu0 %v605
      %v772 = vpop.f32.mrb[0].mxu0
      %v773 = vadd.f32 %v536, %v772
      %v774 = vpop.f32.mrb[0].mxu0
      %v775 = vpop.f32.mrb[0].mxu0
      %v776 = vadd.f32 %v539, %v775
      %v777 = vpop.f32.mrb[0].mxu0
      %778 = vmatprep.mubr.bf16.mxu0 0
      %779 = vmatmul.mubr.bf16.gmra.mrb[0].mxu0 %v608
      %v780 = vpop.f32.mrb[0].mxu0
      %v781 = vadd.f32 %v544, %v780
      %v782 = vpop.f32.mrb[0].mxu0
      %v783 = vpop.f32.mrb[0].mxu0
      %v784 = vadd.f32 %v547, %v783
      %v785 = vpop.f32.mrb[0].mxu0
      %786 = vdwg.mxu0
      %v787 = vld [vmem:[%s192 + $0x12] sm:$0xff]
      %v788 = vld [vmem:[%s192 + $0x1a] sm:$0xff]
      %v789 = vld [vmem:[%s192 + $0x22] sm:$0xff]
      %v790 = vld [vmem:[%s192 + $0x2a] sm:$0xff]
      %v791 = vld [vmem:[%s192 + $0x32] sm:$0xff]
      %v792 = vld [vmem:[%s192 + $0x3a] sm:$0xff]
      %v793 = vld [vmem:[%s192 + $0x42] sm:$0xff]
      %v794 = vld [vmem:[%s192 + $0x4a] sm:$0xff]
      %v795 = vld [vmem:[%s192 + $0x52] sm:$0xff]
      %v796 = vld [vmem:[%s192 + $0x5a] sm:$0xff]
      %v797 = vld [vmem:[%s192 + $0x62] sm:$0xff]
      %v798 = vld [vmem:[%s192 + $0x6a] sm:$0xff]
      %v799 = vld [vmem:[%s192 + $0x72] sm:$0xff]
      %v800 = vld [vmem:[%s192 + $0x7a] sm:$0xff]
      %v801 = vld [vmem:[%s192 + $0x82] sm:$0xff]
      %v802 = vld [vmem:[%s192 + $0x8a] sm:$0xff]
      %v803 = vld [vmem:[%s192 + $0x92] sm:$0xff]
      %v804 = vld [vmem:[%s192 + $0x9a] sm:$0xff]
      %v805 = vld [vmem:[%s192 + $0xa2] sm:$0xff]
      %v806 = vld [vmem:[%s192 + $0xaa] sm:$0xff]
      %v807 = vld [vmem:[%s192 + $0xb2] sm:$0xff]
      %v808 = vld [vmem:[%s192 + $0xba] sm:$0xff]
      %v809 = vld [vmem:[%s192 + $0xc2] sm:$0xff]
      %v810 = vld [vmem:[%s192 + $0xca] sm:$0xff]
      %v811 = vld [vmem:[%s192 + $0xd2] sm:$0xff]
      %v812 = vld [vmem:[%s192 + $0xda] sm:$0xff]
      %v813 = vld [vmem:[%s192 + $0xe2] sm:$0xff]
      %v814 = vld [vmem:[%s192 + $0xea] sm:$0xff]
      %v815 = vld [vmem:[%s192 + $0xf2] sm:$0xff]
      %v816 = vld [vmem:[%s192 + $0xfa] sm:$0xff]
      %v817 = vld [vmem:[%s192 + $0x102] sm:$0xff]
      %v818 = vld [vmem:[%s192 + $0x10a] sm:$0xff]
      %v819 = vld [vmem:[%s192 + $0x112] sm:$0xff]
      %v820 = vld [vmem:[%s192 + $0x11a] sm:$0xff]
      %v821 = vld [vmem:[%s192 + $0x122] sm:$0xff]
      %v822 = vld [vmem:[%s192 + $0x12a] sm:$0xff]
      %v823 = vpack.c.bf16 %v788, %v787
      %v824 = vpack.c.bf16 %v790, %v789
      %v825 = vpack.c.bf16 %v792, %v791
      %v826 = vpack.c.bf16 %v794, %v793
      %v827 = vpack.c.bf16 %v796, %v795
      %v828 = vpack.c.bf16 %v798, %v797
      %v829 = vpack.c.bf16 %v800, %v799
      %v830 = vpack.c.bf16 %v802, %v801
      %v831 = vpack.c.bf16 %v804, %v803
      %v832 = vpack.c.bf16 %v806, %v805
      %v833 = vpack.c.bf16 %v808, %v807
      %v834 = vpack.c.bf16 %v810, %v809
      %v835 = vpack.c.bf16 %v812, %v811
      %v836 = vpack.c.bf16 %v814, %v813
      %v837 = vpack.c.bf16 %v816, %v815
      %v838 = vpack.c.bf16 %v818, %v817
      %v839 = vpack.c.bf16 %v820, %v819
      %v840 = vpack.c.bf16 %v822, %v821
      %s841 = scalar_lea.vmem %s1, 16
      %v842 = vld [vmem:[%s841] sm:$0xf]
      %v843 = vld [vmem:[%s841 + $0x4] sm:$0xf]
      %v846 = vunpack.c.l.b16 %v842
      %v847 = vunpack.c.l.b16 %v843
      %v848 = vpack.c.b16 %v847, %v846
      %v851 = vsel %vm318, %v823, 0
      %v854 = vsel %vm318, %v824, 0
      %v857 = vsel %vm318, %v825, 0
      %v860 = vsel %vm318, %v826, 0
      %v863 = vsel %vm318, %v827, 0
      %v866 = vsel %vm318, %v828, 0
      %v869 = vsel %vm318, %v829, 0
      %v872 = vsel %vm318, %v830, 0
      %v875 = vsel %vm318, %v831, 0
      %v878 = vsel %vm318, %v832, 0
      %v881 = vsel %vm318, %v833, 0
      %v884 = vsel %vm318, %v834, 0
      %v887 = vsel %vm318, %v835, 0
      %v890 = vsel %vm318, %v836, 0
      %v893 = vsel %vm318, %v837, 0
      %v896 = vsel %vm318, %v838, 0
      %v899 = vsel %vm318, %v839, 0
      %v902 = vsel %vm318, %v840, 0
      %904 = vmatprep.subr.bf16.mxu0 0
      %905 = vmatpush1.bf16.msra.mxu0 %v848
      %906 = vmatprep.subr.bf16.mxu0 0
      %907 = vmatpush1.bf16.msra.mxu0 0
      %908 = vmatprep.subr.bf16.mxu0 0
      %909 = vmatpush1.bf16.msra.mxu0 0
      %910 = vmatprep.subr.bf16.mxu0 0
      %911 = vmatpush1.bf16.msra.mxu0 0
      %912 = vmatprep.subr.bf16.mxu0 0
      %913 = vmatpush1.bf16.msra.mxu0 0
      %914 = vmatprep.subr.bf16.mxu0 0
      %915 = vmatpush1.bf16.msra.mxu0 0
      %916 = vmatprep.subr.bf16.mxu0 0
      %917 = vmatpush1.bf16.msra.mxu0 0
      %918 = vmatprep.subr.bf16.mxu0 0
      %919 = vmatpush1.bf16.msra.mxu0 0
      %920 = vmatprep.subr.bf16.mxu0 0
      %921 = vmatpush1.bf16.msra.mxu0 0
      %922 = vmatprep.subr.bf16.mxu0 0
      %923 = vmatpush1.bf16.msra.mxu0 0
      %924 = vmatprep.subr.bf16.mxu0 0
      %925 = vmatpush1.bf16.msra.mxu0 0
      %926 = vmatprep.subr.bf16.mxu0 0
      %927 = vmatpush1.bf16.msra.mxu0 0
      %928 = vmatprep.subr.bf16.mxu0 0
      %929 = vmatpush1.bf16.msra.mxu0 0
      %930 = vmatprep.subr.bf16.mxu0 0
      %931 = vmatpush1.bf16.msra.mxu0 0
      %932 = vmatprep.subr.bf16.mxu0 0
      %933 = vmatpush1.bf16.msra.mxu0 0
      %934 = vmatprep.subr.bf16.mxu0 0
      %935 = vmatpush1.bf16.msra.mxu0 0
      %936 = vmatprep.mubr.bf16.mxu0 0
      %937 = vmatmul.mubr.bf16.gmra.mrb[0].mxu0 %v851
      %v938 = vpop.f32.mrb[0].mxu0
      %v939 = vadd.f32 0.0, %v938
      %v940 = vpop.f32.mrb[0].mxu0
      %v941 = vpop.f32.mrb[0].mxu0
      %v942 = vadd.f32 0.0, %v941
      %v943 = vpop.f32.mrb[0].mxu0
      %944 = vmatprep.mubr.bf16.mxu0 0
      %945 = vmatmul.mubr.bf16.gmra.mrb[0].mxu0 %v854
      %v946 = vpop.f32.mrb[0].mxu0
      %v947 = vadd.f32 0.0, %v946
      %v948 = vpop.f32.mrb[0].mxu0
      %v949 = vpop.f32.mrb[0].mxu0
      %v950 = vadd.f32 0.0, %v949
      %v951 = vpop.f32.mrb[0].mxu0
      %952 = vmatprep.mubr.bf16.mxu0 0
      %953 = vmatmul.mubr.bf16.gmra.mrb[0].mxu0 %v857
      %v954 = vpop.f32.mrb[0].mxu0
      %v955 = vadd.f32 0.0, %v954
      %v956 = vpop.f32.mrb[0].mxu0
      %v957 = vpop.f32.mrb[0].mxu0
      %v958 = vadd.f32 0.0, %v957
      %v959 = vpop.f32.mrb[0].mxu0
      %960 = vmatprep.mubr.bf16.mxu0 0
      %961 = vmatmul.mubr.bf16.gmra.mrb[0].mxu0 %v860
      %v962 = vpop.f32.mrb[0].mxu0
      %v963 = vadd.f32 0.0, %v962
      %v964 = vpop.f32.mrb[0].mxu0
      %v965 = vpop.f32.mrb[0].mxu0
      %v966 = vadd.f32 0.0, %v965
      %v967 = vpop.f32.mrb[0].mxu0
      %968 = vmatprep.mubr.bf16.mxu0 0
      %969 = vmatmul.mubr.bf16.gmra.mrb[0].mxu0 %v863
      %v970 = vpop.f32.mrb[0].mxu0
      %v971 = vadd.f32 0.0, %v970
      %v972 = vpop.f32.mrb[0].mxu0
      %v973 = vpop.f32.mrb[0].mxu0
      %v974 = vadd.f32 0.0, %v973
      %v975 = vpop.f32.mrb[0].mxu0
      %976 = vmatprep.mubr.bf16.mxu0 0
      %977 = vmatmul.mubr.bf16.gmra.mrb[0].mxu0 %v866
      %v978 = vpop.f32.mrb[0].mxu0
      %v979 = vadd.f32 0.0, %v978
      %v980 = vpop.f32.mrb[0].mxu0
      %v981 = vpop.f32.mrb[0].mxu0
      %v982 = vadd.f32 0.0, %v981
      %v983 = vpop.f32.mrb[0].mxu0
      %984 = vmatprep.mubr.bf16.mxu0 0
      %985 = vmatmul.mubr.bf16.gmra.mrb[0].mxu0 %v869
      %v986 = vpop.f32.mrb[0].mxu0
      %v987 = vadd.f32 0.0, %v986
      %v988 = vpop.f32.mrb[0].mxu0
      %v989 = vpop.f32.mrb[0].mxu0
      %v990 = vadd.f32 0.0, %v989
      %v991 = vpop.f32.mrb[0].mxu0
      %992 = vmatprep.mubr.bf16.mxu0 0
      %993 = vmatmul.mubr.bf16.gmra.mrb[0].mxu0 %v872
      %v994 = vpop.f32.mrb[0].mxu0
      %v995 = vadd.f32 0.0, %v994
      %v996 = vpop.f32.mrb[0].mxu0
      %v997 = vpop.f32.mrb[0].mxu0
      %v998 = vadd.f32 0.0, %v997
      %v999 = vpop.f32.mrb[0].mxu0
      %1000 = vmatprep.mubr.bf16.mxu0 0
      %1001 = vmatmul.mubr.bf16.gmra.mrb[0].mxu0 %v875
      %v1002 = vpop.f32.mrb[0].mxu0
      %v1003 = vadd.f32 0.0, %v1002
      %v1004 = vpop.f32.mrb[0].mxu0
      %v1005 = vpop.f32.mrb[0].mxu0
      %v1006 = vadd.f32 0.0, %v1005
      %v1007 = vpop.f32.mrb[0].mxu0
      %1008 = vmatprep.mubr.bf16.mxu0 0
      %1009 = vmatmul.mubr.bf16.gmra.mrb[0].mxu0 %v878
      %v1010 = vpop.f32.mrb[0].mxu0
      %v1011 = vadd.f32 0.0, %v1010
      %v1012 = vpop.f32.mrb[0].mxu0
      %v1013 = vpop.f32.mrb[0].mxu0
      %v1014 = vadd.f32 0.0, %v1013
      %v1015 = vpop.f32.mrb[0].mxu0
      %1016 = vmatprep.mubr.bf16.mxu0 0
      %1017 = vmatmul.mubr.bf16.gmra.mrb[0].mxu0 %v881
      %v1018 = vpop.f32.mrb[0].mxu0
      %v1019 = vadd.f32 0.0, %v1018
      %v1020 = vpop.f32.mrb[0].mxu0
      %v1021 = vpop.f32.mrb[0].mxu0
      %v1022 = vadd.f32 0.0, %v1021
      %v1023 = vpop.f32.mrb[0].mxu0
      %1024 = vmatprep.mubr.bf16.mxu0 0
      %1025 = vmatmul.mubr.bf16.gmra.mrb[0].mxu0 %v884
      %v1026 = vpop.f32.mrb[0].mxu0
      %v1027 = vadd.f32 0.0, %v1026
      %v1028 = vpop.f32.mrb[0].mxu0
      %v1029 = vpop.f32.mrb[0].mxu0
      %v1030 = vadd.f32 0.0, %v1029
      %v1031 = vpop.f32.mrb[0].mxu0
      %1032 = vmatprep.mubr.bf16.mxu0 0
      %1033 = vmatmul.mubr.bf16.gmra.mrb[0].mxu0 %v887
      %v1034 = vpop.f32.mrb[0].mxu0
      %v1035 = vadd.f32 0.0, %v1034
      %v1036 = vpop.f32.mrb[0].mxu0
      %v1037 = vpop.f32.mrb[0].mxu0
      %v1038 = vadd.f32 0.0, %v1037
      %v1039 = vpop.f32.mrb[0].mxu0
      %1040 = vmatprep.mubr.bf16.mxu0 0
      %1041 = vmatmul.mubr.bf16.gmra.mrb[0].mxu0 %v890
      %v1042 = vpop.f32.mrb[0].mxu0
      %v1043 = vadd.f32 0.0, %v1042
      %v1044 = vpop.f32.mrb[0].mxu0
      %v1045 = vpop.f32.mrb[0].mxu0
      %v1046 = vadd.f32 0.0, %v1045
      %v1047 = vpop.f32.mrb[0].mxu0
      %1048 = vmatprep.mubr.bf16.mxu0 0
      %1049 = vmatmul.mubr.bf16.gmra.mrb[0].mxu0 %v893
      %v1050 = vpop.f32.mrb[0].mxu0
      %v1051 = vadd.f32 0.0, %v1050
      %v1052 = vpop.f32.mrb[0].mxu0
      %v1053 = vpop.f32.mrb[0].mxu0
      %v1054 = vadd.f32 0.0, %v1053
      %v1055 = vpop.f32.mrb[0].mxu0
      %1056 = vmatprep.mubr.bf16.mxu0 0
      %1057 = vmatmul.mubr.bf16.gmra.mrb[0].mxu0 %v896
      %v1058 = vpop.f32.mrb[0].mxu0
      %v1059 = vadd.f32 0.0, %v1058
      %v1060 = vpop.f32.mrb[0].mxu0
      %v1061 = vpop.f32.mrb[0].mxu0
      %v1062 = vadd.f32 0.0, %v1061
      %v1063 = vpop.f32.mrb[0].mxu0
      %1064 = vmatprep.mubr.bf16.mxu0 0
      %1065 = vmatmul.mubr.bf16.gmra.mrb[0].mxu0 %v899
      %v1066 = vpop.f32.mrb[0].mxu0
      %v1067 = vadd.f32 0.0, %v1066
      %v1068 = vpop.f32.mrb[0].mxu0
      %v1069 = vpop.f32.mrb[0].mxu0
      %v1070 = vadd.f32 0.0, %v1069
      %v1071 = vpop.f32.mrb[0].mxu0
      %1072 = vmatprep.mubr.bf16.mxu0 0
      %1073 = vmatmul.mubr.bf16.gmra.mrb[0].mxu0 %v902
      %v1074 = vpop.f32.mrb[0].mxu0
      %v1075 = vadd.f32 0.0, %v1074
      %v1076 = vpop.f32.mrb[0].mxu0
      %v1077 = vpop.f32.mrb[0].mxu0
      %v1078 = vadd.f32 0.0, %v1077
      %v1079 = vpop.f32.mrb[0].mxu0
      %1080 = vdwg.mxu0
      %v1081 = vadd.f32 %v645, %v939
      %v1082 = vadd.f32 %v648, %v942
      %v1083 = vadd.f32 %v653, %v947
      %v1084 = vadd.f32 %v656, %v950
      %v1085 = vadd.f32 %v661, %v955
      %v1086 = vadd.f32 %v664, %v958
      %v1087 = vadd.f32 %v669, %v963
      %v1088 = vadd.f32 %v672, %v966
      %v1089 = vadd.f32 %v677, %v971
      %v1090 = vadd.f32 %v680, %v974
      %v1091 = vadd.f32 %v685, %v979
      %v1092 = vadd.f32 %v688, %v982
      %v1093 = vadd.f32 %v693, %v987
      %v1094 = vadd.f32 %v696, %v990
      %v1095 = vadd.f32 %v701, %v995
      %v1096 = vadd.f32 %v704, %v998
      %v1097 = vadd.f32 %v709, %v1003
      %v1098 = vadd.f32 %v712, %v1006
      %v1099 = vadd.f32 %v717, %v1011
      %v1100 = vadd.f32 %v720, %v1014
      %v1101 = vadd.f32 %v725, %v1019
      %v1102 = vadd.f32 %v728, %v1022
      %v1103 = vadd.f32 %v733, %v1027
      %v1104 = vadd.f32 %v736, %v1030
      %v1105 = vadd.f32 %v741, %v1035
      %v1106 = vadd.f32 %v744, %v1038
      %v1107 = vadd.f32 %v749, %v1043
      %v1108 = vadd.f32 %v752, %v1046
      %v1109 = vadd.f32 %v757, %v1051
      %v1110 = vadd.f32 %v760, %v1054
      %v1111 = vadd.f32 %v765, %v1059
      %v1112 = vadd.f32 %v768, %v1062
      %v1113 = vadd.f32 %v773, %v1067
      %v1114 = vadd.f32 %v776, %v1070
      %v1115 = vadd.f32 %v781, %v1075
      %v1116 = vadd.f32 %v784, %v1078
      %v1117 = vld [vmem:[%s192 + $0x13] sm:$0xff]
      %v1118 = vld [vmem:[%s192 + $0x1b] sm:$0xff]
      %v1119 = vld [vmem:[%s192 + $0x23] sm:$0xff]
      %v1120 = vld [vmem:[%s192 + $0x2b] sm:$0xff]
      %v1121 = vld [vmem:[%s192 + $0x33] sm:$0xff]
      %v1122 = vld [vmem:[%s192 + $0x3b] sm:$0xff]
      %v1123 = vld [vmem:[%s192 + $0x43] sm:$0xff]
      %v1124 = vld [vmem:[%s192 + $0x4b] sm:$0xff]
      %v1125 = vld [vmem:[%s192 + $0x53] sm:$0xff]
      %v1126 = vld [vmem:[%s192 + $0x5b] sm:$0xff]
      %v1127 = vld [vmem:[%s192 + $0x63] sm:$0xff]
      %v1128 = vld [vmem:[%s192 + $0x6b] sm:$0xff]
      %v1129 = vld [vmem:[%s192 + $0x73] sm:$0xff]
      %v1130 = vld [vmem:[%s192 + $0x7b] sm:$0xff]
      %v1131 = vld [vmem:[%s192 + $0x83] sm:$0xff]
      %v1132 = vld [vmem:[%s192 + $0x8b] sm:$0xff]
      %v1133 = vld [vmem:[%s192 + $0x93] sm:$0xff]
      %v1134 = vld [vmem:[%s192 + $0x9b] sm:$0xff]
      %v1135 = vld [vmem:[%s192 + $0xa3] sm:$0xff]
      %v1136 = vld [vmem:[%s192 + $0xab] sm:$0xff]
      %v1137 = vld [vmem:[%s192 + $0xb3] sm:$0xff]
      %v1138 = vld [vmem:[%s192 + $0xbb] sm:$0xff]
      %v1139 = vld [vmem:[%s192 + $0xc3] sm:$0xff]
      %v1140 = vld [vmem:[%s192 + $0xcb] sm:$0xff]
      %v1141 = vld [vmem:[%s192 + $0xd3] sm:$0xff]
      %v1142 = vld [vmem:[%s192 + $0xdb] sm:$0xff]
      %v1143 = vld [vmem:[%s192 + $0xe3] sm:$0xff]
      %v1144 = vld [vmem:[%s192 + $0xeb] sm:$0xff]
      %v1145 = vld [vmem:[%s192 + $0xf3] sm:$0xff]
      %v1146 = vld [vmem:[%s192 + $0xfb] sm:$0xff]
      %v1147 = vld [vmem:[%s192 + $0x103] sm:$0xff]
      %v1148 = vld [vmem:[%s192 + $0x10b] sm:$0xff]
      %v1149 = vld [vmem:[%s192 + $0x113] sm:$0xff]
      %v1150 = vld [vmem:[%s192 + $0x11b] sm:$0xff]
      %v1151 = vld [vmem:[%s192 + $0x123] sm:$0xff]
      %v1152 = vld [vmem:[%s192 + $0x12b] sm:$0xff]
      %v1153 = vpack.c.bf16 %v1118, %v1117
      %v1154 = vpack.c.bf16 %v1120, %v1119
      %v1155 = vpack.c.bf16 %v1122, %v1121
      %v1156 = vpack.c.bf16 %v1124, %v1123
      %v1157 = vpack.c.bf16 %v1126, %v1125
      %v1158 = vpack.c.bf16 %v1128, %v1127
      %v1159 = vpack.c.bf16 %v1130, %v1129
      %v1160 = vpack.c.bf16 %v1132, %v1131
      %v1161 = vpack.c.bf16 %v1134, %v1133
      %v1162 = vpack.c.bf16 %v1136, %v1135
      %v1163 = vpack.c.bf16 %v1138, %v1137
      %v1164 = vpack.c.bf16 %v1140, %v1139
      %v1165 = vpack.c.bf16 %v1142, %v1141
      %v1166 = vpack.c.bf16 %v1144, %v1143
      %v1167 = vpack.c.bf16 %v1146, %v1145
      %v1168 = vpack.c.bf16 %v1148, %v1147
      %v1169 = vpack.c.bf16 %v1150, %v1149
      %v1170 = vpack.c.bf16 %v1152, %v1151
      %s1171 = scalar_lea.vmem %s1, 24
      %v1172 = vld [vmem:[%s1171] sm:$0xf]
      %v1173 = vld [vmem:[%s1171 + $0x4] sm:$0xf]
      %v1176 = vunpack.c.l.b16 %v1172
      %v1177 = vunpack.c.l.b16 %v1173
      %v1178 = vpack.c.b16 %v1177, %v1176
      %v1181 = vsel %vm318, %v1153, 0
      %v1184 = vsel %vm318, %v1154, 0
      %v1187 = vsel %vm318, %v1155, 0
      %v1190 = vsel %vm318, %v1156, 0
      %v1193 = vsel %vm318, %v1157, 0
      %v1196 = vsel %vm318, %v1158, 0
      %v1199 = vsel %vm318, %v1159, 0
      %v1202 = vsel %vm318, %v1160, 0
      %v1205 = vsel %vm318, %v1161, 0
      %v1208 = vsel %vm318, %v1162, 0
      %v1211 = vsel %vm318, %v1163, 0
      %v1214 = vsel %vm318, %v1164, 0
      %v1217 = vsel %vm318, %v1165, 0
      %v1220 = vsel %vm318, %v1166, 0
      %v1223 = vsel %vm318, %v1167, 0
      %v1226 = vsel %vm318, %v1168, 0
      %v1229 = vsel %vm318, %v1169, 0
      %v1232 = vsel %vm318, %v1170, 0
      %1234 = vmatprep.subr.bf16.mxu0 0
      %1235 = vmatpush1.bf16.msra.mxu0 %v1178
      %1236 = vmatprep.subr.bf16.mxu0 0
      %1237 = vmatpush1.bf16.msra.mxu0 0
      %1238 = vmatprep.subr.bf16.mxu0 0
      %1239 = vmatpush1.bf16.msra.mxu0 0
      %1240 = vmatprep.subr.bf16.mxu0 0
      %1241 = vmatpush1.bf16.msra.mxu0 0
      %1242 = vmatprep.subr.bf16.mxu0 0
      %1243 = vmatpush1.bf16.msra.mxu0 0
      %1244 = vmatprep.subr.bf16.mxu0 0
      %1245 = vmatpush1.bf16.msra.mxu0 0
      %1246 = vmatprep.subr.bf16.mxu0 0
      %1247 = vmatpush1.bf16.msra.mxu0 0
      %1248 = vmatprep.subr.bf16.mxu0 0
      %1249 = vmatpush1.bf16.msra.mxu0 0
      %1250 = vmatprep.subr.bf16.mxu0 0
      %1251 = vmatpush1.bf16.msra.mxu0 0
      %1252 = vmatprep.subr.bf16.mxu0 0
      %1253 = vmatpush1.bf16.msra.mxu0 0
      %1254 = vmatprep.subr.bf16.mxu0 0
      %1255 = vmatpush1.bf16.msra.mxu0 0
      %1256 = vmatprep.subr.bf16.mxu0 0
      %1257 = vmatpush1.bf16.msra.mxu0 0
      %1258 = vmatprep.subr.bf16.mxu0 0
      %1259 = vmatpush1.bf16.msra.mxu0 0
      %1260 = vmatprep.subr.bf16.mxu0 0
      %1261 = vmatpush1.bf16.msra.mxu0 0
      %1262 = vmatprep.subr.bf16.mxu0 0
      %1263 = vmatpush1.bf16.msra.mxu0 0
      %1264 = vmatprep.subr.bf16.mxu0 0
      %1265 = vmatpush1.bf16.msra.mxu0 0
      %1266 = vmatprep.mubr.bf16.mxu0 0
      %1267 = vmatmul.mubr.bf16.gmra.mrb[0].mxu0 %v1181
      %v1268 = vpop.f32.mrb[0].mxu0
      %v1269 = vadd.f32 0.0, %v1268
      %v1270 = vpop.f32.mrb[0].mxu0
      %v1271 = vpop.f32.mrb[0].mxu0
      %v1272 = vadd.f32 0.0, %v1271
      %v1273 = vpop.f32.mrb[0].mxu0
      %1274 = vmatprep.mubr.bf16.mxu0 0
      %1275 = vmatmul.mubr.bf16.gmra.mrb[0].mxu0 %v1184
      %v1276 = vpop.f32.mrb[0].mxu0
      %v1277 = vadd.f32 0.0, %v1276
      %v1278 = vpop.f32.mrb[0].mxu0
      %v1279 = vpop.f32.mrb[0].mxu0
      %v1280 = vadd.f32 0.0, %v1279
      %v1281 = vpop.f32.mrb[0].mxu0
      %1282 = vmatprep.mubr.bf16.mxu0 0
      %1283 = vmatmul.mubr.bf16.gmra.mrb[0].mxu0 %v1187
      %v1284 = vpop.f32.mrb[0].mxu0
      %v1285 = vadd.f32 0.0, %v1284
      %v1286 = vpop.f32.mrb[0].mxu0
      %v1287 = vpop.f32.mrb[0].mxu0
      %v1288 = vadd.f32 0.0, %v1287
      %v1289 = vpop.f32.mrb[0].mxu0
      %1290 = vmatprep.mubr.bf16.mxu0 0
      %1291 = vmatmul.mubr.bf16.gmra.mrb[0].mxu0 %v1190
      %v1292 = vpop.f32.mrb[0].mxu0
      %v1293 = vadd.f32 0.0, %v1292
      %v1294 = vpop.f32.mrb[0].mxu0
      %v1295 = vpop.f32.mrb[0].mxu0
      %v1296 = vadd.f32 0.0, %v1295
      %v1297 = vpop.f32.mrb[0].mxu0
      %1298 = vmatprep.mubr.bf16.mxu0 0
      %1299 = vmatmul.mubr.bf16.gmra.mrb[0].mxu0 %v1193
      %v1300 = vpop.f32.mrb[0].mxu0
      %v1301 = vadd.f32 0.0, %v1300
      %v1302 = vpop.f32.mrb[0].mxu0
      %v1303 = vpop.f32.mrb[0].mxu0
      %v1304 = vadd.f32 0.0, %v1303
      %v1305 = vpop.f32.mrb[0].mxu0
      %1306 = vmatprep.mubr.bf16.mxu0 0
      %1307 = vmatmul.mubr.bf16.gmra.mrb[0].mxu0 %v1196
      %v1308 = vpop.f32.mrb[0].mxu0
      %v1309 = vadd.f32 0.0, %v1308
      %v1310 = vpop.f32.mrb[0].mxu0
      %v1311 = vpop.f32.mrb[0].mxu0
      %v1312 = vadd.f32 0.0, %v1311
      %v1313 = vpop.f32.mrb[0].mxu0
      %1314 = vmatprep.mubr.bf16.mxu0 0
      %1315 = vmatmul.mubr.bf16.gmra.mrb[0].mxu0 %v1199
      %v1316 = vpop.f32.mrb[0].mxu0
      %v1317 = vadd.f32 0.0, %v1316
      %v1318 = vpop.f32.mrb[0].mxu0
      %v1319 = vpop.f32.mrb[0].mxu0
      %v1320 = vadd.f32 0.0, %v1319
      %v1321 = vpop.f32.mrb[0].mxu0
      %1322 = vmatprep.mubr.bf16.mxu0 0
      %1323 = vmatmul.mubr.bf16.gmra.mrb[0].mxu0 %v1202
      %v1324 = vpop.f32.mrb[0].mxu0
      %v1325 = vadd.f32 0.0, %v1324
      %v1326 = vpop.f32.mrb[0].mxu0
      %v1327 = vpop.f32.mrb[0].mxu0
      %v1328 = vadd.f32 0.0, %v1327
      %v1329 = vpop.f32.mrb[0].mxu0
      %1330 = vmatprep.mubr.bf16.mxu0 0
      %1331 = vmatmul.mubr.bf16.gmra.mrb[0].mxu0 %v1205
      %v1332 = vpop.f32.mrb[0].mxu0
      %v1333 = vadd.f32 0.0, %v1332
      %v1334 = vpop.f32.mrb[0].mxu0
      %v1335 = vpop.f32.mrb[0].mxu0
      %v1336 = vadd.f32 0.0, %v1335
      %v1337 = vpop.f32.mrb[0].mxu0
      %1338 = vmatprep.mubr.bf16.mxu0 0
      %1339 = vmatmul.mubr.bf16.gmra.mrb[0].mxu0 %v1208
      %v1340 = vpop.f32.mrb[0].mxu0
      %v1341 = vadd.f32 0.0, %v1340
      %v1342 = vpop.f32.mrb[0].mxu0
      %v1343 = vpop.f32.mrb[0].mxu0
      %v1344 = vadd.f32 0.0, %v1343
      %v1345 = vpop.f32.mrb[0].mxu0
      %1346 = vmatprep.mubr.bf16.mxu0 0
      %1347 = vmatmul.mubr.bf16.gmra.mrb[0].mxu0 %v1211
      %v1348 = vpop.f32.mrb[0].mxu0
      %v1349 = vadd.f32 0.0, %v1348
      %v1350 = vpop.f32.mrb[0].mxu0
      %v1351 = vpop.f32.mrb[0].mxu0
      %v1352 = vadd.f32 0.0, %v1351
      %v1353 = vpop.f32.mrb[0].mxu0
      %1354 = vmatprep.mubr.bf16.mxu0 0
      %1355 = vmatmul.mubr.bf16.gmra.mrb[0].mxu0 %v1214
      %v1356 = vpop.f32.mrb[0].mxu0
      %v1357 = vadd.f32 0.0, %v1356
      %v1358 = vpop.f32.mrb[0].mxu0
      %v1359 = vpop.f32.mrb[0].mxu0
      %v1360 = vadd.f32 0.0, %v1359
      %v1361 = vpop.f32.mrb[0].mxu0
      %1362 = vmatprep.mubr.bf16.mxu0 0
      %1363 = vmatmul.mubr.bf16.gmra.mrb[0].mxu0 %v1217
      %v1364 = vpop.f32.mrb[0].mxu0
      %v1365 = vadd.f32 0.0, %v1364
      %v1366 = vpop.f32.mrb[0].mxu0
      %v1367 = vpop.f32.mrb[0].mxu0
      %v1368 = vadd.f32 0.0, %v1367
      %v1369 = vpop.f32.mrb[0].mxu0
      %1370 = vmatprep.mubr.bf16.mxu0 0
      %1371 = vmatmul.mubr.bf16.gmra.mrb[0].mxu0 %v1220
      %v1372 = vpop.f32.mrb[0].mxu0
      %v1373 = vadd.f32 0.0, %v1372
      %v1374 = vpop.f32.mrb[0].mxu0
      %v1375 = vpop.f32.mrb[0].mxu0
      %v1376 = vadd.f32 0.0, %v1375
      %v1377 = vpop.f32.mrb[0].mxu0
      %1378 = vmatprep.mubr.bf16.mxu0 0
      %1379 = vmatmul.mubr.bf16.gmra.mrb[0].mxu0 %v1223
      %v1380 = vpop.f32.mrb[0].mxu0
      %v1381 = vadd.f32 0.0, %v1380
      %v1382 = vpop.f32.mrb[0].mxu0
      %v1383 = vpop.f32.mrb[0].mxu0
      %v1384 = vadd.f32 0.0, %v1383
      %v1385 = vpop.f32.mrb[0].mxu0
      %1386 = vmatprep.mubr.bf16.mxu0 0
      %1387 = vmatmul.mubr.bf16.gmra.mrb[0].mxu0 %v1226
      %v1388 = vpop.f32.mrb[0].mxu0
      %v1389 = vadd.f32 0.0, %v1388
      %v1390 = vpop.f32.mrb[0].mxu0
      %v1391 = vpop.f32.mrb[0].mxu0
      %v1392 = vadd.f32 0.0, %v1391
      %v1393 = vpop.f32.mrb[0].mxu0
      %1394 = vmatprep.mubr.bf16.mxu0 0
      %1395 = vmatmul.mubr.bf16.gmra.mrb[0].mxu0 %v1229
      %v1396 = vpop.f32.mrb[0].mxu0
      %v1397 = vadd.f32 0.0, %v1396
      %v1398 = vpop.f32.mrb[0].mxu0
      %v1399 = vpop.f32.mrb[0].mxu0
      %v1400 = vadd.f32 0.0, %v1399
      %v1401 = vpop.f32.mrb[0].mxu0
      %1402 = vmatprep.mubr.bf16.mxu0 0
      %1403 = vmatmul.mubr.bf16.gmra.mrb[0].mxu0 %v1232
      %v1404 = vpop.f32.mrb[0].mxu0
      %v1405 = vadd.f32 0.0, %v1404
      %v1406 = vpop.f32.mrb[0].mxu0
      %v1407 = vpop.f32.mrb[0].mxu0
      %v1408 = vadd.f32 0.0, %v1407
      %v1409 = vpop.f32.mrb[0].mxu0
      %1410 = vdwg.mxu0
      %v1411 = vadd.f32 %v1081, %v1269
      %v1412 = vadd.f32 %v1082, %v1272
      %v1413 = vadd.f32 %v1083, %v1277
      %v1414 = vadd.f32 %v1084, %v1280
      %v1415 = vadd.f32 %v1085, %v1285
      %v1416 = vadd.f32 %v1086, %v1288
      %v1417 = vadd.f32 %v1087, %v1293
      %v1418 = vadd.f32 %v1088, %v1296
      %v1419 = vadd.f32 %v1089, %v1301
      %v1420 = vadd.f32 %v1090, %v1304
      %v1421 = vadd.f32 %v1091, %v1309
      %v1422 = vadd.f32 %v1092, %v1312
      %v1423 = vadd.f32 %v1093, %v1317
      %v1424 = vadd.f32 %v1094, %v1320
      %v1425 = vadd.f32 %v1095, %v1325
      %v1426 = vadd.f32 %v1096, %v1328
      %v1427 = vadd.f32 %v1097, %v1333
      %v1428 = vadd.f32 %v1098, %v1336
      %v1429 = vadd.f32 %v1099, %v1341
      %v1430 = vadd.f32 %v1100, %v1344
      %v1431 = vadd.f32 %v1101, %v1349
      %v1432 = vadd.f32 %v1102, %v1352
      %v1433 = vadd.f32 %v1103, %v1357
      %v1434 = vadd.f32 %v1104, %v1360
      %v1435 = vadd.f32 %v1105, %v1365
      %v1436 = vadd.f32 %v1106, %v1368
      %v1437 = vadd.f32 %v1107, %v1373
      %v1438 = vadd.f32 %v1108, %v1376
      %v1439 = vadd.f32 %v1109, %v1381
      %v1440 = vadd.f32 %v1110, %v1384
      %v1441 = vadd.f32 %v1111, %v1389
      %v1442 = vadd.f32 %v1112, %v1392
      %v1443 = vadd.f32 %v1113, %v1397
      %v1444 = vadd.f32 %v1114, %v1400
      %v1445 = vadd.f32 %v1115, %v1405
      %v1446 = vadd.f32 %v1116, %v1408
      %v1447 = vld [vmem:[%s2] sm:$0x1]
      %v1449 = vlaneseq
      %v1450 = vshrl.u32 %v1449, 7
      %v1451 = vsub.s32 0, %v1450
      %v1452 = vrot.slane %v1447, %v1451
      %v1454 = vmul.f32 %v1411, %v1452
      %v1455 = vmul.f32 %v1412, %v1452
      %v1456 = vmul.f32 %v1413, %v1452
      %v1457 = vmul.f32 %v1414, %v1452
      %v1458 = vmul.f32 %v1415, %v1452
      %v1459 = vmul.f32 %v1416, %v1452
      %v1460 = vmul.f32 %v1417, %v1452
      %v1461 = vmul.f32 %v1418, %v1452
      %v1462 = vmul.f32 %v1419, %v1452
      %v1463 = vmul.f32 %v1420, %v1452
      %v1464 = vmul.f32 %v1421, %v1452
      %v1465 = vmul.f32 %v1422, %v1452
      %v1466 = vmul.f32 %v1423, %v1452
      %v1467 = vmul.f32 %v1424, %v1452
      %v1468 = vmul.f32 %v1425, %v1452
      %v1469 = vmul.f32 %v1426, %v1452
      %v1470 = vmul.f32 %v1427, %v1452
      %v1471 = vmul.f32 %v1428, %v1452
      %v1472 = vmul.f32 %v1429, %v1452
      %v1473 = vmul.f32 %v1430, %v1452
      %v1474 = vmul.f32 %v1431, %v1452
      %v1475 = vmul.f32 %v1432, %v1452
      %v1476 = vmul.f32 %v1433, %v1452
      %v1477 = vmul.f32 %v1434, %v1452
      %v1478 = vmul.f32 %v1435, %v1452
      %v1479 = vmul.f32 %v1436, %v1452
      %v1480 = vmul.f32 %v1437, %v1452
      %v1481 = vmul.f32 %v1438, %v1452
      %v1482 = vmul.f32 %v1439, %v1452
      %v1483 = vmul.f32 %v1440, %v1452
      %v1484 = vmul.f32 %v1441, %v1452
      %v1485 = vmul.f32 %v1442, %v1452
      %v1486 = vmul.f32 %v1443, %v1452
      %v1487 = vmul.f32 %v1444, %v1452
      %v1488 = vmul.f32 %v1445, %v1452
      %v1489 = vmul.f32 %v1446, %v1452
      %v1490 = vld [vmem:[%s3] sm:$0x1]
      %v1492 = vlaneseq
      %v1493 = vshrl.u32 %v1492, 7
      %v1494 = vsub.s32 0, %v1493
      %v1495 = vrot.slane %v1490, %v1494
      %v1497 = vadd.f32 %v1454, %v1495
      %v1498 = vadd.f32 %v1455, %v1495
      %v1499 = vadd.f32 %v1456, %v1495
      %v1500 = vadd.f32 %v1457, %v1495
      %v1501 = vadd.f32 %v1458, %v1495
      %v1502 = vadd.f32 %v1459, %v1495
      %v1503 = vadd.f32 %v1460, %v1495
      %v1504 = vadd.f32 %v1461, %v1495
      %v1505 = vadd.f32 %v1462, %v1495
      %v1506 = vadd.f32 %v1463, %v1495
      %v1507 = vadd.f32 %v1464, %v1495
      %v1508 = vadd.f32 %v1465, %v1495
      %v1509 = vadd.f32 %v1466, %v1495
      %v1510 = vadd.f32 %v1467, %v1495
      %v1511 = vadd.f32 %v1468, %v1495
      %v1512 = vadd.f32 %v1469, %v1495
      %v1513 = vadd.f32 %v1470, %v1495
      %v1514 = vadd.f32 %v1471, %v1495
      %v1515 = vadd.f32 %v1472, %v1495
      %v1516 = vadd.f32 %v1473, %v1495
      %v1517 = vadd.f32 %v1474, %v1495
      %v1518 = vadd.f32 %v1475, %v1495
      %v1519 = vadd.f32 %v1476, %v1495
      %v1520 = vadd.f32 %v1477, %v1495
      %v1521 = vadd.f32 %v1478, %v1495
      %v1522 = vadd.f32 %v1479, %v1495
      %v1523 = vadd.f32 %v1480, %v1495
      %v1524 = vadd.f32 %v1481, %v1495
      %v1525 = vadd.f32 %v1482, %v1495
      %v1526 = vadd.f32 %v1483, %v1495
      %v1527 = vadd.f32 %v1484, %v1495
      %v1528 = vadd.f32 %v1485, %v1495
      %v1529 = vadd.f32 %v1486, %v1495
      %v1530 = vadd.f32 %v1487, %v1495
      %v1531 = vadd.f32 %v1488, %v1495
      %v1532 = vadd.f32 %v1489, %v1495
      %v1533 = vtanh.pop %v1497
      %v1534 = vtanh.pop %v1498
      %v1535 = vtanh.pop %v1499
      %v1536 = vtanh.pop %v1500
      %v1537 = vtanh.pop %v1501
      %v1538 = vtanh.pop %v1502
      %v1539 = vtanh.pop %v1503
      %v1540 = vtanh.pop %v1504
      %v1541 = vtanh.pop %v1505
      %v1542 = vtanh.pop %v1506
      %v1543 = vtanh.pop %v1507
      %v1544 = vtanh.pop %v1508
      %v1545 = vtanh.pop %v1509
      %v1546 = vtanh.pop %v1510
      %v1547 = vtanh.pop %v1511
      %v1548 = vtanh.pop %v1512
      %v1549 = vtanh.pop %v1513
      %v1550 = vtanh.pop %v1514
      %v1551 = vtanh.pop %v1515
      %v1552 = vtanh.pop %v1516
      %v1553 = vtanh.pop %v1517
      %v1554 = vtanh.pop %v1518
      %v1555 = vtanh.pop %v1519
      %v1556 = vtanh.pop %v1520
      %v1557 = vtanh.pop %v1521
      %v1558 = vtanh.pop %v1522
      %v1559 = vtanh.pop %v1523
      %v1560 = vtanh.pop %v1524
      %v1561 = vtanh.pop %v1525
      %v1562 = vtanh.pop %v1526
      %v1563 = vtanh.pop %v1527
      %v1564 = vtanh.pop %v1528
      %v1565 = vtanh.pop %v1529
      %v1566 = vtanh.pop %v1530
      %v1567 = vtanh.pop %v1531
      %v1568 = vtanh.pop %v1532
      %1569 = vst [vmem:[%s197] sm:$0xff] %v1533
      %1570 = vst [vmem:[%s197 + $0x8] sm:$0xff] %v1534
      %1571 = vst [vmem:[%s197 + $0x10] sm:$0xff] %v1535
      %1572 = vst [vmem:[%s197 + $0x18] sm:$0xff] %v1536
      %1573 = vst [vmem:[%s197 + $0x20] sm:$0xff] %v1537
      %1574 = vst [vmem:[%s197 + $0x28] sm:$0xff] %v1538
      %1575 = vst [vmem:[%s197 + $0x30] sm:$0xff] %v1539
      %1576 = vst [vmem:[%s197 + $0x38] sm:$0xff] %v1540
      %1577 = vst [vmem:[%s197 + $0x40] sm:$0xff] %v1541
      %1578 = vst [vmem:[%s197 + $0x48] sm:$0xff] %v1542
      %1579 = vst [vmem:[%s197 + $0x50] sm:$0xff] %v1543
      %1580 = vst [vmem:[%s197 + $0x58] sm:$0xff] %v1544
      %1581 = vst [vmem:[%s197 + $0x60] sm:$0xff] %v1545
      %1582 = vst [vmem:[%s197 + $0x68] sm:$0xff] %v1546
      %1583 = vst [vmem:[%s197 + $0x70] sm:$0xff] %v1547
      %1584 = vst [vmem:[%s197 + $0x78] sm:$0xff] %v1548
      %1585 = vst [vmem:[%s197 + $0x80] sm:$0xff] %v1549
      %1586 = vst [vmem:[%s197 + $0x88] sm:$0xff] %v1550
      %1587 = vst [vmem:[%s197 + $0x90] sm:$0xff] %v1551
      %1588 = vst [vmem:[%s197 + $0x98] sm:$0xff] %v1552
      %1589 = vst [vmem:[%s197 + $0xa0] sm:$0xff] %v1553
      %1590 = vst [vmem:[%s197 + $0xa8] sm:$0xff] %v1554
      %1591 = vst [vmem:[%s197 + $0xb0] sm:$0xff] %v1555
      %1592 = vst [vmem:[%s197 + $0xb8] sm:$0xff] %v1556
      %1593 = vst [vmem:[%s197 + $0xc0] sm:$0xff] %v1557
      %1594 = vst [vmem:[%s197 + $0xc8] sm:$0xff] %v1558
      %1595 = vst [vmem:[%s197 + $0xd0] sm:$0xff] %v1559
      %1596 = vst [vmem:[%s197 + $0xd8] sm:$0xff] %v1560
      %1597 = vst [vmem:[%s197 + $0xe0] sm:$0xff] %v1561
      %1598 = vst [vmem:[%s197 + $0xe8] sm:$0xff] %v1562
      %1599 = vst [vmem:[%s197 + $0xf0] sm:$0xff] %v1563
      %1600 = vst [vmem:[%s197 + $0xf8] sm:$0xff] %v1564
      %1601 = vst [vmem:[%s197 + $0x100] sm:$0xff] %v1565
      %1602 = vst [vmem:[%s197 + $0x108] sm:$0xff] %v1566
      %1603 = vst [vmem:[%s197 + $0x110] sm:$0xff] %v1567
      %1604 = vst [vmem:[%s197 + $0x118] sm:$0xff] %v1568
      %v1605 = vld [vmem:[%s192 + $0x1] sm:$0xff]
      %v1606 = vld [vmem:[%s192 + $0x9] sm:$0xff]
      %v1607 = vld [vmem:[%s192 + $0x11] sm:$0xff]
      %v1608 = vld [vmem:[%s192 + $0x19] sm:$0xff]
      %v1609 = vld [vmem:[%s192 + $0x21] sm:$0xff]
      %v1610 = vld [vmem:[%s192 + $0x29] sm:$0xff]
      %v1611 = vld [vmem:[%s192 + $0x31] sm:$0xff]
      %v1612 = vld [vmem:[%s192 + $0x39] sm:$0xff]
      %v1613 = vld [vmem:[%s192 + $0x41] sm:$0xff]
      %v1614 = vld [vmem:[%s192 + $0x49] sm:$0xff]
      %v1615 = vld [vmem:[%s192 + $0x51] sm:$0xff]
      %v1616 = vld [vmem:[%s192 + $0x59] sm:$0xff]
      %v1617 = vld [vmem:[%s192 + $0x61] sm:$0xff]
      %v1618 = vld [vmem:[%s192 + $0x69] sm:$0xff]
      %v1619 = vld [vmem:[%s192 + $0x71] sm:$0xff]
      %v1620 = vld [vmem:[%s192 + $0x79] sm:$0xff]
      %v1621 = vld [vmem:[%s192 + $0x81] sm:$0xff]
      %v1622 = vld [vmem:[%s192 + $0x89] sm:$0xff]
      %v1623 = vld [vmem:[%s192 + $0x91] sm:$0xff]
      %v1624 = vld [vmem:[%s192 + $0x99] sm:$0xff]
      %v1625 = vld [vmem:[%s192 + $0xa1] sm:$0xff]
      %v1626 = vld [vmem:[%s192 + $0xa9] sm:$0xff]
      %v1627 = vld [vmem:[%s192 + $0xb1] sm:$0xff]
      %v1628 = vld [vmem:[%s192 + $0xb9] sm:$0xff]
      %v1629 = vld [vmem:[%s192 + $0xc1] sm:$0xff]
      %v1630 = vld [vmem:[%s192 + $0xc9] sm:$0xff]
      %v1631 = vld [vmem:[%s192 + $0xd1] sm:$0xff]
      %v1632 = vld [vmem:[%s192 + $0xd9] sm:$0xff]
      %v1633 = vld [vmem:[%s192 + $0xe1] sm:$0xff]
      %v1634 = vld [vmem:[%s192 + $0xe9] sm:$0xff]
      %v1635 = vld [vmem:[%s192 + $0xf1] sm:$0xff]
      %v1636 = vld [vmem:[%s192 + $0xf9] sm:$0xff]
      %v1637 = vld [vmem:[%s192 + $0x101] sm:$0xff]
      %v1638 = vld [vmem:[%s192 + $0x109] sm:$0xff]
      %v1639 = vld [vmem:[%s192 + $0x111] sm:$0xff]
      %v1640 = vld [vmem:[%s192 + $0x119] sm:$0xff]
      %v1641 = vpack.c.bf16 %v1606, %v1605
      %v1642 = vpack.c.bf16 %v1608, %v1607
      %v1643 = vpack.c.bf16 %v1610, %v1609
      %v1644 = vpack.c.bf16 %v1612, %v1611
      %v1645 = vpack.c.bf16 %v1614, %v1613
      %v1646 = vpack.c.bf16 %v1616, %v1615
      %v1647 = vpack.c.bf16 %v1618, %v1617
      %v1648 = vpack.c.bf16 %v1620, %v1619
      %v1649 = vpack.c.bf16 %v1622, %v1621
      %v1650 = vpack.c.bf16 %v1624, %v1623
      %v1651 = vpack.c.bf16 %v1626, %v1625
      %v1652 = vpack.c.bf16 %v1628, %v1627
      %v1653 = vpack.c.bf16 %v1630, %v1629
      %v1654 = vpack.c.bf16 %v1632, %v1631
      %v1655 = vpack.c.bf16 %v1634, %v1633
      %v1656 = vpack.c.bf16 %v1636, %v1635
      %v1657 = vpack.c.bf16 %v1638, %v1637
      %v1658 = vpack.c.bf16 %v1640, %v1639
      %s1659 = scalar_lea.vmem %s1, 32
      %v1660 = vld [vmem:[%s1659] sm:$0xf]
      %v1661 = vld [vmem:[%s1659 + $0x4] sm:$0xf]
      %v1662 = vld [vmem:[%s192 + $0x2] sm:$0xff]
      %v1663 = vld [vmem:[%s192 + $0xa] sm:$0xff]
      %v1664 = vld [vmem:[%s192 + $0x12] sm:$0xff]
      %v1665 = vld [vmem:[%s192 + $0x1a] sm:$0xff]
      %v1666 = vld [vmem:[%s192 + $0x22] sm:$0xff]
      %v1667 = vld [vmem:[%s192 + $0x2a] sm:$0xff]
      %v1668 = vld [vmem:[%s192 + $0x32] sm:$0xff]
      %v1669 = vld [vmem:[%s192 + $0x3a] sm:$0xff]
      %v1670 = vld [vmem:[%s192 + $0x42] sm:$0xff]
      %v1671 = vld [vmem:[%s192 + $0x4a] sm:$0xff]
      %v1672 = vld [vmem:[%s192 + $0x52] sm:$0xff]
      %v1673 = vld [vmem:[%s192 + $0x5a] sm:$0xff]
      %v1674 = vld [vmem:[%s192 + $0x62] sm:$0xff]
      %v1675 = vld [vmem:[%s192 + $0x6a] sm:$0xff]
      %v1676 = vld [vmem:[%s192 + $0x72] sm:$0xff]
      %v1677 = vld [vmem:[%s192 + $0x7a] sm:$0xff]
      %v1678 = vld [vmem:[%s192 + $0x82] sm:$0xff]
      %v1679 = vld [vmem:[%s192 + $0x8a] sm:$0xff]
      %v1680 = vld [vmem:[%s192 + $0x92] sm:$0xff]
      %v1681 = vld [vmem:[%s192 + $0x9a] sm:$0xff]
      %v1682 = vld [vmem:[%s192 + $0xa2] sm:$0xff]
      %v1683 = vld [vmem:[%s192 + $0xaa] sm:$0xff]
      %v1684 = vld [vmem:[%s192 + $0xb2] sm:$0xff]
      %v1685 = vld [vmem:[%s192 + $0xba] sm:$0xff]
      %v1686 = vld [vmem:[%s192 + $0xc2] sm:$0xff]
      %v1687 = vld [vmem:[%s192 + $0xca] sm:$0xff]
      %v1688 = vld [vmem:[%s192 + $0xd2] sm:$0xff]
      %v1689 = vld [vmem:[%s192 + $0xda] sm:$0xff]
      %v1690 = vld [vmem:[%s192 + $0xe2] sm:$0xff]
      %v1691 = vld [vmem:[%s192 + $0xea] sm:$0xff]
      %v1692 = vld [vmem:[%s192 + $0xf2] sm:$0xff]
      %v1693 = vld [vmem:[%s192 + $0xfa] sm:$0xff]
      %v1694 = vld [vmem:[%s192 + $0x102] sm:$0xff]
      %v1695 = vld [vmem:[%s192 + $0x10a] sm:$0xff]
      %v1696 = vld [vmem:[%s192 + $0x112] sm:$0xff]
      %v1697 = vld [vmem:[%s192 + $0x11a] sm:$0xff]
      %v1698 = vpack.c.bf16 %v1663, %v1662
      %v1699 = vpack.c.bf16 %v1665, %v1664
      %v1700 = vpack.c.bf16 %v1667, %v1666
      %v1701 = vpack.c.bf16 %v1669, %v1668
      %v1702 = vpack.c.bf16 %v1671, %v1670
      %v1703 = vpack.c.bf16 %v1673, %v1672
      %v1704 = vpack.c.bf16 %v1675, %v1674
      %v1705 = vpack.c.bf16 %v1677, %v1676
      %v1706 = vpack.c.bf16 %v1679, %v1678
      %v1707 = vpack.c.bf16 %v1681, %v1680
      %v1708 = vpack.c.bf16 %v1683, %v1682
      %v1709 = vpack.c.bf16 %v1685, %v1684
      %v1710 = vpack.c.bf16 %v1687, %v1686
      %v1711 = vpack.c.bf16 %v1689, %v1688
      %v1712 = vpack.c.bf16 %v1691, %v1690
      %v1713 = vpack.c.bf16 %v1693, %v1692
      %v1714 = vpack.c.bf16 %v1695, %v1694
      %v1715 = vpack.c.bf16 %v1697, %v1696
      %s1716 = scalar_lea.vmem %s1, 40
      %v1717 = vld [vmem:[%s1716] sm:$0xf]
      %v1718 = vld [vmem:[%s1716 + $0x4] sm:$0xf]
      %v1721 = vunpack.c.l.b16 %v1717
      %v1722 = vunpack.c.l.b16 %v1718
      %v1723 = vpack.c.b16 %v1722, %v1721
      %v1726 = vsel %vm318, %v1698, 0
      %v1729 = vsel %vm318, %v1699, 0
      %v1732 = vsel %vm318, %v1700, 0
      %v1735 = vsel %vm318, %v1701, 0
      %v1738 = vsel %vm318, %v1702, 0
      %v1741 = vsel %vm318, %v1703, 0
      %v1744 = vsel %vm318, %v1704, 0
      %v1747 = vsel %vm318, %v1705, 0
      %v1750 = vsel %vm318, %v1706, 0
      %v1753 = vsel %vm318, %v1707, 0
      %v1756 = vsel %vm318, %v1708, 0
      %v1759 = vsel %vm318, %v1709, 0
      %v1762 = vsel %vm318, %v1710, 0
      %v1765 = vsel %vm318, %v1711, 0
      %v1768 = vsel %vm318, %v1712, 0
      %v1771 = vsel %vm318, %v1713, 0
      %v1774 = vsel %vm318, %v1714, 0
      %v1777 = vsel %vm318, %v1715, 0
      %1779 = vmatprep.subr.bf16.mxu0 0
      %1780 = vmatpush1.bf16.msra.mxu0 %v1723
      %1781 = vmatprep.subr.bf16.mxu0 0
      %1782 = vmatpush1.bf16.msra.mxu0 0
      %1783 = vmatprep.subr.bf16.mxu0 0
      %1784 = vmatpush1.bf16.msra.mxu0 0
      %1785 = vmatprep.subr.bf16.mxu0 0
      %1786 = vmatpush1.bf16.msra.mxu0 0
      %1787 = vmatprep.subr.bf16.mxu0 0
      %1788 = vmatpush1.bf16.msra.mxu0 0
      %1789 = vmatprep.subr.bf16.mxu0 0
      %1790 = vmatpush1.bf16.msra.mxu0 0
      %1791 = vmatprep.subr.bf16.mxu0 0
      %1792 = vmatpush1.bf16.msra.mxu0 0
      %1793 = vmatprep.subr.bf16.mxu0 0
      %1794 = vmatpush1.bf16.msra.mxu0 0
      %1795 = vmatprep.subr.bf16.mxu0 0
      %1796 = vmatpush1.bf16.msra.mxu0 0
      %1797 = vmatprep.subr.bf16.mxu0 0
      %1798 = vmatpush1.bf16.msra.mxu0 0
      %1799 = vmatprep.subr.bf16.mxu0 0
      %1800 = vmatpush1.bf16.msra.mxu0 0
      %1801 = vmatprep.subr.bf16.mxu0 0
      %1802 = vmatpush1.bf16.msra.mxu0 0
      %1803 = vmatprep.subr.bf16.mxu0 0
      %1804 = vmatpush1.bf16.msra.mxu0 0
      %1805 = vmatprep.subr.bf16.mxu0 0
      %1806 = vmatpush1.bf16.msra.mxu0 0
      %1807 = vmatprep.subr.bf16.mxu0 0
      %1808 = vmatpush1.bf16.msra.mxu0 0
      %1809 = vmatprep.subr.bf16.mxu0 0
      %1810 = vmatpush1.bf16.msra.mxu0 0
      %1811 = vmatprep.mubr.bf16.mxu0 0
      %1812 = vmatmul.mubr.bf16.gmra.mrb[0].mxu0 %v1726
      %v1813 = vpop.f32.mrb[0].mxu0
      %v1814 = vadd.f32 0.0, %v1813
      %v1815 = vpop.f32.mrb[0].mxu0
      %v1816 = vpop.f32.mrb[0].mxu0
      %v1817 = vadd.f32 0.0, %v1816
      %v1818 = vpop.f32.mrb[0].mxu0
      %1819 = vmatprep.mubr.bf16.mxu0 0
      %1820 = vmatmul.mubr.bf16.gmra.mrb[0].mxu0 %v1729
      %v1821 = vpop.f32.mrb[0].mxu0
      %v1822 = vadd.f32 0.0, %v1821
      %v1823 = vpop.f32.mrb[0].mxu0
      %v1824 = vpop.f32.mrb[0].mxu0
      %v1825 = vadd.f32 0.0, %v1824
      %v1826 = vpop.f32.mrb[0].mxu0
      %1827 = vmatprep.mubr.bf16.mxu0 0
      %1828 = vmatmul.mubr.bf16.gmra.mrb[0].mxu0 %v1732
      %v1829 = vpop.f32.mrb[0].mxu0
      %v1830 = vadd.f32 0.0, %v1829
      %v1831 = vpop.f32.mrb[0].mxu0
      %v1832 = vpop.f32.mrb[0].mxu0
      %v1833 = vadd.f32 0.0, %v1832
      %v1834 = vpop.f32.mrb[0].mxu0
      %1835 = vmatprep.mubr.bf16.mxu0 0
      %1836 = vmatmul.mubr.bf16.gmra.mrb[0].mxu0 %v1735
      %v1837 = vpop.f32.mrb[0].mxu0
      %v1838 = vadd.f32 0.0, %v1837
      %v1839 = vpop.f32.mrb[0].mxu0
      %v1840 = vpop.f32.mrb[0].mxu0
      %v1841 = vadd.f32 0.0, %v1840
      %v1842 = vpop.f32.mrb[0].mxu0
      %1843 = vmatprep.mubr.bf16.mxu0 0
      %1844 = vmatmul.mubr.bf16.gmra.mrb[0].mxu0 %v1738
      %v1845 = vpop.f32.mrb[0].mxu0
      %v1846 = vadd.f32 0.0, %v1845
      %v1847 = vpop.f32.mrb[0].mxu0
      %v1848 = vpop.f32.mrb[0].mxu0
      %v1849 = vadd.f32 0.0, %v1848
      %v1850 = vpop.f32.mrb[0].mxu0
      %1851 = vmatprep.mubr.bf16.mxu0 0
      %1852 = vmatmul.mubr.bf16.gmra.mrb[0].mxu0 %v1741
      %v1853 = vpop.f32.mrb[0].mxu0
      %v1854 = vadd.f32 0.0, %v1853
      %v1855 = vpop.f32.mrb[0].mxu0
      %v1856 = vpop.f32.mrb[0].mxu0
      %v1857 = vadd.f32 0.0, %v1856
      %v1858 = vpop.f32.mrb[0].mxu0
      %1859 = vmatprep.mubr.bf16.mxu0 0
      %1860 = vmatmul.mubr.bf16.gmra.mrb[0].mxu0 %v1744
      %v1861 = vpop.f32.mrb[0].mxu0
      %v1862 = vadd.f32 0.0, %v1861
      %v1863 = vpop.f32.mrb[0].mxu0
      %v1864 = vpop.f32.mrb[0].mxu0
      %v1865 = vadd.f32 0.0, %v1864
      %v1866 = vpop.f32.mrb[0].mxu0
      %1867 = vmatprep.mubr.bf16.mxu0 0
      %1868 = vmatmul.mubr.bf16.gmra.mrb[0].mxu0 %v1747
      %v1869 = vpop.f32.mrb[0].mxu0
      %v1870 = vadd.f32 0.0, %v1869
      %v1871 = vpop.f32.mrb[0].mxu0
      %v1872 = vpop.f32.mrb[0].mxu0
      %v1873 = vadd.f32 0.0, %v1872
      %v1874 = vpop.f32.mrb[0].mxu0
      %1875 = vmatprep.mubr.bf16.mxu0 0
      %1876 = vmatmul.mubr.bf16.gmra.mrb[0].mxu0 %v1750
      %v1877 = vpop.f32.mrb[0].mxu0
      %v1878 = vadd.f32 0.0, %v1877
      %v1879 = vpop.f32.mrb[0].mxu0
      %v1880 = vpop.f32.mrb[0].mxu0
      %v1881 = vadd.f32 0.0, %v1880
      %v1882 = vpop.f32.mrb[0].mxu0
      %1883 = vmatprep.mubr.bf16.mxu0 0
      %1884 = vmatmul.mubr.bf16.gmra.mrb[0].mxu0 %v1753
      %v1885 = vpop.f32.mrb[0].mxu0
      %v1886 = vadd.f32 0.0, %v1885
      %v1887 = vpop.f32.mrb[0].mxu0
      %v1888 = vpop.f32.mrb[0].mxu0
      %v1889 = vadd.f32 0.0, %v1888
      %v1890 = vpop.f32.mrb[0].mxu0
      %1891 = vmatprep.mubr.bf16.mxu0 0
      %1892 = vmatmul.mubr.bf16.gmra.mrb[0].mxu0 %v1756
      %v1893 = vpop.f32.mrb[0].mxu0
      %v1894 = vadd.f32 0.0, %v1893
      %v1895 = vpop.f32.mrb[0].mxu0
      %v1896 = vpop.f32.mrb[0].mxu0
      %v1897 = vadd.f32 0.0, %v1896
      %v1898 = vpop.f32.mrb[0].mxu0
      %1899 = vmatprep.mubr.bf16.mxu0 0
      %1900 = vmatmul.mubr.bf16.gmra.mrb[0].mxu0 %v1759
      %v1901 = vpop.f32.mrb[0].mxu0
      %v1902 = vadd.f32 0.0, %v1901
      %v1903 = vpop.f32.mrb[0].mxu0
      %v1904 = vpop.f32.mrb[0].mxu0
      %v1905 = vadd.f32 0.0, %v1904
      %v1906 = vpop.f32.mrb[0].mxu0
      %1907 = vmatprep.mubr.bf16.mxu0 0
      %1908 = vmatmul.mubr.bf16.gmra.mrb[0].mxu0 %v1762
      %v1909 = vpop.f32.mrb[0].mxu0
      %v1910 = vadd.f32 0.0, %v1909
      %v1911 = vpop.f32.mrb[0].mxu0
      %v1912 = vpop.f32.mrb[0].mxu0
      %v1913 = vadd.f32 0.0, %v1912
      %v1914 = vpop.f32.mrb[0].mxu0
      %1915 = vmatprep.mubr.bf16.mxu0 0
      %1916 = vmatmul.mubr.bf16.gmra.mrb[0].mxu0 %v1765
      %v1917 = vpop.f32.mrb[0].mxu0
      %v1918 = vadd.f32 0.0, %v1917
      %v1919 = vpop.f32.mrb[0].mxu0
      %v1920 = vpop.f32.mrb[0].mxu0
      %v1921 = vadd.f32 0.0, %v1920
      %v1922 = vpop.f32.mrb[0].mxu0
      %1923 = vmatprep.mubr.bf16.mxu0 0
      %1924 = vmatmul.mubr.bf16.gmra.mrb[0].mxu0 %v1768
      %v1925 = vpop.f32.mrb[0].mxu0
      %v1926 = vadd.f32 0.0, %v1925
      %v1927 = vpop.f32.mrb[0].mxu0
      %v1928 = vpop.f32.mrb[0].mxu0
      %v1929 = vadd.f32 0.0, %v1928
      %v1930 = vpop.f32.mrb[0].mxu0
      %1931 = vmatprep.mubr.bf16.mxu0 0
      %1932 = vmatmul.mubr.bf16.gmra.mrb[0].mxu0 %v1771
      %v1933 = vpop.f32.mrb[0].mxu0
      %v1934 = vadd.f32 0.0, %v1933
      %v1935 = vpop.f32.mrb[0].mxu0
      %v1936 = vpop.f32.mrb[0].mxu0
      %v1937 = vadd.f32 0.0, %v1936
      %v1938 = vpop.f32.mrb[0].mxu0
      %1939 = vmatprep.mubr.bf16.mxu0 0
      %1940 = vmatmul.mubr.bf16.gmra.mrb[0].mxu0 %v1774
      %v1941 = vpop.f32.mrb[0].mxu0
      %v1942 = vadd.f32 0.0, %v1941
      %v1943 = vpop.f32.mrb[0].mxu0
      %v1944 = vpop.f32.mrb[0].mxu0
      %v1945 = vadd.f32 0.0, %v1944
      %v1946 = vpop.f32.mrb[0].mxu0
      %1947 = vmatprep.mubr.bf16.mxu0 0
      %1948 = vmatmul.mubr.bf16.gmra.mrb[0].mxu0 %v1777
      %v1949 = vpop.f32.mrb[0].mxu0
      %v1950 = vadd.f32 0.0, %v1949
      %v1951 = vpop.f32.mrb[0].mxu0
      %v1952 = vpop.f32.mrb[0].mxu0
      %v1953 = vadd.f32 0.0, %v1952
      %v1954 = vpop.f32.mrb[0].mxu0
      %1955 = vdwg.mxu0
      %v1958 = vunpack.c.l.b16 %v1660
      %v1959 = vunpack.c.l.b16 %v1661
      %v1960 = vpack.c.b16 %v1959, %v1958
      %v1963 = vsel %vm318, %v1641, 0
      %v1966 = vsel %vm318, %v1642, 0
      %v1969 = vsel %vm318, %v1643, 0
      %v1972 = vsel %vm318, %v1644, 0
      %v1975 = vsel %vm318, %v1645, 0
      %v1978 = vsel %vm318, %v1646, 0
      %v1981 = vsel %vm318, %v1647, 0
      %v1984 = vsel %vm318, %v1648, 0
      %v1987 = vsel %vm318, %v1649, 0
      %v1990 = vsel %vm318, %v1650, 0
      %v1993 = vsel %vm318, %v1651, 0
      %v1996 = vsel %vm318, %v1652, 0
      %v1999 = vsel %vm318, %v1653, 0
      %v2002 = vsel %vm318, %v1654, 0
      %v2005 = vsel %vm318, %v1655, 0
      %v2008 = vsel %vm318, %v1656, 0
      %v2011 = vsel %vm318, %v1657, 0
      %v2014 = vsel %vm318, %v1658, 0
      %2016 = vmatprep.subr.bf16.mxu0 0
      %2017 = vmatpush1.bf16.msra.mxu0 %v1960
      %2018 = vmatprep.subr.bf16.mxu0 0
      %2019 = vmatpush1.bf16.msra.mxu0 0
      %2020 = vmatprep.subr.bf16.mxu0 0
      %2021 = vmatpush1.bf16.msra.mxu0 0
      %2022 = vmatprep.subr.bf16.mxu0 0
      %2023 = vmatpush1.bf16.msra.mxu0 0
      %2024 = vmatprep.subr.bf16.mxu0 0
      %2025 = vmatpush1.bf16.msra.mxu0 0
      %2026 = vmatprep.subr.bf16.mxu0 0
      %2027 = vmatpush1.bf16.msra.mxu0 0
      %2028 = vmatprep.subr.bf16.mxu0 0
      %2029 = vmatpush1.bf16.msra.mxu0 0
      %2030 = vmatprep.subr.bf16.mxu0 0
      %2031 = vmatpush1.bf16.msra.mxu0 0
      %2032 = vmatprep.subr.bf16.mxu0 0
      %2033 = vmatpush1.bf16.msra.mxu0 0
      %2034 = vmatprep.subr.bf16.mxu0 0
      %2035 = vmatpush1.bf16.msra.mxu0 0
      %2036 = vmatprep.subr.bf16.mxu0 0
      %2037 = vmatpush1.bf16.msra.mxu0 0
      %2038 = vmatprep.subr.bf16.mxu0 0
      %2039 = vmatpush1.bf16.msra.mxu0 0
      %2040 = vmatprep.subr.bf16.mxu0 0
      %2041 = vmatpush1.bf16.msra.mxu0 0
      %2042 = vmatprep.subr.bf16.mxu0 0
      %2043 = vmatpush1.bf16.msra.mxu0 0
      %2044 = vmatprep.subr.bf16.mxu0 0
      %2045 = vmatpush1.bf16.msra.mxu0 0
      %2046 = vmatprep.subr.bf16.mxu0 0
      %2047 = vmatpush1.bf16.msra.mxu0 0
      %2048 = vmatprep.mubr.bf16.mxu0 0
      %2049 = vmatmul.mubr.bf16.gmra.mrb[0].mxu0 %v1963
      %v2050 = vpop.f32.mrb[0].mxu0
      %v2051 = vadd.f32 %v1814, %v2050
      %v2052 = vpop.f32.mrb[0].mxu0
      %v2053 = vpop.f32.mrb[0].mxu0
      %v2054 = vadd.f32 %v1817, %v2053
      %v2055 = vpop.f32.mrb[0].mxu0
      %2056 = vmatprep.mubr.bf16.mxu0 0
      %2057 = vmatmul.mubr.bf16.gmra.mrb[0].mxu0 %v1966
      %v2058 = vpop.f32.mrb[0].mxu0
      %v2059 = vadd.f32 %v1822, %v2058
      %v2060 = vpop.f32.mrb[0].mxu0
      %v2061 = vpop.f32.mrb[0].mxu0
      %v2062 = vadd.f32 %v1825, %v2061
      %v2063 = vpop.f32.mrb[0].mxu0
      %2064 = vmatprep.mubr.bf16.mxu0 0
      %2065 = vmatmul.mubr.bf16.gmra.mrb[0].mxu0 %v1969
      %v2066 = vpop.f32.mrb[0].mxu0
      %v2067 = vadd.f32 %v1830, %v2066
      %v2068 = vpop.f32.mrb[0].mxu0
      %v2069 = vpop.f32.mrb[0].mxu0
      %v2070 = vadd.f32 %v1833, %v2069
      %v2071 = vpop.f32.mrb[0].mxu0
      %2072 = vmatprep.mubr.bf16.mxu0 0
      %2073 = vmatmul.mubr.bf16.gmra.mrb[0].mxu0 %v1972
      %v2074 = vpop.f32.mrb[0].mxu0
      %v2075 = vadd.f32 %v1838, %v2074
      %v2076 = vpop.f32.mrb[0].mxu0
      %v2077 = vpop.f32.mrb[0].mxu0
      %v2078 = vadd.f32 %v1841, %v2077
      %v2079 = vpop.f32.mrb[0].mxu0
      %2080 = vmatprep.mubr.bf16.mxu0 0
      %2081 = vmatmul.mubr.bf16.gmra.mrb[0].mxu0 %v1975
      %v2082 = vpop.f32.mrb[0].mxu0
      %v2083 = vadd.f32 %v1846, %v2082
      %v2084 = vpop.f32.mrb[0].mxu0
      %v2085 = vpop.f32.mrb[0].mxu0
      %v2086 = vadd.f32 %v1849, %v2085
      %v2087 = vpop.f32.mrb[0].mxu0
      %2088 = vmatprep.mubr.bf16.mxu0 0
      %2089 = vmatmul.mubr.bf16.gmra.mrb[0].mxu0 %v1978
      %v2090 = vpop.f32.mrb[0].mxu0
      %v2091 = vadd.f32 %v1854, %v2090
      %v2092 = vpop.f32.mrb[0].mxu0
      %v2093 = vpop.f32.mrb[0].mxu0
      %v2094 = vadd.f32 %v1857, %v2093
      %v2095 = vpop.f32.mrb[0].mxu0
      %2096 = vmatprep.mubr.bf16.mxu0 0
      %2097 = vmatmul.mubr.bf16.gmra.mrb[0].mxu0 %v1981
      %v2098 = vpop.f32.mrb[0].mxu0
      %v2099 = vadd.f32 %v1862, %v2098
      %v2100 = vpop.f32.mrb[0].mxu0
      %v2101 = vpop.f32.mrb[0].mxu0
      %v2102 = vadd.f32 %v1865, %v2101
      %v2103 = vpop.f32.mrb[0].mxu0
      %2104 = vmatprep.mubr.bf16.mxu0 0
      %2105 = vmatmul.mubr.bf16.gmra.mrb[0].mxu0 %v1984
      %v2106 = vpop.f32.mrb[0].mxu0
      %v2107 = vadd.f32 %v1870, %v2106
      %v2108 = vpop.f32.mrb[0].mxu0
      %v2109 = vpop.f32.mrb[0].mxu0
      %v2110 = vadd.f32 %v1873, %v2109
      %v2111 = vpop.f32.mrb[0].mxu0
      %2112 = vmatprep.mubr.bf16.mxu0 0
      %2113 = vmatmul.mubr.bf16.gmra.mrb[0].mxu0 %v1987
      %v2114 = vpop.f32.mrb[0].mxu0
      %v2115 = vadd.f32 %v1878, %v2114
      %v2116 = vpop.f32.mrb[0].mxu0
      %v2117 = vpop.f32.mrb[0].mxu0
      %v2118 = vadd.f32 %v1881, %v2117
      %v2119 = vpop.f32.mrb[0].mxu0
      %2120 = vmatprep.mubr.bf16.mxu0 0
      %2121 = vmatmul.mubr.bf16.gmra.mrb[0].mxu0 %v1990
      %v2122 = vpop.f32.mrb[0].mxu0
      %v2123 = vadd.f32 %v1886, %v2122
      %v2124 = vpop.f32.mrb[0].mxu0
      %v2125 = vpop.f32.mrb[0].mxu0
      %v2126 = vadd.f32 %v1889, %v2125
      %v2127 = vpop.f32.mrb[0].mxu0
      %2128 = vmatprep.mubr.bf16.mxu0 0
      %2129 = vmatmul.mubr.bf16.gmra.mrb[0].mxu0 %v1993
      %v2130 = vpop.f32.mrb[0].mxu0
      %v2131 = vadd.f32 %v1894, %v2130
      %v2132 = vpop.f32.mrb[0].mxu0
      %v2133 = vpop.f32.mrb[0].mxu0
      %v2134 = vadd.f32 %v1897, %v2133
      %v2135 = vpop.f32.mrb[0].mxu0
      %2136 = vmatprep.mubr.bf16.mxu0 0
      %2137 = vmatmul.mubr.bf16.gmra.mrb[0].mxu0 %v1996
      %v2138 = vpop.f32.mrb[0].mxu0
      %v2139 = vadd.f32 %v1902, %v2138
      %v2140 = vpop.f32.mrb[0].mxu0
      %v2141 = vpop.f32.mrb[0].mxu0
      %v2142 = vadd.f32 %v1905, %v2141
      %v2143 = vpop.f32.mrb[0].mxu0
      %2144 = vmatprep.mubr.bf16.mxu0 0
      %2145 = vmatmul.mubr.bf16.gmra.mrb[0].mxu0 %v1999
      %v2146 = vpop.f32.mrb[0].mxu0
      %v2147 = vadd.f32 %v1910, %v2146
      %v2148 = vpop.f32.mrb[0].mxu0
      %v2149 = vpop.f32.mrb[0].mxu0
      %v2150 = vadd.f32 %v1913, %v2149
      %v2151 = vpop.f32.mrb[0].mxu0
      %2152 = vmatprep.mubr.bf16.mxu0 0
      %2153 = vmatmul.mubr.bf16.gmra.mrb[0].mxu0 %v2002
      %v2154 = vpop.f32.mrb[0].mxu0
      %v2155 = vadd.f32 %v1918, %v2154
      %v2156 = vpop.f32.mrb[0].mxu0
      %v2157 = vpop.f32.mrb[0].mxu0
      %v2158 = vadd.f32 %v1921, %v2157
      %v2159 = vpop.f32.mrb[0].mxu0
      %2160 = vmatprep.mubr.bf16.mxu0 0
      %2161 = vmatmul.mubr.bf16.gmra.mrb[0].mxu0 %v2005
      %v2162 = vpop.f32.mrb[0].mxu0
      %v2163 = vadd.f32 %v1926, %v2162
      %v2164 = vpop.f32.mrb[0].mxu0
      %v2165 = vpop.f32.mrb[0].mxu0
      %v2166 = vadd.f32 %v1929, %v2165
      %v2167 = vpop.f32.mrb[0].mxu0
      %2168 = vmatprep.mubr.bf16.mxu0 0
      %2169 = vmatmul.mubr.bf16.gmra.mrb[0].mxu0 %v2008
      %v2170 = vpop.f32.mrb[0].mxu0
      %v2171 = vadd.f32 %v1934, %v2170
      %v2172 = vpop.f32.mrb[0].mxu0
      %v2173 = vpop.f32.mrb[0].mxu0
      %v2174 = vadd.f32 %v1937, %v2173
      %v2175 = vpop.f32.mrb[0].mxu0
      %2176 = vmatprep.mubr.bf16.mxu0 0
      %2177 = vmatmul.mubr.bf16.gmra.mrb[0].mxu0 %v2011
      %v2178 = vpop.f32.mrb[0].mxu0
      %v2179 = vadd.f32 %v1942, %v2178
      %v2180 = vpop.f32.mrb[0].mxu0
      %v2181 = vpop.f32.mrb[0].mxu0
      %v2182 = vadd.f32 %v1945, %v2181
      %v2183 = vpop.f32.mrb[0].mxu0
      %2184 = vmatprep.mubr.bf16.mxu0 0
      %2185 = vmatmul.mubr.bf16.gmra.mrb[0].mxu0 %v2014
      %v2186 = vpop.f32.mrb[0].mxu0
      %v2187 = vadd.f32 %v1950, %v2186
      %v2188 = vpop.f32.mrb[0].mxu0
      %v2189 = vpop.f32.mrb[0].mxu0
      %v2190 = vadd.f32 %v1953, %v2189
      %v2191 = vpop.f32.mrb[0].mxu0
      %2192 = vdwg.mxu0
      %v2193 = vld [vmem:[%s192 + $0x13] sm:$0xff]
      %v2194 = vld [vmem:[%s192 + $0x1b] sm:$0xff]
      %v2195 = vld [vmem:[%s192 + $0x23] sm:$0xff]
      %v2196 = vld [vmem:[%s192 + $0x2b] sm:$0xff]
      %v2197 = vld [vmem:[%s192 + $0x33] sm:$0xff]
      %v2198 = vld [vmem:[%s192 + $0x3b] sm:$0xff]
      %v2199 = vld [vmem:[%s192 + $0x43] sm:$0xff]
      %v2200 = vld [vmem:[%s192 + $0x4b] sm:$0xff]
      %v2201 = vld [vmem:[%s192 + $0x53] sm:$0xff]
      %v2202 = vld [vmem:[%s192 + $0x5b] sm:$0xff]
      %v2203 = vld [vmem:[%s192 + $0x63] sm:$0xff]
      %v2204 = vld [vmem:[%s192 + $0x6b] sm:$0xff]
      %v2205 = vld [vmem:[%s192 + $0x73] sm:$0xff]
      %v2206 = vld [vmem:[%s192 + $0x7b] sm:$0xff]
      %v2207 = vld [vmem:[%s192 + $0x83] sm:$0xff]
      %v2208 = vld [vmem:[%s192 + $0x8b] sm:$0xff]
      %v2209 = vld [vmem:[%s192 + $0x93] sm:$0xff]
      %v2210 = vld [vmem:[%s192 + $0x9b] sm:$0xff]
      %v2211 = vld [vmem:[%s192 + $0xa3] sm:$0xff]
      %v2212 = vld [vmem:[%s192 + $0xab] sm:$0xff]
      %v2213 = vld [vmem:[%s192 + $0xb3] sm:$0xff]
      %v2214 = vld [vmem:[%s192 + $0xbb] sm:$0xff]
      %v2215 = vld [vmem:[%s192 + $0xc3] sm:$0xff]
      %v2216 = vld [vmem:[%s192 + $0xcb] sm:$0xff]
      %v2217 = vld [vmem:[%s192 + $0xd3] sm:$0xff]
      %v2218 = vld [vmem:[%s192 + $0xdb] sm:$0xff]
      %v2219 = vld [vmem:[%s192 + $0xe3] sm:$0xff]
      %v2220 = vld [vmem:[%s192 + $0xeb] sm:$0xff]
      %v2221 = vld [vmem:[%s192 + $0xf3] sm:$0xff]
      %v2222 = vld [vmem:[%s192 + $0xfb] sm:$0xff]
      %v2223 = vld [vmem:[%s192 + $0x103] sm:$0xff]
      %v2224 = vld [vmem:[%s192 + $0x10b] sm:$0xff]
      %v2225 = vld [vmem:[%s192 + $0x113] sm:$0xff]
      %v2226 = vld [vmem:[%s192 + $0x11b] sm:$0xff]
      %v2227 = vld [vmem:[%s192 + $0x123] sm:$0xff]
      %v2228 = vld [vmem:[%s192 + $0x12b] sm:$0xff]
      %v2229 = vpack.c.bf16 %v2194, %v2193
      %v2230 = vpack.c.bf16 %v2196, %v2195
      %v2231 = vpack.c.bf16 %v2198, %v2197
      %v2232 = vpack.c.bf16 %v2200, %v2199
      %v2233 = vpack.c.bf16 %v2202, %v2201
      %v2234 = vpack.c.bf16 %v2204, %v2203
      %v2235 = vpack.c.bf16 %v2206, %v2205
      %v2236 = vpack.c.bf16 %v2208, %v2207
      %v2237 = vpack.c.bf16 %v2210, %v2209
      %v2238 = vpack.c.bf16 %v2212, %v2211
      %v2239 = vpack.c.bf16 %v2214, %v2213
      %v2240 = vpack.c.bf16 %v2216, %v2215
      %v2241 = vpack.c.bf16 %v2218, %v2217
      %v2242 = vpack.c.bf16 %v2220, %v2219
      %v2243 = vpack.c.bf16 %v2222, %v2221
      %v2244 = vpack.c.bf16 %v2224, %v2223
      %v2245 = vpack.c.bf16 %v2226, %v2225
      %v2246 = vpack.c.bf16 %v2228, %v2227
      %s2247 = scalar_lea.vmem %s1, 48
      %v2248 = vld [vmem:[%s2247] sm:$0xf]
      %v2249 = vld [vmem:[%s2247 + $0x4] sm:$0xf]
      %v2252 = vunpack.c.l.b16 %v2248
      %v2253 = vunpack.c.l.b16 %v2249
      %v2254 = vpack.c.b16 %v2253, %v2252
      %v2257 = vsel %vm318, %v2229, 0
      %v2260 = vsel %vm318, %v2230, 0
      %v2263 = vsel %vm318, %v2231, 0
      %v2266 = vsel %vm318, %v2232, 0
      %v2269 = vsel %vm318, %v2233, 0
      %v2272 = vsel %vm318, %v2234, 0
      %v2275 = vsel %vm318, %v2235, 0
      %v2278 = vsel %vm318, %v2236, 0
      %v2281 = vsel %vm318, %v2237, 0
      %v2284 = vsel %vm318, %v2238, 0
      %v2287 = vsel %vm318, %v2239, 0
      %v2290 = vsel %vm318, %v2240, 0
      %v2293 = vsel %vm318, %v2241, 0
      %v2296 = vsel %vm318, %v2242, 0
      %v2299 = vsel %vm318, %v2243, 0
      %v2302 = vsel %vm318, %v2244, 0
      %v2305 = vsel %vm318, %v2245, 0
      %v2308 = vsel %vm318, %v2246, 0
      %2310 = vmatprep.subr.bf16.mxu0 0
      %2311 = vmatpush1.bf16.msra.mxu0 %v2254
      %2312 = vmatprep.subr.bf16.mxu0 0
      %2313 = vmatpush1.bf16.msra.mxu0 0
      %2314 = vmatprep.subr.bf16.mxu0 0
      %2315 = vmatpush1.bf16.msra.mxu0 0
      %2316 = vmatprep.subr.bf16.mxu0 0
      %2317 = vmatpush1.bf16.msra.mxu0 0
      %2318 = vmatprep.subr.bf16.mxu0 0
      %2319 = vmatpush1.bf16.msra.mxu0 0
      %2320 = vmatprep.subr.bf16.mxu0 0
      %2321 = vmatpush1.bf16.msra.mxu0 0
      %2322 = vmatprep.subr.bf16.mxu0 0
      %2323 = vmatpush1.bf16.msra.mxu0 0
      %2324 = vmatprep.subr.bf16.mxu0 0
      %2325 = vmatpush1.bf16.msra.mxu0 0
      %2326 = vmatprep.subr.bf16.mxu0 0
      %2327 = vmatpush1.bf16.msra.mxu0 0
      %2328 = vmatprep.subr.bf16.mxu0 0
      %2329 = vmatpush1.bf16.msra.mxu0 0
      %2330 = vmatprep.subr.bf16.mxu0 0
      %2331 = vmatpush1.bf16.msra.mxu0 0
      %2332 = vmatprep.subr.bf16.mxu0 0
      %2333 = vmatpush1.bf16.msra.mxu0 0
      %2334 = vmatprep.subr.bf16.mxu0 0
      %2335 = vmatpush1.bf16.msra.mxu0 0
      %2336 = vmatprep.subr.bf16.mxu0 0
      %2337 = vmatpush1.bf16.msra.mxu0 0
      %2338 = vmatprep.subr.bf16.mxu0 0
      %2339 = vmatpush1.bf16.msra.mxu0 0
      %2340 = vmatprep.subr.bf16.mxu0 0
      %2341 = vmatpush1.bf16.msra.mxu0 0
      %2342 = vmatprep.mubr.bf16.mxu0 0
      %2343 = vmatmul.mubr.bf16.gmra.mrb[0].mxu0 %v2257
      %v2344 = vpop.f32.mrb[0].mxu0
      %v2345 = vadd.f32 0.0, %v2344
      %v2346 = vpop.f32.mrb[0].mxu0
      %v2347 = vpop.f32.mrb[0].mxu0
      %v2348 = vadd.f32 0.0, %v2347
      %v2349 = vpop.f32.mrb[0].mxu0
      %2350 = vmatprep.mubr.bf16.mxu0 0
      %2351 = vmatmul.mubr.bf16.gmra.mrb[0].mxu0 %v2260
      %v2352 = vpop.f32.mrb[0].mxu0
      %v2353 = vadd.f32 0.0, %v2352
      %v2354 = vpop.f32.mrb[0].mxu0
      %v2355 = vpop.f32.mrb[0].mxu0
      %v2356 = vadd.f32 0.0, %v2355
      %v2357 = vpop.f32.mrb[0].mxu0
      %2358 = vmatprep.mubr.bf16.mxu0 0
      %2359 = vmatmul.mubr.bf16.gmra.mrb[0].mxu0 %v2263
      %v2360 = vpop.f32.mrb[0].mxu0
      %v2361 = vadd.f32 0.0, %v2360
      %v2362 = vpop.f32.mrb[0].mxu0
      %v2363 = vpop.f32.mrb[0].mxu0
      %v2364 = vadd.f32 0.0, %v2363
      %v2365 = vpop.f32.mrb[0].mxu0
      %2366 = vmatprep.mubr.bf16.mxu0 0
      %2367 = vmatmul.mubr.bf16.gmra.mrb[0].mxu0 %v2266
      %v2368 = vpop.f32.mrb[0].mxu0
      %v2369 = vadd.f32 0.0, %v2368
      %v2370 = vpop.f32.mrb[0].mxu0
      %v2371 = vpop.f32.mrb[0].mxu0
      %v2372 = vadd.f32 0.0, %v2371
      %v2373 = vpop.f32.mrb[0].mxu0
      %2374 = vmatprep.mubr.bf16.mxu0 0
      %2375 = vmatmul.mubr.bf16.gmra.mrb[0].mxu0 %v2269
      %v2376 = vpop.f32.mrb[0].mxu0
      %v2377 = vadd.f32 0.0, %v2376
      %v2378 = vpop.f32.mrb[0].mxu0
      %v2379 = vpop.f32.mrb[0].mxu0
      %v2380 = vadd.f32 0.0, %v2379
      %v2381 = vpop.f32.mrb[0].mxu0
      %2382 = vmatprep.mubr.bf16.mxu0 0
      %2383 = vmatmul.mubr.bf16.gmra.mrb[0].mxu0 %v2272
      %v2384 = vpop.f32.mrb[0].mxu0
      %v2385 = vadd.f32 0.0, %v2384
      %v2386 = vpop.f32.mrb[0].mxu0
      %v2387 = vpop.f32.mrb[0].mxu0
      %v2388 = vadd.f32 0.0, %v2387
      %v2389 = vpop.f32.mrb[0].mxu0
      %2390 = vmatprep.mubr.bf16.mxu0 0
      %2391 = vmatmul.mubr.bf16.gmra.mrb[0].mxu0 %v2275
      %v2392 = vpop.f32.mrb[0].mxu0
      %v2393 = vadd.f32 0.0, %v2392
      %v2394 = vpop.f32.mrb[0].mxu0
      %v2395 = vpop.f32.mrb[0].mxu0
      %v2396 = vadd.f32 0.0, %v2395
      %v2397 = vpop.f32.mrb[0].mxu0
      %2398 = vmatprep.mubr.bf16.mxu0 0
      %2399 = vmatmul.mubr.bf16.gmra.mrb[0].mxu0 %v2278
      %v2400 = vpop.f32.mrb[0].mxu0
      %v2401 = vadd.f32 0.0, %v2400
      %v2402 = vpop.f32.mrb[0].mxu0
      %v2403 = vpop.f32.mrb[0].mxu0
      %v2404 = vadd.f32 0.0, %v2403
      %v2405 = vpop.f32.mrb[0].mxu0
      %2406 = vmatprep.mubr.bf16.mxu0 0
      %2407 = vmatmul.mubr.bf16.gmra.mrb[0].mxu0 %v2281
      %v2408 = vpop.f32.mrb[0].mxu0
      %v2409 = vadd.f32 0.0, %v2408
      %v2410 = vpop.f32.mrb[0].mxu0
      %v2411 = vpop.f32.mrb[0].mxu0
      %v2412 = vadd.f32 0.0, %v2411
      %v2413 = vpop.f32.mrb[0].mxu0
      %2414 = vmatprep.mubr.bf16.mxu0 0
      %2415 = vmatmul.mubr.bf16.gmra.mrb[0].mxu0 %v2284
      %v2416 = vpop.f32.mrb[0].mxu0
      %v2417 = vadd.f32 0.0, %v2416
      %v2418 = vpop.f32.mrb[0].mxu0
      %v2419 = vpop.f32.mrb[0].mxu0
      %v2420 = vadd.f32 0.0, %v2419
      %v2421 = vpop.f32.mrb[0].mxu0
      %2422 = vmatprep.mubr.bf16.mxu0 0
      %2423 = vmatmul.mubr.bf16.gmra.mrb[0].mxu0 %v2287
      %v2424 = vpop.f32.mrb[0].mxu0
      %v2425 = vadd.f32 0.0, %v2424
      %v2426 = vpop.f32.mrb[0].mxu0
      %v2427 = vpop.f32.mrb[0].mxu0
      %v2428 = vadd.f32 0.0, %v2427
      %v2429 = vpop.f32.mrb[0].mxu0
      %2430 = vmatprep.mubr.bf16.mxu0 0
      %2431 = vmatmul.mubr.bf16.gmra.mrb[0].mxu0 %v2290
      %v2432 = vpop.f32.mrb[0].mxu0
      %v2433 = vadd.f32 0.0, %v2432
      %v2434 = vpop.f32.mrb[0].mxu0
      %v2435 = vpop.f32.mrb[0].mxu0
      %v2436 = vadd.f32 0.0, %v2435
      %v2437 = vpop.f32.mrb[0].mxu0
      %2438 = vmatprep.mubr.bf16.mxu0 0
      %2439 = vmatmul.mubr.bf16.gmra.mrb[0].mxu0 %v2293
      %v2440 = vpop.f32.mrb[0].mxu0
      %v2441 = vadd.f32 0.0, %v2440
      %v2442 = vpop.f32.mrb[0].mxu0
      %v2443 = vpop.f32.mrb[0].mxu0
      %v2444 = vadd.f32 0.0, %v2443
      %v2445 = vpop.f32.mrb[0].mxu0
      %2446 = vmatprep.mubr.bf16.mxu0 0
      %2447 = vmatmul.mubr.bf16.gmra.mrb[0].mxu0 %v2296
      %v2448 = vpop.f32.mrb[0].mxu0
      %v2449 = vadd.f32 0.0, %v2448
      %v2450 = vpop.f32.mrb[0].mxu0
      %v2451 = vpop.f32.mrb[0].mxu0
      %v2452 = vadd.f32 0.0, %v2451
      %v2453 = vpop.f32.mrb[0].mxu0
      %2454 = vmatprep.mubr.bf16.mxu0 0
      %2455 = vmatmul.mubr.bf16.gmra.mrb[0].mxu0 %v2299
      %v2456 = vpop.f32.mrb[0].mxu0
      %v2457 = vadd.f32 0.0, %v2456
      %v2458 = vpop.f32.mrb[0].mxu0
      %v2459 = vpop.f32.mrb[0].mxu0
      %v2460 = vadd.f32 0.0, %v2459
      %v2461 = vpop.f32.mrb[0].mxu0
      %2462 = vmatprep.mubr.bf16.mxu0 0
      %2463 = vmatmul.mubr.bf16.gmra.mrb[0].mxu0 %v2302
      %v2464 = vpop.f32.mrb[0].mxu0
      %v2465 = vadd.f32 0.0, %v2464
      %v2466 = vpop.f32.mrb[0].mxu0
      %v2467 = vpop.f32.mrb[0].mxu0
      %v2468 = vadd.f32 0.0, %v2467
      %v2469 = vpop.f32.mrb[0].mxu0
      %2470 = vmatprep.mubr.bf16.mxu0 0
      %2471 = vmatmul.mubr.bf16.gmra.mrb[0].mxu0 %v2305
      %v2472 = vpop.f32.mrb[0].mxu0
      %v2473 = vadd.f32 0.0, %v2472
      %v2474 = vpop.f32.mrb[0].mxu0
      %v2475 = vpop.f32.mrb[0].mxu0
      %v2476 = vadd.f32 0.0, %v2475
      %v2477 = vpop.f32.mrb[0].mxu0
      %2478 = vmatprep.mubr.bf16.mxu0 0
      %2479 = vmatmul.mubr.bf16.gmra.mrb[0].mxu0 %v2308
      %v2480 = vpop.f32.mrb[0].mxu0
      %v2481 = vadd.f32 0.0, %v2480
      %v2482 = vpop.f32.mrb[0].mxu0
      %v2483 = vpop.f32.mrb[0].mxu0
      %v2484 = vadd.f32 0.0, %v2483
      %v2485 = vpop.f32.mrb[0].mxu0
      %2486 = vdwg.mxu0
      %v2487 = vadd.f32 %v2051, %v2345
      %v2488 = vadd.f32 %v2054, %v2348
      %v2489 = vadd.f32 %v2059, %v2353
      %v2490 = vadd.f32 %v2062, %v2356
      %v2491 = vadd.f32 %v2067, %v2361
      %v2492 = vadd.f32 %v2070, %v2364
      %v2493 = vadd.f32 %v2075, %v2369
      %v2494 = vadd.f32 %v2078, %v2372
      %v2495 = vadd.f32 %v2083, %v2377
      %v2496 = vadd.f32 %v2086, %v2380
      %v2497 = vadd.f32 %v2091, %v2385
      %v2498 = vadd.f32 %v2094, %v2388
      %v2499 = vadd.f32 %v2099, %v2393
      %v2500 = vadd.f32 %v2102, %v2396
      %v2501 = vadd.f32 %v2107, %v2401
      %v2502 = vadd.f32 %v2110, %v2404
      %v2503 = vadd.f32 %v2115, %v2409
      %v2504 = vadd.f32 %v2118, %v2412
      %v2505 = vadd.f32 %v2123, %v2417
      %v2506 = vadd.f32 %v2126, %v2420
      %v2507 = vadd.f32 %v2131, %v2425
      %v2508 = vadd.f32 %v2134, %v2428
      %v2509 = vadd.f32 %v2139, %v2433
      %v2510 = vadd.f32 %v2142, %v2436
      %v2511 = vadd.f32 %v2147, %v2441
      %v2512 = vadd.f32 %v2150, %v2444
      %v2513 = vadd.f32 %v2155, %v2449
      %v2514 = vadd.f32 %v2158, %v2452
      %v2515 = vadd.f32 %v2163, %v2457
      %v2516 = vadd.f32 %v2166, %v2460
      %v2517 = vadd.f32 %v2171, %v2465
      %v2518 = vadd.f32 %v2174, %v2468
      %v2519 = vadd.f32 %v2179, %v2473
      %v2520 = vadd.f32 %v2182, %v2476
      %v2521 = vadd.f32 %v2187, %v2481
      %v2522 = vadd.f32 %v2190, %v2484
      %v2523 = vld [vmem:[%s192 + $0x14] sm:$0xff]
      %v2524 = vld [vmem:[%s192 + $0x1c] sm:$0xff]
      %v2525 = vld [vmem:[%s192 + $0x24] sm:$0xff]
      %v2526 = vld [vmem:[%s192 + $0x2c] sm:$0xff]
      %v2527 = vld [vmem:[%s192 + $0x34] sm:$0xff]
      %v2528 = vld [vmem:[%s192 + $0x3c] sm:$0xff]
      %v2529 = vld [vmem:[%s192 + $0x44] sm:$0xff]
      %v2530 = vld [vmem:[%s192 + $0x4c] sm:$0xff]
      %v2531 = vld [vmem:[%s192 + $0x54] sm:$0xff]
      %v2532 = vld [vmem:[%s192 + $0x5c] sm:$0xff]
      %v2533 = vld [vmem:[%s192 + $0x64] sm:$0xff]
      %v2534 = vld [vmem:[%s192 + $0x6c] sm:$0xff]
      %v2535 = vld [vmem:[%s192 + $0x74] sm:$0xff]
      %v2536 = vld [vmem:[%s192 + $0x7c] sm:$0xff]
      %v2537 = vld [vmem:[%s192 + $0x84] sm:$0xff]
      %v2538 = vld [vmem:[%s192 + $0x8c] sm:$0xff]
      %v2539 = vld [vmem:[%s192 + $0x94] sm:$0xff]
      %v2540 = vld [vmem:[%s192 + $0x9c] sm:$0xff]
      %v2541 = vld [vmem:[%s192 + $0xa4] sm:$0xff]
      %v2542 = vld [vmem:[%s192 + $0xac] sm:$0xff]
      %v2543 = vld [vmem:[%s192 + $0xb4] sm:$0xff]
      %v2544 = vld [vmem:[%s192 + $0xbc] sm:$0xff]
      %v2545 = vld [vmem:[%s192 + $0xc4] sm:$0xff]
      %v2546 = vld [vmem:[%s192 + $0xcc] sm:$0xff]
      %v2547 = vld [vmem:[%s192 + $0xd4] sm:$0xff]
      %v2548 = vld [vmem:[%s192 + $0xdc] sm:$0xff]
      %v2549 = vld [vmem:[%s192 + $0xe4] sm:$0xff]
      %v2550 = vld [vmem:[%s192 + $0xec] sm:$0xff]
      %v2551 = vld [vmem:[%s192 + $0xf4] sm:$0xff]
      %v2552 = vld [vmem:[%s192 + $0xfc] sm:$0xff]
      %v2553 = vld [vmem:[%s192 + $0x104] sm:$0xff]
      %v2554 = vld [vmem:[%s192 + $0x10c] sm:$0xff]
      %v2555 = vld [vmem:[%s192 + $0x114] sm:$0xff]
      %v2556 = vld [vmem:[%s192 + $0x11c] sm:$0xff]
      %v2557 = vld [vmem:[%s192 + $0x124] sm:$0xff]
      %v2558 = vld [vmem:[%s192 + $0x12c] sm:$0xff]
      %v2559 = vpack.c.bf16 %v2524, %v2523
      %v2560 = vpack.c.bf16 %v2526, %v2525
      %v2561 = vpack.c.bf16 %v2528, %v2527
      %v2562 = vpack.c.bf16 %v2530, %v2529
      %v2563 = vpack.c.bf16 %v2532, %v2531
      %v2564 = vpack.c.bf16 %v2534, %v2533
      %v2565 = vpack.c.bf16 %v2536, %v2535
      %v2566 = vpack.c.bf16 %v2538, %v2537
      %v2567 = vpack.c.bf16 %v2540, %v2539
      %v2568 = vpack.c.bf16 %v2542, %v2541
      %v2569 = vpack.c.bf16 %v2544, %v2543
      %v2570 = vpack.c.bf16 %v2546, %v2545
      %v2571 = vpack.c.bf16 %v2548, %v2547
      %v2572 = vpack.c.bf16 %v2550, %v2549
      %v2573 = vpack.c.bf16 %v2552, %v2551
      %v2574 = vpack.c.bf16 %v2554, %v2553
      %v2575 = vpack.c.bf16 %v2556, %v2555
      %v2576 = vpack.c.bf16 %v2558, %v2557
      %s2577 = scalar_lea.vmem %s1, 56
      %v2578 = vld [vmem:[%s2577] sm:$0xf]
      %v2579 = vld [vmem:[%s2577 + $0x4] sm:$0xf]
      %v2582 = vunpack.c.l.b16 %v2578
      %v2583 = vunpack.c.l.b16 %v2579
      %v2584 = vpack.c.b16 %v2583, %v2582
      %v2587 = vsel %vm318, %v2559, 0
      %v2590 = vsel %vm318, %v2560, 0
      %v2593 = vsel %vm318, %v2561, 0
      %v2596 = vsel %vm318, %v2562, 0
      %v2599 = vsel %vm318, %v2563, 0
      %v2602 = vsel %vm318, %v2564, 0
      %v2605 = vsel %vm318, %v2565, 0
      %v2608 = vsel %vm318, %v2566, 0
      %v2611 = vsel %vm318, %v2567, 0
      %v2614 = vsel %vm318, %v2568, 0
      %v2617 = vsel %vm318, %v2569, 0
      %v2620 = vsel %vm318, %v2570, 0
      %v2623 = vsel %vm318, %v2571, 0
      %v2626 = vsel %vm318, %v2572, 0
      %v2629 = vsel %vm318, %v2573, 0
      %v2632 = vsel %vm318, %v2574, 0
      %v2635 = vsel %vm318, %v2575, 0
      %v2638 = vsel %vm318, %v2576, 0
      %2640 = vmatprep.subr.bf16.mxu0 0
      %2641 = vmatpush1.bf16.msra.mxu0 %v2584
      %2642 = vmatprep.subr.bf16.mxu0 0
      %2643 = vmatpush1.bf16.msra.mxu0 0
      %2644 = vmatprep.subr.bf16.mxu0 0
      %2645 = vmatpush1.bf16.msra.mxu0 0
      %2646 = vmatprep.subr.bf16.mxu0 0
      %2647 = vmatpush1.bf16.msra.mxu0 0
      %2648 = vmatprep.subr.bf16.mxu0 0
      %2649 = vmatpush1.bf16.msra.mxu0 0
      %2650 = vmatprep.subr.bf16.mxu0 0
      %2651 = vmatpush1.bf16.msra.mxu0 0
      %2652 = vmatprep.subr.bf16.mxu0 0
      %2653 = vmatpush1.bf16.msra.mxu0 0
      %2654 = vmatprep.subr.bf16.mxu0 0
      %2655 = vmatpush1.bf16.msra.mxu0 0
      %2656 = vmatprep.subr.bf16.mxu0 0
      %2657 = vmatpush1.bf16.msra.mxu0 0
      %2658 = vmatprep.subr.bf16.mxu0 0
      %2659 = vmatpush1.bf16.msra.mxu0 0
      %2660 = vmatprep.subr.bf16.mxu0 0
      %2661 = vmatpush1.bf16.msra.mxu0 0
      %2662 = vmatprep.subr.bf16.mxu0 0
      %2663 = vmatpush1.bf16.msra.mxu0 0
      %2664 = vmatprep.subr.bf16.mxu0 0
      %2665 = vmatpush1.bf16.msra.mxu0 0
      %2666 = vmatprep.subr.bf16.mxu0 0
      %2667 = vmatpush1.bf16.msra.mxu0 0
      %2668 = vmatprep.subr.bf16.mxu0 0
      %2669 = vmatpush1.bf16.msra.mxu0 0
      %2670 = vmatprep.subr.bf16.mxu0 0
      %2671 = vmatpush1.bf16.msra.mxu0 0
      %2672 = vmatprep.mubr.bf16.mxu0 0
      %2673 = vmatmul.mubr.bf16.gmra.mrb[0].mxu0 %v2587
      %v2674 = vpop.f32.mrb[0].mxu0
      %v2675 = vadd.f32 0.0, %v2674
      %v2676 = vpop.f32.mrb[0].mxu0
      %v2677 = vpop.f32.mrb[0].mxu0
      %v2678 = vadd.f32 0.0, %v2677
      %v2679 = vpop.f32.mrb[0].mxu0
      %2680 = vmatprep.mubr.bf16.mxu0 0
      %2681 = vmatmul.mubr.bf16.gmra.mrb[0].mxu0 %v2590
      %v2682 = vpop.f32.mrb[0].mxu0
      %v2683 = vadd.f32 0.0, %v2682
      %v2684 = vpop.f32.mrb[0].mxu0
      %v2685 = vpop.f32.mrb[0].mxu0
      %v2686 = vadd.f32 0.0, %v2685
      %v2687 = vpop.f32.mrb[0].mxu0
      %2688 = vmatprep.mubr.bf16.mxu0 0
      %2689 = vmatmul.mubr.bf16.gmra.mrb[0].mxu0 %v2593
      %v2690 = vpop.f32.mrb[0].mxu0
      %v2691 = vadd.f32 0.0, %v2690
      %v2692 = vpop.f32.mrb[0].mxu0
      %v2693 = vpop.f32.mrb[0].mxu0
      %v2694 = vadd.f32 0.0, %v2693
      %v2695 = vpop.f32.mrb[0].mxu0
      %2696 = vmatprep.mubr.bf16.mxu0 0
      %2697 = vmatmul.mubr.bf16.gmra.mrb[0].mxu0 %v2596
      %v2698 = vpop.f32.mrb[0].mxu0
      %v2699 = vadd.f32 0.0, %v2698
      %v2700 = vpop.f32.mrb[0].mxu0
      %v2701 = vpop.f32.mrb[0].mxu0
      %v2702 = vadd.f32 0.0, %v2701
      %v2703 = vpop.f32.mrb[0].mxu0
      %2704 = vmatprep.mubr.bf16.mxu0 0
      %2705 = vmatmul.mubr.bf16.gmra.mrb[0].mxu0 %v2599
      %v2706 = vpop.f32.mrb[0].mxu0
      %v2707 = vadd.f32 0.0, %v2706
      %v2708 = vpop.f32.mrb[0].mxu0
      %v2709 = vpop.f32.mrb[0].mxu0
      %v2710 = vadd.f32 0.0, %v2709
      %v2711 = vpop.f32.mrb[0].mxu0
      %2712 = vmatprep.mubr.bf16.mxu0 0
      %2713 = vmatmul.mubr.bf16.gmra.mrb[0].mxu0 %v2602
      %v2714 = vpop.f32.mrb[0].mxu0
      %v2715 = vadd.f32 0.0, %v2714
      %v2716 = vpop.f32.mrb[0].mxu0
      %v2717 = vpop.f32.mrb[0].mxu0
      %v2718 = vadd.f32 0.0, %v2717
      %v2719 = vpop.f32.mrb[0].mxu0
      %2720 = vmatprep.mubr.bf16.mxu0 0
      %2721 = vmatmul.mubr.bf16.gmra.mrb[0].mxu0 %v2605
      %v2722 = vpop.f32.mrb[0].mxu0
      %v2723 = vadd.f32 0.0, %v2722
      %v2724 = vpop.f32.mrb[0].mxu0
      %v2725 = vpop.f32.mrb[0].mxu0
      %v2726 = vadd.f32 0.0, %v2725
      %v2727 = vpop.f32.mrb[0].mxu0
      %2728 = vmatprep.mubr.bf16.mxu0 0
      %2729 = vmatmul.mubr.bf16.gmra.mrb[0].mxu0 %v2608
      %v2730 = vpop.f32.mrb[0].mxu0
      %v2731 = vadd.f32 0.0, %v2730
      %v2732 = vpop.f32.mrb[0].mxu0
      %v2733 = vpop.f32.mrb[0].mxu0
      %v2734 = vadd.f32 0.0, %v2733
      %v2735 = vpop.f32.mrb[0].mxu0
      %2736 = vmatprep.mubr.bf16.mxu0 0
      %2737 = vmatmul.mubr.bf16.gmra.mrb[0].mxu0 %v2611
      %v2738 = vpop.f32.mrb[0].mxu0
      %v2739 = vadd.f32 0.0, %v2738
      %v2740 = vpop.f32.mrb[0].mxu0
      %v2741 = vpop.f32.mrb[0].mxu0
      %v2742 = vadd.f32 0.0, %v2741
      %v2743 = vpop.f32.mrb[0].mxu0
      %2744 = vmatprep.mubr.bf16.mxu0 0
      %2745 = vmatmul.mubr.bf16.gmra.mrb[0].mxu0 %v2614
      %v2746 = vpop.f32.mrb[0].mxu0
      %v2747 = vadd.f32 0.0, %v2746
      %v2748 = vpop.f32.mrb[0].mxu0
      %v2749 = vpop.f32.mrb[0].mxu0
      %v2750 = vadd.f32 0.0, %v2749
      %v2751 = vpop.f32.mrb[0].mxu0
      %2752 = vmatprep.mubr.bf16.mxu0 0
      %2753 = vmatmul.mubr.bf16.gmra.mrb[0].mxu0 %v2617
      %v2754 = vpop.f32.mrb[0].mxu0
      %v2755 = vadd.f32 0.0, %v2754
      %v2756 = vpop.f32.mrb[0].mxu0
      %v2757 = vpop.f32.mrb[0].mxu0
      %v2758 = vadd.f32 0.0, %v2757
      %v2759 = vpop.f32.mrb[0].mxu0
      %2760 = vmatprep.mubr.bf16.mxu0 0
      %2761 = vmatmul.mubr.bf16.gmra.mrb[0].mxu0 %v2620
      %v2762 = vpop.f32.mrb[0].mxu0
      %v2763 = vadd.f32 0.0, %v2762
      %v2764 = vpop.f32.mrb[0].mxu0
      %v2765 = vpop.f32.mrb[0].mxu0
      %v2766 = vadd.f32 0.0, %v2765
      %v2767 = vpop.f32.mrb[0].mxu0
      %2768 = vmatprep.mubr.bf16.mxu0 0
      %2769 = vmatmul.mubr.bf16.gmra.mrb[0].mxu0 %v2623
      %v2770 = vpop.f32.mrb[0].mxu0
      %v2771 = vadd.f32 0.0, %v2770
      %v2772 = vpop.f32.mrb[0].mxu0
      %v2773 = vpop.f32.mrb[0].mxu0
      %v2774 = vadd.f32 0.0, %v2773
      %v2775 = vpop.f32.mrb[0].mxu0
      %2776 = vmatprep.mubr.bf16.mxu0 0
      %2777 = vmatmul.mubr.bf16.gmra.mrb[0].mxu0 %v2626
      %v2778 = vpop.f32.mrb[0].mxu0
      %v2779 = vadd.f32 0.0, %v2778
      %v2780 = vpop.f32.mrb[0].mxu0
      %v2781 = vpop.f32.mrb[0].mxu0
      %v2782 = vadd.f32 0.0, %v2781
      %v2783 = vpop.f32.mrb[0].mxu0
      %2784 = vmatprep.mubr.bf16.mxu0 0
      %2785 = vmatmul.mubr.bf16.gmra.mrb[0].mxu0 %v2629
      %v2786 = vpop.f32.mrb[0].mxu0
      %v2787 = vadd.f32 0.0, %v2786
      %v2788 = vpop.f32.mrb[0].mxu0
      %v2789 = vpop.f32.mrb[0].mxu0
      %v2790 = vadd.f32 0.0, %v2789
      %v2791 = vpop.f32.mrb[0].mxu0
      %2792 = vmatprep.mubr.bf16.mxu0 0
      %2793 = vmatmul.mubr.bf16.gmra.mrb[0].mxu0 %v2632
      %v2794 = vpop.f32.mrb[0].mxu0
      %v2795 = vadd.f32 0.0, %v2794
      %v2796 = vpop.f32.mrb[0].mxu0
      %v2797 = vpop.f32.mrb[0].mxu0
      %v2798 = vadd.f32 0.0, %v2797
      %v2799 = vpop.f32.mrb[0].mxu0
      %2800 = vmatprep.mubr.bf16.mxu0 0
      %2801 = vmatmul.mubr.bf16.gmra.mrb[0].mxu0 %v2635
      %v2802 = vpop.f32.mrb[0].mxu0
      %v2803 = vadd.f32 0.0, %v2802
      %v2804 = vpop.f32.mrb[0].mxu0
      %v2805 = vpop.f32.mrb[0].mxu0
      %v2806 = vadd.f32 0.0, %v2805
      %v2807 = vpop.f32.mrb[0].mxu0
      %2808 = vmatprep.mubr.bf16.mxu0 0
      %2809 = vmatmul.mubr.bf16.gmra.mrb[0].mxu0 %v2638
      %v2810 = vpop.f32.mrb[0].mxu0
      %v2811 = vadd.f32 0.0, %v2810
      %v2812 = vpop.f32.mrb[0].mxu0
      %v2813 = vpop.f32.mrb[0].mxu0
      %v2814 = vadd.f32 0.0, %v2813
      %v2815 = vpop.f32.mrb[0].mxu0
      %2816 = vdwg.mxu0
      %v2817 = vadd.f32 %v2487, %v2675
      %v2818 = vadd.f32 %v2488, %v2678
      %v2819 = vadd.f32 %v2489, %v2683
      %v2820 = vadd.f32 %v2490, %v2686
      %v2821 = vadd.f32 %v2491, %v2691
      %v2822 = vadd.f32 %v2492, %v2694
      %v2823 = vadd.f32 %v2493, %v2699
      %v2824 = vadd.f32 %v2494, %v2702
      %v2825 = vadd.f32 %v2495, %v2707
      %v2826 = vadd.f32 %v2496, %v2710
      %v2827 = vadd.f32 %v2497, %v2715
      %v2828 = vadd.f32 %v2498, %v2718
      %v2829 = vadd.f32 %v2499, %v2723
      %v2830 = vadd.f32 %v2500, %v2726
      %v2831 = vadd.f32 %v2501, %v2731
      %v2832 = vadd.f32 %v2502, %v2734
      %v2833 = vadd.f32 %v2503, %v2739
      %v2834 = vadd.f32 %v2504, %v2742
      %v2835 = vadd.f32 %v2505, %v2747
      %v2836 = vadd.f32 %v2506, %v2750
      %v2837 = vadd.f32 %v2507, %v2755
      %v2838 = vadd.f32 %v2508, %v2758
      %v2839 = vadd.f32 %v2509, %v2763
      %v2840 = vadd.f32 %v2510, %v2766
      %v2841 = vadd.f32 %v2511, %v2771
      %v2842 = vadd.f32 %v2512, %v2774
      %v2843 = vadd.f32 %v2513, %v2779
      %v2844 = vadd.f32 %v2514, %v2782
      %v2845 = vadd.f32 %v2515, %v2787
      %v2846 = vadd.f32 %v2516, %v2790
      %v2847 = vadd.f32 %v2517, %v2795
      %v2848 = vadd.f32 %v2518, %v2798
      %v2849 = vadd.f32 %v2519, %v2803
      %v2850 = vadd.f32 %v2520, %v2806
      %v2851 = vadd.f32 %v2521, %v2811
      %v2852 = vadd.f32 %v2522, %v2814
      %v2853 = vld [vmem:[%s2] sm:$0x1]
      %v2855 = vlaneseq
      %v2856 = vshrl.u32 %v2855, 7
      %v2857 = vsub.s32 0, %v2856
      %v2858 = vrot.slane %v2853, %v2857
      %v2860 = vmul.f32 %v2817, %v2858
      %v2861 = vmul.f32 %v2818, %v2858
      %v2862 = vmul.f32 %v2819, %v2858
      %v2863 = vmul.f32 %v2820, %v2858
      %v2864 = vmul.f32 %v2821, %v2858
      %v2865 = vmul.f32 %v2822, %v2858
      %v2866 = vmul.f32 %v2823, %v2858
      %v2867 = vmul.f32 %v2824, %v2858
      %v2868 = vmul.f32 %v2825, %v2858
      %v2869 = vmul.f32 %v2826, %v2858
      %v2870 = vmul.f32 %v2827, %v2858
      %v2871 = vmul.f32 %v2828, %v2858
      %v2872 = vmul.f32 %v2829, %v2858
      %v2873 = vmul.f32 %v2830, %v2858
      %v2874 = vmul.f32 %v2831, %v2858
      %v2875 = vmul.f32 %v2832, %v2858
      %v2876 = vmul.f32 %v2833, %v2858
      %v2877 = vmul.f32 %v2834, %v2858
      %v2878 = vmul.f32 %v2835, %v2858
      %v2879 = vmul.f32 %v2836, %v2858
      %v2880 = vmul.f32 %v2837, %v2858
      %v2881 = vmul.f32 %v2838, %v2858
      %v2882 = vmul.f32 %v2839, %v2858
      %v2883 = vmul.f32 %v2840, %v2858
      %v2884 = vmul.f32 %v2841, %v2858
      %v2885 = vmul.f32 %v2842, %v2858
      %v2886 = vmul.f32 %v2843, %v2858
      %v2887 = vmul.f32 %v2844, %v2858
      %v2888 = vmul.f32 %v2845, %v2858
      %v2889 = vmul.f32 %v2846, %v2858
      %v2890 = vmul.f32 %v2847, %v2858
      %v2891 = vmul.f32 %v2848, %v2858
      %v2892 = vmul.f32 %v2849, %v2858
      %v2893 = vmul.f32 %v2850, %v2858
      %v2894 = vmul.f32 %v2851, %v2858
      %v2895 = vmul.f32 %v2852, %v2858
      %v2896 = vld [vmem:[%s3] sm:$0x1]
      %v2898 = vlaneseq
      %v2899 = vshrl.u32 %v2898, 7
      %v2900 = vsub.s32 0, %v2899
      %v2901 = vrot.slane %v2896, %v2900
      %v2903 = vadd.f32 %v2860, %v2901
      %v2904 = vadd.f32 %v2861, %v2901
      %v2905 = vadd.f32 %v2862, %v2901
      %v2906 = vadd.f32 %v2863, %v2901
      %v2907 = vadd.f32 %v2864, %v2901
      %v2908 = vadd.f32 %v2865, %v2901
      %v2909 = vadd.f32 %v2866, %v2901
      %v2910 = vadd.f32 %v2867, %v2901
      %v2911 = vadd.f32 %v2868, %v2901
      %v2912 = vadd.f32 %v2869, %v2901
      %v2913 = vadd.f32 %v2870, %v2901
      %v2914 = vadd.f32 %v2871, %v2901
      %v2915 = vadd.f32 %v2872, %v2901
      %v2916 = vadd.f32 %v2873, %v2901
      %v2917 = vadd.f32 %v2874, %v2901
      %v2918 = vadd.f32 %v2875, %v2901
      %v2919 = vadd.f32 %v2876, %v2901
      %v2920 = vadd.f32 %v2877, %v2901
      %v2921 = vadd.f32 %v2878, %v2901
      %v2922 = vadd.f32 %v2879, %v2901
      %v2923 = vadd.f32 %v2880, %v2901
      %v2924 = vadd.f32 %v2881, %v2901
      %v2925 = vadd.f32 %v2882, %v2901
      %v2926 = vadd.f32 %v2883, %v2901
      %v2927 = vadd.f32 %v2884, %v2901
      %v2928 = vadd.f32 %v2885, %v2901
      %v2929 = vadd.f32 %v2886, %v2901
      %v2930 = vadd.f32 %v2887, %v2901
      %v2931 = vadd.f32 %v2888, %v2901
      %v2932 = vadd.f32 %v2889, %v2901
      %v2933 = vadd.f32 %v2890, %v2901
      %v2934 = vadd.f32 %v2891, %v2901
      %v2935 = vadd.f32 %v2892, %v2901
      %v2936 = vadd.f32 %v2893, %v2901
      %v2937 = vadd.f32 %v2894, %v2901
      %v2938 = vadd.f32 %v2895, %v2901
      %v2939 = vtanh.pop %v2903
      %v2940 = vtanh.pop %v2904
      %v2941 = vtanh.pop %v2905
      %v2942 = vtanh.pop %v2906
      %v2943 = vtanh.pop %v2907
      %v2944 = vtanh.pop %v2908
      %v2945 = vtanh.pop %v2909
      %v2946 = vtanh.pop %v2910
      %v2947 = vtanh.pop %v2911
      %v2948 = vtanh.pop %v2912
      %v2949 = vtanh.pop %v2913
      %v2950 = vtanh.pop %v2914
      %v2951 = vtanh.pop %v2915
      %v2952 = vtanh.pop %v2916
      %v2953 = vtanh.pop %v2917
      %v2954 = vtanh.pop %v2918
      %v2955 = vtanh.pop %v2919
      %v2956 = vtanh.pop %v2920
      %v2957 = vtanh.pop %v2921
      %v2958 = vtanh.pop %v2922
      %v2959 = vtanh.pop %v2923
      %v2960 = vtanh.pop %v2924
      %v2961 = vtanh.pop %v2925
      %v2962 = vtanh.pop %v2926
      %v2963 = vtanh.pop %v2927
      %v2964 = vtanh.pop %v2928
      %v2965 = vtanh.pop %v2929
      %v2966 = vtanh.pop %v2930
      %v2967 = vtanh.pop %v2931
      %v2968 = vtanh.pop %v2932
      %v2969 = vtanh.pop %v2933
      %v2970 = vtanh.pop %v2934
      %v2971 = vtanh.pop %v2935
      %v2972 = vtanh.pop %v2936
      %v2973 = vtanh.pop %v2937
      %v2974 = vtanh.pop %v2938
      %s2975 = scalar_lea.vmem %s197, 288
      %2976 = vst [vmem:[%s2975] sm:$0xff] %v2939
      %2977 = vst [vmem:[%s2975 + $0x8] sm:$0xff] %v2940
      %2978 = vst [vmem:[%s2975 + $0x10] sm:$0xff] %v2941
      %2979 = vst [vmem:[%s2975 + $0x18] sm:$0xff] %v2942
      %2980 = vst [vmem:[%s2975 + $0x20] sm:$0xff] %v2943
      %2981 = vst [vmem:[%s2975 + $0x28] sm:$0xff] %v2944
      %2982 = vst [vmem:[%s2975 + $0x30] sm:$0xff] %v2945
      %2983 = vst [vmem:[%s2975 + $0x38] sm:$0xff] %v2946
      %2984 = vst [vmem:[%s2975 + $0x40] sm:$0xff] %v2947
      %2985 = vst [vmem:[%s2975 + $0x48] sm:$0xff] %v2948
      %2986 = vst [vmem:[%s2975 + $0x50] sm:$0xff] %v2949
      %2987 = vst [vmem:[%s2975 + $0x58] sm:$0xff] %v2950
      %2988 = vst [vmem:[%s2975 + $0x60] sm:$0xff] %v2951
      %2989 = vst [vmem:[%s2975 + $0x68] sm:$0xff] %v2952
      %2990 = vst [vmem:[%s2975 + $0x70] sm:$0xff] %v2953
      %2991 = vst [vmem:[%s2975 + $0x78] sm:$0xff] %v2954
      %2992 = vst [vmem:[%s2975 + $0x80] sm:$0xff] %v2955
      %2993 = vst [vmem:[%s2975 + $0x88] sm:$0xff] %v2956
      %2994 = vst [vmem:[%s2975 + $0x90] sm:$0xff] %v2957
      %2995 = vst [vmem:[%s2975 + $0x98] sm:$0xff] %v2958
      %2996 = vst [vmem:[%s2975 + $0xa0] sm:$0xff] %v2959
      %2997 = vst [vmem:[%s2975 + $0xa8] sm:$0xff] %v2960
      %2998 = vst [vmem:[%s2975 + $0xb0] sm:$0xff] %v2961
      %2999 = vst [vmem:[%s2975 + $0xb8] sm:$0xff] %v2962
      %3000 = vst [vmem:[%s2975 + $0xc0] sm:$0xff] %v2963
      %3001 = vst [vmem:[%s2975 + $0xc8] sm:$0xff] %v2964
      %3002 = vst [vmem:[%s2975 + $0xd0] sm:$0xff] %v2965
      %3003 = vst [vmem:[%s2975 + $0xd8] sm:$0xff] %v2966
      %3004 = vst [vmem:[%s2975 + $0xe0] sm:$0xff] %v2967
      %3005 = vst [vmem:[%s2975 + $0xe8] sm:$0xff] %v2968
      %3006 = vst [vmem:[%s2975 + $0xf0] sm:$0xff] %v2969
      %3007 = vst [vmem:[%s2975 + $0xf8] sm:$0xff] %v2970
      %3008 = vst [vmem:[%s2975 + $0x100] sm:$0xff] %v2971
      %3009 = vst [vmem:[%s2975 + $0x108] sm:$0xff] %v2972
      %3010 = vst [vmem:[%s2975 + $0x110] sm:$0xff] %v2973
      %3011 = vst [vmem:[%s2975 + $0x118] sm:$0xff] %v2974
      %v3012 = vld [vmem:[%s192 + $0x12] sm:$0xff]
      %v3013 = vld [vmem:[%s192 + $0x1a] sm:$0xff]
      %v3014 = vld [vmem:[%s192 + $0x22] sm:$0xff]
      %v3015 = vld [vmem:[%s192 + $0x2a] sm:$0xff]
      %v3016 = vld [vmem:[%s192 + $0x32] sm:$0xff]
      %v3017 = vld [vmem:[%s192 + $0x3a] sm:$0xff]
      %v3018 = vld [vmem:[%s192 + $0x42] sm:$0xff]
      %v3019 = vld [vmem:[%s192 + $0x4a] sm:$0xff]
      %v3020 = vld [vmem:[%s192 + $0x52] sm:$0xff]
      %v3021 = vld [vmem:[%s192 + $0x5a] sm:$0xff]
      %v3022 = vld [vmem:[%s192 + $0x62] sm:$0xff]
      %v3023 = vld [vmem:[%s192 + $0x6a] sm:$0xff]
      %v3024 = vld [vmem:[%s192 + $0x72] sm:$0xff]
      %v3025 = vld [vmem:[%s192 + $0x7a] sm:$0xff]
      %v3026 = vld [vmem:[%s192 + $0x82] sm:$0xff]
      %v3027 = vld [vmem:[%s192 + $0x8a] sm:$0xff]
      %v3028 = vld [vmem:[%s192 + $0x92] sm:$0xff]
      %v3029 = vld [vmem:[%s192 + $0x9a] sm:$0xff]
      %v3030 = vld [vmem:[%s192 + $0xa2] sm:$0xff]
      %v3031 = vld [vmem:[%s192 + $0xaa] sm:$0xff]
      %v3032 = vld [vmem:[%s192 + $0xb2] sm:$0xff]
      %v3033 = vld [vmem:[%s192 + $0xba] sm:$0xff]
      %v3034 = vld [vmem:[%s192 + $0xc2] sm:$0xff]
      %v3035 = vld [vmem:[%s192 + $0xca] sm:$0xff]
      %v3036 = vld [vmem:[%s192 + $0xd2] sm:$0xff]
      %v3037 = vld [vmem:[%s192 + $0xda] sm:$0xff]
      %v3038 = vld [vmem:[%s192 + $0xe2] sm:$0xff]
      %v3039 = vld [vmem:[%s192 + $0xea] sm:$0xff]
      %v3040 = vld [vmem:[%s192 + $0xf2] sm:$0xff]
      %v3041 = vld [vmem:[%s192 + $0xfa] sm:$0xff]
      %v3042 = vld [vmem:[%s192 + $0x102] sm:$0xff]
      %v3043 = vld [vmem:[%s192 + $0x10a] sm:$0xff]
      %v3044 = vld [vmem:[%s192 + $0x112] sm:$0xff]
      %v3045 = vld [vmem:[%s192 + $0x11a] sm:$0xff]
      %v3046 = vld [vmem:[%s192 + $0x122] sm:$0xff]
      %v3047 = vld [vmem:[%s192 + $0x12a] sm:$0xff]
      %v3048 = vpack.c.bf16 %v3013, %v3012
      %v3049 = vpack.c.bf16 %v3015, %v3014
      %v3050 = vpack.c.bf16 %v3017, %v3016
      %v3051 = vpack.c.bf16 %v3019, %v3018
      %v3052 = vpack.c.bf16 %v3021, %v3020
      %v3053 = vpack.c.bf16 %v3023, %v3022
      %v3054 = vpack.c.bf16 %v3025, %v3024
      %v3055 = vpack.c.bf16 %v3027, %v3026
      %v3056 = vpack.c.bf16 %v3029, %v3028
      %v3057 = vpack.c.bf16 %v3031, %v3030
      %v3058 = vpack.c.bf16 %v3033, %v3032
      %v3059 = vpack.c.bf16 %v3035, %v3034
      %v3060 = vpack.c.bf16 %v3037, %v3036
      %v3061 = vpack.c.bf16 %v3039, %v3038
      %v3062 = vpack.c.bf16 %v3041, %v3040
      %v3063 = vpack.c.bf16 %v3043, %v3042
      %v3064 = vpack.c.bf16 %v3045, %v3044
      %v3065 = vpack.c.bf16 %v3047, %v3046
      %s3066 = scalar_lea.vmem %s1, 64
      %v3067 = vld [vmem:[%s3066] sm:$0xf]
      %v3068 = vld [vmem:[%s3066 + $0x4] sm:$0xf]
      %v3069 = vld [vmem:[%s192 + $0x13] sm:$0xff]
      %v3070 = vld [vmem:[%s192 + $0x1b] sm:$0xff]
      %v3071 = vld [vmem:[%s192 + $0x23] sm:$0xff]
      %v3072 = vld [vmem:[%s192 + $0x2b] sm:$0xff]
      %v3073 = vld [vmem:[%s192 + $0x33] sm:$0xff]
      %v3074 = vld [vmem:[%s192 + $0x3b] sm:$0xff]
      %v3075 = vld [vmem:[%s192 + $0x43] sm:$0xff]
      %v3076 = vld [vmem:[%s192 + $0x4b] sm:$0xff]
      %v3077 = vld [vmem:[%s192 + $0x53] sm:$0xff]
      %v3078 = vld [vmem:[%s192 + $0x5b] sm:$0xff]
      %v3079 = vld [vmem:[%s192 + $0x63] sm:$0xff]
      %v3080 = vld [vmem:[%s192 + $0x6b] sm:$0xff]
      %v3081 = vld [vmem:[%s192 + $0x73] sm:$0xff]
      %v3082 = vld [vmem:[%s192 + $0x7b] sm:$0xff]
      %v3083 = vld [vmem:[%s192 + $0x83] sm:$0xff]
      %v3084 = vld [vmem:[%s192 + $0x8b] sm:$0xff]
      %v3085 = vld [vmem:[%s192 + $0x93] sm:$0xff]
      %v3086 = vld [vmem:[%s192 + $0x9b] sm:$0xff]
      %v3087 = vld [vmem:[%s192 + $0xa3] sm:$0xff]
      %v3088 = vld [vmem:[%s192 + $0xab] sm:$0xff]
      %v3089 = vld [vmem:[%s192 + $0xb3] sm:$0xff]
      %v3090 = vld [vmem:[%s192 + $0xbb] sm:$0xff]
      %v3091 = vld [vmem:[%s192 + $0xc3] sm:$0xff]
      %v3092 = vld [vmem:[%s192 + $0xcb] sm:$0xff]
      %v3093 = vld [vmem:[%s192 + $0xd3] sm:$0xff]
      %v3094 = vld [vmem:[%s192 + $0xdb] sm:$0xff]
      %v3095 = vld [vmem:[%s192 + $0xe3] sm:$0xff]
      %v3096 = vld [vmem:[%s192 + $0xeb] sm:$0xff]
      %v3097 = vld [vmem:[%s192 + $0xf3] sm:$0xff]
      %v3098 = vld [vmem:[%s192 + $0xfb] sm:$0xff]
      %v3099 = vld [vmem:[%s192 + $0x103] sm:$0xff]
      %v3100 = vld [vmem:[%s192 + $0x10b] sm:$0xff]
      %v3101 = vld [vmem:[%s192 + $0x113] sm:$0xff]
      %v3102 = vld [vmem:[%s192 + $0x11b] sm:$0xff]
      %v3103 = vld [vmem:[%s192 + $0x123] sm:$0xff]
      %v3104 = vld [vmem:[%s192 + $0x12b] sm:$0xff]
      %v3105 = vpack.c.bf16 %v3070, %v3069
      %v3106 = vpack.c.bf16 %v3072, %v3071
      %v3107 = vpack.c.bf16 %v3074, %v3073
      %v3108 = vpack.c.bf16 %v3076, %v3075
      %v3109 = vpack.c.bf16 %v3078, %v3077
      %v3110 = vpack.c.bf16 %v3080, %v3079
      %v3111 = vpack.c.bf16 %v3082, %v3081
      %v3112 = vpack.c.bf16 %v3084, %v3083
      %v3113 = vpack.c.bf16 %v3086, %v3085
      %v3114 = vpack.c.bf16 %v3088, %v3087
      %v3115 = vpack.c.bf16 %v3090, %v3089
      %v3116 = vpack.c.bf16 %v3092, %v3091
      %v3117 = vpack.c.bf16 %v3094, %v3093
      %v3118 = vpack.c.bf16 %v3096, %v3095
      %v3119 = vpack.c.bf16 %v3098, %v3097
      %v3120 = vpack.c.bf16 %v3100, %v3099
      %v3121 = vpack.c.bf16 %v3102, %v3101
      %v3122 = vpack.c.bf16 %v3104, %v3103
      %s3123 = scalar_lea.vmem %s1, 72
      %v3124 = vld [vmem:[%s3123] sm:$0xf]
      %v3125 = vld [vmem:[%s3123 + $0x4] sm:$0xf]
      %v3128 = vunpack.c.l.b16 %v3124
      %v3129 = vunpack.c.l.b16 %v3125
      %v3130 = vpack.c.b16 %v3129, %v3128
      %v3133 = vsel %vm318, %v3105, 0
      %v3136 = vsel %vm318, %v3106, 0
      %v3139 = vsel %vm318, %v3107, 0
      %v3142 = vsel %vm318, %v3108, 0
      %v3145 = vsel %vm318, %v3109, 0
      %v3148 = vsel %vm318, %v3110, 0
      %v3151 = vsel %vm318, %v3111, 0
      %v3154 = vsel %vm318, %v3112, 0
      %v3157 = vsel %vm318, %v3113, 0
      %v3160 = vsel %vm318, %v3114, 0
      %v3163 = vsel %vm318, %v3115, 0
      %v3166 = vsel %vm318, %v3116, 0
      %v3169 = vsel %vm318, %v3117, 0
      %v3172 = vsel %vm318, %v3118, 0
      %v3175 = vsel %vm318, %v3119, 0
      %v3178 = vsel %vm318, %v3120, 0
      %v3181 = vsel %vm318, %v3121, 0
      %v3184 = vsel %vm318, %v3122, 0
      %3186 = vmatprep.subr.bf16.mxu0 0
      %3187 = vmatpush1.bf16.msra.mxu0 %v3130
      %3188 = vmatprep.subr.bf16.mxu0 0
      %3189 = vmatpush1.bf16.msra.mxu0 0
      %3190 = vmatprep.subr.bf16.mxu0 0
      %3191 = vmatpush1.bf16.msra.mxu0 0
      %3192 = vmatprep.subr.bf16.mxu0 0
      %3193 = vmatpush1.bf16.msra.mxu0 0
      %3194 = vmatprep.subr.bf16.mxu0 0
      %3195 = vmatpush1.bf16.msra.mxu0 0
      %3196 = vmatprep.subr.bf16.mxu0 0
      %3197 = vmatpush1.bf16.msra.mxu0 0
      %3198 = vmatprep.subr.bf16.mxu0 0
      %3199 = vmatpush1.bf16.msra.mxu0 0
      %3200 = vmatprep.subr.bf16.mxu0 0
      %3201 = vmatpush1.bf16.msra.mxu0 0
      %3202 = vmatprep.subr.bf16.mxu0 0
      %3203 = vmatpush1.bf16.msra.mxu0 0
      %3204 = vmatprep.subr.bf16.mxu0 0
      %3205 = vmatpush1.bf16.msra.mxu0 0
      %3206 = vmatprep.subr.bf16.mxu0 0
      %3207 = vmatpush1.bf16.msra.mxu0 0
      %3208 = vmatprep.subr.bf16.mxu0 0
      %3209 = vmatpush1.bf16.msra.mxu0 0
      %3210 = vmatprep.subr.bf16.mxu0 0
      %3211 = vmatpush1.bf16.msra.mxu0 0
      %3212 = vmatprep.subr.bf16.mxu0 0
      %3213 = vmatpush1.bf16.msra.mxu0 0
      %3214 = vmatprep.subr.bf16.mxu0 0
      %3215 = vmatpush1.bf16.msra.mxu0 0
      %3216 = vmatprep.subr.bf16.mxu0 0
      %3217 = vmatpush1.bf16.msra.mxu0 0
      %3218 = vmatprep.mubr.bf16.mxu0 0
      %3219 = vmatmul.mubr.bf16.gmra.mrb[0].mxu0 %v3133
      %v3220 = vpop.f32.mrb[0].mxu0
      %v3221 = vadd.f32 0.0, %v3220
      %v3222 = vpop.f32.mrb[0].mxu0
      %v3223 = vpop.f32.mrb[0].mxu0
      %v3224 = vadd.f32 0.0, %v3223
      %v3225 = vpop.f32.mrb[0].mxu0
      %3226 = vmatprep.mubr.bf16.mxu0 0
      %3227 = vmatmul.mubr.bf16.gmra.mrb[0].mxu0 %v3136
      %v3228 = vpop.f32.mrb[0].mxu0
      %v3229 = vadd.f32 0.0, %v3228
      %v3230 = vpop.f32.mrb[0].mxu0
      %v3231 = vpop.f32.mrb[0].mxu0
      %v3232 = vadd.f32 0.0, %v3231
      %v3233 = vpop.f32.mrb[0].mxu0
      %3234 = vmatprep.mubr.bf16.mxu0 0
      %3235 = vmatmul.mubr.bf16.gmra.mrb[0].mxu0 %v3139
      %v3236 = vpop.f32.mrb[0].mxu0
      %v3237 = vadd.f32 0.0, %v3236
      %v3238 = vpop.f32.mrb[0].mxu0
      %v3239 = vpop.f32.mrb[0].mxu0
      %v3240 = vadd.f32 0.0, %v3239
      %v3241 = vpop.f32.mrb[0].mxu0
      %3242 = vmatprep.mubr.bf16.mxu0 0
      %3243 = vmatmul.mubr.bf16.gmra.mrb[0].mxu0 %v3142
      %v3244 = vpop.f32.mrb[0].mxu0
      %v3245 = vadd.f32 0.0, %v3244
      %v3246 = vpop.f32.mrb[0].mxu0
      %v3247 = vpop.f32.mrb[0].mxu0
      %v3248 = vadd.f32 0.0, %v3247
      %v3249 = vpop.f32.mrb[0].mxu0
      %3250 = vmatprep.mubr.bf16.mxu0 0
      %3251 = vmatmul.mubr.bf16.gmra.mrb[0].mxu0 %v3145
      %v3252 = vpop.f32.mrb[0].mxu0
      %v3253 = vadd.f32 0.0, %v3252
      %v3254 = vpop.f32.mrb[0].mxu0
      %v3255 = vpop.f32.mrb[0].mxu0
      %v3256 = vadd.f32 0.0, %v3255
      %v3257 = vpop.f32.mrb[0].mxu0
      %3258 = vmatprep.mubr.bf16.mxu0 0
      %3259 = vmatmul.mubr.bf16.gmra.mrb[0].mxu0 %v3148
      %v3260 = vpop.f32.mrb[0].mxu0
      %v3261 = vadd.f32 0.0, %v3260
      %v3262 = vpop.f32.mrb[0].mxu0
      %v3263 = vpop.f32.mrb[0].mxu0
      %v3264 = vadd.f32 0.0, %v3263
      %v3265 = vpop.f32.mrb[0].mxu0
      %3266 = vmatprep.mubr.bf16.mxu0 0
      %3267 = vmatmul.mubr.bf16.gmra.mrb[0].mxu0 %v3151
      %v3268 = vpop.f32.mrb[0].mxu0
      %v3269 = vadd.f32 0.0, %v3268
      %v3270 = vpop.f32.mrb[0].mxu0
      %v3271 = vpop.f32.mrb[0].mxu0
      %v3272 = vadd.f32 0.0, %v3271
      %v3273 = vpop.f32.mrb[0].mxu0
      %3274 = vmatprep.mubr.bf16.mxu0 0
      %3275 = vmatmul.mubr.bf16.gmra.mrb[0].mxu0 %v3154
      %v3276 = vpop.f32.mrb[0].mxu0
      %v3277 = vadd.f32 0.0, %v3276
      %v3278 = vpop.f32.mrb[0].mxu0
      %v3279 = vpop.f32.mrb[0].mxu0
      %v3280 = vadd.f32 0.0, %v3279
      %v3281 = vpop.f32.mrb[0].mxu0
      %3282 = vmatprep.mubr.bf16.mxu0 0
      %3283 = vmatmul.mubr.bf16.gmra.mrb[0].mxu0 %v3157
      %v3284 = vpop.f32.mrb[0].mxu0
      %v3285 = vadd.f32 0.0, %v3284
      %v3286 = vpop.f32.mrb[0].mxu0
      %v3287 = vpop.f32.mrb[0].mxu0
      %v3288 = vadd.f32 0.0, %v3287
      %v3289 = vpop.f32.mrb[0].mxu0
      %3290 = vmatprep.mubr.bf16.mxu0 0
      %3291 = vmatmul.mubr.bf16.gmra.mrb[0].mxu0 %v3160
      %v3292 = vpop.f32.mrb[0].mxu0
      %v3293 = vadd.f32 0.0, %v3292
      %v3294 = vpop.f32.mrb[0].mxu0
      %v3295 = vpop.f32.mrb[0].mxu0
      %v3296 = vadd.f32 0.0, %v3295
      %v3297 = vpop.f32.mrb[0].mxu0
      %3298 = vmatprep.mubr.bf16.mxu0 0
      %3299 = vmatmul.mubr.bf16.gmra.mrb[0].mxu0 %v3163
      %v3300 = vpop.f32.mrb[0].mxu0
      %v3301 = vadd.f32 0.0, %v3300
      %v3302 = vpop.f32.mrb[0].mxu0
      %v3303 = vpop.f32.mrb[0].mxu0
      %v3304 = vadd.f32 0.0, %v3303
      %v3305 = vpop.f32.mrb[0].mxu0
      %3306 = vmatprep.mubr.bf16.mxu0 0
      %3307 = vmatmul.mubr.bf16.gmra.mrb[0].mxu0 %v3166
      %v3308 = vpop.f32.mrb[0].mxu0
      %v3309 = vadd.f32 0.0, %v3308
      %v3310 = vpop.f32.mrb[0].mxu0
      %v3311 = vpop.f32.mrb[0].mxu0
      %v3312 = vadd.f32 0.0, %v3311
      %v3313 = vpop.f32.mrb[0].mxu0
      %3314 = vmatprep.mubr.bf16.mxu0 0
      %3315 = vmatmul.mubr.bf16.gmra.mrb[0].mxu0 %v3169
      %v3316 = vpop.f32.mrb[0].mxu0
      %v3317 = vadd.f32 0.0, %v3316
      %v3318 = vpop.f32.mrb[0].mxu0
      %v3319 = vpop.f32.mrb[0].mxu0
      %v3320 = vadd.f32 0.0, %v3319
      %v3321 = vpop.f32.mrb[0].mxu0
      %3322 = vmatprep.mubr.bf16.mxu0 0
      %3323 = vmatmul.mubr.bf16.gmra.mrb[0].mxu0 %v3172
      %v3324 = vpop.f32.mrb[0].mxu0
      %v3325 = vadd.f32 0.0, %v3324
      %v3326 = vpop.f32.mrb[0].mxu0
      %v3327 = vpop.f32.mrb[0].mxu0
      %v3328 = vadd.f32 0.0, %v3327
      %v3329 = vpop.f32.mrb[0].mxu0
      %3330 = vmatprep.mubr.bf16.mxu0 0
      %3331 = vmatmul.mubr.bf16.gmra.mrb[0].mxu0 %v3175
      %v3332 = vpop.f32.mrb[0].mxu0
      %v3333 = vadd.f32 0.0, %v3332
      %v3334 = vpop.f32.mrb[0].mxu0
      %v3335 = vpop.f32.mrb[0].mxu0
      %v3336 = vadd.f32 0.0, %v3335
      %v3337 = vpop.f32.mrb[0].mxu0
      %3338 = vmatprep.mubr.bf16.mxu0 0
      %3339 = vmatmul.mubr.bf16.gmra.mrb[0].mxu0 %v3178
      %v3340 = vpop.f32.mrb[0].mxu0
      %v3341 = vadd.f32 0.0, %v3340
      %v3342 = vpop.f32.mrb[0].mxu0
      %v3343 = vpop.f32.mrb[0].mxu0
      %v3344 = vadd.f32 0.0, %v3343
      %v3345 = vpop.f32.mrb[0].mxu0
      %3346 = vmatprep.mubr.bf16.mxu0 0
      %3347 = vmatmul.mubr.bf16.gmra.mrb[0].mxu0 %v3181
      %v3348 = vpop.f32.mrb[0].mxu0
      %v3349 = vadd.f32 0.0, %v3348
      %v3350 = vpop.f32.mrb[0].mxu0
      %v3351 = vpop.f32.mrb[0].mxu0
      %v3352 = vadd.f32 0.0, %v3351
      %v3353 = vpop.f32.mrb[0].mxu0
      %3354 = vmatprep.mubr.bf16.mxu0 0
      %3355 = vmatmul.mubr.bf16.gmra.mrb[0].mxu0 %v3184
      %v3356 = vpop.f32.mrb[0].mxu0
      %v3357 = vadd.f32 0.0, %v3356
      %v3358 = vpop.f32.mrb[0].mxu0
      %v3359 = vpop.f32.mrb[0].mxu0
      %v3360 = vadd.f32 0.0, %v3359
      %v3361 = vpop.f32.mrb[0].mxu0
      %3362 = vdwg.mxu0
      %v3365 = vunpack.c.l.b16 %v3067
      %v3366 = vunpack.c.l.b16 %v3068
      %v3367 = vpack.c.b16 %v3366, %v3365
      %v3370 = vsel %vm318, %v3048, 0
      %v3373 = vsel %vm318, %v3049, 0
      %v3376 = vsel %vm318, %v3050, 0
      %v3379 = vsel %vm318, %v3051, 0
      %v3382 = vsel %vm318, %v3052, 0
      %v3385 = vsel %vm318, %v3053, 0
      %v3388 = vsel %vm318, %v3054, 0
      %v3391 = vsel %vm318, %v3055, 0
      %v3394 = vsel %vm318, %v3056, 0
      %v3397 = vsel %vm318, %v3057, 0
      %v3400 = vsel %vm318, %v3058, 0
      %v3403 = vsel %vm318, %v3059, 0
      %v3406 = vsel %vm318, %v3060, 0
      %v3409 = vsel %vm318, %v3061, 0
      %v3412 = vsel %vm318, %v3062, 0
      %v3415 = vsel %vm318, %v3063, 0
      %v3418 = vsel %vm318, %v3064, 0
      %v3421 = vsel %vm318, %v3065, 0
      %3423 = vmatprep.subr.bf16.mxu0 0
      %3424 = vmatpush1.bf16.msra.mxu0 %v3367
      %3425 = vmatprep.subr.bf16.mxu0 0
      %3426 = vmatpush1.bf16.msra.mxu0 0
      %3427 = vmatprep.subr.bf16.mxu0 0
      %3428 = vmatpush1.bf16.msra.mxu0 0
      %3429 = vmatprep.subr.bf16.mxu0 0
      %3430 = vmatpush1.bf16.msra.mxu0 0
      %3431 = vmatprep.subr.bf16.mxu0 0
      %3432 = vmatpush1.bf16.msra.mxu0 0
      %3433 = vmatprep.subr.bf16.mxu0 0
      %3434 = vmatpush1.bf16.msra.mxu0 0
      %3435 = vmatprep.subr.bf16.mxu0 0
      %3436 = vmatpush1.bf16.msra.mxu0 0
      %3437 = vmatprep.subr.bf16.mxu0 0
      %3438 = vmatpush1.bf16.msra.mxu0 0
      %3439 = vmatprep.subr.bf16.mxu0 0
      %3440 = vmatpush1.bf16.msra.mxu0 0
      %3441 = vmatprep.subr.bf16.mxu0 0
      %3442 = vmatpush1.bf16.msra.mxu0 0
      %3443 = vmatprep.subr.bf16.mxu0 0
      %3444 = vmatpush1.bf16.msra.mxu0 0
      %3445 = vmatprep.subr.bf16.mxu0 0
      %3446 = vmatpush1.bf16.msra.mxu0 0
      %3447 = vmatprep.subr.bf16.mxu0 0
      %3448 = vmatpush1.bf16.msra.mxu0 0
      %3449 = vmatprep.subr.bf16.mxu0 0
      %3450 = vmatpush1.bf16.msra.mxu0 0
      %3451 = vmatprep.subr.bf16.mxu0 0
      %3452 = vmatpush1.bf16.msra.mxu0 0
      %3453 = vmatprep.subr.bf16.mxu0 0
      %3454 = vmatpush1.bf16.msra.mxu0 0
      %3455 = vmatprep.mubr.bf16.mxu0 0
      %3456 = vmatmul.mubr.bf16.gmra.mrb[0].mxu0 %v3370
      %v3457 = vpop.f32.mrb[0].mxu0
      %v3458 = vadd.f32 %v3221, %v3457
      %v3459 = vpop.f32.mrb[0].mxu0
      %v3460 = vpop.f32.mrb[0].mxu0
      %v3461 = vadd.f32 %v3224, %v3460
      %v3462 = vpop.f32.mrb[0].mxu0
      %3463 = vmatprep.mubr.bf16.mxu0 0
      %3464 = vmatmul.mubr.bf16.gmra.mrb[0].mxu0 %v3373
      %v3465 = vpop.f32.mrb[0].mxu0
      %v3466 = vadd.f32 %v3229, %v3465
      %v3467 = vpop.f32.mrb[0].mxu0
      %v3468 = vpop.f32.mrb[0].mxu0
      %v3469 = vadd.f32 %v3232, %v3468
      %v3470 = vpop.f32.mrb[0].mxu0
      %3471 = vmatprep.mubr.bf16.mxu0 0
      %3472 = vmatmul.mubr.bf16.gmra.mrb[0].mxu0 %v3376
      %v3473 = vpop.f32.mrb[0].mxu0
      %v3474 = vadd.f32 %v3237, %v3473
      %v3475 = vpop.f32.mrb[0].mxu0
      %v3476 = vpop.f32.mrb[0].mxu0
      %v3477 = vadd.f32 %v3240, %v3476
      %v3478 = vpop.f32.mrb[0].mxu0
      %3479 = vmatprep.mubr.bf16.mxu0 0
      %3480 = vmatmul.mubr.bf16.gmra.mrb[0].mxu0 %v3379
      %v3481 = vpop.f32.mrb[0].mxu0
      %v3482 = vadd.f32 %v3245, %v3481
      %v3483 = vpop.f32.mrb[0].mxu0
      %v3484 = vpop.f32.mrb[0].mxu0
      %v3485 = vadd.f32 %v3248, %v3484
      %v3486 = vpop.f32.mrb[0].mxu0
      %3487 = vmatprep.mubr.bf16.mxu0 0
      %3488 = vmatmul.mubr.bf16.gmra.mrb[0].mxu0 %v3382
      %v3489 = vpop.f32.mrb[0].mxu0
      %v3490 = vadd.f32 %v3253, %v3489
      %v3491 = vpop.f32.mrb[0].mxu0
      %v3492 = vpop.f32.mrb[0].mxu0
      %v3493 = vadd.f32 %v3256, %v3492
      %v3494 = vpop.f32.mrb[0].mxu0
      %3495 = vmatprep.mubr.bf16.mxu0 0
      %3496 = vmatmul.mubr.bf16.gmra.mrb[0].mxu0 %v3385
      %v3497 = vpop.f32.mrb[0].mxu0
      %v3498 = vadd.f32 %v3261, %v3497
      %v3499 = vpop.f32.mrb[0].mxu0
      %v3500 = vpop.f32.mrb[0].mxu0
      %v3501 = vadd.f32 %v3264, %v3500
      %v3502 = vpop.f32.mrb[0].mxu0
      %3503 = vmatprep.mubr.bf16.mxu0 0
      %3504 = vmatmul.mubr.bf16.gmra.mrb[0].mxu0 %v3388
      %v3505 = vpop.f32.mrb[0].mxu0
      %v3506 = vadd.f32 %v3269, %v3505
      %v3507 = vpop.f32.mrb[0].mxu0
      %v3508 = vpop.f32.mrb[0].mxu0
      %v3509 = vadd.f32 %v3272, %v3508
      %v3510 = vpop.f32.mrb[0].mxu0
      %3511 = vmatprep.mubr.bf16.mxu0 0
      %3512 = vmatmul.mubr.bf16.gmra.mrb[0].mxu0 %v3391
      %v3513 = vpop.f32.mrb[0].mxu0
      %v3514 = vadd.f32 %v3277, %v3513
      %v3515 = vpop.f32.mrb[0].mxu0
      %v3516 = vpop.f32.mrb[0].mxu0
      %v3517 = vadd.f32 %v3280, %v3516
      %v3518 = vpop.f32.mrb[0].mxu0
      %3519 = vmatprep.mubr.bf16.mxu0 0
      %3520 = vmatmul.mubr.bf16.gmra.mrb[0].mxu0 %v3394
      %v3521 = vpop.f32.mrb[0].mxu0
      %v3522 = vadd.f32 %v3285, %v3521
      %v3523 = vpop.f32.mrb[0].mxu0
      %v3524 = vpop.f32.mrb[0].mxu0
      %v3525 = vadd.f32 %v3288, %v3524
      %v3526 = vpop.f32.mrb[0].mxu0
      %3527 = vmatprep.mubr.bf16.mxu0 0
      %3528 = vmatmul.mubr.bf16.gmra.mrb[0].mxu0 %v3397
      %v3529 = vpop.f32.mrb[0].mxu0
      %v3530 = vadd.f32 %v3293, %v3529
      %v3531 = vpop.f32.mrb[0].mxu0
      %v3532 = vpop.f32.mrb[0].mxu0
      %v3533 = vadd.f32 %v3296, %v3532
      %v3534 = vpop.f32.mrb[0].mxu0
      %3535 = vmatprep.mubr.bf16.mxu0 0
      %3536 = vmatmul.mubr.bf16.gmra.mrb[0].mxu0 %v3400
      %v3537 = vpop.f32.mrb[0].mxu0
      %v3538 = vadd.f32 %v3301, %v3537
      %v3539 = vpop.f32.mrb[0].mxu0
      %v3540 = vpop.f32.mrb[0].mxu0
      %v3541 = vadd.f32 %v3304, %v3540
      %v3542 = vpop.f32.mrb[0].mxu0
      %3543 = vmatprep.mubr.bf16.mxu0 0
      %3544 = vmatmul.mubr.bf16.gmra.mrb[0].mxu0 %v3403
      %v3545 = vpop.f32.mrb[0].mxu0
      %v3546 = vadd.f32 %v3309, %v3545
      %v3547 = vpop.f32.mrb[0].mxu0
      %v3548 = vpop.f32.mrb[0].mxu0
      %v3549 = vadd.f32 %v3312, %v3548
      %v3550 = vpop.f32.mrb[0].mxu0
      %3551 = vmatprep.mubr.bf16.mxu0 0
      %3552 = vmatmul.mubr.bf16.gmra.mrb[0].mxu0 %v3406
      %v3553 = vpop.f32.mrb[0].mxu0
      %v3554 = vadd.f32 %v3317, %v3553
      %v3555 = vpop.f32.mrb[0].mxu0
      %v3556 = vpop.f32.mrb[0].mxu0
      %v3557 = vadd.f32 %v3320, %v3556
      %v3558 = vpop.f32.mrb[0].mxu0
      %3559 = vmatprep.mubr.bf16.mxu0 0
      %3560 = vmatmul.mubr.bf16.gmra.mrb[0].mxu0 %v3409
      %v3561 = vpop.f32.mrb[0].mxu0
      %v3562 = vadd.f32 %v3325, %v3561
      %v3563 = vpop.f32.mrb[0].mxu0
      %v3564 = vpop.f32.mrb[0].mxu0
      %v3565 = vadd.f32 %v3328, %v3564
      %v3566 = vpop.f32.mrb[0].mxu0
      %3567 = vmatprep.mubr.bf16.mxu0 0
      %3568 = vmatmul.mubr.bf16.gmra.mrb[0].mxu0 %v3412
      %v3569 = vpop.f32.mrb[0].mxu0
      %v3570 = vadd.f32 %v3333, %v3569
      %v3571 = vpop.f32.mrb[0].mxu0
      %v3572 = vpop.f32.mrb[0].mxu0
      %v3573 = vadd.f32 %v3336, %v3572
      %v3574 = vpop.f32.mrb[0].mxu0
      %3575 = vmatprep.mubr.bf16.mxu0 0
      %3576 = vmatmul.mubr.bf16.gmra.mrb[0].mxu0 %v3415
      %v3577 = vpop.f32.mrb[0].mxu0
      %v3578 = vadd.f32 %v3341, %v3577
      %v3579 = vpop.f32.mrb[0].mxu0
      %v3580 = vpop.f32.mrb[0].mxu0
      %v3581 = vadd.f32 %v3344, %v3580
      %v3582 = vpop.f32.mrb[0].mxu0
      %3583 = vmatprep.mubr.bf16.mxu0 0
      %3584 = vmatmul.mubr.bf16.gmra.mrb[0].mxu0 %v3418
      %v3585 = vpop.f32.mrb[0].mxu0
      %v3586 = vadd.f32 %v3349, %v3585
      %v3587 = vpop.f32.mrb[0].mxu0
      %v3588 = vpop.f32.mrb[0].mxu0
      %v3589 = vadd.f32 %v3352, %v3588
      %v3590 = vpop.f32.mrb[0].mxu0
      %3591 = vmatprep.mubr.bf16.mxu0 0
      %3592 = vmatmul.mubr.bf16.gmra.mrb[0].mxu0 %v3421
      %v3593 = vpop.f32.mrb[0].mxu0
      %v3594 = vadd.f32 %v3357, %v3593
      %v3595 = vpop.f32.mrb[0].mxu0
      %v3596 = vpop.f32.mrb[0].mxu0
      %v3597 = vadd.f32 %v3360, %v3596
      %v3598 = vpop.f32.mrb[0].mxu0
      %3599 = vdwg.mxu0
      %v3600 = vld [vmem:[%s192 + $0x24] sm:$0xff]
      %v3601 = vld [vmem:[%s192 + $0x2c] sm:$0xff]
      %v3602 = vld [vmem:[%s192 + $0x34] sm:$0xff]
      %v3603 = vld [vmem:[%s192 + $0x3c] sm:$0xff]
      %v3604 = vld [vmem:[%s192 + $0x44] sm:$0xff]
      %v3605 = vld [vmem:[%s192 + $0x4c] sm:$0xff]
      %v3606 = vld [vmem:[%s192 + $0x54] sm:$0xff]
      %v3607 = vld [vmem:[%s192 + $0x5c] sm:$0xff]
      %v3608 = vld [vmem:[%s192 + $0x64] sm:$0xff]
      %v3609 = vld [vmem:[%s192 + $0x6c] sm:$0xff]
      %v3610 = vld [vmem:[%s192 + $0x74] sm:$0xff]
      %v3611 = vld [vmem:[%s192 + $0x7c] sm:$0xff]
      %v3612 = vld [vmem:[%s192 + $0x84] sm:$0xff]
      %v3613 = vld [vmem:[%s192 + $0x8c] sm:$0xff]
      %v3614 = vld [vmem:[%s192 + $0x94] sm:$0xff]
      %v3615 = vld [vmem:[%s192 + $0x9c] sm:$0xff]
      %v3616 = vld [vmem:[%s192 + $0xa4] sm:$0xff]
      %v3617 = vld [vmem:[%s192 + $0xac] sm:$0xff]
      %v3618 = vld [vmem:[%s192 + $0xb4] sm:$0xff]
      %v3619 = vld [vmem:[%s192 + $0xbc] sm:$0xff]
      %v3620 = vld [vmem:[%s192 + $0xc4] sm:$0xff]
      %v3621 = vld [vmem:[%s192 + $0xcc] sm:$0xff]
      %v3622 = vld [vmem:[%s192 + $0xd4] sm:$0xff]
      %v3623 = vld [vmem:[%s192 + $0xdc] sm:$0xff]
      %v3624 = vld [vmem:[%s192 + $0xe4] sm:$0xff]
      %v3625 = vld [vmem:[%s192 + $0xec] sm:$0xff]
      %v3626 = vld [vmem:[%s192 + $0xf4] sm:$0xff]
      %v3627 = vld [vmem:[%s192 + $0xfc] sm:$0xff]
      %v3628 = vld [vmem:[%s192 + $0x104] sm:$0xff]
      %v3629 = vld [vmem:[%s192 + $0x10c] sm:$0xff]
      %v3630 = vld [vmem:[%s192 + $0x114] sm:$0xff]
      %v3631 = vld [vmem:[%s192 + $0x11c] sm:$0xff]
      %v3632 = vld [vmem:[%s192 + $0x124] sm:$0xff]
      %v3633 = vld [vmem:[%s192 + $0x12c] sm:$0xff]
      %v3634 = vld [vmem:[%s192 + $0x134] sm:$0xff]
      %v3635 = vld [vmem:[%s192 + $0x13c] sm:$0xff]
      %v3636 = vpack.c.bf16 %v3601, %v3600
      %v3637 = vpack.c.bf16 %v3603, %v3602
      %v3638 = vpack.c.bf16 %v3605, %v3604
      %v3639 = vpack.c.bf16 %v3607, %v3606
      %v3640 = vpack.c.bf16 %v3609, %v3608
      %v3641 = vpack.c.bf16 %v3611, %v3610
      %v3642 = vpack.c.bf16 %v3613, %v3612
      %v3643 = vpack.c.bf16 %v3615, %v3614
      %v3644 = vpack.c.bf16 %v3617, %v3616
      %v3645 = vpack.c.bf16 %v3619, %v3618
      %v3646 = vpack.c.bf16 %v3621, %v3620
      %v3647 = vpack.c.bf16 %v3623, %v3622
      %v3648 = vpack.c.bf16 %v3625, %v3624
      %v3649 = vpack.c.bf16 %v3627, %v3626
      %v3650 = vpack.c.bf16 %v3629, %v3628
      %v3651 = vpack.c.bf16 %v3631, %v3630
      %v3652 = vpack.c.bf16 %v3633, %v3632
      %v3653 = vpack.c.bf16 %v3635, %v3634
      %s3654 = scalar_lea.vmem %s1, 80
      %v3655 = vld [vmem:[%s3654] sm:$0xf]
      %v3656 = vld [vmem:[%s3654 + $0x4] sm:$0xf]
      %v3659 = vunpack.c.l.b16 %v3655
      %v3660 = vunpack.c.l.b16 %v3656
      %v3661 = vpack.c.b16 %v3660, %v3659
      %v3664 = vsel %vm318, %v3636, 0
      %v3667 = vsel %vm318, %v3637, 0
      %v3670 = vsel %vm318, %v3638, 0
      %v3673 = vsel %vm318, %v3639, 0
      %v3676 = vsel %vm318, %v3640, 0
      %v3679 = vsel %vm318, %v3641, 0
      %v3682 = vsel %vm318, %v3642, 0
      %v3685 = vsel %vm318, %v3643, 0
      %v3688 = vsel %vm318, %v3644, 0
      %v3691 = vsel %vm318, %v3645, 0
      %v3694 = vsel %vm318, %v3646, 0
      %v3697 = vsel %vm318, %v3647, 0
      %v3700 = vsel %vm318, %v3648, 0
      %v3703 = vsel %vm318, %v3649, 0
      %v3706 = vsel %vm318, %v3650, 0
      %v3709 = vsel %vm318, %v3651, 0
      %v3712 = vsel %vm318, %v3652, 0
      %v3715 = vsel %vm318, %v3653, 0
      %3717 = vmatprep.subr.bf16.mxu0 0
      %3718 = vmatpush1.bf16.msra.mxu0 %v3661
      %3719 = vmatprep.subr.bf16.mxu0 0
      %3720 = vmatpush1.bf16.msra.mxu0 0
      %3721 = vmatprep.subr.bf16.mxu0 0
      %3722 = vmatpush1.bf16.msra.mxu0 0
      %3723 = vmatprep.subr.bf16.mxu0 0
      %3724 = vmatpush1.bf16.msra.mxu0 0
      %3725 = vmatprep.subr.bf16.mxu0 0
      %3726 = vmatpush1.bf16.msra.mxu0 0
      %3727 = vmatprep.subr.bf16.mxu0 0
      %3728 = vmatpush1.bf16.msra.mxu0 0
      %3729 = vmatprep.subr.bf16.mxu0 0
      %3730 = vmatpush1.bf16.msra.mxu0 0
      %3731 = vmatprep.subr.bf16.mxu0 0
      %3732 = vmatpush1.bf16.msra.mxu0 0
      %3733 = vmatprep.subr.bf16.mxu0 0
      %3734 = vmatpush1.bf16.msra.mxu0 0
      %3735 = vmatprep.subr.bf16.mxu0 0
      %3736 = vmatpush1.bf16.msra.mxu0 0
      %3737 = vmatprep.subr.bf16.mxu0 0
      %3738 = vmatpush1.bf16.msra.mxu0 0
      %3739 = vmatprep.subr.bf16.mxu0 0
      %3740 = vmatpush1.bf16.msra.mxu0 0
      %3741 = vmatprep.subr.bf16.mxu0 0
      %3742 = vmatpush1.bf16.msra.mxu0 0
      %3743 = vmatprep.subr.bf16.mxu0 0
      %3744 = vmatpush1.bf16.msra.mxu0 0
      %3745 = vmatprep.subr.bf16.mxu0 0
      %3746 = vmatpush1.bf16.msra.mxu0 0
      %3747 = vmatprep.subr.bf16.mxu0 0
      %3748 = vmatpush1.bf16.msra.mxu0 0
      %3749 = vmatprep.mubr.bf16.mxu0 0
      %3750 = vmatmul.mubr.bf16.gmra.mrb[0].mxu0 %v3664
      %v3751 = vpop.f32.mrb[0].mxu0
      %v3752 = vadd.f32 0.0, %v3751
      %v3753 = vpop.f32.mrb[0].mxu0
      %v3754 = vpop.f32.mrb[0].mxu0
      %v3755 = vadd.f32 0.0, %v3754
      %v3756 = vpop.f32.mrb[0].mxu0
      %3757 = vmatprep.mubr.bf16.mxu0 0
      %3758 = vmatmul.mubr.bf16.gmra.mrb[0].mxu0 %v3667
      %v3759 = vpop.f32.mrb[0].mxu0
      %v3760 = vadd.f32 0.0, %v3759
      %v3761 = vpop.f32.mrb[0].mxu0
      %v3762 = vpop.f32.mrb[0].mxu0
      %v3763 = vadd.f32 0.0, %v3762
      %v3764 = vpop.f32.mrb[0].mxu0
      %3765 = vmatprep.mubr.bf16.mxu0 0
      %3766 = vmatmul.mubr.bf16.gmra.mrb[0].mxu0 %v3670
      %v3767 = vpop.f32.mrb[0].mxu0
      %v3768 = vadd.f32 0.0, %v3767
      %v3769 = vpop.f32.mrb[0].mxu0
      %v3770 = vpop.f32.mrb[0].mxu0
      %v3771 = vadd.f32 0.0, %v3770
      %v3772 = vpop.f32.mrb[0].mxu0
      %3773 = vmatprep.mubr.bf16.mxu0 0
      %3774 = vmatmul.mubr.bf16.gmra.mrb[0].mxu0 %v3673
      %v3775 = vpop.f32.mrb[0].mxu0
      %v3776 = vadd.f32 0.0, %v3775
      %v3777 = vpop.f32.mrb[0].mxu0
      %v3778 = vpop.f32.mrb[0].mxu0
      %v3779 = vadd.f32 0.0, %v3778
      %v3780 = vpop.f32.mrb[0].mxu0
      %3781 = vmatprep.mubr.bf16.mxu0 0
      %3782 = vmatmul.mubr.bf16.gmra.mrb[0].mxu0 %v3676
      %v3783 = vpop.f32.mrb[0].mxu0
      %v3784 = vadd.f32 0.0, %v3783
      %v3785 = vpop.f32.mrb[0].mxu0
      %v3786 = vpop.f32.mrb[0].mxu0
      %v3787 = vadd.f32 0.0, %v3786
      %v3788 = vpop.f32.mrb[0].mxu0
      %3789 = vmatprep.mubr.bf16.mxu0 0
      %3790 = vmatmul.mubr.bf16.gmra.mrb[0].mxu0 %v3679
      %v3791 = vpop.f32.mrb[0].mxu0
      %v3792 = vadd.f32 0.0, %v3791
      %v3793 = vpop.f32.mrb[0].mxu0
      %v3794 = vpop.f32.mrb[0].mxu0
      %v3795 = vadd.f32 0.0, %v3794
      %v3796 = vpop.f32.mrb[0].mxu0
      %3797 = vmatprep.mubr.bf16.mxu0 0
      %3798 = vmatmul.mubr.bf16.gmra.mrb[0].mxu0 %v3682
      %v3799 = vpop.f32.mrb[0].mxu0
      %v3800 = vadd.f32 0.0, %v3799
      %v3801 = vpop.f32.mrb[0].mxu0
      %v3802 = vpop.f32.mrb[0].mxu0
      %v3803 = vadd.f32 0.0, %v3802
      %v3804 = vpop.f32.mrb[0].mxu0
      %3805 = vmatprep.mubr.bf16.mxu0 0
      %3806 = vmatmul.mubr.bf16.gmra.mrb[0].mxu0 %v3685
      %v3807 = vpop.f32.mrb[0].mxu0
      %v3808 = vadd.f32 0.0, %v3807
      %v3809 = vpop.f32.mrb[0].mxu0
      %v3810 = vpop.f32.mrb[0].mxu0
      %v3811 = vadd.f32 0.0, %v3810
      %v3812 = vpop.f32.mrb[0].mxu0
      %3813 = vmatprep.mubr.bf16.mxu0 0
      %3814 = vmatmul.mubr.bf16.gmra.mrb[0].mxu0 %v3688
      %v3815 = vpop.f32.mrb[0].mxu0
      %v3816 = vadd.f32 0.0, %v3815
      %v3817 = vpop.f32.mrb[0].mxu0
      %v3818 = vpop.f32.mrb[0].mxu0
      %v3819 = vadd.f32 0.0, %v3818
      %v3820 = vpop.f32.mrb[0].mxu0
      %3821 = vmatprep.mubr.bf16.mxu0 0
      %3822 = vmatmul.mubr.bf16.gmra.mrb[0].mxu0 %v3691
      %v3823 = vpop.f32.mrb[0].mxu0
      %v3824 = vadd.f32 0.0, %v3823
      %v3825 = vpop.f32.mrb[0].mxu0
      %v3826 = vpop.f32.mrb[0].mxu0
      %v3827 = vadd.f32 0.0, %v3826
      %v3828 = vpop.f32.mrb[0].mxu0
      %3829 = vmatprep.mubr.bf16.mxu0 0
      %3830 = vmatmul.mubr.bf16.gmra.mrb[0].mxu0 %v3694
      %v3831 = vpop.f32.mrb[0].mxu0
      %v3832 = vadd.f32 0.0, %v3831
      %v3833 = vpop.f32.mrb[0].mxu0
      %v3834 = vpop.f32.mrb[0].mxu0
      %v3835 = vadd.f32 0.0, %v3834
      %v3836 = vpop.f32.mrb[0].mxu0
      %3837 = vmatprep.mubr.bf16.mxu0 0
      %3838 = vmatmul.mubr.bf16.gmra.mrb[0].mxu0 %v3697
      %v3839 = vpop.f32.mrb[0].mxu0
      %v3840 = vadd.f32 0.0, %v3839
      %v3841 = vpop.f32.mrb[0].mxu0
      %v3842 = vpop.f32.mrb[0].mxu0
      %v3843 = vadd.f32 0.0, %v3842
      %v3844 = vpop.f32.mrb[0].mxu0
      %3845 = vmatprep.mubr.bf16.mxu0 0
      %3846 = vmatmul.mubr.bf16.gmra.mrb[0].mxu0 %v3700
      %v3847 = vpop.f32.mrb[0].mxu0
      %v3848 = vadd.f32 0.0, %v3847
      %v3849 = vpop.f32.mrb[0].mxu0
      %v3850 = vpop.f32.mrb[0].mxu0
      %v3851 = vadd.f32 0.0, %v3850
      %v3852 = vpop.f32.mrb[0].mxu0
      %3853 = vmatprep.mubr.bf16.mxu0 0
      %3854 = vmatmul.mubr.bf16.gmra.mrb[0].mxu0 %v3703
      %v3855 = vpop.f32.mrb[0].mxu0
      %v3856 = vadd.f32 0.0, %v3855
      %v3857 = vpop.f32.mrb[0].mxu0
      %v3858 = vpop.f32.mrb[0].mxu0
      %v3859 = vadd.f32 0.0, %v3858
      %v3860 = vpop.f32.mrb[0].mxu0
      %3861 = vmatprep.mubr.bf16.mxu0 0
      %3862 = vmatmul.mubr.bf16.gmra.mrb[0].mxu0 %v3706
      %v3863 = vpop.f32.mrb[0].mxu0
      %v3864 = vadd.f32 0.0, %v3863
      %v3865 = vpop.f32.mrb[0].mxu0
      %v3866 = vpop.f32.mrb[0].mxu0
      %v3867 = vadd.f32 0.0, %v3866
      %v3868 = vpop.f32.mrb[0].mxu0
      %3869 = vmatprep.mubr.bf16.mxu0 0
      %3870 = vmatmul.mubr.bf16.gmra.mrb[0].mxu0 %v3709
      %v3871 = vpop.f32.mrb[0].mxu0
      %v3872 = vadd.f32 0.0, %v3871
      %v3873 = vpop.f32.mrb[0].mxu0
      %v3874 = vpop.f32.mrb[0].mxu0
      %v3875 = vadd.f32 0.0, %v3874
      %v3876 = vpop.f32.mrb[0].mxu0
      %3877 = vmatprep.mubr.bf16.mxu0 0
      %3878 = vmatmul.mubr.bf16.gmra.mrb[0].mxu0 %v3712
      %v3879 = vpop.f32.mrb[0].mxu0
      %v3880 = vadd.f32 0.0, %v3879
      %v3881 = vpop.f32.mrb[0].mxu0
      %v3882 = vpop.f32.mrb[0].mxu0
      %v3883 = vadd.f32 0.0, %v3882
      %v3884 = vpop.f32.mrb[0].mxu0
      %3885 = vmatprep.mubr.bf16.mxu0 0
      %3886 = vmatmul.mubr.bf16.gmra.mrb[0].mxu0 %v3715
      %v3887 = vpop.f32.mrb[0].mxu0
      %v3888 = vadd.f32 0.0, %v3887
      %v3889 = vpop.f32.mrb[0].mxu0
      %v3890 = vpop.f32.mrb[0].mxu0
      %v3891 = vadd.f32 0.0, %v3890
      %v3892 = vpop.f32.mrb[0].mxu0
      %3893 = vdwg.mxu0
      %v3894 = vadd.f32 %v3458, %v3752
      %v3895 = vadd.f32 %v3461, %v3755
      %v3896 = vadd.f32 %v3466, %v3760
      %v3897 = vadd.f32 %v3469, %v3763
      %v3898 = vadd.f32 %v3474, %v3768
      %v3899 = vadd.f32 %v3477, %v3771
      %v3900 = vadd.f32 %v3482, %v3776
      %v3901 = vadd.f32 %v3485, %v3779
      %v3902 = vadd.f32 %v3490, %v3784
      %v3903 = vadd.f32 %v3493, %v3787
      %v3904 = vadd.f32 %v3498, %v3792
      %v3905 = vadd.f32 %v3501, %v3795
      %v3906 = vadd.f32 %v3506, %v3800
      %v3907 = vadd.f32 %v3509, %v3803
      %v3908 = vadd.f32 %v3514, %v3808
      %v3909 = vadd.f32 %v3517, %v3811
      %v3910 = vadd.f32 %v3522, %v3816
      %v3911 = vadd.f32 %v3525, %v3819
      %v3912 = vadd.f32 %v3530, %v3824
      %v3913 = vadd.f32 %v3533, %v3827
      %v3914 = vadd.f32 %v3538, %v3832
      %v3915 = vadd.f32 %v3541, %v3835
      %v3916 = vadd.f32 %v3546, %v3840
      %v3917 = vadd.f32 %v3549, %v3843
      %v3918 = vadd.f32 %v3554, %v3848
      %v3919 = vadd.f32 %v3557, %v3851
      %v3920 = vadd.f32 %v3562, %v3856
      %v3921 = vadd.f32 %v3565, %v3859
      %v3922 = vadd.f32 %v3570, %v3864
      %v3923 = vadd.f32 %v3573, %v3867
      %v3924 = vadd.f32 %v3578, %v3872
      %v3925 = vadd.f32 %v3581, %v3875
      %v3926 = vadd.f32 %v3586, %v3880
      %v3927 = vadd.f32 %v3589, %v3883
      %v3928 = vadd.f32 %v3594, %v3888
      %v3929 = vadd.f32 %v3597, %v3891
      %v3930 = vld [vmem:[%s192 + $0x25] sm:$0xff]
      %v3931 = vld [vmem:[%s192 + $0x2d] sm:$0xff]
      %v3932 = vld [vmem:[%s192 + $0x35] sm:$0xff]
      %v3933 = vld [vmem:[%s192 + $0x3d] sm:$0xff]
      %v3934 = vld [vmem:[%s192 + $0x45] sm:$0xff]
      %v3935 = vld [vmem:[%s192 + $0x4d] sm:$0xff]
      %v3936 = vld [vmem:[%s192 + $0x55] sm:$0xff]
      %v3937 = vld [vmem:[%s192 + $0x5d] sm:$0xff]
      %v3938 = vld [vmem:[%s192 + $0x65] sm:$0xff]
      %v3939 = vld [vmem:[%s192 + $0x6d] sm:$0xff]
      %v3940 = vld [vmem:[%s192 + $0x75] sm:$0xff]
      %v3941 = vld [vmem:[%s192 + $0x7d] sm:$0xff]
      %v3942 = vld [vmem:[%s192 + $0x85] sm:$0xff]
      %v3943 = vld [vmem:[%s192 + $0x8d] sm:$0xff]
      %v3944 = vld [vmem:[%s192 + $0x95] sm:$0xff]
      %v3945 = vld [vmem:[%s192 + $0x9d] sm:$0xff]
      %v3946 = vld [vmem:[%s192 + $0xa5] sm:$0xff]
      %v3947 = vld [vmem:[%s192 + $0xad] sm:$0xff]
      %v3948 = vld [vmem:[%s192 + $0xb5] sm:$0xff]
      %v3949 = vld [vmem:[%s192 + $0xbd] sm:$0xff]
      %v3950 = vld [vmem:[%s192 + $0xc5] sm:$0xff]
      %v3951 = vld [vmem:[%s192 + $0xcd] sm:$0xff]
      %v3952 = vld [vmem:[%s192 + $0xd5] sm:$0xff]
      %v3953 = vld [vmem:[%s192 + $0xdd] sm:$0xff]
      %v3954 = vld [vmem:[%s192 + $0xe5] sm:$0xff]
      %v3955 = vld [vmem:[%s192 + $0xed] sm:$0xff]
      %v3956 = vld [vmem:[%s192 + $0xf5] sm:$0xff]
      %v3957 = vld [vmem:[%s192 + $0xfd] sm:$0xff]
      %v3958 = vld [vmem:[%s192 + $0x105] sm:$0xff]
      %v3959 = vld [vmem:[%s192 + $0x10d] sm:$0xff]
      %v3960 = vld [vmem:[%s192 + $0x115] sm:$0xff]
      %v3961 = vld [vmem:[%s192 + $0x11d] sm:$0xff]
      %v3962 = vld [vmem:[%s192 + $0x125] sm:$0xff]
      %v3963 = vld [vmem:[%s192 + $0x12d] sm:$0xff]
      %v3964 = vld [vmem:[%s192 + $0x135] sm:$0xff]
      %v3965 = vld [vmem:[%s192 + $0x13d] sm:$0xff]
      %v3966 = vpack.c.bf16 %v3931, %v3930
      %v3967 = vpack.c.bf16 %v3933, %v3932
      %v3968 = vpack.c.bf16 %v3935, %v3934
      %v3969 = vpack.c.bf16 %v3937, %v3936
      %v3970 = vpack.c.bf16 %v3939, %v3938
      %v3971 = vpack.c.bf16 %v3941, %v3940
      %v3972 = vpack.c.bf16 %v3943, %v3942
      %v3973 = vpack.c.bf16 %v3945, %v3944
      %v3974 = vpack.c.bf16 %v3947, %v3946
      %v3975 = vpack.c.bf16 %v3949, %v3948
      %v3976 = vpack.c.bf16 %v3951, %v3950
      %v3977 = vpack.c.bf16 %v3953, %v3952
      %v3978 = vpack.c.bf16 %v3955, %v3954
      %v3979 = vpack.c.bf16 %v3957, %v3956
      %v3980 = vpack.c.bf16 %v3959, %v3958
      %v3981 = vpack.c.bf16 %v3961, %v3960
      %v3982 = vpack.c.bf16 %v3963, %v3962
      %v3983 = vpack.c.bf16 %v3965, %v3964
      %s3984 = scalar_lea.vmem %s1, 88
      %v3985 = vld [vmem:[%s3984] sm:$0xf]
      %v3986 = vld [vmem:[%s3984 + $0x4] sm:$0xf]
      %v3989 = vunpack.c.l.b16 %v3985
      %v3990 = vunpack.c.l.b16 %v3986
      %v3991 = vpack.c.b16 %v3990, %v3989
      %v3994 = vsel %vm318, %v3966, 0
      %v3997 = vsel %vm318, %v3967, 0
      %v4000 = vsel %vm318, %v3968, 0
      %v4003 = vsel %vm318, %v3969, 0
      %v4006 = vsel %vm318, %v3970, 0
      %v4009 = vsel %vm318, %v3971, 0
      %v4012 = vsel %vm318, %v3972, 0
      %v4015 = vsel %vm318, %v3973, 0
      %v4018 = vsel %vm318, %v3974, 0
      %v4021 = vsel %vm318, %v3975, 0
      %v4024 = vsel %vm318, %v3976, 0
      %v4027 = vsel %vm318, %v3977, 0
      %v4030 = vsel %vm318, %v3978, 0
      %v4033 = vsel %vm318, %v3979, 0
      %v4036 = vsel %vm318, %v3980, 0
      %v4039 = vsel %vm318, %v3981, 0
      %v4042 = vsel %vm318, %v3982, 0
      %v4045 = vsel %vm318, %v3983, 0
      %4047 = vmatprep.subr.bf16.mxu0 0
      %4048 = vmatpush1.bf16.msra.mxu0 %v3991
      %4049 = vmatprep.subr.bf16.mxu0 0
      %4050 = vmatpush1.bf16.msra.mxu0 0
      %4051 = vmatprep.subr.bf16.mxu0 0
      %4052 = vmatpush1.bf16.msra.mxu0 0
      %4053 = vmatprep.subr.bf16.mxu0 0
      %4054 = vmatpush1.bf16.msra.mxu0 0
      %4055 = vmatprep.subr.bf16.mxu0 0
      %4056 = vmatpush1.bf16.msra.mxu0 0
      %4057 = vmatprep.subr.bf16.mxu0 0
      %4058 = vmatpush1.bf16.msra.mxu0 0
      %4059 = vmatprep.subr.bf16.mxu0 0
      %4060 = vmatpush1.bf16.msra.mxu0 0
      %4061 = vmatprep.subr.bf16.mxu0 0
      %4062 = vmatpush1.bf16.msra.mxu0 0
      %4063 = vmatprep.subr.bf16.mxu0 0
      %4064 = vmatpush1.bf16.msra.mxu0 0
      %4065 = vmatprep.subr.bf16.mxu0 0
      %4066 = vmatpush1.bf16.msra.mxu0 0
      %4067 = vmatprep.subr.bf16.mxu0 0
      %4068 = vmatpush1.bf16.msra.mxu0 0
      %4069 = vmatprep.subr.bf16.mxu0 0
      %4070 = vmatpush1.bf16.msra.mxu0 0
      %4071 = vmatprep.subr.bf16.mxu0 0
      %4072 = vmatpush1.bf16.msra.mxu0 0
      %4073 = vmatprep.subr.bf16.mxu0 0
      %4074 = vmatpush1.bf16.msra.mxu0 0
      %4075 = vmatprep.subr.bf16.mxu0 0
      %4076 = vmatpush1.bf16.msra.mxu0 0
      %4077 = vmatprep.subr.bf16.mxu0 0
      %4078 = vmatpush1.bf16.msra.mxu0 0
      %4079 = vmatprep.mubr.bf16.mxu0 0
      %4080 = vmatmul.mubr.bf16.gmra.mrb[0].mxu0 %v3994
      %v4081 = vpop.f32.mrb[0].mxu0
      %v4082 = vadd.f32 0.0, %v4081
      %v4083 = vpop.f32.mrb[0].mxu0
      %v4084 = vpop.f32.mrb[0].mxu0
      %v4085 = vadd.f32 0.0, %v4084
      %v4086 = vpop.f32.mrb[0].mxu0
      %4087 = vmatprep.mubr.bf16.mxu0 0
      %4088 = vmatmul.mubr.bf16.gmra.mrb[0].mxu0 %v3997
      %v4089 = vpop.f32.mrb[0].mxu0
      %v4090 = vadd.f32 0.0, %v4089
      %v4091 = vpop.f32.mrb[0].mxu0
      %v4092 = vpop.f32.mrb[0].mxu0
      %v4093 = vadd.f32 0.0, %v4092
      %v4094 = vpop.f32.mrb[0].mxu0
      %4095 = vmatprep.mubr.bf16.mxu0 0
      %4096 = vmatmul.mubr.bf16.gmra.mrb[0].mxu0 %v4000
      %v4097 = vpop.f32.mrb[0].mxu0
      %v4098 = vadd.f32 0.0, %v4097
      %v4099 = vpop.f32.mrb[0].mxu0
      %v4100 = vpop.f32.mrb[0].mxu0
      %v4101 = vadd.f32 0.0, %v4100
      %v4102 = vpop.f32.mrb[0].mxu0
      %4103 = vmatprep.mubr.bf16.mxu0 0
      %4104 = vmatmul.mubr.bf16.gmra.mrb[0].mxu0 %v4003
      %v4105 = vpop.f32.mrb[0].mxu0
      %v4106 = vadd.f32 0.0, %v4105
      %v4107 = vpop.f32.mrb[0].mxu0
      %v4108 = vpop.f32.mrb[0].mxu0
      %v4109 = vadd.f32 0.0, %v4108
      %v4110 = vpop.f32.mrb[0].mxu0
      %4111 = vmatprep.mubr.bf16.mxu0 0
      %4112 = vmatmul.mubr.bf16.gmra.mrb[0].mxu0 %v4006
      %v4113 = vpop.f32.mrb[0].mxu0
      %v4114 = vadd.f32 0.0, %v4113
      %v4115 = vpop.f32.mrb[0].mxu0
      %v4116 = vpop.f32.mrb[0].mxu0
      %v4117 = vadd.f32 0.0, %v4116
      %v4118 = vpop.f32.mrb[0].mxu0
      %4119 = vmatprep.mubr.bf16.mxu0 0
      %4120 = vmatmul.mubr.bf16.gmra.mrb[0].mxu0 %v4009
      %v4121 = vpop.f32.mrb[0].mxu0
      %v4122 = vadd.f32 0.0, %v4121
      %v4123 = vpop.f32.mrb[0].mxu0
      %v4124 = vpop.f32.mrb[0].mxu0
      %v4125 = vadd.f32 0.0, %v4124
      %v4126 = vpop.f32.mrb[0].mxu0
      %4127 = vmatprep.mubr.bf16.mxu0 0
      %4128 = vmatmul.mubr.bf16.gmra.mrb[0].mxu0 %v4012
      %v4129 = vpop.f32.mrb[0].mxu0
      %v4130 = vadd.f32 0.0, %v4129
      %v4131 = vpop.f32.mrb[0].mxu0
      %v4132 = vpop.f32.mrb[0].mxu0
      %v4133 = vadd.f32 0.0, %v4132
      %v4134 = vpop.f32.mrb[0].mxu0
      %4135 = vmatprep.mubr.bf16.mxu0 0
      %4136 = vmatmul.mubr.bf16.gmra.mrb[0].mxu0 %v4015
      %v4137 = vpop.f32.mrb[0].mxu0
      %v4138 = vadd.f32 0.0, %v4137
      %v4139 = vpop.f32.mrb[0].mxu0
      %v4140 = vpop.f32.mrb[0].mxu0
      %v4141 = vadd.f32 0.0, %v4140
      %v4142 = vpop.f32.mrb[0].mxu0
      %4143 = vmatprep.mubr.bf16.mxu0 0
      %4144 = vmatmul.mubr.bf16.gmra.mrb[0].mxu0 %v4018
      %v4145 = vpop.f32.mrb[0].mxu0
      %v4146 = vadd.f32 0.0, %v4145
      %v4147 = vpop.f32.mrb[0].mxu0
      %v4148 = vpop.f32.mrb[0].mxu0
      %v4149 = vadd.f32 0.0, %v4148
      %v4150 = vpop.f32.mrb[0].mxu0
      %4151 = vmatprep.mubr.bf16.mxu0 0
      %4152 = vmatmul.mubr.bf16.gmra.mrb[0].mxu0 %v4021
      %v4153 = vpop.f32.mrb[0].mxu0
      %v4154 = vadd.f32 0.0, %v4153
      %v4155 = vpop.f32.mrb[0].mxu0
      %v4156 = vpop.f32.mrb[0].mxu0
      %v4157 = vadd.f32 0.0, %v4156
      %v4158 = vpop.f32.mrb[0].mxu0
      %4159 = vmatprep.mubr.bf16.mxu0 0
      %4160 = vmatmul.mubr.bf16.gmra.mrb[0].mxu0 %v4024
      %v4161 = vpop.f32.mrb[0].mxu0
      %v4162 = vadd.f32 0.0, %v4161
      %v4163 = vpop.f32.mrb[0].mxu0
      %v4164 = vpop.f32.mrb[0].mxu0
      %v4165 = vadd.f32 0.0, %v4164
      %v4166 = vpop.f32.mrb[0].mxu0
      %4167 = vmatprep.mubr.bf16.mxu0 0
      %4168 = vmatmul.mubr.bf16.gmra.mrb[0].mxu0 %v4027
      %v4169 = vpop.f32.mrb[0].mxu0
      %v4170 = vadd.f32 0.0, %v4169
      %v4171 = vpop.f32.mrb[0].mxu0
      %v4172 = vpop.f32.mrb[0].mxu0
      %v4173 = vadd.f32 0.0, %v4172
      %v4174 = vpop.f32.mrb[0].mxu0
      %4175 = vmatprep.mubr.bf16.mxu0 0
      %4176 = vmatmul.mubr.bf16.gmra.mrb[0].mxu0 %v4030
      %v4177 = vpop.f32.mrb[0].mxu0
      %v4178 = vadd.f32 0.0, %v4177
      %v4179 = vpop.f32.mrb[0].mxu0
      %v4180 = vpop.f32.mrb[0].mxu0
      %v4181 = vadd.f32 0.0, %v4180
      %v4182 = vpop.f32.mrb[0].mxu0
      %4183 = vmatprep.mubr.bf16.mxu0 0
      %4184 = vmatmul.mubr.bf16.gmra.mrb[0].mxu0 %v4033
      %v4185 = vpop.f32.mrb[0].mxu0
      %v4186 = vadd.f32 0.0, %v4185
      %v4187 = vpop.f32.mrb[0].mxu0
      %v4188 = vpop.f32.mrb[0].mxu0
      %v4189 = vadd.f32 0.0, %v4188
      %v4190 = vpop.f32.mrb[0].mxu0
      %4191 = vmatprep.mubr.bf16.mxu0 0
      %4192 = vmatmul.mubr.bf16.gmra.mrb[0].mxu0 %v4036
      %v4193 = vpop.f32.mrb[0].mxu0
      %v4194 = vadd.f32 0.0, %v4193
      %v4195 = vpop.f32.mrb[0].mxu0
      %v4196 = vpop.f32.mrb[0].mxu0
      %v4197 = vadd.f32 0.0, %v4196
      %v4198 = vpop.f32.mrb[0].mxu0
      %4199 = vmatprep.mubr.bf16.mxu0 0
      %4200 = vmatmul.mubr.bf16.gmra.mrb[0].mxu0 %v4039
      %v4201 = vpop.f32.mrb[0].mxu0
      %v4202 = vadd.f32 0.0, %v4201
      %v4203 = vpop.f32.mrb[0].mxu0
      %v4204 = vpop.f32.mrb[0].mxu0
      %v4205 = vadd.f32 0.0, %v4204
      %v4206 = vpop.f32.mrb[0].mxu0
      %4207 = vmatprep.mubr.bf16.mxu0 0
      %4208 = vmatmul.mubr.bf16.gmra.mrb[0].mxu0 %v4042
      %v4209 = vpop.f32.mrb[0].mxu0
      %v4210 = vadd.f32 0.0, %v4209
      %v4211 = vpop.f32.mrb[0].mxu0
      %v4212 = vpop.f32.mrb[0].mxu0
      %v4213 = vadd.f32 0.0, %v4212
      %v4214 = vpop.f32.mrb[0].mxu0
      %4215 = vmatprep.mubr.bf16.mxu0 0
      %4216 = vmatmul.mubr.bf16.gmra.mrb[0].mxu0 %v4045
      %v4217 = vpop.f32.mrb[0].mxu0
      %v4218 = vadd.f32 0.0, %v4217
      %v4219 = vpop.f32.mrb[0].mxu0
      %v4220 = vpop.f32.mrb[0].mxu0
      %v4221 = vadd.f32 0.0, %v4220
      %v4222 = vpop.f32.mrb[0].mxu0
      %4223 = vdwg.mxu0
      %v4224 = vadd.f32 %v3894, %v4082
      %v4225 = vadd.f32 %v3895, %v4085
      %v4226 = vadd.f32 %v3896, %v4090
      %v4227 = vadd.f32 %v3897, %v4093
      %v4228 = vadd.f32 %v3898, %v4098
      %v4229 = vadd.f32 %v3899, %v4101
      %v4230 = vadd.f32 %v3900, %v4106
      %v4231 = vadd.f32 %v3901, %v4109
      %v4232 = vadd.f32 %v3902, %v4114
      %v4233 = vadd.f32 %v3903, %v4117
      %v4234 = vadd.f32 %v3904, %v4122
      %v4235 = vadd.f32 %v3905, %v4125
      %v4236 = vadd.f32 %v3906, %v4130
      %v4237 = vadd.f32 %v3907, %v4133
      %v4238 = vadd.f32 %v3908, %v4138
      %v4239 = vadd.f32 %v3909, %v4141
      %v4240 = vadd.f32 %v3910, %v4146
      %v4241 = vadd.f32 %v3911, %v4149
      %v4242 = vadd.f32 %v3912, %v4154
      %v4243 = vadd.f32 %v3913, %v4157
      %v4244 = vadd.f32 %v3914, %v4162
      %v4245 = vadd.f32 %v3915, %v4165
      %v4246 = vadd.f32 %v3916, %v4170
      %v4247 = vadd.f32 %v3917, %v4173
      %v4248 = vadd.f32 %v3918, %v4178
      %v4249 = vadd.f32 %v3919, %v4181
      %v4250 = vadd.f32 %v3920, %v4186
      %v4251 = vadd.f32 %v3921, %v4189
      %v4252 = vadd.f32 %v3922, %v4194
      %v4253 = vadd.f32 %v3923, %v4197
      %v4254 = vadd.f32 %v3924, %v4202
      %v4255 = vadd.f32 %v3925, %v4205
      %v4256 = vadd.f32 %v3926, %v4210
      %v4257 = vadd.f32 %v3927, %v4213
      %v4258 = vadd.f32 %v3928, %v4218
      %v4259 = vadd.f32 %v3929, %v4221
      %v4260 = vld [vmem:[%s2] sm:$0x1]
      %v4262 = vlaneseq
      %v4263 = vshrl.u32 %v4262, 7
      %v4264 = vsub.s32 0, %v4263
      %v4265 = vrot.slane %v4260, %v4264
      %v4267 = vmul.f32 %v4224, %v4265
      %v4268 = vmul.f32 %v4225, %v4265
      %v4269 = vmul.f32 %v4226, %v4265
      %v4270 = vmul.f32 %v4227, %v4265
      %v4271 = vmul.f32 %v4228, %v4265
      %v4272 = vmul.f32 %v4229, %v4265
      %v4273 = vmul.f32 %v4230, %v4265
      %v4274 = vmul.f32 %v4231, %v4265
      %v4275 = vmul.f32 %v4232, %v4265
      %v4276 = vmul.f32 %v4233, %v4265
      %v4277 = vmul.f32 %v4234, %v4265
      %v4278 = vmul.f32 %v4235, %v4265
      %v4279 = vmul.f32 %v4236, %v4265
      %v4280 = vmul.f32 %v4237, %v4265
      %v4281 = vmul.f32 %v4238, %v4265
      %v4282 = vmul.f32 %v4239, %v4265
      %v4283 = vmul.f32 %v4240, %v4265
      %v4284 = vmul.f32 %v4241, %v4265
      %v4285 = vmul.f32 %v4242, %v4265
      %v4286 = vmul.f32 %v4243, %v4265
      %v4287 = vmul.f32 %v4244, %v4265
      %v4288 = vmul.f32 %v4245, %v4265
      %v4289 = vmul.f32 %v4246, %v4265
      %v4290 = vmul.f32 %v4247, %v4265
      %v4291 = vmul.f32 %v4248, %v4265
      %v4292 = vmul.f32 %v4249, %v4265
      %v4293 = vmul.f32 %v4250, %v4265
      %v4294 = vmul.f32 %v4251, %v4265
      %v4295 = vmul.f32 %v4252, %v4265
      %v4296 = vmul.f32 %v4253, %v4265
      %v4297 = vmul.f32 %v4254, %v4265
      %v4298 = vmul.f32 %v4255, %v4265
      %v4299 = vmul.f32 %v4256, %v4265
      %v4300 = vmul.f32 %v4257, %v4265
      %v4301 = vmul.f32 %v4258, %v4265
      %v4302 = vmul.f32 %v4259, %v4265
      %v4303 = vld [vmem:[%s3] sm:$0x1]
      %v4305 = vlaneseq
      %v4306 = vshrl.u32 %v4305, 7
      %v4307 = vsub.s32 0, %v4306
      %v4308 = vrot.slane %v4303, %v4307
      %v4310 = vadd.f32 %v4267, %v4308
      %v4311 = vadd.f32 %v4268, %v4308
      %v4312 = vadd.f32 %v4269, %v4308
      %v4313 = vadd.f32 %v4270, %v4308
      %v4314 = vadd.f32 %v4271, %v4308
      %v4315 = vadd.f32 %v4272, %v4308
      %v4316 = vadd.f32 %v4273, %v4308
      %v4317 = vadd.f32 %v4274, %v4308
      %v4318 = vadd.f32 %v4275, %v4308
      %v4319 = vadd.f32 %v4276, %v4308
      %v4320 = vadd.f32 %v4277, %v4308
      %v4321 = vadd.f32 %v4278, %v4308
      %v4322 = vadd.f32 %v4279, %v4308
      %v4323 = vadd.f32 %v4280, %v4308
      %v4324 = vadd.f32 %v4281, %v4308
      %v4325 = vadd.f32 %v4282, %v4308
      %v4326 = vadd.f32 %v4283, %v4308
      %v4327 = vadd.f32 %v4284, %v4308
      %v4328 = vadd.f32 %v4285, %v4308
      %v4329 = vadd.f32 %v4286, %v4308
      %v4330 = vadd.f32 %v4287, %v4308
      %v4331 = vadd.f32 %v4288, %v4308
      %v4332 = vadd.f32 %v4289, %v4308
      %v4333 = vadd.f32 %v4290, %v4308
      %v4334 = vadd.f32 %v4291, %v4308
      %v4335 = vadd.f32 %v4292, %v4308
      %v4336 = vadd.f32 %v4293, %v4308
      %v4337 = vadd.f32 %v4294, %v4308
      %v4338 = vadd.f32 %v4295, %v4308
      %v4339 = vadd.f32 %v4296, %v4308
      %v4340 = vadd.f32 %v4297, %v4308
      %v4341 = vadd.f32 %v4298, %v4308
      %v4342 = vadd.f32 %v4299, %v4308
      %v4343 = vadd.f32 %v4300, %v4308
      %v4344 = vadd.f32 %v4301, %v4308
      %v4345 = vadd.f32 %v4302, %v4308
      %v4346 = vtanh.pop %v4310
      %v4347 = vtanh.pop %v4311
      %v4348 = vtanh.pop %v4312
      %v4349 = vtanh.pop %v4313
      %v4350 = vtanh.pop %v4314
      %v4351 = vtanh.pop %v4315
      %v4352 = vtanh.pop %v4316
      %v4353 = vtanh.pop %v4317
      %v4354 = vtanh.pop %v4318
      %v4355 = vtanh.pop %v4319
      %v4356 = vtanh.pop %v4320
      %v4357 = vtanh.pop %v4321
      %v4358 = vtanh.pop %v4322
      %v4359 = vtanh.pop %v4323
      %v4360 = vtanh.pop %v4324
      %v4361 = vtanh.pop %v4325
      %v4362 = vtanh.pop %v4326
      %v4363 = vtanh.pop %v4327
      %v4364 = vtanh.pop %v4328
      %v4365 = vtanh.pop %v4329
      %v4366 = vtanh.pop %v4330
      %v4367 = vtanh.pop %v4331
      %v4368 = vtanh.pop %v4332
      %v4369 = vtanh.pop %v4333
      %v4370 = vtanh.pop %v4334
      %v4371 = vtanh.pop %v4335
      %v4372 = vtanh.pop %v4336
      %v4373 = vtanh.pop %v4337
      %v4374 = vtanh.pop %v4338
      %v4375 = vtanh.pop %v4339
      %v4376 = vtanh.pop %v4340
      %v4377 = vtanh.pop %v4341
      %v4378 = vtanh.pop %v4342
      %v4379 = vtanh.pop %v4343
      %v4380 = vtanh.pop %v4344
      %v4381 = vtanh.pop %v4345
      %s4382 = scalar_lea.vmem %s197, 576
      %4383 = vst [vmem:[%s4382] sm:$0xff] %v4346
      %4384 = vst [vmem:[%s4382 + $0x8] sm:$0xff] %v4347
      %4385 = vst [vmem:[%s4382 + $0x10] sm:$0xff] %v4348
      %4386 = vst [vmem:[%s4382 + $0x18] sm:$0xff] %v4349
      %4387 = vst [vmem:[%s4382 + $0x20] sm:$0xff] %v4350
      %4388 = vst [vmem:[%s4382 + $0x28] sm:$0xff] %v4351
      %4389 = vst [vmem:[%s4382 + $0x30] sm:$0xff] %v4352
      %4390 = vst [vmem:[%s4382 + $0x38] sm:$0xff] %v4353
      %4391 = vst [vmem:[%s4382 + $0x40] sm:$0xff] %v4354
      %4392 = vst [vmem:[%s4382 + $0x48] sm:$0xff] %v4355
      %4393 = vst [vmem:[%s4382 + $0x50] sm:$0xff] %v4356
      %4394 = vst [vmem:[%s4382 + $0x58] sm:$0xff] %v4357
      %4395 = vst [vmem:[%s4382 + $0x60] sm:$0xff] %v4358
      %4396 = vst [vmem:[%s4382 + $0x68] sm:$0xff] %v4359
      %4397 = vst [vmem:[%s4382 + $0x70] sm:$0xff] %v4360
      %4398 = vst [vmem:[%s4382 + $0x78] sm:$0xff] %v4361
      %4399 = vst [vmem:[%s4382 + $0x80] sm:$0xff] %v4362
      %4400 = vst [vmem:[%s4382 + $0x88] sm:$0xff] %v4363
      %4401 = vst [vmem:[%s4382 + $0x90] sm:$0xff] %v4364
      %4402 = vst [vmem:[%s4382 + $0x98] sm:$0xff] %v4365
      %4403 = vst [vmem:[%s4382 + $0xa0] sm:$0xff] %v4366
      %4404 = vst [vmem:[%s4382 + $0xa8] sm:$0xff] %v4367
      %4405 = vst [vmem:[%s4382 + $0xb0] sm:$0xff] %v4368
      %4406 = vst [vmem:[%s4382 + $0xb8] sm:$0xff] %v4369
      %4407 = vst [vmem:[%s4382 + $0xc0] sm:$0xff] %v4370
      %4408 = vst [vmem:[%s4382 + $0xc8] sm:$0xff] %v4371
      %4409 = vst [vmem:[%s4382 + $0xd0] sm:$0xff] %v4372
      %4410 = vst [vmem:[%s4382 + $0xd8] sm:$0xff] %v4373
      %4411 = vst [vmem:[%s4382 + $0xe0] sm:$0xff] %v4374
      %4412 = vst [vmem:[%s4382 + $0xe8] sm:$0xff] %v4375
      %4413 = vst [vmem:[%s4382 + $0xf0] sm:$0xff] %v4376
      %4414 = vst [vmem:[%s4382 + $0xf8] sm:$0xff] %v4377
      %4415 = vst [vmem:[%s4382 + $0x100] sm:$0xff] %v4378
      %4416 = vst [vmem:[%s4382 + $0x108] sm:$0xff] %v4379
      %4417 = vst [vmem:[%s4382 + $0x110] sm:$0xff] %v4380
      %4418 = vst [vmem:[%s4382 + $0x118] sm:$0xff] %v4381
      %v4419 = vld [vmem:[%s192 + $0x13] sm:$0xff]
      %v4420 = vld [vmem:[%s192 + $0x1b] sm:$0xff]
      %v4421 = vld [vmem:[%s192 + $0x23] sm:$0xff]
      %v4422 = vld [vmem:[%s192 + $0x2b] sm:$0xff]
      %v4423 = vld [vmem:[%s192 + $0x33] sm:$0xff]
      %v4424 = vld [vmem:[%s192 + $0x3b] sm:$0xff]
      %v4425 = vld [vmem:[%s192 + $0x43] sm:$0xff]
      %v4426 = vld [vmem:[%s192 + $0x4b] sm:$0xff]
      %v4427 = vld [vmem:[%s192 + $0x53] sm:$0xff]
      %v4428 = vld [vmem:[%s192 + $0x5b] sm:$0xff]
      %v4429 = vld [vmem:[%s192 + $0x63] sm:$0xff]
      %v4430 = vld [vmem:[%s192 + $0x6b] sm:$0xff]
      %v4431 = vld [vmem:[%s192 + $0x73] sm:$0xff]
      %v4432 = vld [vmem:[%s192 + $0x7b] sm:$0xff]
      %v4433 = vld [vmem:[%s192 + $0x83] sm:$0xff]
      %v4434 = vld [vmem:[%s192 + $0x8b] sm:$0xff]
      %v4435 = vld [vmem:[%s192 + $0x93] sm:$0xff]
      %v4436 = vld [vmem:[%s192 + $0x9b] sm:$0xff]
      %v4437 = vld [vmem:[%s192 + $0xa3] sm:$0xff]
      %v4438 = vld [vmem:[%s192 + $0xab] sm:$0xff]
      %v4439 = vld [vmem:[%s192 + $0xb3] sm:$0xff]
      %v4440 = vld [vmem:[%s192 + $0xbb] sm:$0xff]
      %v4441 = vld [vmem:[%s192 + $0xc3] sm:$0xff]
      %v4442 = vld [vmem:[%s192 + $0xcb] sm:$0xff]
      %v4443 = vld [vmem:[%s192 + $0xd3] sm:$0xff]
      %v4444 = vld [vmem:[%s192 + $0xdb] sm:$0xff]
      %v4445 = vld [vmem:[%s192 + $0xe3] sm:$0xff]
      %v4446 = vld [vmem:[%s192 + $0xeb] sm:$0xff]
      %v4447 = vld [vmem:[%s192 + $0xf3] sm:$0xff]
      %v4448 = vld [vmem:[%s192 + $0xfb] sm:$0xff]
      %v4449 = vld [vmem:[%s192 + $0x103] sm:$0xff]
      %v4450 = vld [vmem:[%s192 + $0x10b] sm:$0xff]
      %v4451 = vld [vmem:[%s192 + $0x113] sm:$0xff]
      %v4452 = vld [vmem:[%s192 + $0x11b] sm:$0xff]
      %v4453 = vld [vmem:[%s192 + $0x123] sm:$0xff]
      %v4454 = vld [vmem:[%s192 + $0x12b] sm:$0xff]
      %v4455 = vpack.c.bf16 %v4420, %v4419
      %v4456 = vpack.c.bf16 %v4422, %v4421
      %v4457 = vpack.c.bf16 %v4424, %v4423
      %v4458 = vpack.c.bf16 %v4426, %v4425
      %v4459 = vpack.c.bf16 %v4428, %v4427
      %v4460 = vpack.c.bf16 %v4430, %v4429
      %v4461 = vpack.c.bf16 %v4432, %v4431
      %v4462 = vpack.c.bf16 %v4434, %v4433
      %v4463 = vpack.c.bf16 %v4436, %v4435
      %v4464 = vpack.c.bf16 %v4438, %v4437
      %v4465 = vpack.c.bf16 %v4440, %v4439
      %v4466 = vpack.c.bf16 %v4442, %v4441
      %v4467 = vpack.c.bf16 %v4444, %v4443
      %v4468 = vpack.c.bf16 %v4446, %v4445
      %v4469 = vpack.c.bf16 %v4448, %v4447
      %v4470 = vpack.c.bf16 %v4450, %v4449
      %v4471 = vpack.c.bf16 %v4452, %v4451
      %v4472 = vpack.c.bf16 %v4454, %v4453
      %s4473 = scalar_lea.vmem %s1, 96
      %v4474 = vld [vmem:[%s4473] sm:$0xf]
      %v4475 = vld [vmem:[%s4473 + $0x4] sm:$0xf]
      %v4476 = vld [vmem:[%s192 + $0x14] sm:$0xff]
      %v4477 = vld [vmem:[%s192 + $0x1c] sm:$0xff]
      %v4478 = vld [vmem:[%s192 + $0x24] sm:$0xff]
      %v4479 = vld [vmem:[%s192 + $0x2c] sm:$0xff]
      %v4480 = vld [vmem:[%s192 + $0x34] sm:$0xff]
      %v4481 = vld [vmem:[%s192 + $0x3c] sm:$0xff]
      %v4482 = vld [vmem:[%s192 + $0x44] sm:$0xff]
      %v4483 = vld [vmem:[%s192 + $0x4c] sm:$0xff]
      %v4484 = vld [vmem:[%s192 + $0x54] sm:$0xff]
      %v4485 = vld [vmem:[%s192 + $0x5c] sm:$0xff]
      %v4486 = vld [vmem:[%s192 + $0x64] sm:$0xff]
      %v4487 = vld [vmem:[%s192 + $0x6c] sm:$0xff]
      %v4488 = vld [vmem:[%s192 + $0x74] sm:$0xff]
      %v4489 = vld [vmem:[%s192 + $0x7c] sm:$0xff]
      %v4490 = vld [vmem:[%s192 + $0x84] sm:$0xff]
      %v4491 = vld [vmem:[%s192 + $0x8c] sm:$0xff]
      %v4492 = vld [vmem:[%s192 + $0x94] sm:$0xff]
      %v4493 = vld [vmem:[%s192 + $0x9c] sm:$0xff]
      %v4494 = vld [vmem:[%s192 + $0xa4] sm:$0xff]
      %v4495 = vld [vmem:[%s192 + $0xac] sm:$0xff]
      %v4496 = vld [vmem:[%s192 + $0xb4] sm:$0xff]
      %v4497 = vld [vmem:[%s192 + $0xbc] sm:$0xff]
      %v4498 = vld [vmem:[%s192 + $0xc4] sm:$0xff]
      %v4499 = vld [vmem:[%s192 + $0xcc] sm:$0xff]
      %v4500 = vld [vmem:[%s192 + $0xd4] sm:$0xff]
      %v4501 = vld [vmem:[%s192 + $0xdc] sm:$0xff]
      %v4502 = vld [vmem:[%s192 + $0xe4] sm:$0xff]
      %v4503 = vld [vmem:[%s192 + $0xec] sm:$0xff]
      %v4504 = vld [vmem:[%s192 + $0xf4] sm:$0xff]
      %v4505 = vld [vmem:[%s192 + $0xfc] sm:$0xff]
      %v4506 = vld [vmem:[%s192 + $0x104] sm:$0xff]
      %v4507 = vld [vmem:[%s192 + $0x10c] sm:$0xff]
      %v4508 = vld [vmem:[%s192 + $0x114] sm:$0xff]
      %v4509 = vld [vmem:[%s192 + $0x11c] sm:$0xff]
      %v4510 = vld [vmem:[%s192 + $0x124] sm:$0xff]
      %v4511 = vld [vmem:[%s192 + $0x12c] sm:$0xff]
      %v4512 = vpack.c.bf16 %v4477, %v4476
      %v4513 = vpack.c.bf16 %v4479, %v4478
      %v4514 = vpack.c.bf16 %v4481, %v4480
      %v4515 = vpack.c.bf16 %v4483, %v4482
      %v4516 = vpack.c.bf16 %v4485, %v4484
      %v4517 = vpack.c.bf16 %v4487, %v4486
      %v4518 = vpack.c.bf16 %v4489, %v4488
      %v4519 = vpack.c.bf16 %v4491, %v4490
      %v4520 = vpack.c.bf16 %v4493, %v4492
      %v4521 = vpack.c.bf16 %v4495, %v4494
      %v4522 = vpack.c.bf16 %v4497, %v4496
      %v4523 = vpack.c.bf16 %v4499, %v4498
      %v4524 = vpack.c.bf16 %v4501, %v4500
      %v4525 = vpack.c.bf16 %v4503, %v4502
      %v4526 = vpack.c.bf16 %v4505, %v4504
      %v4527 = vpack.c.bf16 %v4507, %v4506
      %v4528 = vpack.c.bf16 %v4509, %v4508
      %v4529 = vpack.c.bf16 %v4511, %v4510
      %s4530 = scalar_lea.vmem %s1, 104
      %v4531 = vld [vmem:[%s4530] sm:$0xf]
      %v4532 = vld [vmem:[%s4530 + $0x4] sm:$0xf]
      %v4535 = vunpack.c.l.b16 %v4531
      %v4536 = vunpack.c.l.b16 %v4532
      %v4537 = vpack.c.b16 %v4536, %v4535
      %v4540 = vsel %vm318, %v4512, 0
      %v4543 = vsel %vm318, %v4513, 0
      %v4546 = vsel %vm318, %v4514, 0
      %v4549 = vsel %vm318, %v4515, 0
      %v4552 = vsel %vm318, %v4516, 0
      %v4555 = vsel %vm318, %v4517, 0
      %v4558 = vsel %vm318, %v4518, 0
      %v4561 = vsel %vm318, %v4519, 0
      %v4564 = vsel %vm318, %v4520, 0
      %v4567 = vsel %vm318, %v4521, 0
      %v4570 = vsel %vm318, %v4522, 0
      %v4573 = vsel %vm318, %v4523, 0
      %v4576 = vsel %vm318, %v4524, 0
      %v4579 = vsel %vm318, %v4525, 0
      %v4582 = vsel %vm318, %v4526, 0
      %v4585 = vsel %vm318, %v4527, 0
      %v4588 = vsel %vm318, %v4528, 0
      %v4591 = vsel %vm318, %v4529, 0
      %4593 = vmatprep.subr.bf16.mxu0 0
      %4594 = vmatpush1.bf16.msra.mxu0 %v4537
      %4595 = vmatprep.subr.bf16.mxu0 0
      %4596 = vmatpush1.bf16.msra.mxu0 0
      %4597 = vmatprep.subr.bf16.mxu0 0
      %4598 = vmatpush1.bf16.msra.mxu0 0
      %4599 = vmatprep.subr.bf16.mxu0 0
      %4600 = vmatpush1.bf16.msra.mxu0 0
      %4601 = vmatprep.subr.bf16.mxu0 0
      %4602 = vmatpush1.bf16.msra.mxu0 0
      %4603 = vmatprep.subr.bf16.mxu0 0
      %4604 = vmatpush1.bf16.msra.mxu0 0
      %4605 = vmatprep.subr.bf16.mxu0 0
      %4606 = vmatpush1.bf16.msra.mxu0 0
      %4607 = vmatprep.subr.bf16.mxu0 0
      %4608 = vmatpush1.bf16.msra.mxu0 0
      %4609 = vmatprep.subr.bf16.mxu0 0
      %4610 = vmatpush1.bf16.msra.mxu0 0
      %4611 = vmatprep.subr.bf16.mxu0 0
      %4612 = vmatpush1.bf16.msra.mxu0 0
      %4613 = vmatprep.subr.bf16.mxu0 0
      %4614 = vmatpush1.bf16.msra.mxu0 0
      %4615 = vmatprep.subr.bf16.mxu0 0
      %4616 = vmatpush1.bf16.msra.mxu0 0
      %4617 = vmatprep.subr.bf16.mxu0 0
      %4618 = vmatpush1.bf16.msra.mxu0 0
      %4619 = vmatprep.subr.bf16.mxu0 0
      %4620 = vmatpush1.bf16.msra.mxu0 0
      %4621 = vmatprep.subr.bf16.mxu0 0
      %4622 = vmatpush1.bf16.msra.mxu0 0
      %4623 = vmatprep.subr.bf16.mxu0 0
      %4624 = vmatpush1.bf16.msra.mxu0 0
      %4625 = vmatprep.mubr.bf16.mxu0 0
      %4626 = vmatmul.mubr.bf16.gmra.mrb[0].mxu0 %v4540
      %v4627 = vpop.f32.mrb[0].mxu0
      %v4628 = vadd.f32 0.0, %v4627
      %v4629 = vpop.f32.mrb[0].mxu0
      %v4630 = vpop.f32.mrb[0].mxu0
      %v4631 = vadd.f32 0.0, %v4630
      %v4632 = vpop.f32.mrb[0].mxu0
      %4633 = vmatprep.mubr.bf16.mxu0 0
      %4634 = vmatmul.mubr.bf16.gmra.mrb[0].mxu0 %v4543
      %v4635 = vpop.f32.mrb[0].mxu0
      %v4636 = vadd.f32 0.0, %v4635
      %v4637 = vpop.f32.mrb[0].mxu0
      %v4638 = vpop.f32.mrb[0].mxu0
      %v4639 = vadd.f32 0.0, %v4638
      %v4640 = vpop.f32.mrb[0].mxu0
      %4641 = vmatprep.mubr.bf16.mxu0 0
      %4642 = vmatmul.mubr.bf16.gmra.mrb[0].mxu0 %v4546
      %v4643 = vpop.f32.mrb[0].mxu0
      %v4644 = vadd.f32 0.0, %v4643
      %v4645 = vpop.f32.mrb[0].mxu0
      %v4646 = vpop.f32.mrb[0].mxu0
      %v4647 = vadd.f32 0.0, %v4646
      %v4648 = vpop.f32.mrb[0].mxu0
      %4649 = vmatprep.mubr.bf16.mxu0 0
      %4650 = vmatmul.mubr.bf16.gmra.mrb[0].mxu0 %v4549
      %v4651 = vpop.f32.mrb[0].mxu0
      %v4652 = vadd.f32 0.0, %v4651
      %v4653 = vpop.f32.mrb[0].mxu0
      %v4654 = vpop.f32.mrb[0].mxu0
      %v4655 = vadd.f32 0.0, %v4654
      %v4656 = vpop.f32.mrb[0].mxu0
      %4657 = vmatprep.mubr.bf16.mxu0 0
      %4658 = vmatmul.mubr.bf16.gmra.mrb[0].mxu0 %v4552
      %v4659 = vpop.f32.mrb[0].mxu0
      %v4660 = vadd.f32 0.0, %v4659
      %v4661 = vpop.f32.mrb[0].mxu0
      %v4662 = vpop.f32.mrb[0].mxu0
      %v4663 = vadd.f32 0.0, %v4662
      %v4664 = vpop.f32.mrb[0].mxu0
      %4665 = vmatprep.mubr.bf16.mxu0 0
      %4666 = vmatmul.mubr.bf16.gmra.mrb[0].mxu0 %v4555
      %v4667 = vpop.f32.mrb[0].mxu0
      %v4668 = vadd.f32 0.0, %v4667
      %v4669 = vpop.f32.mrb[0].mxu0
      %v4670 = vpop.f32.mrb[0].mxu0
      %v4671 = vadd.f32 0.0, %v4670
      %v4672 = vpop.f32.mrb[0].mxu0
      %4673 = vmatprep.mubr.bf16.mxu0 0
      %4674 = vmatmul.mubr.bf16.gmra.mrb[0].mxu0 %v4558
      %v4675 = vpop.f32.mrb[0].mxu0
      %v4676 = vadd.f32 0.0, %v4675
      %v4677 = vpop.f32.mrb[0].mxu0
      %v4678 = vpop.f32.mrb[0].mxu0
      %v4679 = vadd.f32 0.0, %v4678
      %v4680 = vpop.f32.mrb[0].mxu0
      %4681 = vmatprep.mubr.bf16.mxu0 0
      %4682 = vmatmul.mubr.bf16.gmra.mrb[0].mxu0 %v4561
      %v4683 = vpop.f32.mrb[0].mxu0
      %v4684 = vadd.f32 0.0, %v4683
      %v4685 = vpop.f32.mrb[0].mxu0
      %v4686 = vpop.f32.mrb[0].mxu0
      %v4687 = vadd.f32 0.0, %v4686
      %v4688 = vpop.f32.mrb[0].mxu0
      %4689 = vmatprep.mubr.bf16.mxu0 0
      %4690 = vmatmul.mubr.bf16.gmra.mrb[0].mxu0 %v4564
      %v4691 = vpop.f32.mrb[0].mxu0
      %v4692 = vadd.f32 0.0, %v4691
      %v4693 = vpop.f32.mrb[0].mxu0
      %v4694 = vpop.f32.mrb[0].mxu0
      %v4695 = vadd.f32 0.0, %v4694
      %v4696 = vpop.f32.mrb[0].mxu0
      %4697 = vmatprep.mubr.bf16.mxu0 0
      %4698 = vmatmul.mubr.bf16.gmra.mrb[0].mxu0 %v4567
      %v4699 = vpop.f32.mrb[0].mxu0
      %v4700 = vadd.f32 0.0, %v4699
      %v4701 = vpop.f32.mrb[0].mxu0
      %v4702 = vpop.f32.mrb[0].mxu0
      %v4703 = vadd.f32 0.0, %v4702
      %v4704 = vpop.f32.mrb[0].mxu0
      %4705 = vmatprep.mubr.bf16.mxu0 0
      %4706 = vmatmul.mubr.bf16.gmra.mrb[0].mxu0 %v4570
      %v4707 = vpop.f32.mrb[0].mxu0
      %v4708 = vadd.f32 0.0, %v4707
      %v4709 = vpop.f32.mrb[0].mxu0
      %v4710 = vpop.f32.mrb[0].mxu0
      %v4711 = vadd.f32 0.0, %v4710
      %v4712 = vpop.f32.mrb[0].mxu0
      %4713 = vmatprep.mubr.bf16.mxu0 0
      %4714 = vmatmul.mubr.bf16.gmra.mrb[0].mxu0 %v4573
      %v4715 = vpop.f32.mrb[0].mxu0
      %v4716 = vadd.f32 0.0, %v4715
      %v4717 = vpop.f32.mrb[0].mxu0
      %v4718 = vpop.f32.mrb[0].mxu0
      %v4719 = vadd.f32 0.0, %v4718
      %v4720 = vpop.f32.mrb[0].mxu0
      %4721 = vmatprep.mubr.bf16.mxu0 0
      %4722 = vmatmul.mubr.bf16.gmra.mrb[0].mxu0 %v4576
      %v4723 = vpop.f32.mrb[0].mxu0
      %v4724 = vadd.f32 0.0, %v4723
      %v4725 = vpop.f32.mrb[0].mxu0
      %v4726 = vpop.f32.mrb[0].mxu0
      %v4727 = vadd.f32 0.0, %v4726
      %v4728 = vpop.f32.mrb[0].mxu0
      %4729 = vmatprep.mubr.bf16.mxu0 0
      %4730 = vmatmul.mubr.bf16.gmra.mrb[0].mxu0 %v4579
      %v4731 = vpop.f32.mrb[0].mxu0
      %v4732 = vadd.f32 0.0, %v4731
      %v4733 = vpop.f32.mrb[0].mxu0
      %v4734 = vpop.f32.mrb[0].mxu0
      %v4735 = vadd.f32 0.0, %v4734
      %v4736 = vpop.f32.mrb[0].mxu0
      %4737 = vmatprep.mubr.bf16.mxu0 0
      %4738 = vmatmul.mubr.bf16.gmra.mrb[0].mxu0 %v4582
      %v4739 = vpop.f32.mrb[0].mxu0
      %v4740 = vadd.f32 0.0, %v4739
      %v4741 = vpop.f32.mrb[0].mxu0
      %v4742 = vpop.f32.mrb[0].mxu0
      %v4743 = vadd.f32 0.0, %v4742
      %v4744 = vpop.f32.mrb[0].mxu0
      %4745 = vmatprep.mubr.bf16.mxu0 0
      %4746 = vmatmul.mubr.bf16.gmra.mrb[0].mxu0 %v4585
      %v4747 = vpop.f32.mrb[0].mxu0
      %v4748 = vadd.f32 0.0, %v4747
      %v4749 = vpop.f32.mrb[0].mxu0
      %v4750 = vpop.f32.mrb[0].mxu0
      %v4751 = vadd.f32 0.0, %v4750
      %v4752 = vpop.f32.mrb[0].mxu0
      %4753 = vmatprep.mubr.bf16.mxu0 0
      %4754 = vmatmul.mubr.bf16.gmra.mrb[0].mxu0 %v4588
      %v4755 = vpop.f32.mrb[0].mxu0
      %v4756 = vadd.f32 0.0, %v4755
      %v4757 = vpop.f32.mrb[0].mxu0
      %v4758 = vpop.f32.mrb[0].mxu0
      %v4759 = vadd.f32 0.0, %v4758
      %v4760 = vpop.f32.mrb[0].mxu0
      %4761 = vmatprep.mubr.bf16.mxu0 0
      %4762 = vmatmul.mubr.bf16.gmra.mrb[0].mxu0 %v4591
      %v4763 = vpop.f32.mrb[0].mxu0
      %v4764 = vadd.f32 0.0, %v4763
      %v4765 = vpop.f32.mrb[0].mxu0
      %v4766 = vpop.f32.mrb[0].mxu0
      %v4767 = vadd.f32 0.0, %v4766
      %v4768 = vpop.f32.mrb[0].mxu0
      %4769 = vdwg.mxu0
      %v4772 = vunpack.c.l.b16 %v4474
      %v4773 = vunpack.c.l.b16 %v4475
      %v4774 = vpack.c.b16 %v4773, %v4772
      %v4777 = vsel %vm318, %v4455, 0
      %v4780 = vsel %vm318, %v4456, 0
      %v4783 = vsel %vm318, %v4457, 0
      %v4786 = vsel %vm318, %v4458, 0
      %v4789 = vsel %vm318, %v4459, 0
      %v4792 = vsel %vm318, %v4460, 0
      %v4795 = vsel %vm318, %v4461, 0
      %v4798 = vsel %vm318, %v4462, 0
      %v4801 = vsel %vm318, %v4463, 0
      %v4804 = vsel %vm318, %v4464, 0
      %v4807 = vsel %vm318, %v4465, 0
      %v4810 = vsel %vm318, %v4466, 0
      %v4813 = vsel %vm318, %v4467, 0
      %v4816 = vsel %vm318, %v4468, 0
      %v4819 = vsel %vm318, %v4469, 0
      %v4822 = vsel %vm318, %v4470, 0
      %v4825 = vsel %vm318, %v4471, 0
      %v4828 = vsel %vm318, %v4472, 0
      %4830 = vmatprep.subr.bf16.mxu0 0
      %4831 = vmatpush1.bf16.msra.mxu0 %v4774
      %4832 = vmatprep.subr.bf16.mxu0 0
      %4833 = vmatpush1.bf16.msra.mxu0 0
      %4834 = vmatprep.subr.bf16.mxu0 0
      %4835 = vmatpush1.bf16.msra.mxu0 0
      %4836 = vmatprep.subr.bf16.mxu0 0
      %4837 = vmatpush1.bf16.msra.mxu0 0
      %4838 = vmatprep.subr.bf16.mxu0 0
      %4839 = vmatpush1.bf16.msra.mxu0 0
      %4840 = vmatprep.subr.bf16.mxu0 0
      %4841 = vmatpush1.bf16.msra.mxu0 0
      %4842 = vmatprep.subr.bf16.mxu0 0
      %4843 = vmatpush1.bf16.msra.mxu0 0
      %4844 = vmatprep.subr.bf16.mxu0 0
      %4845 = vmatpush1.bf16.msra.mxu0 0
      %4846 = vmatprep.subr.bf16.mxu0 0
      %4847 = vmatpush1.bf16.msra.mxu0 0
      %4848 = vmatprep.subr.bf16.mxu0 0
      %4849 = vmatpush1.bf16.msra.mxu0 0
      %4850 = vmatprep.subr.bf16.mxu0 0
      %4851 = vmatpush1.bf16.msra.mxu0 0
      %4852 = vmatprep.subr.bf16.mxu0 0
      %4853 = vmatpush1.bf16.msra.mxu0 0
      %4854 = vmatprep.subr.bf16.mxu0 0
      %4855 = vmatpush1.bf16.msra.mxu0 0
      %4856 = vmatprep.subr.bf16.mxu0 0
      %4857 = vmatpush1.bf16.msra.mxu0 0
      %4858 = vmatprep.subr.bf16.mxu0 0
      %4859 = vmatpush1.bf16.msra.mxu0 0
      %4860 = vmatprep.subr.bf16.mxu0 0
      %4861 = vmatpush1.bf16.msra.mxu0 0
      %4862 = vmatprep.mubr.bf16.mxu0 0
      %4863 = vmatmul.mubr.bf16.gmra.mrb[0].mxu0 %v4777
      %v4864 = vpop.f32.mrb[0].mxu0
      %v4865 = vadd.f32 %v4628, %v4864
      %v4866 = vpop.f32.mrb[0].mxu0
      %v4867 = vpop.f32.mrb[0].mxu0
      %v4868 = vadd.f32 %v4631, %v4867
      %v4869 = vpop.f32.mrb[0].mxu0
      %4870 = vmatprep.mubr.bf16.mxu0 0
      %4871 = vmatmul.mubr.bf16.gmra.mrb[0].mxu0 %v4780
      %v4872 = vpop.f32.mrb[0].mxu0
      %v4873 = vadd.f32 %v4636, %v4872
      %v4874 = vpop.f32.mrb[0].mxu0
      %v4875 = vpop.f32.mrb[0].mxu0
      %v4876 = vadd.f32 %v4639, %v4875
      %v4877 = vpop.f32.mrb[0].mxu0
      %4878 = vmatprep.mubr.bf16.mxu0 0
      %4879 = vmatmul.mubr.bf16.gmra.mrb[0].mxu0 %v4783
      %v4880 = vpop.f32.mrb[0].mxu0
      %v4881 = vadd.f32 %v4644, %v4880
      %v4882 = vpop.f32.mrb[0].mxu0
      %v4883 = vpop.f32.mrb[0].mxu0
      %v4884 = vadd.f32 %v4647, %v4883
      %v4885 = vpop.f32.mrb[0].mxu0
      %4886 = vmatprep.mubr.bf16.mxu0 0
      %4887 = vmatmul.mubr.bf16.gmra.mrb[0].mxu0 %v4786
      %v4888 = vpop.f32.mrb[0].mxu0
      %v4889 = vadd.f32 %v4652, %v4888
      %v4890 = vpop.f32.mrb[0].mxu0
      %v4891 = vpop.f32.mrb[0].mxu0
      %v4892 = vadd.f32 %v4655, %v4891
      %v4893 = vpop.f32.mrb[0].mxu0
      %4894 = vmatprep.mubr.bf16.mxu0 0
      %4895 = vmatmul.mubr.bf16.gmra.mrb[0].mxu0 %v4789
      %v4896 = vpop.f32.mrb[0].mxu0
      %v4897 = vadd.f32 %v4660, %v4896
      %v4898 = vpop.f32.mrb[0].mxu0
      %v4899 = vpop.f32.mrb[0].mxu0
      %v4900 = vadd.f32 %v4663, %v4899
      %v4901 = vpop.f32.mrb[0].mxu0
      %4902 = vmatprep.mubr.bf16.mxu0 0
      %4903 = vmatmul.mubr.bf16.gmra.mrb[0].mxu0 %v4792
      %v4904 = vpop.f32.mrb[0].mxu0
      %v4905 = vadd.f32 %v4668, %v4904
      %v4906 = vpop.f32.mrb[0].mxu0
      %v4907 = vpop.f32.mrb[0].mxu0
      %v4908 = vadd.f32 %v4671, %v4907
      %v4909 = vpop.f32.mrb[0].mxu0
      %4910 = vmatprep.mubr.bf16.mxu0 0
      %4911 = vmatmul.mubr.bf16.gmra.mrb[0].mxu0 %v4795
      %v4912 = vpop.f32.mrb[0].mxu0
      %v4913 = vadd.f32 %v4676, %v4912
      %v4914 = vpop.f32.mrb[0].mxu0
      %v4915 = vpop.f32.mrb[0].mxu0
      %v4916 = vadd.f32 %v4679, %v4915
      %v4917 = vpop.f32.mrb[0].mxu0
      %4918 = vmatprep.mubr.bf16.mxu0 0
      %4919 = vmatmul.mubr.bf16.gmra.mrb[0].mxu0 %v4798
      %v4920 = vpop.f32.mrb[0].mxu0
      %v4921 = vadd.f32 %v4684, %v4920
      %v4922 = vpop.f32.mrb[0].mxu0
      %v4923 = vpop.f32.mrb[0].mxu0
      %v4924 = vadd.f32 %v4687, %v4923
      %v4925 = vpop.f32.mrb[0].mxu0
      %4926 = vmatprep.mubr.bf16.mxu0 0
      %4927 = vmatmul.mubr.bf16.gmra.mrb[0].mxu0 %v4801
      %v4928 = vpop.f32.mrb[0].mxu0
      %v4929 = vadd.f32 %v4692, %v4928
      %v4930 = vpop.f32.mrb[0].mxu0
      %v4931 = vpop.f32.mrb[0].mxu0
      %v4932 = vadd.f32 %v4695, %v4931
      %v4933 = vpop.f32.mrb[0].mxu0
      %4934 = vmatprep.mubr.bf16.mxu0 0
      %4935 = vmatmul.mubr.bf16.gmra.mrb[0].mxu0 %v4804
      %v4936 = vpop.f32.mrb[0].mxu0
      %v4937 = vadd.f32 %v4700, %v4936
      %v4938 = vpop.f32.mrb[0].mxu0
      %v4939 = vpop.f32.mrb[0].mxu0
      %v4940 = vadd.f32 %v4703, %v4939
      %v4941 = vpop.f32.mrb[0].mxu0
      %4942 = vmatprep.mubr.bf16.mxu0 0
      %4943 = vmatmul.mubr.bf16.gmra.mrb[0].mxu0 %v4807
      %v4944 = vpop.f32.mrb[0].mxu0
      %v4945 = vadd.f32 %v4708, %v4944
      %v4946 = vpop.f32.mrb[0].mxu0
      %v4947 = vpop.f32.mrb[0].mxu0
      %v4948 = vadd.f32 %v4711, %v4947
      %v4949 = vpop.f32.mrb[0].mxu0
      %4950 = vmatprep.mubr.bf16.mxu0 0
      %4951 = vmatmul.mubr.bf16.gmra.mrb[0].mxu0 %v4810
      %v4952 = vpop.f32.mrb[0].mxu0
      %v4953 = vadd.f32 %v4716, %v4952
      %v4954 = vpop.f32.mrb[0].mxu0
      %v4955 = vpop.f32.mrb[0].mxu0
      %v4956 = vadd.f32 %v4719, %v4955
      %v4957 = vpop.f32.mrb[0].mxu0
      %4958 = vmatprep.mubr.bf16.mxu0 0
      %4959 = vmatmul.mubr.bf16.gmra.mrb[0].mxu0 %v4813
      %v4960 = vpop.f32.mrb[0].mxu0
      %v4961 = vadd.f32 %v4724, %v4960
      %v4962 = vpop.f32.mrb[0].mxu0
      %v4963 = vpop.f32.mrb[0].mxu0
      %v4964 = vadd.f32 %v4727, %v4963
      %v4965 = vpop.f32.mrb[0].mxu0
      %4966 = vmatprep.mubr.bf16.mxu0 0
      %4967 = vmatmul.mubr.bf16.gmra.mrb[0].mxu0 %v4816
      %v4968 = vpop.f32.mrb[0].mxu0
      %v4969 = vadd.f32 %v4732, %v4968
      %v4970 = vpop.f32.mrb[0].mxu0
      %v4971 = vpop.f32.mrb[0].mxu0
      %v4972 = vadd.f32 %v4735, %v4971
      %v4973 = vpop.f32.mrb[0].mxu0
      %4974 = vmatprep.mubr.bf16.mxu0 0
      %4975 = vmatmul.mubr.bf16.gmra.mrb[0].mxu0 %v4819
      %v4976 = vpop.f32.mrb[0].mxu0
      %v4977 = vadd.f32 %v4740, %v4976
      %v4978 = vpop.f32.mrb[0].mxu0
      %v4979 = vpop.f32.mrb[0].mxu0
      %v4980 = vadd.f32 %v4743, %v4979
      %v4981 = vpop.f32.mrb[0].mxu0
      %4982 = vmatprep.mubr.bf16.mxu0 0
      %4983 = vmatmul.mubr.bf16.gmra.mrb[0].mxu0 %v4822
      %v4984 = vpop.f32.mrb[0].mxu0
      %v4985 = vadd.f32 %v4748, %v4984
      %v4986 = vpop.f32.mrb[0].mxu0
      %v4987 = vpop.f32.mrb[0].mxu0
      %v4988 = vadd.f32 %v4751, %v4987
      %v4989 = vpop.f32.mrb[0].mxu0
      %4990 = vmatprep.mubr.bf16.mxu0 0
      %4991 = vmatmul.mubr.bf16.gmra.mrb[0].mxu0 %v4825
      %v4992 = vpop.f32.mrb[0].mxu0
      %v4993 = vadd.f32 %v4756, %v4992
      %v4994 = vpop.f32.mrb[0].mxu0
      %v4995 = vpop.f32.mrb[0].mxu0
      %v4996 = vadd.f32 %v4759, %v4995
      %v4997 = vpop.f32.mrb[0].mxu0
      %4998 = vmatprep.mubr.bf16.mxu0 0
      %4999 = vmatmul.mubr.bf16.gmra.mrb[0].mxu0 %v4828
      %v5000 = vpop.f32.mrb[0].mxu0
      %v5001 = vadd.f32 %v4764, %v5000
      %v5002 = vpop.f32.mrb[0].mxu0
      %v5003 = vpop.f32.mrb[0].mxu0
      %v5004 = vadd.f32 %v4767, %v5003
      %v5005 = vpop.f32.mrb[0].mxu0
      %5006 = vdwg.mxu0
      %v5007 = vld [vmem:[%s192 + $0x25] sm:$0xff]
      %v5008 = vld [vmem:[%s192 + $0x2d] sm:$0xff]
      %v5009 = vld [vmem:[%s192 + $0x35] sm:$0xff]
      %v5010 = vld [vmem:[%s192 + $0x3d] sm:$0xff]
      %v5011 = vld [vmem:[%s192 + $0x45] sm:$0xff]
      %v5012 = vld [vmem:[%s192 + $0x4d] sm:$0xff]
      %v5013 = vld [vmem:[%s192 + $0x55] sm:$0xff]
      %v5014 = vld [vmem:[%s192 + $0x5d] sm:$0xff]
      %v5015 = vld [vmem:[%s192 + $0x65] sm:$0xff]
      %v5016 = vld [vmem:[%s192 + $0x6d] sm:$0xff]
      %v5017 = vld [vmem:[%s192 + $0x75] sm:$0xff]
      %v5018 = vld [vmem:[%s192 + $0x7d] sm:$0xff]
      %v5019 = vld [vmem:[%s192 + $0x85] sm:$0xff]
      %v5020 = vld [vmem:[%s192 + $0x8d] sm:$0xff]
      %v5021 = vld [vmem:[%s192 + $0x95] sm:$0xff]
      %v5022 = vld [vmem:[%s192 + $0x9d] sm:$0xff]
      %v5023 = vld [vmem:[%s192 + $0xa5] sm:$0xff]
      %v5024 = vld [vmem:[%s192 + $0xad] sm:$0xff]
      %v5025 = vld [vmem:[%s192 + $0xb5] sm:$0xff]
      %v5026 = vld [vmem:[%s192 + $0xbd] sm:$0xff]
      %v5027 = vld [vmem:[%s192 + $0xc5] sm:$0xff]
      %v5028 = vld [vmem:[%s192 + $0xcd] sm:$0xff]
      %v5029 = vld [vmem:[%s192 + $0xd5] sm:$0xff]
      %v5030 = vld [vmem:[%s192 + $0xdd] sm:$0xff]
      %v5031 = vld [vmem:[%s192 + $0xe5] sm:$0xff]
      %v5032 = vld [vmem:[%s192 + $0xed] sm:$0xff]
      %v5033 = vld [vmem:[%s192 + $0xf5] sm:$0xff]
      %v5034 = vld [vmem:[%s192 + $0xfd] sm:$0xff]
      %v5035 = vld [vmem:[%s192 + $0x105] sm:$0xff]
      %v5036 = vld [vmem:[%s192 + $0x10d] sm:$0xff]
      %v5037 = vld [vmem:[%s192 + $0x115] sm:$0xff]
      %v5038 = vld [vmem:[%s192 + $0x11d] sm:$0xff]
      %v5039 = vld [vmem:[%s192 + $0x125] sm:$0xff]
      %v5040 = vld [vmem:[%s192 + $0x12d] sm:$0xff]
      %v5041 = vld [vmem:[%s192 + $0x135] sm:$0xff]
      %v5042 = vld [vmem:[%s192 + $0x13d] sm:$0xff]
      %v5043 = vpack.c.bf16 %v5008, %v5007
      %v5044 = vpack.c.bf16 %v5010, %v5009
      %v5045 = vpack.c.bf16 %v5012, %v5011
      %v5046 = vpack.c.bf16 %v5014, %v5013
      %v5047 = vpack.c.bf16 %v5016, %v5015
      %v5048 = vpack.c.bf16 %v5018, %v5017
      %v5049 = vpack.c.bf16 %v5020, %v5019
      %v5050 = vpack.c.bf16 %v5022, %v5021
      %v5051 = vpack.c.bf16 %v5024, %v5023
      %v5052 = vpack.c.bf16 %v5026, %v5025
      %v5053 = vpack.c.bf16 %v5028, %v5027
      %v5054 = vpack.c.bf16 %v5030, %v5029
      %v5055 = vpack.c.bf16 %v5032, %v5031
      %v5056 = vpack.c.bf16 %v5034, %v5033
      %v5057 = vpack.c.bf16 %v5036, %v5035
      %v5058 = vpack.c.bf16 %v5038, %v5037
      %v5059 = vpack.c.bf16 %v5040, %v5039
      %v5060 = vpack.c.bf16 %v5042, %v5041
      %s5061 = scalar_lea.vmem %s1, 112
      %v5062 = vld [vmem:[%s5061] sm:$0xf]
      %v5063 = vld [vmem:[%s5061 + $0x4] sm:$0xf]
      %v5066 = vunpack.c.l.b16 %v5062
      %v5067 = vunpack.c.l.b16 %v5063
      %v5068 = vpack.c.b16 %v5067, %v5066
      %v5071 = vsel %vm318, %v5043, 0
      %v5074 = vsel %vm318, %v5044, 0
      %v5077 = vsel %vm318, %v5045, 0
      %v5080 = vsel %vm318, %v5046, 0
      %v5083 = vsel %vm318, %v5047, 0
      %v5086 = vsel %vm318, %v5048, 0
      %v5089 = vsel %vm318, %v5049, 0
      %v5092 = vsel %vm318, %v5050, 0
      %v5095 = vsel %vm318, %v5051, 0
      %v5098 = vsel %vm318, %v5052, 0
      %v5101 = vsel %vm318, %v5053, 0
      %v5104 = vsel %vm318, %v5054, 0
      %v5107 = vsel %vm318, %v5055, 0
      %v5110 = vsel %vm318, %v5056, 0
      %v5113 = vsel %vm318, %v5057, 0
      %v5116 = vsel %vm318, %v5058, 0
      %v5119 = vsel %vm318, %v5059, 0
      %v5122 = vsel %vm318, %v5060, 0
      %5124 = vmatprep.subr.bf16.mxu0 0
      %5125 = vmatpush1.bf16.msra.mxu0 %v5068
      %5126 = vmatprep.subr.bf16.mxu0 0
      %5127 = vmatpush1.bf16.msra.mxu0 0
      %5128 = vmatprep.subr.bf16.mxu0 0
      %5129 = vmatpush1.bf16.msra.mxu0 0
      %5130 = vmatprep.subr.bf16.mxu0 0
      %5131 = vmatpush1.bf16.msra.mxu0 0
      %5132 = vmatprep.subr.bf16.mxu0 0
      %5133 = vmatpush1.bf16.msra.mxu0 0
      %5134 = vmatprep.subr.bf16.mxu0 0
      %5135 = vmatpush1.bf16.msra.mxu0 0
      %5136 = vmatprep.subr.bf16.mxu0 0
      %5137 = vmatpush1.bf16.msra.mxu0 0
      %5138 = vmatprep.subr.bf16.mxu0 0
      %5139 = vmatpush1.bf16.msra.mxu0 0
      %5140 = vmatprep.subr.bf16.mxu0 0
      %5141 = vmatpush1.bf16.msra.mxu0 0
      %5142 = vmatprep.subr.bf16.mxu0 0
      %5143 = vmatpush1.bf16.msra.mxu0 0
      %5144 = vmatprep.subr.bf16.mxu0 0
      %5145 = vmatpush1.bf16.msra.mxu0 0
      %5146 = vmatprep.subr.bf16.mxu0 0
      %5147 = vmatpush1.bf16.msra.mxu0 0
      %5148 = vmatprep.subr.bf16.mxu0 0
      %5149 = vmatpush1.bf16.msra.mxu0 0
      %5150 = vmatprep.subr.bf16.mxu0 0
      %5151 = vmatpush1.bf16.msra.mxu0 0
      %5152 = vmatprep.subr.bf16.mxu0 0
      %5153 = vmatpush1.bf16.msra.mxu0 0
      %5154 = vmatprep.subr.bf16.mxu0 0
      %5155 = vmatpush1.bf16.msra.mxu0 0
      %5156 = vmatprep.mubr.bf16.mxu0 0
      %5157 = vmatmul.mubr.bf16.gmra.mrb[0].mxu0 %v5071
      %v5158 = vpop.f32.mrb[0].mxu0
      %v5159 = vadd.f32 0.0, %v5158
      %v5160 = vpop.f32.mrb[0].mxu0
      %v5161 = vpop.f32.mrb[0].mxu0
      %v5162 = vadd.f32 0.0, %v5161
      %v5163 = vpop.f32.mrb[0].mxu0
      %5164 = vmatprep.mubr.bf16.mxu0 0
      %5165 = vmatmul.mubr.bf16.gmra.mrb[0].mxu0 %v5074
      %v5166 = vpop.f32.mrb[0].mxu0
      %v5167 = vadd.f32 0.0, %v5166
      %v5168 = vpop.f32.mrb[0].mxu0
      %v5169 = vpop.f32.mrb[0].mxu0
      %v5170 = vadd.f32 0.0, %v5169
      %v5171 = vpop.f32.mrb[0].mxu0
      %5172 = vmatprep.mubr.bf16.mxu0 0
      %5173 = vmatmul.mubr.bf16.gmra.mrb[0].mxu0 %v5077
      %v5174 = vpop.f32.mrb[0].mxu0
      %v5175 = vadd.f32 0.0, %v5174
      %v5176 = vpop.f32.mrb[0].mxu0
      %v5177 = vpop.f32.mrb[0].mxu0
      %v5178 = vadd.f32 0.0, %v5177
      %v5179 = vpop.f32.mrb[0].mxu0
      %5180 = vmatprep.mubr.bf16.mxu0 0
      %5181 = vmatmul.mubr.bf16.gmra.mrb[0].mxu0 %v5080
      %v5182 = vpop.f32.mrb[0].mxu0
      %v5183 = vadd.f32 0.0, %v5182
      %v5184 = vpop.f32.mrb[0].mxu0
      %v5185 = vpop.f32.mrb[0].mxu0
      %v5186 = vadd.f32 0.0, %v5185
      %v5187 = vpop.f32.mrb[0].mxu0
      %5188 = vmatprep.mubr.bf16.mxu0 0
      %5189 = vmatmul.mubr.bf16.gmra.mrb[0].mxu0 %v5083
      %v5190 = vpop.f32.mrb[0].mxu0
      %v5191 = vadd.f32 0.0, %v5190
      %v5192 = vpop.f32.mrb[0].mxu0
      %v5193 = vpop.f32.mrb[0].mxu0
      %v5194 = vadd.f32 0.0, %v5193
      %v5195 = vpop.f32.mrb[0].mxu0
      %5196 = vmatprep.mubr.bf16.mxu0 0
      %5197 = vmatmul.mubr.bf16.gmra.mrb[0].mxu0 %v5086
      %v5198 = vpop.f32.mrb[0].mxu0
      %v5199 = vadd.f32 0.0, %v5198
      %v5200 = vpop.f32.mrb[0].mxu0
      %v5201 = vpop.f32.mrb[0].mxu0
      %v5202 = vadd.f32 0.0, %v5201
      %v5203 = vpop.f32.mrb[0].mxu0
      %5204 = vmatprep.mubr.bf16.mxu0 0
      %5205 = vmatmul.mubr.bf16.gmra.mrb[0].mxu0 %v5089
      %v5206 = vpop.f32.mrb[0].mxu0
      %v5207 = vadd.f32 0.0, %v5206
      %v5208 = vpop.f32.mrb[0].mxu0
      %v5209 = vpop.f32.mrb[0].mxu0
      %v5210 = vadd.f32 0.0, %v5209
      %v5211 = vpop.f32.mrb[0].mxu0
      %5212 = vmatprep.mubr.bf16.mxu0 0
      %5213 = vmatmul.mubr.bf16.gmra.mrb[0].mxu0 %v5092
      %v5214 = vpop.f32.mrb[0].mxu0
      %v5215 = vadd.f32 0.0, %v5214
      %v5216 = vpop.f32.mrb[0].mxu0
      %v5217 = vpop.f32.mrb[0].mxu0
      %v5218 = vadd.f32 0.0, %v5217
      %v5219 = vpop.f32.mrb[0].mxu0
      %5220 = vmatprep.mubr.bf16.mxu0 0
      %5221 = vmatmul.mubr.bf16.gmra.mrb[0].mxu0 %v5095
      %v5222 = vpop.f32.mrb[0].mxu0
      %v5223 = vadd.f32 0.0, %v5222
      %v5224 = vpop.f32.mrb[0].mxu0
      %v5225 = vpop.f32.mrb[0].mxu0
      %v5226 = vadd.f32 0.0, %v5225
      %v5227 = vpop.f32.mrb[0].mxu0
      %5228 = vmatprep.mubr.bf16.mxu0 0
      %5229 = vmatmul.mubr.bf16.gmra.mrb[0].mxu0 %v5098
      %v5230 = vpop.f32.mrb[0].mxu0
      %v5231 = vadd.f32 0.0, %v5230
      %v5232 = vpop.f32.mrb[0].mxu0
      %v5233 = vpop.f32.mrb[0].mxu0
      %v5234 = vadd.f32 0.0, %v5233
      %v5235 = vpop.f32.mrb[0].mxu0
      %5236 = vmatprep.mubr.bf16.mxu0 0
      %5237 = vmatmul.mubr.bf16.gmra.mrb[0].mxu0 %v5101
      %v5238 = vpop.f32.mrb[0].mxu0
      %v5239 = vadd.f32 0.0, %v5238
      %v5240 = vpop.f32.mrb[0].mxu0
      %v5241 = vpop.f32.mrb[0].mxu0
      %v5242 = vadd.f32 0.0, %v5241
      %v5243 = vpop.f32.mrb[0].mxu0
      %5244 = vmatprep.mubr.bf16.mxu0 0
      %5245 = vmatmul.mubr.bf16.gmra.mrb[0].mxu0 %v5104
      %v5246 = vpop.f32.mrb[0].mxu0
      %v5247 = vadd.f32 0.0, %v5246
      %v5248 = vpop.f32.mrb[0].mxu0
      %v5249 = vpop.f32.mrb[0].mxu0
      %v5250 = vadd.f32 0.0, %v5249
      %v5251 = vpop.f32.mrb[0].mxu0
      %5252 = vmatprep.mubr.bf16.mxu0 0
      %5253 = vmatmul.mubr.bf16.gmra.mrb[0].mxu0 %v5107
      %v5254 = vpop.f32.mrb[0].mxu0
      %v5255 = vadd.f32 0.0, %v5254
      %v5256 = vpop.f32.mrb[0].mxu0
      %v5257 = vpop.f32.mrb[0].mxu0
      %v5258 = vadd.f32 0.0, %v5257
      %v5259 = vpop.f32.mrb[0].mxu0
      %5260 = vmatprep.mubr.bf16.mxu0 0
      %5261 = vmatmul.mubr.bf16.gmra.mrb[0].mxu0 %v5110
      %v5262 = vpop.f32.mrb[0].mxu0
      %v5263 = vadd.f32 0.0, %v5262
      %v5264 = vpop.f32.mrb[0].mxu0
      %v5265 = vpop.f32.mrb[0].mxu0
      %v5266 = vadd.f32 0.0, %v5265
      %v5267 = vpop.f32.mrb[0].mxu0
      %5268 = vmatprep.mubr.bf16.mxu0 0
      %5269 = vmatmul.mubr.bf16.gmra.mrb[0].mxu0 %v5113
      %v5270 = vpop.f32.mrb[0].mxu0
      %v5271 = vadd.f32 0.0, %v5270
      %v5272 = vpop.f32.mrb[0].mxu0
      %v5273 = vpop.f32.mrb[0].mxu0
      %v5274 = vadd.f32 0.0, %v5273
      %v5275 = vpop.f32.mrb[0].mxu0
      %5276 = vmatprep.mubr.bf16.mxu0 0
      %5277 = vmatmul.mubr.bf16.gmra.mrb[0].mxu0 %v5116
      %v5278 = vpop.f32.mrb[0].mxu0
      %v5279 = vadd.f32 0.0, %v5278
      %v5280 = vpop.f32.mrb[0].mxu0
      %v5281 = vpop.f32.mrb[0].mxu0
      %v5282 = vadd.f32 0.0, %v5281
      %v5283 = vpop.f32.mrb[0].mxu0
      %5284 = vmatprep.mubr.bf16.mxu0 0
      %5285 = vmatmul.mubr.bf16.gmra.mrb[0].mxu0 %v5119
      %v5286 = vpop.f32.mrb[0].mxu0
      %v5287 = vadd.f32 0.0, %v5286
      %v5288 = vpop.f32.mrb[0].mxu0
      %v5289 = vpop.f32.mrb[0].mxu0
      %v5290 = vadd.f32 0.0, %v5289
      %v5291 = vpop.f32.mrb[0].mxu0
      %5292 = vmatprep.mubr.bf16.mxu0 0
      %5293 = vmatmul.mubr.bf16.gmra.mrb[0].mxu0 %v5122
      %v5294 = vpop.f32.mrb[0].mxu0
      %v5295 = vadd.f32 0.0, %v5294
      %v5296 = vpop.f32.mrb[0].mxu0
      %v5297 = vpop.f32.mrb[0].mxu0
      %v5298 = vadd.f32 0.0, %v5297
      %v5299 = vpop.f32.mrb[0].mxu0
      %5300 = vdwg.mxu0
      %v5301 = vadd.f32 %v4865, %v5159
      %v5302 = vadd.f32 %v4868, %v5162
      %v5303 = vadd.f32 %v4873, %v5167
      %v5304 = vadd.f32 %v4876, %v5170
      %v5305 = vadd.f32 %v4881, %v5175
      %v5306 = vadd.f32 %v4884, %v5178
      %v5307 = vadd.f32 %v4889, %v5183
      %v5308 = vadd.f32 %v4892, %v5186
      %v5309 = vadd.f32 %v4897, %v5191
      %v5310 = vadd.f32 %v4900, %v5194
      %v5311 = vadd.f32 %v4905, %v5199
      %v5312 = vadd.f32 %v4908, %v5202
      %v5313 = vadd.f32 %v4913, %v5207
      %v5314 = vadd.f32 %v4916, %v5210
      %v5315 = vadd.f32 %v4921, %v5215
      %v5316 = vadd.f32 %v4924, %v5218
      %v5317 = vadd.f32 %v4929, %v5223
      %v5318 = vadd.f32 %v4932, %v5226
      %v5319 = vadd.f32 %v4937, %v5231
      %v5320 = vadd.f32 %v4940, %v5234
      %v5321 = vadd.f32 %v4945, %v5239
      %v5322 = vadd.f32 %v4948, %v5242
      %v5323 = vadd.f32 %v4953, %v5247
      %v5324 = vadd.f32 %v4956, %v5250
      %v5325 = vadd.f32 %v4961, %v5255
      %v5326 = vadd.f32 %v4964, %v5258
      %v5327 = vadd.f32 %v4969, %v5263
      %v5328 = vadd.f32 %v4972, %v5266
      %v5329 = vadd.f32 %v4977, %v5271
      %v5330 = vadd.f32 %v4980, %v5274
      %v5331 = vadd.f32 %v4985, %v5279
      %v5332 = vadd.f32 %v4988, %v5282
      %v5333 = vadd.f32 %v4993, %v5287
      %v5334 = vadd.f32 %v4996, %v5290
      %v5335 = vadd.f32 %v5001, %v5295
      %v5336 = vadd.f32 %v5004, %v5298
      %v5337 = vld [vmem:[%s192 + $0x26] sm:$0xff]
      %v5338 = vld [vmem:[%s192 + $0x2e] sm:$0xff]
      %v5339 = vld [vmem:[%s192 + $0x36] sm:$0xff]
      %v5340 = vld [vmem:[%s192 + $0x3e] sm:$0xff]
      %v5341 = vld [vmem:[%s192 + $0x46] sm:$0xff]
      %v5342 = vld [vmem:[%s192 + $0x4e] sm:$0xff]
      %v5343 = vld [vmem:[%s192 + $0x56] sm:$0xff]
      %v5344 = vld [vmem:[%s192 + $0x5e] sm:$0xff]
      %v5345 = vld [vmem:[%s192 + $0x66] sm:$0xff]
      %v5346 = vld [vmem:[%s192 + $0x6e] sm:$0xff]
      %v5347 = vld [vmem:[%s192 + $0x76] sm:$0xff]
      %v5348 = vld [vmem:[%s192 + $0x7e] sm:$0xff]
      %v5349 = vld [vmem:[%s192 + $0x86] sm:$0xff]
      %v5350 = vld [vmem:[%s192 + $0x8e] sm:$0xff]
      %v5351 = vld [vmem:[%s192 + $0x96] sm:$0xff]
      %v5352 = vld [vmem:[%s192 + $0x9e] sm:$0xff]
      %v5353 = vld [vmem:[%s192 + $0xa6] sm:$0xff]
      %v5354 = vld [vmem:[%s192 + $0xae] sm:$0xff]
      %v5355 = vld [vmem:[%s192 + $0xb6] sm:$0xff]
      %v5356 = vld [vmem:[%s192 + $0xbe] sm:$0xff]
      %v5357 = vld [vmem:[%s192 + $0xc6] sm:$0xff]
      %v5358 = vld [vmem:[%s192 + $0xce] sm:$0xff]
      %v5359 = vld [vmem:[%s192 + $0xd6] sm:$0xff]
      %v5360 = vld [vmem:[%s192 + $0xde] sm:$0xff]
      %v5361 = vld [vmem:[%s192 + $0xe6] sm:$0xff]
      %v5362 = vld [vmem:[%s192 + $0xee] sm:$0xff]
      %v5363 = vld [vmem:[%s192 + $0xf6] sm:$0xff]
      %v5364 = vld [vmem:[%s192 + $0xfe] sm:$0xff]
      %v5365 = vld [vmem:[%s192 + $0x106] sm:$0xff]
      %v5366 = vld [vmem:[%s192 + $0x10e] sm:$0xff]
      %v5367 = vld [vmem:[%s192 + $0x116] sm:$0xff]
      %v5368 = vld [vmem:[%s192 + $0x11e] sm:$0xff]
      %v5369 = vld [vmem:[%s192 + $0x126] sm:$0xff]
      %v5370 = vld [vmem:[%s192 + $0x12e] sm:$0xff]
      %v5371 = vld [vmem:[%s192 + $0x136] sm:$0xff]
      %v5372 = vld [vmem:[%s192 + $0x13e] sm:$0xff]
      %v5373 = vpack.c.bf16 %v5338, %v5337
      %v5374 = vpack.c.bf16 %v5340, %v5339
      %v5375 = vpack.c.bf16 %v5342, %v5341
      %v5376 = vpack.c.bf16 %v5344, %v5343
      %v5377 = vpack.c.bf16 %v5346, %v5345
      %v5378 = vpack.c.bf16 %v5348, %v5347
      %v5379 = vpack.c.bf16 %v5350, %v5349
      %v5380 = vpack.c.bf16 %v5352, %v5351
      %v5381 = vpack.c.bf16 %v5354, %v5353
      %v5382 = vpack.c.bf16 %v5356, %v5355
      %v5383 = vpack.c.bf16 %v5358, %v5357
      %v5384 = vpack.c.bf16 %v5360, %v5359
      %v5385 = vpack.c.bf16 %v5362, %v5361
      %v5386 = vpack.c.bf16 %v5364, %v5363
      %v5387 = vpack.c.bf16 %v5366, %v5365
      %v5388 = vpack.c.bf16 %v5368, %v5367
      %v5389 = vpack.c.bf16 %v5370, %v5369
      %v5390 = vpack.c.bf16 %v5372, %v5371
      %s5391 = scalar_lea.vmem %s1, 120
      %v5392 = vld [vmem:[%s5391] sm:$0xf]
      %v5393 = vld [vmem:[%s5391 + $0x4] sm:$0xf]
      %v5396 = vunpack.c.l.b16 %v5392
      %v5397 = vunpack.c.l.b16 %v5393
      %v5398 = vpack.c.b16 %v5397, %v5396
      %v5401 = vsel %vm318, %v5373, 0
      %v5404 = vsel %vm318, %v5374, 0
      %v5407 = vsel %vm318, %v5375, 0
      %v5410 = vsel %vm318, %v5376, 0
      %v5413 = vsel %vm318, %v5377, 0
      %v5416 = vsel %vm318, %v5378, 0
      %v5419 = vsel %vm318, %v5379, 0
      %v5422 = vsel %vm318, %v5380, 0
      %v5425 = vsel %vm318, %v5381, 0
      %v5428 = vsel %vm318, %v5382, 0
      %v5431 = vsel %vm318, %v5383, 0
      %v5434 = vsel %vm318, %v5384, 0
      %v5437 = vsel %vm318, %v5385, 0
      %v5440 = vsel %vm318, %v5386, 0
      %v5443 = vsel %vm318, %v5387, 0
      %v5446 = vsel %vm318, %v5388, 0
      %v5449 = vsel %vm318, %v5389, 0
      %v5452 = vsel %vm318, %v5390, 0
      %5454 = vmatprep.subr.bf16.mxu0 0
      %5455 = vmatpush1.bf16.msra.mxu0 %v5398
      %5456 = vmatprep.subr.bf16.mxu0 0
      %5457 = vmatpush1.bf16.msra.mxu0 0
      %5458 = vmatprep.subr.bf16.mxu0 0
      %5459 = vmatpush1.bf16.msra.mxu0 0
      %5460 = vmatprep.subr.bf16.mxu0 0
      %5461 = vmatpush1.bf16.msra.mxu0 0
      %5462 = vmatprep.subr.bf16.mxu0 0
      %5463 = vmatpush1.bf16.msra.mxu0 0
      %5464 = vmatprep.subr.bf16.mxu0 0
      %5465 = vmatpush1.bf16.msra.mxu0 0
      %5466 = vmatprep.subr.bf16.mxu0 0
      %5467 = vmatpush1.bf16.msra.mxu0 0
      %5468 = vmatprep.subr.bf16.mxu0 0
      %5469 = vmatpush1.bf16.msra.mxu0 0
      %5470 = vmatprep.subr.bf16.mxu0 0
      %5471 = vmatpush1.bf16.msra.mxu0 0
      %5472 = vmatprep.subr.bf16.mxu0 0
      %5473 = vmatpush1.bf16.msra.mxu0 0
      %5474 = vmatprep.subr.bf16.mxu0 0
      %5475 = vmatpush1.bf16.msra.mxu0 0
      %5476 = vmatprep.subr.bf16.mxu0 0
      %5477 = vmatpush1.bf16.msra.mxu0 0
      %5478 = vmatprep.subr.bf16.mxu0 0
      %5479 = vmatpush1.bf16.msra.mxu0 0
      %5480 = vmatprep.subr.bf16.mxu0 0
      %5481 = vmatpush1.bf16.msra.mxu0 0
      %5482 = vmatprep.subr.bf16.mxu0 0
      %5483 = vmatpush1.bf16.msra.mxu0 0
      %5484 = vmatprep.subr.bf16.mxu0 0
      %5485 = vmatpush1.bf16.msra.mxu0 0
      %5486 = vmatprep.mubr.bf16.mxu0 0
      %5487 = vmatmul.mubr.bf16.gmra.mrb[0].mxu0 %v5401
      %v5488 = vpop.f32.mrb[0].mxu0
      %v5489 = vadd.f32 0.0, %v5488
      %v5490 = vpop.f32.mrb[0].mxu0
      %v5491 = vpop.f32.mrb[0].mxu0
      %v5492 = vadd.f32 0.0, %v5491
      %v5493 = vpop.f32.mrb[0].mxu0
      %5494 = vmatprep.mubr.bf16.mxu0 0
      %5495 = vmatmul.mubr.bf16.gmra.mrb[0].mxu0 %v5404
      %v5496 = vpop.f32.mrb[0].mxu0
      %v5497 = vadd.f32 0.0, %v5496
      %v5498 = vpop.f32.mrb[0].mxu0
      %v5499 = vpop.f32.mrb[0].mxu0
      %v5500 = vadd.f32 0.0, %v5499
      %v5501 = vpop.f32.mrb[0].mxu0
      %5502 = vmatprep.mubr.bf16.mxu0 0
      %5503 = vmatmul.mubr.bf16.gmra.mrb[0].mxu0 %v5407
      %v5504 = vpop.f32.mrb[0].mxu0
      %v5505 = vadd.f32 0.0, %v5504
      %v5506 = vpop.f32.mrb[0].mxu0
      %v5507 = vpop.f32.mrb[0].mxu0
      %v5508 = vadd.f32 0.0, %v5507
      %v5509 = vpop.f32.mrb[0].mxu0
      %5510 = vmatprep.mubr.bf16.mxu0 0
      %5511 = vmatmul.mubr.bf16.gmra.mrb[0].mxu0 %v5410
      %v5512 = vpop.f32.mrb[0].mxu0
      %v5513 = vadd.f32 0.0, %v5512
      %v5514 = vpop.f32.mrb[0].mxu0
      %v5515 = vpop.f32.mrb[0].mxu0
      %v5516 = vadd.f32 0.0, %v5515
      %v5517 = vpop.f32.mrb[0].mxu0
      %5518 = vmatprep.mubr.bf16.mxu0 0
      %5519 = vmatmul.mubr.bf16.gmra.mrb[0].mxu0 %v5413
      %v5520 = vpop.f32.mrb[0].mxu0
      %v5521 = vadd.f32 0.0, %v5520
      %v5522 = vpop.f32.mrb[0].mxu0
      %v5523 = vpop.f32.mrb[0].mxu0
      %v5524 = vadd.f32 0.0, %v5523
      %v5525 = vpop.f32.mrb[0].mxu0
      %5526 = vmatprep.mubr.bf16.mxu0 0
      %5527 = vmatmul.mubr.bf16.gmra.mrb[0].mxu0 %v5416
      %v5528 = vpop.f32.mrb[0].mxu0
      %v5529 = vadd.f32 0.0, %v5528
      %v5530 = vpop.f32.mrb[0].mxu0
      %v5531 = vpop.f32.mrb[0].mxu0
      %v5532 = vadd.f32 0.0, %v5531
      %v5533 = vpop.f32.mrb[0].mxu0
      %5534 = vmatprep.mubr.bf16.mxu0 0
      %5535 = vmatmul.mubr.bf16.gmra.mrb[0].mxu0 %v5419
      %v5536 = vpop.f32.mrb[0].mxu0
      %v5537 = vadd.f32 0.0, %v5536
      %v5538 = vpop.f32.mrb[0].mxu0
      %v5539 = vpop.f32.mrb[0].mxu0
      %v5540 = vadd.f32 0.0, %v5539
      %v5541 = vpop.f32.mrb[0].mxu0
      %5542 = vmatprep.mubr.bf16.mxu0 0
      %5543 = vmatmul.mubr.bf16.gmra.mrb[0].mxu0 %v5422
      %v5544 = vpop.f32.mrb[0].mxu0
      %v5545 = vadd.f32 0.0, %v5544
      %v5546 = vpop.f32.mrb[0].mxu0
      %v5547 = vpop.f32.mrb[0].mxu0
      %v5548 = vadd.f32 0.0, %v5547
      %v5549 = vpop.f32.mrb[0].mxu0
      %5550 = vmatprep.mubr.bf16.mxu0 0
      %5551 = vmatmul.mubr.bf16.gmra.mrb[0].mxu0 %v5425
      %v5552 = vpop.f32.mrb[0].mxu0
      %v5553 = vadd.f32 0.0, %v5552
      %v5554 = vpop.f32.mrb[0].mxu0
      %v5555 = vpop.f32.mrb[0].mxu0
      %v5556 = vadd.f32 0.0, %v5555
      %v5557 = vpop.f32.mrb[0].mxu0
      %5558 = vmatprep.mubr.bf16.mxu0 0
      %5559 = vmatmul.mubr.bf16.gmra.mrb[0].mxu0 %v5428
      %v5560 = vpop.f32.mrb[0].mxu0
      %v5561 = vadd.f32 0.0, %v5560
      %v5562 = vpop.f32.mrb[0].mxu0
      %v5563 = vpop.f32.mrb[0].mxu0
      %v5564 = vadd.f32 0.0, %v5563
      %v5565 = vpop.f32.mrb[0].mxu0
      %5566 = vmatprep.mubr.bf16.mxu0 0
      %5567 = vmatmul.mubr.bf16.gmra.mrb[0].mxu0 %v5431
      %v5568 = vpop.f32.mrb[0].mxu0
      %v5569 = vadd.f32 0.0, %v5568
      %v5570 = vpop.f32.mrb[0].mxu0
      %v5571 = vpop.f32.mrb[0].mxu0
      %v5572 = vadd.f32 0.0, %v5571
      %v5573 = vpop.f32.mrb[0].mxu0
      %5574 = vmatprep.mubr.bf16.mxu0 0
      %5575 = vmatmul.mubr.bf16.gmra.mrb[0].mxu0 %v5434
      %v5576 = vpop.f32.mrb[0].mxu0
      %v5577 = vadd.f32 0.0, %v5576
      %v5578 = vpop.f32.mrb[0].mxu0
      %v5579 = vpop.f32.mrb[0].mxu0
      %v5580 = vadd.f32 0.0, %v5579
      %v5581 = vpop.f32.mrb[0].mxu0
      %5582 = vmatprep.mubr.bf16.mxu0 0
      %5583 = vmatmul.mubr.bf16.gmra.mrb[0].mxu0 %v5437
      %v5584 = vpop.f32.mrb[0].mxu0
      %v5585 = vadd.f32 0.0, %v5584
      %v5586 = vpop.f32.mrb[0].mxu0
      %v5587 = vpop.f32.mrb[0].mxu0
      %v5588 = vadd.f32 0.0, %v5587
      %v5589 = vpop.f32.mrb[0].mxu0
      %5590 = vmatprep.mubr.bf16.mxu0 0
      %5591 = vmatmul.mubr.bf16.gmra.mrb[0].mxu0 %v5440
      %v5592 = vpop.f32.mrb[0].mxu0
      %v5593 = vadd.f32 0.0, %v5592
      %v5594 = vpop.f32.mrb[0].mxu0
      %v5595 = vpop.f32.mrb[0].mxu0
      %v5596 = vadd.f32 0.0, %v5595
      %v5597 = vpop.f32.mrb[0].mxu0
      %5598 = vmatprep.mubr.bf16.mxu0 0
      %5599 = vmatmul.mubr.bf16.gmra.mrb[0].mxu0 %v5443
      %v5600 = vpop.f32.mrb[0].mxu0
      %v5601 = vadd.f32 0.0, %v5600
      %v5602 = vpop.f32.mrb[0].mxu0
      %v5603 = vpop.f32.mrb[0].mxu0
      %v5604 = vadd.f32 0.0, %v5603
      %v5605 = vpop.f32.mrb[0].mxu0
      %5606 = vmatprep.mubr.bf16.mxu0 0
      %5607 = vmatmul.mubr.bf16.gmra.mrb[0].mxu0 %v5446
      %v5608 = vpop.f32.mrb[0].mxu0
      %v5609 = vadd.f32 0.0, %v5608
      %v5610 = vpop.f32.mrb[0].mxu0
      %v5611 = vpop.f32.mrb[0].mxu0
      %v5612 = vadd.f32 0.0, %v5611
      %v5613 = vpop.f32.mrb[0].mxu0
      %5614 = vmatprep.mubr.bf16.mxu0 0
      %5615 = vmatmul.mubr.bf16.gmra.mrb[0].mxu0 %v5449
      %v5616 = vpop.f32.mrb[0].mxu0
      %v5617 = vadd.f32 0.0, %v5616
      %v5618 = vpop.f32.mrb[0].mxu0
      %v5619 = vpop.f32.mrb[0].mxu0
      %v5620 = vadd.f32 0.0, %v5619
      %v5621 = vpop.f32.mrb[0].mxu0
      %5622 = vmatprep.mubr.bf16.mxu0 0
      %5623 = vmatmul.mubr.bf16.gmra.mrb[0].mxu0 %v5452
      %v5624 = vpop.f32.mrb[0].mxu0
      %v5625 = vadd.f32 0.0, %v5624
      %v5626 = vpop.f32.mrb[0].mxu0
      %v5627 = vpop.f32.mrb[0].mxu0
      %v5628 = vadd.f32 0.0, %v5627
      %v5629 = vpop.f32.mrb[0].mxu0
      %5630 = vdwg.mxu0
      %v5631 = vadd.f32 %v5301, %v5489
      %v5632 = vadd.f32 %v5302, %v5492
      %v5633 = vadd.f32 %v5303, %v5497
      %v5634 = vadd.f32 %v5304, %v5500
      %v5635 = vadd.f32 %v5305, %v5505
      %v5636 = vadd.f32 %v5306, %v5508
      %v5637 = vadd.f32 %v5307, %v5513
      %v5638 = vadd.f32 %v5308, %v5516
      %v5639 = vadd.f32 %v5309, %v5521
      %v5640 = vadd.f32 %v5310, %v5524
      %v5641 = vadd.f32 %v5311, %v5529
      %v5642 = vadd.f32 %v5312, %v5532
      %v5643 = vadd.f32 %v5313, %v5537
      %v5644 = vadd.f32 %v5314, %v5540
      %v5645 = vadd.f32 %v5315, %v5545
      %v5646 = vadd.f32 %v5316, %v5548
      %v5647 = vadd.f32 %v5317, %v5553
      %v5648 = vadd.f32 %v5318, %v5556
      %v5649 = vadd.f32 %v5319, %v5561
      %v5650 = vadd.f32 %v5320, %v5564
      %v5651 = vadd.f32 %v5321, %v5569
      %v5652 = vadd.f32 %v5322, %v5572
      %v5653 = vadd.f32 %v5323, %v5577
      %v5654 = vadd.f32 %v5324, %v5580
      %v5655 = vadd.f32 %v5325, %v5585
      %v5656 = vadd.f32 %v5326, %v5588
      %v5657 = vadd.f32 %v5327, %v5593
      %v5658 = vadd.f32 %v5328, %v5596
      %v5659 = vadd.f32 %v5329, %v5601
      %v5660 = vadd.f32 %v5330, %v5604
      %v5661 = vadd.f32 %v5331, %v5609
      %v5662 = vadd.f32 %v5332, %v5612
      %v5663 = vadd.f32 %v5333, %v5617
      %v5664 = vadd.f32 %v5334, %v5620
      %v5665 = vadd.f32 %v5335, %v5625
      %v5666 = vadd.f32 %v5336, %v5628
      %v5667 = vld [vmem:[%s2] sm:$0x1]
      %v5669 = vlaneseq
      %v5670 = vshrl.u32 %v5669, 7
      %v5671 = vsub.s32 0, %v5670
      %v5672 = vrot.slane %v5667, %v5671
      %v5674 = vmul.f32 %v5631, %v5672
      %v5675 = vmul.f32 %v5632, %v5672
      %v5676 = vmul.f32 %v5633, %v5672
      %v5677 = vmul.f32 %v5634, %v5672
      %v5678 = vmul.f32 %v5635, %v5672
      %v5679 = vmul.f32 %v5636, %v5672
      %v5680 = vmul.f32 %v5637, %v5672
      %v5681 = vmul.f32 %v5638, %v5672
      %v5682 = vmul.f32 %v5639, %v5672
      %v5683 = vmul.f32 %v5640, %v5672
      %v5684 = vmul.f32 %v5641, %v5672
      %v5685 = vmul.f32 %v5642, %v5672
      %v5686 = vmul.f32 %v5643, %v5672
      %v5687 = vmul.f32 %v5644, %v5672
      %v5688 = vmul.f32 %v5645, %v5672
      %v5689 = vmul.f32 %v5646, %v5672
      %v5690 = vmul.f32 %v5647, %v5672
      %v5691 = vmul.f32 %v5648, %v5672
      %v5692 = vmul.f32 %v5649, %v5672
      %v5693 = vmul.f32 %v5650, %v5672
      %v5694 = vmul.f32 %v5651, %v5672
      %v5695 = vmul.f32 %v5652, %v5672
      %v5696 = vmul.f32 %v5653, %v5672
      %v5697 = vmul.f32 %v5654, %v5672
      %v5698 = vmul.f32 %v5655, %v5672
      %v5699 = vmul.f32 %v5656, %v5672
      %v5700 = vmul.f32 %v5657, %v5672
      %v5701 = vmul.f32 %v5658, %v5672
      %v5702 = vmul.f32 %v5659, %v5672
      %v5703 = vmul.f32 %v5660, %v5672
      %v5704 = vmul.f32 %v5661, %v5672
      %v5705 = vmul.f32 %v5662, %v5672
      %v5706 = vmul.f32 %v5663, %v5672
      %v5707 = vmul.f32 %v5664, %v5672
      %v5708 = vmul.f32 %v5665, %v5672
      %v5709 = vmul.f32 %v5666, %v5672
      %v5710 = vld [vmem:[%s3] sm:$0x1]
      %v5712 = vlaneseq
      %v5713 = vshrl.u32 %v5712, 7
      %v5714 = vsub.s32 0, %v5713
      %v5715 = vrot.slane %v5710, %v5714
      %v5717 = vadd.f32 %v5674, %v5715
      %v5718 = vadd.f32 %v5675, %v5715
      %v5719 = vadd.f32 %v5676, %v5715
      %v5720 = vadd.f32 %v5677, %v5715
      %v5721 = vadd.f32 %v5678, %v5715
      %v5722 = vadd.f32 %v5679, %v5715
      %v5723 = vadd.f32 %v5680, %v5715
      %v5724 = vadd.f32 %v5681, %v5715
      %v5725 = vadd.f32 %v5682, %v5715
      %v5726 = vadd.f32 %v5683, %v5715
      %v5727 = vadd.f32 %v5684, %v5715
      %v5728 = vadd.f32 %v5685, %v5715
      %v5729 = vadd.f32 %v5686, %v5715
      %v5730 = vadd.f32 %v5687, %v5715
      %v5731 = vadd.f32 %v5688, %v5715
      %v5732 = vadd.f32 %v5689, %v5715
      %v5733 = vadd.f32 %v5690, %v5715
      %v5734 = vadd.f32 %v5691, %v5715
      %v5735 = vadd.f32 %v5692, %v5715
      %v5736 = vadd.f32 %v5693, %v5715
      %v5737 = vadd.f32 %v5694, %v5715
      %v5738 = vadd.f32 %v5695, %v5715
      %v5739 = vadd.f32 %v5696, %v5715
      %v5740 = vadd.f32 %v5697, %v5715
      %v5741 = vadd.f32 %v5698, %v5715
      %v5742 = vadd.f32 %v5699, %v5715
      %v5743 = vadd.f32 %v5700, %v5715
      %v5744 = vadd.f32 %v5701, %v5715
      %v5745 = vadd.f32 %v5702, %v5715
      %v5746 = vadd.f32 %v5703, %v5715
      %v5747 = vadd.f32 %v5704, %v5715
      %v5748 = vadd.f32 %v5705, %v5715
      %v5749 = vadd.f32 %v5706, %v5715
      %v5750 = vadd.f32 %v5707, %v5715
      %v5751 = vadd.f32 %v5708, %v5715
      %v5752 = vadd.f32 %v5709, %v5715
      %v5753 = vtanh.pop %v5717
      %v5754 = vtanh.pop %v5718
      %v5755 = vtanh.pop %v5719
      %v5756 = vtanh.pop %v5720
      %v5757 = vtanh.pop %v5721
      %v5758 = vtanh.pop %v5722
      %v5759 = vtanh.pop %v5723
      %v5760 = vtanh.pop %v5724
      %v5761 = vtanh.pop %v5725
      %v5762 = vtanh.pop %v5726
      %v5763 = vtanh.pop %v5727
      %v5764 = vtanh.pop %v5728
      %v5765 = vtanh.pop %v5729
      %v5766 = vtanh.pop %v5730
      %v5767 = vtanh.pop %v5731
      %v5768 = vtanh.pop %v5732
      %v5769 = vtanh.pop %v5733
      %v5770 = vtanh.pop %v5734
      %v5771 = vtanh.pop %v5735
      %v5772 = vtanh.pop %v5736
      %v5773 = vtanh.pop %v5737
      %v5774 = vtanh.pop %v5738
      %v5775 = vtanh.pop %v5739
      %v5776 = vtanh.pop %v5740
      %v5777 = vtanh.pop %v5741
      %v5778 = vtanh.pop %v5742
      %v5779 = vtanh.pop %v5743
      %v5780 = vtanh.pop %v5744
      %v5781 = vtanh.pop %v5745
      %v5782 = vtanh.pop %v5746
      %v5783 = vtanh.pop %v5747
      %v5784 = vtanh.pop %v5748
      %v5785 = vtanh.pop %v5749
      %v5786 = vtanh.pop %v5750
      %v5787 = vtanh.pop %v5751
      %v5788 = vtanh.pop %v5752
      %s5789 = scalar_lea.vmem %s197, 864
      %5790 = vst [vmem:[%s5789] sm:$0xff] %v5753
      %5791 = vst [vmem:[%s5789 + $0x8] sm:$0xff] %v5754
      %5792 = vst [vmem:[%s5789 + $0x10] sm:$0xff] %v5755
      %5793 = vst [vmem:[%s5789 + $0x18] sm:$0xff] %v5756
      %5794 = vst [vmem:[%s5789 + $0x20] sm:$0xff] %v5757
      %5795 = vst [vmem:[%s5789 + $0x28] sm:$0xff] %v5758
      %5796 = vst [vmem:[%s5789 + $0x30] sm:$0xff] %v5759
      %5797 = vst [vmem:[%s5789 + $0x38] sm:$0xff] %v5760
      %5798 = vst [vmem:[%s5789 + $0x40] sm:$0xff] %v5761
      %5799 = vst [vmem:[%s5789 + $0x48] sm:$0xff] %v5762
      %5800 = vst [vmem:[%s5789 + $0x50] sm:$0xff] %v5763
      %5801 = vst [vmem:[%s5789 + $0x58] sm:$0xff] %v5764
      %5802 = vst [vmem:[%s5789 + $0x60] sm:$0xff] %v5765
      %5803 = vst [vmem:[%s5789 + $0x68] sm:$0xff] %v5766
      %5804 = vst [vmem:[%s5789 + $0x70] sm:$0xff] %v5767
      %5805 = vst [vmem:[%s5789 + $0x78] sm:$0xff] %v5768
      %5806 = vst [vmem:[%s5789 + $0x80] sm:$0xff] %v5769
      %5807 = vst [vmem:[%s5789 + $0x88] sm:$0xff] %v5770
      %5808 = vst [vmem:[%s5789 + $0x90] sm:$0xff] %v5771
      %5809 = vst [vmem:[%s5789 + $0x98] sm:$0xff] %v5772
      %5810 = vst [vmem:[%s5789 + $0xa0] sm:$0xff] %v5773
      %5811 = vst [vmem:[%s5789 + $0xa8] sm:$0xff] %v5774
      %5812 = vst [vmem:[%s5789 + $0xb0] sm:$0xff] %v5775
      %5813 = vst [vmem:[%s5789 + $0xb8] sm:$0xff] %v5776
      %5814 = vst [vmem:[%s5789 + $0xc0] sm:$0xff] %v5777
      %5815 = vst [vmem:[%s5789 + $0xc8] sm:$0xff] %v5778
      %5816 = vst [vmem:[%s5789 + $0xd0] sm:$0xff] %v5779
      %5817 = vst [vmem:[%s5789 + $0xd8] sm:$0xff] %v5780
      %5818 = vst [vmem:[%s5789 + $0xe0] sm:$0xff] %v5781
      %5819 = vst [vmem:[%s5789 + $0xe8] sm:$0xff] %v5782
      %5820 = vst [vmem:[%s5789 + $0xf0] sm:$0xff] %v5783
      %5821 = vst [vmem:[%s5789 + $0xf8] sm:$0xff] %v5784
      %5822 = vst [vmem:[%s5789 + $0x100] sm:$0xff] %v5785
      %5823 = vst [vmem:[%s5789 + $0x108] sm:$0xff] %v5786
      %5824 = vst [vmem:[%s5789 + $0x110] sm:$0xff] %v5787
      %5825 = vst [vmem:[%s5789 + $0x118] sm:$0xff] %v5788
      %p5826 = scmp.lt.s32.totalorder %s15, 1
      %s5827 = scalar_select %p5826, %s15, 1
      %s5828 = smul.addr %s5827, 144
      %s5829 = smul.addr %s5828, 8
      %s5830 = scalar_lea.vmem %s4, %s5829
      // Predicated region
      $region37: #{generator_forward.7} parent=35 // pred_check
        %p5831 = pneg %p122
      $region38: #{generator_forward.7} parent=35 // pred_check_branch
        %5833 = sbr.rel (%p5831) target = $region40
      $region39: #{generator_forward.7} parent=35 // pred_region
        _
      $region40: #{generator_forward.7} parent=35 // pred_fallthru
        _
    $region36: #{generator_forward.7} parent=5 // pred_fallthru
      _
    %p5834 = scmp.le.s32.totalorder 2, %s10
    // Predicated region
    $region41: #{generator_forward.7} parent=5 // pred_check
      %p5835 = pneg %p5834
    $region42: #{generator_forward.7} parent=5 // pred_check_branch
      %5837 = sbr.rel (%p5835) target = $region44
    $region43: #{generator_forward.7} parent=5 // pred_region
      %s5838 = ssub.s32 %s10, 2
      // Predicated region
      $region45: #{generator_forward.7} parent=43 // pred_check
        %p5839 = pneg %p128
      $region46: #{generator_forward.7} parent=43 // pred_check_branch
        %5841 = sbr.rel (%p5839) target = $region48
      $region47: #{generator_forward.7} parent=43 // pred_region
        %p5842 = scmp.lt.s32.totalorder %s16, 1
        %s5843 = scalar_select %p5842, %s16, 1
        %s5844 = smul.addr %s5843, 144
        %s5845 = smul.addr %s5844, 8
        %s5846 = scalar_lea.vmem %s4, %s5845
      $region48: #{generator_forward.7} parent=43 // pred_fallthru
        _
    $region44: #{generator_forward.7} parent=5 // pred_fallthru
      _
  $region6: #{generator_forward.7} parent=0 // loop_footer
    %s14 = sadd.s32 1, %s10
  $region7: #{generator_forward.7} parent=0 // loop_footer_branch
    %9 = sbr.rel target = $region3
  $region8: #{generator_forward.7} parent=0 // loop_exit
    _

</llo_original>
